<compile_context>
chip_gen: v7x
topology: tpu7x:2x2x1
jax: 0.10.0
libtpu: 0.0.40
codegen_flags: <defaults>
</compile_context>

<pallas_src>
import jax
import jax.numpy as jnp
import numpy as np
from jax import lax
from jax.experimental import pallas as pl
from jax.experimental.pallas import tpu as pltpu


def _make_kernel(H, W, C, P, K):
    """Pallas kernel body for fixed (static) shapes. One grid step = one image."""
    HW = H * W

    def kernel(t2_ref, bias_ref, w1_ref, w2_ref, xpad_ref, out_ref):
        # xpad_ref: (H+2, W+2, C)   out_ref: (H, W, C)
        # w1_ref:   (K*K, C, P)     w2_ref:  (K*K, P, C)
        # t2_ref / bias_ref: (1, P)

        # ---- res = conv2d(x, kernel, padding=1): 9 per-tap MXU matmuls ----
        acc = None                                           # (H*W, P) f32
        for i in range(K):
            for j in range(K):
                xs = xpad_ref[i:i + H, j:j + W, :].reshape(HW, C)
                part = jnp.dot(xs, w1_ref[i * K + j],
                               preferred_element_type=jnp.float32)
                acc = part if acc is None else acc + part

        # ---- y = (2*t) * relu(res + bias)   (module's factor 2 folded into t) ----
        y = t2_ref[...] * jnp.maximum(acc + bias_ref[...], 0.0)      # (H*W, P)

        # ---- out = x - 2 * conv_transpose2d(t * relu(.), kernel, padding=1) ----
        # Scatter form: the un-cropped transpose-conv output satisfies
        #   out_full[i:i+H, j:j+W, :] += y @ kernel[:, :, i, j]   for each tap,
        # and padding=1 keeps out_full[1:1+H, 1:1+W].  Folding that crop into the
        # destination gives a statically clipped window of out_ref per tap — no
        # padded VMEM scratch, no zero fill, no reload.
        out_ref[...] = xpad_ref[1:1 + H, 1:1 + W, :]          # the "x -" term
        for i in range(K):
            for j in range(K):
                contrib = jnp.dot(y, w2_ref[i * K + j],
                                  preferred_element_type=jnp.float32)
                contrib = contrib.reshape(H, W, C)
                oi, oj = i - 1, j - 1
                dh0, dh1 = max(0, oi), H + min(0, oi)
                dw0, dw1 = max(0, oj), W + min(0, oj)
                out_ref[dh0:dh1, dw0:dw1, :] -= contrib[dh0 - oi:dh1 - oi,
                                                        dw0 - oj:dw1 - oj, :]

    return kernel


def _compute_t(kernel, q):
    """compute_t() of the module, in plain JAX (weights-only; hoisted out of the kernel)."""
    P = kernel.shape[0]
    K = kernel.shape[-1]
    dn = ('NCHW', 'OIHW', 'NCHW')
    ktk = lax.conv_general_dilated(kernel, kernel, (1, 1),
                                   [(K - 1, K - 1), (K - 1, K - 1)],
                                   dimension_numbers=dn,
                                   precision=lax.Precision.HIGHEST)
    ktk = jnp.abs(ktk)
    # NOTE: exactly as written in the reference module, q and q_inv are both
    # reshaped to (-1, 1, 1, 1) and therefore scale the SAME axis of ktk (they
    # cancel).  Kept verbatim for fidelity; it is free here since it runs once
    # on the weights, outside the kernel.
    qe = jnp.exp(q).reshape(-1, 1, 1, 1)
    qi = jnp.exp(-q).reshape(-1, 1, 1, 1)
    tsum = (qi * ktk * qe).sum(axis=(1, 2, 3))
    return jnp.where(tsum == 0.0, 0.0, 1.0 / tsum).reshape(1, P)     # safe_inv


@jax.jit
def sdp_lipschitz_conv_forward(x_nchw, kernel, bias, q):
    """Forward pass of SDPBasedLipschitzConvLayer.  x_nchw: (N, Cin, H, W)."""
    N, C, H, W = x_nchw.shape
    P, _, K, _ = kernel.shape
    KK = K * K
    kernel = kernel.astype(jnp.float32)

    t2 = (2.0 * _compute_t(kernel, q)).astype(jnp.float32)           # (1, P)
    bias2 = bias.reshape(1, P).astype(jnp.float32)                   # (1, P)

    # Per-tap weight matrices.
    # w1[i*K+j, c, p] = kernel[p, c, i, j]   (forward conv, gather form)
    w1 = jnp.transpose(kernel, (2, 3, 1, 0)).reshape(KK, C, P)
    # w2[i*K+j, p, c] = kernel[p, c, i, j]   (transpose conv, scatter form; no flip)
    w2 = jnp.transpose(kernel, (2, 3, 0, 1)).reshape(KK, P, C)

    # NCHW -> NHWC (channels minor) + 1-pixel zero halo (single fused XLA pass).
    x = jnp.transpose(x_nchw, (0, 2, 3, 1)).astype(jnp.float32)
    xpad = jnp.pad(x, ((0, 0), (1, 1), (1, 1), (0, 0)))

    out_nhwc = pl.pallas_call(
        _make_kernel(H, W, C, P, K),
        out_shape=jax.ShapeDtypeStruct((N, H, W, C), jnp.float32),
        grid=(N,),
        in_specs=[
            pl.BlockSpec((1, P), lambda n: (0, 0)),                   # 2*t
            pl.BlockSpec((1, P), lambda n: (0, 0)),                   # bias
            pl.BlockSpec((KK, C, P), lambda n: (0, 0, 0)),            # conv taps
            pl.BlockSpec((KK, P, C), lambda n: (0, 0, 0)),            # convT taps
            pl.BlockSpec((None, H + 2, W + 2, C), lambda n: (n, 0, 0, 0)),
        ],
        out_specs=pl.BlockSpec((None, H, W, C), lambda n: (n, 0, 0, 0)),
        compiler_params=pltpu.CompilerParams(
            dimension_semantics=("parallel",)),
    )(t2, bias2, w1, w2, xpad)

    return jnp.transpose(out_nhwc, (0, 3, 1, 2))


def init_params(key, cin, inner_dim, kernel_size=3):
    """Deterministic init matching the module's __init__ shapes / init scheme."""
    k1, k2, k3 = jax.random.split(key, 3)
    fan_in = cin * kernel_size * kernel_size
    fan_out = inner_dim * kernel_size * kernel_size
    std = (2.0 / (fan_in + fan_out)) ** 0.5                    # xavier_normal_
    kernel = std * jax.random.normal(
        k1, (inner_dim, cin, kernel_size, kernel_size), jnp.float32)
    bound = 1.0 / (fan_in ** 0.5)
    bias = jax.random.uniform(
        k2, (1, inner_dim, 1, 1), jnp.float32, -bound, bound)
    q = jax.random.normal(k3, (inner_dim,), jnp.float32)
    return kernel, bias, q


def reference_forward(x, kernel, bias, q):
    """Pure-JAX reference mirroring the PyTorch module line-by-line (NCHW)."""
    K = kernel.shape[-1]
    dn = ('NCHW', 'OIHW', 'NCHW')
    ktk = lax.conv_general_dilated(kernel, kernel, (1, 1),
                                   [(K - 1, K - 1), (K - 1, K - 1)],
                                   dimension_numbers=dn,
                                   precision=lax.Precision.HIGHEST)
    ktk = jnp.abs(ktk)
    qe = jnp.exp(q).reshape(-1, 1, 1, 1)
    qi = jnp.exp(-q).reshape(-1, 1, 1, 1)
    tsum = (qi * ktk * qe).sum(axis=(1, 2, 3))
    t = jnp.where(tsum == 0, 0.0, 1.0 / tsum).reshape(1, -1, 1, 1)
    res = lax.conv_general_dilated(x, kernel, (1, 1), [(1, 1), (1, 1)],
                                   dimension_numbers=dn,
                                   precision=lax.Precision.HIGHEST)
    res = res + bias
    res = t * jnp.maximum(res, 0.0)
    kT = jnp.transpose(kernel[:, :, ::-1, ::-1], (1, 0, 2, 3))
    res = 2.0 * lax.conv_general_dilated(res, kT, (1, 1), [(1, 1), (1, 1)],
                                         dimension_numbers=dn,
                                         precision=lax.Precision.HIGHEST)
    return x - res


if __name__ == "__main__":
    key = jax.random.PRNGKey(0)
    kx, kp = jax.random.split(key)
    N, C, H, W = 2, 4, 16, 16
    inner_dim = 8

    x = jax.random.normal(kx, (N, C, H, W), jnp.float32)
    kernel, bias, q = init_params(kp, C, inner_dim, kernel_size=3)

    out = jax.block_until_ready(sdp_lipschitz_conv_forward(x, kernel, bias, q))

    ref = reference_forward(x, kernel, bias, q)
    assert out.shape == x.shape
    # Tolerance leaves margin for MXU f32 matmul rounding vs the HIGHEST-precision
    # XLA reference convolutions.
    np.testing.assert_allclose(np.asarray(out), np.asarray(ref),
                               rtol=5e-3, atol=5e-3)
    print("KERNEL_OK")
</pallas_src>

<mosaic_0001>
module attributes {stable_mosaic.version = 11 : i64} {
  func.func @kernel(%arg0: i32, %arg1: memref<1x8xf32, #tpu.memory_space<vmem>>, %arg2: memref<1x8xf32, #tpu.memory_space<vmem>>, %arg3: memref<9x4x8xf32, #tpu.memory_space<vmem>>, %arg4: memref<9x8x4xf32, #tpu.memory_space<vmem>>, %arg5: memref<1x18x18x4xf32, #tpu.memory_space<vmem>>, %arg6: memref<1x16x16x4xf32, #tpu.memory_space<vmem>>) attributes {dimension_semantics = [#tpu.dimension_semantics<parallel>], iteration_bounds = array<i64: 2>, scalar_prefetch = 0 : i64, scratch_operands = 0 : i64, tpu.core_type = #tpu.core_type<tc>, window_params = [{pipeline_mode = #tpu.pipeline_mode<synchronous>, transform_indices = @transform_0, window_bounds = array<i64: 1, 8>}, {pipeline_mode = #tpu.pipeline_mode<synchronous>, transform_indices = @transform_1, window_bounds = array<i64: 1, 8>}, {pipeline_mode = #tpu.pipeline_mode<synchronous>, transform_indices = @transform_2, window_bounds = array<i64: 9, 4, 8>}, {pipeline_mode = #tpu.pipeline_mode<synchronous>, transform_indices = @transform_3, window_bounds = array<i64: 9, 8, 4>}, {transform_indices = @transform_4, window_bounds = array<i64: 1, 18, 18, 4>}, {transform_indices = @transform_5, window_bounds = array<i64: 1, 16, 16, 4>}]} {
    %c0 = arith.constant 0 : index
    %c0_0 = arith.constant 0 : index
    %c0_1 = arith.constant 0 : index
    %c0_2 = arith.constant 0 : index
    %0 = vector.load %arg5[%c0, %c0_0, %c0_1, %c0_2] : memref<1x18x18x4xf32, #tpu.memory_space<vmem>>, vector<1x16x16x4xf32>
    %1 = vector.shape_cast %0 : vector<1x16x16x4xf32> to vector<16x16x4xf32>
    %2 = vector.shape_cast %1 : vector<16x16x4xf32> to vector<256x4xf32>
    %c0_3 = arith.constant 0 : index
    %c0_4 = arith.constant 0 : index
    %c0_5 = arith.constant 0 : index
    %3 = vector.load %arg3[%c0_3, %c0_4, %c0_5] : memref<9x4x8xf32, #tpu.memory_space<vmem>>, vector<1x4x8xf32>
    %4 = vector.shape_cast %3 : vector<1x4x8xf32> to vector<4x8xf32>
    %cst = arith.constant dense<0.000000e+00> : vector<256x8xf32>
    %5 = tpu.matmul %2, %4, %cst {dimension_numbers = #tpu.dot_dimension_numbers<[1], [0], [0], [1], [0, 0, 1, 1], [], []>} : vector<256x4xf32>, vector<4x8xf32>, vector<256x8xf32> -> vector<256x8xf32>
    %c0_6 = arith.constant 0 : index
    %c0_7 = arith.constant 0 : index
    %c1 = arith.constant 1 : index
    %c0_8 = arith.constant 0 : index
    %6 = vector.load %arg5[%c0_6, %c0_7, %c1, %c0_8] : memref<1x18x18x4xf32, #tpu.memory_space<vmem>>, vector<1x16x16x4xf32>
    %7 = vector.shape_cast %6 : vector<1x16x16x4xf32> to vector<16x16x4xf32>
    %8 = vector.shape_cast %7 : vector<16x16x4xf32> to vector<256x4xf32>
    %c1_9 = arith.constant 1 : index
    %c0_10 = arith.constant 0 : index
    %c0_11 = arith.constant 0 : index
    %9 = vector.load %arg3[%c1_9, %c0_10, %c0_11] : memref<9x4x8xf32, #tpu.memory_space<vmem>>, vector<1x4x8xf32>
    %10 = vector.shape_cast %9 : vector<1x4x8xf32> to vector<4x8xf32>
    %cst_12 = arith.constant dense<0.000000e+00> : vector<256x8xf32>
    %11 = tpu.matmul %8, %10, %cst_12 {dimension_numbers = #tpu.dot_dimension_numbers<[1], [0], [0], [1], [0, 0, 1, 1], [], []>} : vector<256x4xf32>, vector<4x8xf32>, vector<256x8xf32> -> vector<256x8xf32>
    %12 = arith.addf %5, %11 : vector<256x8xf32>
    %c0_13 = arith.constant 0 : index
    %c0_14 = arith.constant 0 : index
    %c2 = arith.constant 2 : index
    %c0_15 = arith.constant 0 : index
    %13 = vector.load %arg5[%c0_13, %c0_14, %c2, %c0_15] : memref<1x18x18x4xf32, #tpu.memory_space<vmem>>, vector<1x16x16x4xf32>
    %14 = vector.shape_cast %13 : vector<1x16x16x4xf32> to vector<16x16x4xf32>
    %15 = vector.shape_cast %14 : vector<16x16x4xf32> to vector<256x4xf32>
    %c2_16 = arith.constant 2 : index
    %c0_17 = arith.constant 0 : index
    %c0_18 = arith.constant 0 : index
    %16 = vector.load %arg3[%c2_16, %c0_17, %c0_18] : memref<9x4x8xf32, #tpu.memory_space<vmem>>, vector<1x4x8xf32>
    %17 = vector.shape_cast %16 : vector<1x4x8xf32> to vector<4x8xf32>
    %cst_19 = arith.constant dense<0.000000e+00> : vector<256x8xf32>
    %18 = tpu.matmul %15, %17, %cst_19 {dimension_numbers = #tpu.dot_dimension_numbers<[1], [0], [0], [1], [0, 0, 1, 1], [], []>} : vector<256x4xf32>, vector<4x8xf32>, vector<256x8xf32> -> vector<256x8xf32>
    %19 = arith.addf %12, %18 : vector<256x8xf32>
    %c0_20 = arith.constant 0 : index
    %c1_21 = arith.constant 1 : index
    %c0_22 = arith.constant 0 : index
    %c0_23 = arith.constant 0 : index
    %20 = vector.load %arg5[%c0_20, %c1_21, %c0_22, %c0_23] : memref<1x18x18x4xf32, #tpu.memory_space<vmem>>, vector<1x16x16x4xf32>
    %21 = vector.shape_cast %20 : vector<1x16x16x4xf32> to vector<16x16x4xf32>
    %22 = vector.shape_cast %21 : vector<16x16x4xf32> to vector<256x4xf32>
    %c3 = arith.constant 3 : index
    %c0_24 = arith.constant 0 : index
    %c0_25 = arith.constant 0 : index
    %23 = vector.load %arg3[%c3, %c0_24, %c0_25] : memref<9x4x8xf32, #tpu.memory_space<vmem>>, vector<1x4x8xf32>
    %24 = vector.shape_cast %23 : vector<1x4x8xf32> to vector<4x8xf32>
    %cst_26 = arith.constant dense<0.000000e+00> : vector<256x8xf32>
    %25 = tpu.matmul %22, %24, %cst_26 {dimension_numbers = #tpu.dot_dimension_numbers<[1], [0], [0], [1], [0, 0, 1, 1], [], []>} : vector<256x4xf32>, vector<4x8xf32>, vector<256x8xf32> -> vector<256x8xf32>
    %26 = arith.addf %19, %25 : vector<256x8xf32>
    %c0_27 = arith.constant 0 : index
    %c1_28 = arith.constant 1 : index
    %c1_29 = arith.constant 1 : index
    %c0_30 = arith.constant 0 : index
    %27 = vector.load %arg5[%c0_27, %c1_28, %c1_29, %c0_30] : memref<1x18x18x4xf32, #tpu.memory_space<vmem>>, vector<1x16x16x4xf32>
    %28 = vector.shape_cast %27 : vector<1x16x16x4xf32> to vector<16x16x4xf32>
    %29 = vector.shape_cast %28 : vector<16x16x4xf32> to vector<256x4xf32>
    %c4 = arith.constant 4 : index
    %c0_31 = arith.constant 0 : index
    %c0_32 = arith.constant 0 : index
    %30 = vector.load %arg3[%c4, %c0_31, %c0_32] : memref<9x4x8xf32, #tpu.memory_space<vmem>>, vector<1x4x8xf32>
    %31 = vector.shape_cast %30 : vector<1x4x8xf32> to vector<4x8xf32>
    %cst_33 = arith.constant dense<0.000000e+00> : vector<256x8xf32>
    %32 = tpu.matmul %29, %31, %cst_33 {dimension_numbers = #tpu.dot_dimension_numbers<[1], [0], [0], [1], [0, 0, 1, 1], [], []>} : vector<256x4xf32>, vector<4x8xf32>, vector<256x8xf32> -> vector<256x8xf32>
    %33 = arith.addf %26, %32 : vector<256x8xf32>
    %c0_34 = arith.constant 0 : index
    %c1_35 = arith.constant 1 : index
    %c2_36 = arith.constant 2 : index
    %c0_37 = arith.constant 0 : index
    %34 = vector.load %arg5[%c0_34, %c1_35, %c2_36, %c0_37] : memref<1x18x18x4xf32, #tpu.memory_space<vmem>>, vector<1x16x16x4xf32>
    %35 = vector.shape_cast %34 : vector<1x16x16x4xf32> to vector<16x16x4xf32>
    %36 = vector.shape_cast %35 : vector<16x16x4xf32> to vector<256x4xf32>
    %c5 = arith.constant 5 : index
    %c0_38 = arith.constant 0 : index
    %c0_39 = arith.constant 0 : index
    %37 = vector.load %arg3[%c5, %c0_38, %c0_39] : memref<9x4x8xf32, #tpu.memory_space<vmem>>, vector<1x4x8xf32>
    %38 = vector.shape_cast %37 : vector<1x4x8xf32> to vector<4x8xf32>
    %cst_40 = arith.constant dense<0.000000e+00> : vector<256x8xf32>
    %39 = tpu.matmul %36, %38, %cst_40 {dimension_numbers = #tpu.dot_dimension_numbers<[1], [0], [0], [1], [0, 0, 1, 1], [], []>} : vector<256x4xf32>, vector<4x8xf32>, vector<256x8xf32> -> vector<256x8xf32>
    %40 = arith.addf %33, %39 : vector<256x8xf32>
    %c0_41 = arith.constant 0 : index
    %c2_42 = arith.constant 2 : index
    %c0_43 = arith.constant 0 : index
    %c0_44 = arith.constant 0 : index
    %41 = vector.load %arg5[%c0_41, %c2_42, %c0_43, %c0_44] : memref<1x18x18x4xf32, #tpu.memory_space<vmem>>, vector<1x16x16x4xf32>
    %42 = vector.shape_cast %41 : vector<1x16x16x4xf32> to vector<16x16x4xf32>
    %43 = vector.shape_cast %42 : vector<16x16x4xf32> to vector<256x4xf32>
    %c6 = arith.constant 6 : index
    %c0_45 = arith.constant 0 : index
    %c0_46 = arith.constant 0 : index
    %44 = vector.load %arg3[%c6, %c0_45, %c0_46] : memref<9x4x8xf32, #tpu.memory_space<vmem>>, vector<1x4x8xf32>
    %45 = vector.shape_cast %44 : vector<1x4x8xf32> to vector<4x8xf32>
    %cst_47 = arith.constant dense<0.000000e+00> : vector<256x8xf32>
    %46 = tpu.matmul %43, %45, %cst_47 {dimension_numbers = #tpu.dot_dimension_numbers<[1], [0], [0], [1], [0, 0, 1, 1], [], []>} : vector<256x4xf32>, vector<4x8xf32>, vector<256x8xf32> -> vector<256x8xf32>
    %47 = arith.addf %40, %46 : vector<256x8xf32>
    %c0_48 = arith.constant 0 : index
    %c2_49 = arith.constant 2 : index
    %c1_50 = arith.constant 1 : index
    %c0_51 = arith.constant 0 : index
    %48 = vector.load %arg5[%c0_48, %c2_49, %c1_50, %c0_51] : memref<1x18x18x4xf32, #tpu.memory_space<vmem>>, vector<1x16x16x4xf32>
    %49 = vector.shape_cast %48 : vector<1x16x16x4xf32> to vector<16x16x4xf32>
    %50 = vector.shape_cast %49 : vector<16x16x4xf32> to vector<256x4xf32>
    %c7 = arith.constant 7 : index
    %c0_52 = arith.constant 0 : index
    %c0_53 = arith.constant 0 : index
    %51 = vector.load %arg3[%c7, %c0_52, %c0_53] : memref<9x4x8xf32, #tpu.memory_space<vmem>>, vector<1x4x8xf32>
    %52 = vector.shape_cast %51 : vector<1x4x8xf32> to vector<4x8xf32>
    %cst_54 = arith.constant dense<0.000000e+00> : vector<256x8xf32>
    %53 = tpu.matmul %50, %52, %cst_54 {dimension_numbers = #tpu.dot_dimension_numbers<[1], [0], [0], [1], [0, 0, 1, 1], [], []>} : vector<256x4xf32>, vector<4x8xf32>, vector<256x8xf32> -> vector<256x8xf32>
    %54 = arith.addf %47, %53 : vector<256x8xf32>
    %c0_55 = arith.constant 0 : index
    %c2_56 = arith.constant 2 : index
    %c2_57 = arith.constant 2 : index
    %c0_58 = arith.constant 0 : index
    %55 = vector.load %arg5[%c0_55, %c2_56, %c2_57, %c0_58] : memref<1x18x18x4xf32, #tpu.memory_space<vmem>>, vector<1x16x16x4xf32>
    %56 = vector.shape_cast %55 : vector<1x16x16x4xf32> to vector<16x16x4xf32>
    %57 = vector.shape_cast %56 : vector<16x16x4xf32> to vector<256x4xf32>
    %c8 = arith.constant 8 : index
    %c0_59 = arith.constant 0 : index
    %c0_60 = arith.constant 0 : index
    %58 = vector.load %arg3[%c8, %c0_59, %c0_60] : memref<9x4x8xf32, #tpu.memory_space<vmem>>, vector<1x4x8xf32>
    %59 = vector.shape_cast %58 : vector<1x4x8xf32> to vector<4x8xf32>
    %cst_61 = arith.constant dense<0.000000e+00> : vector<256x8xf32>
    %60 = tpu.matmul %57, %59, %cst_61 {dimension_numbers = #tpu.dot_dimension_numbers<[1], [0], [0], [1], [0, 0, 1, 1], [], []>} : vector<256x4xf32>, vector<4x8xf32>, vector<256x8xf32> -> vector<256x8xf32>
    %61 = arith.addf %54, %60 : vector<256x8xf32>
    %c0_62 = arith.constant 0 : index
    %c0_63 = arith.constant 0 : index
    %62 = vector.load %arg1[%c0_62, %c0_63] : memref<1x8xf32, #tpu.memory_space<vmem>>, vector<1x8xf32>
    %c0_64 = arith.constant 0 : index
    %c0_65 = arith.constant 0 : index
    %63 = vector.load %arg2[%c0_64, %c0_65] : memref<1x8xf32, #tpu.memory_space<vmem>>, vector<1x8xf32>
    %64 = vector.broadcast %63 : vector<1x8xf32> to vector<256x8xf32>
    %65 = arith.addf %61, %64 : vector<256x8xf32>
    %cst_66 = arith.constant 0.000000e+00 : f32
    %66 = vector.broadcast %cst_66 : f32 to vector<256x8xf32>
    %67 = arith.maximumf %65, %66 : vector<256x8xf32>
    %68 = vector.broadcast %62 : vector<1x8xf32> to vector<256x8xf32>
    %69 = arith.mulf %68, %67 : vector<256x8xf32>
    %c0_67 = arith.constant 0 : index
    %c1_68 = arith.constant 1 : index
    %c1_69 = arith.constant 1 : index
    %c0_70 = arith.constant 0 : index
    %70 = vector.load %arg5[%c0_67, %c1_68, %c1_69, %c0_70] : memref<1x18x18x4xf32, #tpu.memory_space<vmem>>, vector<1x16x16x4xf32>
    %71 = vector.shape_cast %70 : vector<1x16x16x4xf32> to vector<16x16x4xf32>
    %c0_71 = arith.constant 0 : index
    %c0_72 = arith.constant 0 : index
    %c0_73 = arith.constant 0 : index
    %c0_74 = arith.constant 0 : index
    %72 = vector.load %arg6[%c0_71, %c0_72, %c0_73, %c0_74] : memref<1x16x16x4xf32, #tpu.memory_space<vmem>>, vector<1x16x16x4xf32>
    %73 = vector.shape_cast %72 : vector<1x16x16x4xf32> to vector<16x16x4xf32>
    %74 = vector.shape_cast %71 : vector<16x16x4xf32> to vector<1x16x16x4xf32>
    tpu.vector_store %arg6[%c0_71, %c0_72, %c0_73, %c0_74], %74 {strides = array<i32>} : memref<1x16x16x4xf32, #tpu.memory_space<vmem>>, vector<1x16x16x4xf32>,
    %c0_75 = arith.constant 0 : index
    %c0_76 = arith.constant 0 : index
    %c0_77 = arith.constant 0 : index
    %75 = vector.load %arg4[%c0_75, %c0_76, %c0_77] : memref<9x8x4xf32, #tpu.memory_space<vmem>>, vector<1x8x4xf32>
    %76 = vector.shape_cast %75 : vector<1x8x4xf32> to vector<8x4xf32>
    %cst_78 = arith.constant dense<0.000000e+00> : vector<256x4xf32>
    %77 = tpu.matmul %69, %76, %cst_78 {dimension_numbers = #tpu.dot_dimension_numbers<[1], [0], [0], [1], [0, 0, 1, 1], [], []>} : vector<256x8xf32>, vector<8x4xf32>, vector<256x4xf32> -> vector<256x4xf32>
    %78 = vector.shape_cast %77 : vector<256x4xf32> to vector<16x16x4xf32>
    %c0_79 = arith.constant 0 : index
    %c0_80 = arith.constant 0 : index
    %c0_81 = arith.constant 0 : index
    %c0_82 = arith.constant 0 : index
    %79 = vector.load %arg6[%c0_79, %c0_80, %c0_81, %c0_82] : memref<1x16x16x4xf32, #tpu.memory_space<vmem>>, vector<1x15x15x4xf32>
    %80 = vector.shape_cast %79 : vector<1x15x15x4xf32> to vector<15x15x4xf32>
    %81 = vector.extract_strided_slice %78 {offsets = [1, 1, 0], sizes = [15, 15, 4], strides = [1, 1, 1]} : vector<16x16x4xf32> to vector<15x15x4xf32>
    %82 = arith.subf %80, %81 : vector<15x15x4xf32>
    %c0_83 = arith.constant 0 : index
    %c0_84 = arith.constant 0 : index
    %c0_85 = arith.constant 0 : index
    %c0_86 = arith.constant 0 : index
    %83 = vector.load %arg6[%c0_83, %c0_84, %c0_85, %c0_86] : memref<1x16x16x4xf32, #tpu.memory_space<vmem>>, vector<1x15x15x4xf32>
    %84 = vector.shape_cast %83 : vector<1x15x15x4xf32> to vector<15x15x4xf32>
    %85 = vector.shape_cast %82 : vector<15x15x4xf32> to vector<1x15x15x4xf32>
    tpu.vector_store %arg6[%c0_83, %c0_84, %c0_85, %c0_86], %85 {strides = array<i32>} : memref<1x16x16x4xf32, #tpu.memory_space<vmem>>, vector<1x15x15x4xf32>,
    %c1_87 = arith.constant 1 : index
    %c0_88 = arith.constant 0 : index
    %c0_89 = arith.constant 0 : index
    %86 = vector.load %arg4[%c1_87, %c0_88, %c0_89] : memref<9x8x4xf32, #tpu.memory_space<vmem>>, vector<1x8x4xf32>
    %87 = vector.shape_cast %86 : vector<1x8x4xf32> to vector<8x4xf32>
    %cst_90 = arith.constant dense<0.000000e+00> : vector<256x4xf32>
    %88 = tpu.matmul %69, %87, %cst_90 {dimension_numbers = #tpu.dot_dimension_numbers<[1], [0], [0], [1], [0, 0, 1, 1], [], []>} : vector<256x8xf32>, vector<8x4xf32>, vector<256x4xf32> -> vector<256x4xf32>
    %89 = vector.shape_cast %88 : vector<256x4xf32> to vector<16x16x4xf32>
    %c0_91 = arith.constant 0 : index
    %c0_92 = arith.constant 0 : index
    %c0_93 = arith.constant 0 : index
    %c0_94 = arith.constant 0 : index
    %90 = vector.load %arg6[%c0_91, %c0_92, %c0_93, %c0_94] : memref<1x16x16x4xf32, #tpu.memory_space<vmem>>, vector<1x15x16x4xf32>
    %91 = vector.shape_cast %90 : vector<1x15x16x4xf32> to vector<15x16x4xf32>
    %92 = vector.extract_strided_slice %89 {offsets = [1, 0, 0], sizes = [15, 16, 4], strides = [1, 1, 1]} : vector<16x16x4xf32> to vector<15x16x4xf32>
    %93 = arith.subf %91, %92 : vector<15x16x4xf32>
    %c0_95 = arith.constant 0 : index
    %c0_96 = arith.constant 0 : index
    %c0_97 = arith.constant 0 : index
    %c0_98 = arith.constant 0 : index
    %94 = vector.load %arg6[%c0_95, %c0_96, %c0_97, %c0_98] : memref<1x16x16x4xf32, #tpu.memory_space<vmem>>, vector<1x15x16x4xf32>
    %95 = vector.shape_cast %94 : vector<1x15x16x4xf32> to vector<15x16x4xf32>
    %96 = vector.shape_cast %93 : vector<15x16x4xf32> to vector<1x15x16x4xf32>
    tpu.vector_store %arg6[%c0_95, %c0_96, %c0_97, %c0_98], %96 {strides = array<i32>} : memref<1x16x16x4xf32, #tpu.memory_space<vmem>>, vector<1x15x16x4xf32>,
    %c2_99 = arith.constant 2 : index
    %c0_100 = arith.constant 0 : index
    %c0_101 = arith.constant 0 : index
    %97 = vector.load %arg4[%c2_99, %c0_100, %c0_101] : memref<9x8x4xf32, #tpu.memory_space<vmem>>, vector<1x8x4xf32>
    %98 = vector.shape_cast %97 : vector<1x8x4xf32> to vector<8x4xf32>
    %cst_102 = arith.constant dense<0.000000e+00> : vector<256x4xf32>
    %99 = tpu.matmul %69, %98, %cst_102 {dimension_numbers = #tpu.dot_dimension_numbers<[1], [0], [0], [1], [0, 0, 1, 1], [], []>} : vector<256x8xf32>, vector<8x4xf32>, vector<256x4xf32> -> vector<256x4xf32>
    %100 = vector.shape_cast %99 : vector<256x4xf32> to vector<16x16x4xf32>
    %c0_103 = arith.constant 0 : index
    %c0_104 = arith.constant 0 : index
    %c1_105 = arith.constant 1 : index
    %c0_106 = arith.constant 0 : index
    %101 = vector.load %arg6[%c0_103, %c0_104, %c1_105, %c0_106] : memref<1x16x16x4xf32, #tpu.memory_space<vmem>>, vector<1x15x15x4xf32>
    %102 = vector.shape_cast %101 : vector<1x15x15x4xf32> to vector<15x15x4xf32>
    %103 = vector.extract_strided_slice %100 {offsets = [1, 0, 0], sizes = [15, 15, 4], strides = [1, 1, 1]} : vector<16x16x4xf32> to vector<15x15x4xf32>
    %104 = arith.subf %102, %103 : vector<15x15x4xf32>
    %c0_107 = arith.constant 0 : index
    %c0_108 = arith.constant 0 : index
    %c1_109 = arith.constant 1 : index
    %c0_110 = arith.constant 0 : index
    %105 = vector.load %arg6[%c0_107, %c0_108, %c1_109, %c0_110] : memref<1x16x16x4xf32, #tpu.memory_space<vmem>>, vector<1x15x15x4xf32>
    %106 = vector.shape_cast %105 : vector<1x15x15x4xf32> to vector<15x15x4xf32>
    %107 = vector.shape_cast %104 : vector<15x15x4xf32> to vector<1x15x15x4xf32>
    tpu.vector_store %arg6[%c0_107, %c0_108, %c1_109, %c0_110], %107 {strides = array<i32>} : memref<1x16x16x4xf32, #tpu.memory_space<vmem>>, vector<1x15x15x4xf32>,
    %c3_111 = arith.constant 3 : index
    %c0_112 = arith.constant 0 : index
    %c0_113 = arith.constant 0 : index
    %108 = vector.load %arg4[%c3_111, %c0_112, %c0_113] : memref<9x8x4xf32, #tpu.memory_space<vmem>>, vector<1x8x4xf32>
    %109 = vector.shape_cast %108 : vector<1x8x4xf32> to vector<8x4xf32>
    %cst_114 = arith.constant dense<0.000000e+00> : vector<256x4xf32>
    %110 = tpu.matmul %69, %109, %cst_114 {dimension_numbers = #tpu.dot_dimension_numbers<[1], [0], [0], [1], [0, 0, 1, 1], [], []>} : vector<256x8xf32>, vector<8x4xf32>, vector<256x4xf32> -> vector<256x4xf32>
    %111 = vector.shape_cast %110 : vector<256x4xf32> to vector<16x16x4xf32>
    %c0_115 = arith.constant 0 : index
    %c0_116 = arith.constant 0 : index
    %c0_117 = arith.constant 0 : index
    %c0_118 = arith.constant 0 : index
    %112 = vector.load %arg6[%c0_115, %c0_116, %c0_117, %c0_118] : memref<1x16x16x4xf32, #tpu.memory_space<vmem>>, vector<1x16x15x4xf32>
    %113 = vector.shape_cast %112 : vector<1x16x15x4xf32> to vector<16x15x4xf32>
    %114 = vector.extract_strided_slice %111 {offsets = [0, 1, 0], sizes = [16, 15, 4], strides = [1, 1, 1]} : vector<16x16x4xf32> to vector<16x15x4xf32>
    %115 = arith.subf %113, %114 : vector<16x15x4xf32>
    %c0_119 = arith.constant 0 : index
    %c0_120 = arith.constant 0 : index
    %c0_121 = arith.constant 0 : index
    %c0_122 = arith.constant 0 : index
    %116 = vector.load %arg6[%c0_119, %c0_120, %c0_121, %c0_122] : memref<1x16x16x4xf32, #tpu.memory_space<vmem>>, vector<1x16x15x4xf32>
    %117 = vector.shape_cast %116 : vector<1x16x15x4xf32> to vector<16x15x4xf32>
    %118 = vector.shape_cast %115 : vector<16x15x4xf32> to vector<1x16x15x4xf32>
    tpu.vector_store %arg6[%c0_119, %c0_120, %c0_121, %c0_122], %118 {strides = array<i32>} : memref<1x16x16x4xf32, #tpu.memory_space<vmem>>, vector<1x16x15x4xf32>,
    %c4_123 = arith.constant 4 : index
    %c0_124 = arith.constant 0 : index
    %c0_125 = arith.constant 0 : index
    %119 = vector.load %arg4[%c4_123, %c0_124, %c0_125] : memref<9x8x4xf32, #tpu.memory_space<vmem>>, vector<1x8x4xf32>
    %120 = vector.shape_cast %119 : vector<1x8x4xf32> to vector<8x4xf32>
    %cst_126 = arith.constant dense<0.000000e+00> : vector<256x4xf32>
    %121 = tpu.matmul %69, %120, %cst_126 {dimension_numbers = #tpu.dot_dimension_numbers<[1], [0], [0], [1], [0, 0, 1, 1], [], []>} : vector<256x8xf32>, vector<8x4xf32>, vector<256x4xf32> -> vector<256x4xf32>
    %122 = vector.shape_cast %121 : vector<256x4xf32> to vector<16x16x4xf32>
    %c0_127 = arith.constant 0 : index
    %c0_128 = arith.constant 0 : index
    %c0_129 = arith.constant 0 : index
    %c0_130 = arith.constant 0 : index
    %123 = vector.load %arg6[%c0_127, %c0_128, %c0_129, %c0_130] : memref<1x16x16x4xf32, #tpu.memory_space<vmem>>, vector<1x16x16x4xf32>
    %124 = vector.shape_cast %123 : vector<1x16x16x4xf32> to vector<16x16x4xf32>
    %125 = arith.subf %124, %122 : vector<16x16x4xf32>
    %c0_131 = arith.constant 0 : index
    %c0_132 = arith.constant 0 : index
    %c0_133 = arith.constant 0 : index
    %c0_134 = arith.constant 0 : index
    %126 = vector.load %arg6[%c0_131, %c0_132, %c0_133, %c0_134] : memref<1x16x16x4xf32, #tpu.memory_space<vmem>>, vector<1x16x16x4xf32>
    %127 = vector.shape_cast %126 : vector<1x16x16x4xf32> to vector<16x16x4xf32>
    %128 = vector.shape_cast %125 : vector<16x16x4xf32> to vector<1x16x16x4xf32>
    tpu.vector_store %arg6[%c0_131, %c0_132, %c0_133, %c0_134], %128 {strides = array<i32>} : memref<1x16x16x4xf32, #tpu.memory_space<vmem>>, vector<1x16x16x4xf32>,
    %c5_135 = arith.constant 5 : index
    %c0_136 = arith.constant 0 : index
    %c0_137 = arith.constant 0 : index
    %129 = vector.load %arg4[%c5_135, %c0_136, %c0_137] : memref<9x8x4xf32, #tpu.memory_space<vmem>>, vector<1x8x4xf32>
    %130 = vector.shape_cast %129 : vector<1x8x4xf32> to vector<8x4xf32>
    %cst_138 = arith.constant dense<0.000000e+00> : vector<256x4xf32>
    %131 = tpu.matmul %69, %130, %cst_138 {dimension_numbers = #tpu.dot_dimension_numbers<[1], [0], [0], [1], [0, 0, 1, 1], [], []>} : vector<256x8xf32>, vector<8x4xf32>, vector<256x4xf32> -> vector<256x4xf32>
    %132 = vector.shape_cast %131 : vector<256x4xf32> to vector<16x16x4xf32>
    %c0_139 = arith.constant 0 : index
    %c0_140 = arith.constant 0 : index
    %c1_141 = arith.constant 1 : index
    %c0_142 = arith.constant 0 : index
    %133 = vector.load %arg6[%c0_139, %c0_140, %c1_141, %c0_142] : memref<1x16x16x4xf32, #tpu.memory_space<vmem>>, vector<1x16x15x4xf32>
    %134 = vector.shape_cast %133 : vector<1x16x15x4xf32> to vector<16x15x4xf32>
    %135 = vector.extract_strided_slice %132 {offsets = [0, 0, 0], sizes = [16, 15, 4], strides = [1, 1, 1]} : vector<16x16x4xf32> to vector<16x15x4xf32>
    %136 = arith.subf %134, %135 : vector<16x15x4xf32>
    %c0_143 = arith.constant 0 : index
    %c0_144 = arith.constant 0 : index
    %c1_145 = arith.constant 1 : index
    %c0_146 = arith.constant 0 : index
    %137 = vector.load %arg6[%c0_143, %c0_144, %c1_145, %c0_146] : memref<1x16x16x4xf32, #tpu.memory_space<vmem>>, vector<1x16x15x4xf32>
    %138 = vector.shape_cast %137 : vector<1x16x15x4xf32> to vector<16x15x4xf32>
    %139 = vector.shape_cast %136 : vector<16x15x4xf32> to vector<1x16x15x4xf32>
    tpu.vector_store %arg6[%c0_143, %c0_144, %c1_145, %c0_146], %139 {strides = array<i32>} : memref<1x16x16x4xf32, #tpu.memory_space<vmem>>, vector<1x16x15x4xf32>,
    %c6_147 = arith.constant 6 : index
    %c0_148 = arith.constant 0 : index
    %c0_149 = arith.constant 0 : index
    %140 = vector.load %arg4[%c6_147, %c0_148, %c0_149] : memref<9x8x4xf32, #tpu.memory_space<vmem>>, vector<1x8x4xf32>
    %141 = vector.shape_cast %140 : vector<1x8x4xf32> to vector<8x4xf32>
    %cst_150 = arith.constant dense<0.000000e+00> : vector<256x4xf32>
    %142 = tpu.matmul %69, %141, %cst_150 {dimension_numbers = #tpu.dot_dimension_numbers<[1], [0], [0], [1], [0, 0, 1, 1], [], []>} : vector<256x8xf32>, vector<8x4xf32>, vector<256x4xf32> -> vector<256x4xf32>
    %143 = vector.shape_cast %142 : vector<256x4xf32> to vector<16x16x4xf32>
    %c0_151 = arith.constant 0 : index
    %c1_152 = arith.constant 1 : index
    %c0_153 = arith.constant 0 : index
    %c0_154 = arith.constant 0 : index
    %144 = vector.load %arg6[%c0_151, %c1_152, %c0_153, %c0_154] : memref<1x16x16x4xf32, #tpu.memory_space<vmem>>, vector<1x15x15x4xf32>
    %145 = vector.shape_cast %144 : vector<1x15x15x4xf32> to vector<15x15x4xf32>
    %146 = vector.extract_strided_slice %143 {offsets = [0, 1, 0], sizes = [15, 15, 4], strides = [1, 1, 1]} : vector<16x16x4xf32> to vector<15x15x4xf32>
    %147 = arith.subf %145, %146 : vector<15x15x4xf32>
    %c0_155 = arith.constant 0 : index
    %c1_156 = arith.constant 1 : index
    %c0_157 = arith.constant 0 : index
    %c0_158 = arith.constant 0 : index
    %148 = vector.load %arg6[%c0_155, %c1_156, %c0_157, %c0_158] : memref<1x16x16x4xf32, #tpu.memory_space<vmem>>, vector<1x15x15x4xf32>
    %149 = vector.shape_cast %148 : vector<1x15x15x4xf32> to vector<15x15x4xf32>
    %150 = vector.shape_cast %147 : vector<15x15x4xf32> to vector<1x15x15x4xf32>
    tpu.vector_store %arg6[%c0_155, %c1_156, %c0_157, %c0_158], %150 {strides = array<i32>} : memref<1x16x16x4xf32, #tpu.memory_space<vmem>>, vector<1x15x15x4xf32>,
    %c7_159 = arith.constant 7 : index
    %c0_160 = arith.constant 0 : index
    %c0_161 = arith.constant 0 : index
    %151 = vector.load %arg4[%c7_159, %c0_160, %c0_161] : memref<9x8x4xf32, #tpu.memory_space<vmem>>, vector<1x8x4xf32>
    %152 = vector.shape_cast %151 : vector<1x8x4xf32> to vector<8x4xf32>
    %cst_162 = arith.constant dense<0.000000e+00> : vector<256x4xf32>
    %153 = tpu.matmul %69, %152, %cst_162 {dimension_numbers = #tpu.dot_dimension_numbers<[1], [0], [0], [1], [0, 0, 1, 1], [], []>} : vector<256x8xf32>, vector<8x4xf32>, vector<256x4xf32> -> vector<256x4xf32>
    %154 = vector.shape_cast %153 : vector<256x4xf32> to vector<16x16x4xf32>
    %c0_163 = arith.constant 0 : index
    %c1_164 = arith.constant 1 : index
    %c0_165 = arith.constant 0 : index
    %c0_166 = arith.constant 0 : index
    %155 = vector.load %arg6[%c0_163, %c1_164, %c0_165, %c0_166] : memref<1x16x16x4xf32, #tpu.memory_space<vmem>>, vector<1x15x16x4xf32>
    %156 = vector.shape_cast %155 : vector<1x15x16x4xf32> to vector<15x16x4xf32>
    %157 = vector.extract_strided_slice %154 {offsets = [0, 0, 0], sizes = [15, 16, 4], strides = [1, 1, 1]} : vector<16x16x4xf32> to vector<15x16x4xf32>
    %158 = arith.subf %156, %157 : vector<15x16x4xf32>
    %c0_167 = arith.constant 0 : index
    %c1_168 = arith.constant 1 : index
    %c0_169 = arith.constant 0 : index
    %c0_170 = arith.constant 0 : index
    %159 = vector.load %arg6[%c0_167, %c1_168, %c0_169, %c0_170] : memref<1x16x16x4xf32, #tpu.memory_space<vmem>>, vector<1x15x16x4xf32>
    %160 = vector.shape_cast %159 : vector<1x15x16x4xf32> to vector<15x16x4xf32>
    %161 = vector.shape_cast %158 : vector<15x16x4xf32> to vector<1x15x16x4xf32>
    tpu.vector_store %arg6[%c0_167, %c1_168, %c0_169, %c0_170], %161 {strides = array<i32>} : memref<1x16x16x4xf32, #tpu.memory_space<vmem>>, vector<1x15x16x4xf32>,
    %c8_171 = arith.constant 8 : index
    %c0_172 = arith.constant 0 : index
    %c0_173 = arith.constant 0 : index
    %162 = vector.load %arg4[%c8_171, %c0_172, %c0_173] : memref<9x8x4xf32, #tpu.memory_space<vmem>>, vector<1x8x4xf32>
    %163 = vector.shape_cast %162 : vector<1x8x4xf32> to vector<8x4xf32>
    %cst_174 = arith.constant dense<0.000000e+00> : vector<256x4xf32>
    %164 = tpu.matmul %69, %163, %cst_174 {dimension_numbers = #tpu.dot_dimension_numbers<[1], [0], [0], [1], [0, 0, 1, 1], [], []>} : vector<256x8xf32>, vector<8x4xf32>, vector<256x4xf32> -> vector<256x4xf32>
    %165 = vector.shape_cast %164 : vector<256x4xf32> to vector<16x16x4xf32>
    %c0_175 = arith.constant 0 : index
    %c1_176 = arith.constant 1 : index
    %c1_177 = arith.constant 1 : index
    %c0_178 = arith.constant 0 : index
    %166 = vector.load %arg6[%c0_175, %c1_176, %c1_177, %c0_178] : memref<1x16x16x4xf32, #tpu.memory_space<vmem>>, vector<1x15x15x4xf32>
    %167 = vector.shape_cast %166 : vector<1x15x15x4xf32> to vector<15x15x4xf32>
    %168 = vector.extract_strided_slice %165 {offsets = [0, 0, 0], sizes = [15, 15, 4], strides = [1, 1, 1]} : vector<16x16x4xf32> to vector<15x15x4xf32>
    %169 = arith.subf %167, %168 : vector<15x15x4xf32>
    %c0_179 = arith.constant 0 : index
    %c1_180 = arith.constant 1 : index
    %c1_181 = arith.constant 1 : index
    %c0_182 = arith.constant 0 : index
    %170 = vector.load %arg6[%c0_179, %c1_180, %c1_181, %c0_182] : memref<1x16x16x4xf32, #tpu.memory_space<vmem>>, vector<1x15x15x4xf32>
    %171 = vector.shape_cast %170 : vector<1x15x15x4xf32> to vector<15x15x4xf32>
    %172 = vector.shape_cast %169 : vector<15x15x4xf32> to vector<1x15x15x4xf32>
    tpu.vector_store %arg6[%c0_179, %c1_180, %c1_181, %c0_182], %172 {strides = array<i32>} : memref<1x16x16x4xf32, #tpu.memory_space<vmem>>, vector<1x15x15x4xf32>,
    return
  }
  func.func @transform_0(%arg0: i32) -> (i32, i32) {
    %c0_i32 = arith.constant 0 : i32
    %c0_i32_0 = arith.constant 0 : i32
    %c0_i32_1 = arith.constant 0 : i32
    return %c0_i32, %c0_i32_0 : i32, i32
  }
  func.func @transform_1(%arg0: i32) -> (i32, i32) {
    %c0_i32 = arith.constant 0 : i32
    %c0_i32_0 = arith.constant 0 : i32
    %c0_i32_1 = arith.constant 0 : i32
    return %c0_i32, %c0_i32_0 : i32, i32
  }
  func.func @transform_2(%arg0: i32) -> (i32, i32, i32) {
    %c0_i32 = arith.constant 0 : i32
    %c0_i32_0 = arith.constant 0 : i32
    %c0_i32_1 = arith.constant 0 : i32
    %c0_i32_2 = arith.constant 0 : i32
    return %c0_i32, %c0_i32_0, %c0_i32_1 : i32, i32, i32
  }
  func.func @transform_3(%arg0: i32) -> (i32, i32, i32) {
    %c0_i32 = arith.constant 0 : i32
    %c0_i32_0 = arith.constant 0 : i32
    %c0_i32_1 = arith.constant 0 : i32
    %c0_i32_2 = arith.constant 0 : i32
    return %c0_i32, %c0_i32_0, %c0_i32_1 : i32, i32, i32
  }
  func.func @transform_4(%arg0: i32) -> (i32, i32, i32, i32) {
    %c0_i32 = arith.constant 0 : i32
    %c0_i32_0 = arith.constant 0 : i32
    %c0_i32_1 = arith.constant 0 : i32
    %c0_i32_2 = arith.constant 0 : i32
    return %arg0, %c0_i32, %c0_i32_0, %c0_i32_1 : i32, i32, i32, i32
  }
  func.func @transform_5(%arg0: i32) -> (i32, i32, i32, i32) {
    %c0_i32 = arith.constant 0 : i32
    %c0_i32_0 = arith.constant 0 : i32
    %c0_i32_1 = arith.constant 0 : i32
    %c0_i32_2 = arith.constant 0 : i32
    return %arg0, %c0_i32, %c0_i32_0, %c0_i32_1 : i32, i32, i32, i32
  }
}

</mosaic_0001>

<llo_original>
// kernel: sdp_lipschitz_conv_forward.1
$region0: #{sdp_lipschitz_conv_forward.1}
  #allocation0 [shape = 'u32[]', space=smem, size = 0x4, offset = 0x4, fixed_abs, tag = 'smem constant byte address 0x4 - core index']
  #allocation1 [shape = 'u32[144,128]{1,0:T(1,128)}', space=vmem, size = 0x12000, scoped, tag = 'internal scratch']
  %s0 = inlined_call_operand.vmem [shape: f32[1,8], index: 0, kind: input, shape index: {}]
  %s1 = inlined_call_operand.vmem [shape: f32[1,8], index: 1, kind: input, shape index: {}]
  %s2 = inlined_call_operand.vmem [shape: f32[9,4,8], index: 2, kind: input, shape index: {}]
  %s3 = inlined_call_operand.vmem [shape: f32[9,8,4], index: 3, kind: input, shape index: {}]
  %s4 = inlined_call_operand.vmem [shape: f32[2,18,18,4], index: 4, kind: input, shape index: {}]
  %s5 = inlined_call_operand.vmem [shape: f32[2,16,16,4], index: 5, kind: output, shape index: {}]
  %s6 = sld [smem:[#allocation0]]
  $region53: #{sdp_lipschitz_conv_forward.1} parent=0
    _
  %s8 = ssub.s32 1, %s6
  %s9 = scalar_select 0, %s8, %s6
  loop: start=0, step=1, limit=4
  $region2: #{sdp_lipschitz_conv_forward.1} parent=0 // loop_pre_header
    _
  $region3: #{sdp_lipschitz_conv_forward.1} parent=0 // loop_header
    %s11 = sphi 0, %s15
    %p12 = scmp.ge.s32.totalorder %s11, 4
    %s19 = sphi 0, %s19
    %s21 = sphi 0, %s19
    %s22 = sphi 0, %s21
    %s36 = sphi 0, %s22
    %s40 = sphi 0, %s40
    %s42 = sphi 0, %s40
    %s43 = sphi 0, %s42
    %s57 = sphi 0, %s43
    %s61 = sphi 0, %s61
    %s63 = sphi 0, %s61
    %s64 = sphi 0, %s63
    %s78 = sphi 0, %s64
    %s82 = sphi 0, %s82
    %s84 = sphi 0, %s82
    %s85 = sphi 0, %s84
    %s99 = sphi 0, %s85
    %s105 = sphi 0, %s107
    %s108 = sphi 0, %s105
    %s109 = sphi 0, %s108
    %s125 = sphi 0, %s109
    %s131 = sphi 0, %s133
    %s134 = sphi 0, %s131
    %s135 = sphi 0, %s134
    %s151 = sphi 0, %s135
  $region4: #{sdp_lipschitz_conv_forward.1} parent=0 // loop_header_branch
    %14 = sbr.rel (%p12) target = $region8
  $region5: #{sdp_lipschitz_conv_forward.1} parent=0 // loop_body
    %s16 = ssub.s32 %s11, 1
    %s17 = ssub.s32 %s11, 2
    %s18 = sadd.s32 %s11, 1
    %s20 = sadd.s32 %s19, 1
    %p23 = scmp.eq.s32.totalorder %s11, 1
    %p24 = scmp.ne.s32.totalorder %s19, %s21
    %p25 = scmp.eq.s32.totalorder %s11, 0
    %p26 = por %p24, %p25
    %p27 = scmp.ne.s32.totalorder %s19, %s21
    %p28 = scmp.eq.s32.totalorder %s16, 1
    %p29 = por %p27, %p28
    %p30 = scmp.ne.s32.totalorder %s21, %s22
    %p31 = scmp.eq.s32.totalorder %s16, 0
    %p32 = por %p30, %p31
    %p33 = scmp.ne.s32.totalorder %s21, %s22
    %p34 = scmp.eq.s32.totalorder %s17, 1
    %p35 = por %p33, %p34
    %p37 = scmp.ne.s32.totalorder %s22, %s36
    %p38 = scmp.eq.s32.totalorder %s17, 0
    %p39 = por %p37, %p38
    %s41 = sadd.s32 %s40, 1
    %p44 = scmp.eq.s32.totalorder %s11, 1
    %p45 = scmp.ne.s32.totalorder %s40, %s42
    %p46 = scmp.eq.s32.totalorder %s11, 0
    %p47 = por %p45, %p46
    %p48 = scmp.ne.s32.totalorder %s40, %s42
    %p49 = scmp.eq.s32.totalorder %s16, 1
    %p50 = por %p48, %p49
    %p51 = scmp.ne.s32.totalorder %s42, %s43
    %p52 = scmp.eq.s32.totalorder %s16, 0
    %p53 = por %p51, %p52
    %p54 = scmp.ne.s32.totalorder %s42, %s43
    %p55 = scmp.eq.s32.totalorder %s17, 1
    %p56 = por %p54, %p55
    %p58 = scmp.ne.s32.totalorder %s43, %s57
    %p59 = scmp.eq.s32.totalorder %s17, 0
    %p60 = por %p58, %p59
    %s62 = sadd.s32 %s61, 1
    %p65 = scmp.eq.s32.totalorder %s11, 1
    %p66 = scmp.ne.s32.totalorder %s61, %s63
    %p67 = scmp.eq.s32.totalorder %s11, 0
    %p68 = por %p66, %p67
    %p69 = scmp.ne.s32.totalorder %s61, %s63
    %p70 = scmp.eq.s32.totalorder %s16, 1
    %p71 = por %p69, %p70
    %p72 = scmp.ne.s32.totalorder %s63, %s64
    %p73 = scmp.eq.s32.totalorder %s16, 0
    %p74 = por %p72, %p73
    %p75 = scmp.ne.s32.totalorder %s63, %s64
    %p76 = scmp.eq.s32.totalorder %s17, 1
    %p77 = por %p75, %p76
    %p79 = scmp.ne.s32.totalorder %s64, %s78
    %p80 = scmp.eq.s32.totalorder %s17, 0
    %p81 = por %p79, %p80
    %s83 = sadd.s32 %s82, 1
    %p86 = scmp.eq.s32.totalorder %s11, 1
    %p87 = scmp.ne.s32.totalorder %s82, %s84
    %p88 = scmp.eq.s32.totalorder %s11, 0
    %p89 = por %p87, %p88
    %p90 = scmp.ne.s32.totalorder %s82, %s84
    %p91 = scmp.eq.s32.totalorder %s16, 1
    %p92 = por %p90, %p91
    %p93 = scmp.ne.s32.totalorder %s84, %s85
    %p94 = scmp.eq.s32.totalorder %s16, 0
    %p95 = por %p93, %p94
    %p96 = scmp.ne.s32.totalorder %s84, %s85
    %p97 = scmp.eq.s32.totalorder %s17, 1
    %p98 = por %p96, %p97
    %p100 = scmp.ne.s32.totalorder %s85, %s99
    %p101 = scmp.eq.s32.totalorder %s17, 0
    %p102 = por %p100, %p101
    %s103 = ssub.s32 %s11, %s18
    %p104 = scmp.eq.s32.totalorder %s103, 0
    %s106 = sadd.s32 %s105, 1
    %s107 = scalar_select %p104, %s105, %s106
    %p110 = pneg %p104
    %p111 = scmp.eq.s32.totalorder %s11, 1
    %p112 = por %p110, %p111
    %p113 = scmp.ne.s32.totalorder %s105, %s108
    %p114 = scmp.eq.s32.totalorder %s11, 0
    %p115 = por %p113, %p114
    %p116 = scmp.ne.s32.totalorder %s105, %s108
    %p117 = scmp.eq.s32.totalorder %s16, 1
    %p118 = por %p116, %p117
    %p119 = scmp.ne.s32.totalorder %s108, %s109
    %p120 = scmp.eq.s32.totalorder %s16, 0
    %p121 = por %p119, %p120
    %p122 = scmp.ne.s32.totalorder %s108, %s109
    %p123 = scmp.eq.s32.totalorder %s17, 1
    %p124 = por %p122, %p123
    %p126 = scmp.ne.s32.totalorder %s109, %s125
    %p127 = scmp.eq.s32.totalorder %s17, 0
    %p128 = por %p126, %p127
    %s129 = ssub.s32 %s11, %s18
    %p130 = scmp.eq.s32.totalorder %s129, 0
    %s132 = sadd.s32 %s131, 1
    %s133 = scalar_select %p130, %s131, %s132
    %p136 = pneg %p130
    %p137 = scmp.eq.s32.totalorder %s11, 1
    %p138 = por %p136, %p137
    %p139 = scmp.ne.s32.totalorder %s131, %s134
    %p140 = scmp.eq.s32.totalorder %s11, 0
    %p141 = por %p139, %p140
    %p142 = scmp.ne.s32.totalorder %s131, %s134
    %p143 = scmp.eq.s32.totalorder %s16, 1
    %p144 = por %p142, %p143
    %p145 = scmp.ne.s32.totalorder %s134, %s135
    %p146 = scmp.eq.s32.totalorder %s16, 0
    %p147 = por %p145, %p146
    %p148 = scmp.ne.s32.totalorder %s134, %s135
    %p149 = scmp.eq.s32.totalorder %s17, 1
    %p150 = por %p148, %p149
    %p152 = scmp.ne.s32.totalorder %s135, %s151
    %p153 = scmp.eq.s32.totalorder %s17, 0
    %p154 = por %p152, %p153
    %p155 = scmp.le.s32.totalorder 1, %s11
    %p156 = scmp.lt.s32.totalorder %s11, 3
    %p157 = pnand %p155, %p156
    %p158 = pneg %p157
    // Predicated region
    $region9: #{sdp_lipschitz_conv_forward.1} parent=5 // pred_check
      _
    $region10: #{sdp_lipschitz_conv_forward.1} parent=5 // pred_check_branch
      %160 = sbr.rel (%p157) target = $region12
    $region11: #{sdp_lipschitz_conv_forward.1} parent=5 // pred_region
      %s161 = ssub.s32 %s11, 1
      // Predicated region
      $region13: #{sdp_lipschitz_conv_forward.1} parent=11 // pred_check
        %p162 = pneg %p32
      $region14: #{sdp_lipschitz_conv_forward.1} parent=11 // pred_check_branch
        %164 = sbr.rel (%p162) target = $region16
      $region15: #{sdp_lipschitz_conv_forward.1} parent=11 // pred_region
        _
      $region16: #{sdp_lipschitz_conv_forward.1} parent=11 // pred_fallthru
        _
      // Predicated region
      $region17: #{sdp_lipschitz_conv_forward.1} parent=11 // pred_check
        %p165 = pneg %p53
      $region18: #{sdp_lipschitz_conv_forward.1} parent=11 // pred_check_branch
        %167 = sbr.rel (%p165) target = $region20
      $region19: #{sdp_lipschitz_conv_forward.1} parent=11 // pred_region
        _
      $region20: #{sdp_lipschitz_conv_forward.1} parent=11 // pred_fallthru
        _
      // Predicated region
      $region21: #{sdp_lipschitz_conv_forward.1} parent=11 // pred_check
        %p168 = pneg %p74
      $region22: #{sdp_lipschitz_conv_forward.1} parent=11 // pred_check_branch
        %170 = sbr.rel (%p168) target = $region24
      $region23: #{sdp_lipschitz_conv_forward.1} parent=11 // pred_region
        _
      $region24: #{sdp_lipschitz_conv_forward.1} parent=11 // pred_fallthru
        _
      // Predicated region
      $region25: #{sdp_lipschitz_conv_forward.1} parent=11 // pred_check
        %p171 = pneg %p95
      $region26: #{sdp_lipschitz_conv_forward.1} parent=11 // pred_check_branch
        %173 = sbr.rel (%p171) target = $region28
      $region27: #{sdp_lipschitz_conv_forward.1} parent=11 // pred_region
        _
      $region28: #{sdp_lipschitz_conv_forward.1} parent=11 // pred_fallthru
        _
    $region12: #{sdp_lipschitz_conv_forward.1} parent=5 // pred_fallthru
      _
    %p174 = scmp.lt.s32.totalorder %s11, 2
    // Predicated region
    $region29: #{sdp_lipschitz_conv_forward.1} parent=5 // pred_check
      %p175 = pneg %p174
    $region30: #{sdp_lipschitz_conv_forward.1} parent=5 // pred_check_branch
      %177 = sbr.rel (%p175) target = $region32
    $region31: #{sdp_lipschitz_conv_forward.1} parent=5 // pred_region
      // Predicated region
      $region33: #{sdp_lipschitz_conv_forward.1} parent=31 // pred_check
        %p178 = pneg %p115
      $region34: #{sdp_lipschitz_conv_forward.1} parent=31 // pred_check_branch
        %180 = sbr.rel (%p178) target = $region36
      $region35: #{sdp_lipschitz_conv_forward.1} parent=31 // pred_region
        %p181 = scmp.lt.s32.totalorder %s11, 1
        %s182 = scalar_select %p181, %s11, 1
        %s183 = smul.addr %s182, 54
        %s184 = smul.addr %s183, 8
        %s185 = scalar_lea.vmem %s4, %s184
      $region36: #{sdp_lipschitz_conv_forward.1} parent=31 // pred_fallthru
        _
    $region32: #{sdp_lipschitz_conv_forward.1} parent=5 // pred_fallthru
      _
    %p186 = scmp.le.s32.totalorder 1, %s11
    %p187 = scmp.lt.s32.totalorder %s11, 3
    %p188 = pnand %p186, %p187
    %p189 = pneg %p188
    // Predicated region
    $region37: #{sdp_lipschitz_conv_forward.1} parent=5 // pred_check
      _
    $region38: #{sdp_lipschitz_conv_forward.1} parent=5 // pred_check_branch
      %191 = sbr.rel (%p188) target = $region40
    $region39: #{sdp_lipschitz_conv_forward.1} parent=5 // pred_region
      %s192 = ssub.s32 %s11, 1
      %p193 = pneg %p32
      %p194 = pneg %p29
      %p195 = pneg %p53
      %p196 = pneg %p50
      %p197 = pneg %p74
      %p198 = pneg %p71
      %p199 = pneg %p95
      %p200 = pneg %p92
      %p201 = scmp.lt.s32.totalorder %s16, 1
      %s202 = scalar_select %p201, %s16, 1
      %s203 = smul.addr %s202, 54
      %s204 = smul.addr %s203, 8
      %s205 = scalar_lea.vmem %s4, %s204
      %p206 = pneg %p121
      %p207 = pneg %p118
      %p208 = pneg %p147
      %p209 = pneg %p144
      %p210 = scmp.lt.s32.totalorder %s16, 1
      %s211 = scalar_select %p210, %s16, 1
      %s212 = smul.addr %s211, 32
      %s213 = smul.addr %s212, 8
      %s214 = scalar_lea.vmem %s5, %s213
      %p215 = scmp.lt.s32.totalorder %s16, 1
      %s216 = scalar_select %p215, %s16, 1
      %s217 = smul.addr %s216, 54
      %s218 = smul.addr %s217, 8
      %s219 = scalar_lea.vmem %s4, %s218
      %p220 = scmp.lt.s32.totalorder %s16, 1
      %s221 = scalar_select %p220, %s16, 1
      %s222 = smul.addr %s221, 32
      %s223 = smul.addr %s222, 8
      %s224 = scalar_lea.vmem %s5, %s223
      %v225 = vld [vmem:[%s219] sm:$0xff]
      %v226 = vld [vmem:[%s219 + $0x8] sm:$0xff]
      %v227 = vld [vmem:[%s219 + $0x18] sm:$0xff]
      %v228 = vld [vmem:[%s219 + $0x20] sm:$0xff]
      %v229 = vld [vmem:[%s219 + $0x30] sm:$0xff]
      %v230 = vld [vmem:[%s219 + $0x38] sm:$0xff]
      %v231 = vld [vmem:[%s219 + $0x48] sm:$0xff]
      %v232 = vld [vmem:[%s219 + $0x50] sm:$0xff]
      %v233 = vld [vmem:[%s219 + $0x60] sm:$0xff]
      %v234 = vld [vmem:[%s219 + $0x68] sm:$0xff]
      %v235 = vld [vmem:[%s219 + $0x78] sm:$0xff]
      %v236 = vld [vmem:[%s219 + $0x80] sm:$0xff]
      %v237 = vld [vmem:[%s219 + $0x90] sm:$0xff]
      %v238 = vld [vmem:[%s219 + $0x98] sm:$0xff]
      %v239 = vld [vmem:[%s219 + $0xa8] sm:$0xff]
      %v240 = vld [vmem:[%s219 + $0xb0] sm:$0xff]
      %v241 = vld [vmem:[%s219 + $0xc0] sm:$0xff]
      %v242 = vld [vmem:[%s219 + $0xc8] sm:$0xff]
      %v243 = vld [vmem:[%s219 + $0xd8] sm:$0xff]
      %v244 = vld [vmem:[%s219 + $0xe0] sm:$0xff]
      %v245 = vld [vmem:[%s219 + $0xf0] sm:$0xff]
      %v246 = vld [vmem:[%s219 + $0xf8] sm:$0xff]
      %v247 = vld [vmem:[%s219 + $0x108] sm:$0xff]
      %v248 = vld [vmem:[%s219 + $0x110] sm:$0xff]
      %v249 = vld [vmem:[%s219 + $0x120] sm:$0xff]
      %v250 = vld [vmem:[%s219 + $0x128] sm:$0xff]
      %v251 = vld [vmem:[%s219 + $0x138] sm:$0xff]
      %v252 = vld [vmem:[%s219 + $0x140] sm:$0xff]
      %v253 = vld [vmem:[%s219 + $0x150] sm:$0xff]
      %v254 = vld [vmem:[%s219 + $0x158] sm:$0xff]
      %v255 = vld [vmem:[%s219 + $0x168] sm:$0xff]
      %v256 = vld [vmem:[%s219 + $0x170] sm:$0xff]
      %v257 = vld [vmem:[%s2] sm:$0xf]
      %v258 = vld [vmem:[%s219 + $0x1] sm:$0xff]
      %v259 = vld [vmem:[%s219 + $0x9] sm:$0xff]
      %v260 = vld [vmem:[%s219 + $0x19] sm:$0xff]
      %v261 = vld [vmem:[%s219 + $0x21] sm:$0xff]
      %v262 = vld [vmem:[%s219 + $0x31] sm:$0xff]
      %v263 = vld [vmem:[%s219 + $0x39] sm:$0xff]
      %v264 = vld [vmem:[%s219 + $0x49] sm:$0xff]
      %v265 = vld [vmem:[%s219 + $0x51] sm:$0xff]
      %v266 = vld [vmem:[%s219 + $0x61] sm:$0xff]
      %v267 = vld [vmem:[%s219 + $0x69] sm:$0xff]
      %v268 = vld [vmem:[%s219 + $0x79] sm:$0xff]
      %v269 = vld [vmem:[%s219 + $0x81] sm:$0xff]
      %v270 = vld [vmem:[%s219 + $0x91] sm:$0xff]
      %v271 = vld [vmem:[%s219 + $0x99] sm:$0xff]
      %v272 = vld [vmem:[%s219 + $0xa9] sm:$0xff]
      %v273 = vld [vmem:[%s219 + $0xb1] sm:$0xff]
      %v274 = vld [vmem:[%s219 + $0xc1] sm:$0xff]
      %v275 = vld [vmem:[%s219 + $0xc9] sm:$0xff]
      %v276 = vld [vmem:[%s219 + $0xd9] sm:$0xff]
      %v277 = vld [vmem:[%s219 + $0xe1] sm:$0xff]
      %v278 = vld [vmem:[%s219 + $0xf1] sm:$0xff]
      %v279 = vld [vmem:[%s219 + $0xf9] sm:$0xff]
      %v280 = vld [vmem:[%s219 + $0x109] sm:$0xff]
      %v281 = vld [vmem:[%s219 + $0x111] sm:$0xff]
      %v282 = vld [vmem:[%s219 + $0x121] sm:$0xff]
      %v283 = vld [vmem:[%s219 + $0x129] sm:$0xff]
      %v284 = vld [vmem:[%s219 + $0x139] sm:$0xff]
      %v285 = vld [vmem:[%s219 + $0x141] sm:$0xff]
      %v286 = vld [vmem:[%s219 + $0x151] sm:$0xff]
      %v287 = vld [vmem:[%s219 + $0x159] sm:$0xff]
      %v288 = vld [vmem:[%s219 + $0x169] sm:$0xff]
      %v289 = vld [vmem:[%s219 + $0x171] sm:$0xff]
      %s290 = scalar_lea.vmem %s2, 4
      %v291 = vld [vmem:[%s290] sm:$0xf]
      %vm292 = vcmask 31744
      %v294 = vsel %vm292, %v258, 0
      %v297 = vsel %vm292, %v259, 0
      %v300 = vsel %vm292, %v260, 0
      %v303 = vsel %vm292, %v261, 0
      %v306 = vsel %vm292, %v262, 0
      %v309 = vsel %vm292, %v263, 0
      %v312 = vsel %vm292, %v264, 0
      %v315 = vsel %vm292, %v265, 0
      %v318 = vsel %vm292, %v266, 0
      %v321 = vsel %vm292, %v267, 0
      %v324 = vsel %vm292, %v268, 0
      %v327 = vsel %vm292, %v269, 0
      %v330 = vsel %vm292, %v270, 0
      %v333 = vsel %vm292, %v271, 0
      %v336 = vsel %vm292, %v272, 0
      %v339 = vsel %vm292, %v273, 0
      %v342 = vsel %vm292, %v274, 0
      %v345 = vsel %vm292, %v275, 0
      %v348 = vsel %vm292, %v276, 0
      %v351 = vsel %vm292, %v277, 0
      %v354 = vsel %vm292, %v278, 0
      %v357 = vsel %vm292, %v279, 0
      %v360 = vsel %vm292, %v280, 0
      %v363 = vsel %vm292, %v281, 0
      %v366 = vsel %vm292, %v282, 0
      %v369 = vsel %vm292, %v283, 0
      %v372 = vsel %vm292, %v284, 0
      %v375 = vsel %vm292, %v285, 0
      %v378 = vsel %vm292, %v286, 0
      %v381 = vsel %vm292, %v287, 0
      %v384 = vsel %vm292, %v288, 0
      %v387 = vsel %vm292, %v289, 0
      %vm389 = vcmask 1043456
      %v391 = vsel %vm389, %v291, 0
      %393 = vmatprep.subr.mxu0 0.0
      %394 = vmatpush1.msra.mxu0 %v391
      %395 = vmatprep.subr.mxu0 0.0
      %396 = vmatpush1.msra.mxu0 0.0
      %397 = vmatprep.subr.mxu0 0.0
      %398 = vmatpush1.msra.mxu0 0.0
      %399 = vmatprep.subr.mxu0 0.0
      %400 = vmatpush1.msra.mxu0 0.0
      %401 = vmatprep.subr.mxu0 0.0
      %402 = vmatpush1.msra.mxu0 0.0
      %403 = vmatprep.subr.mxu0 0.0
      %404 = vmatpush1.msra.mxu0 0.0
      %405 = vmatprep.subr.mxu0 0.0
      %406 = vmatpush1.msra.mxu0 0.0
      %407 = vmatprep.subr.mxu0 0.0
      %408 = vmatpush1.msra.mxu0 0.0
      %409 = vmatprep.subr.mxu0 0.0
      %410 = vmatpush1.msra.mxu0 0.0
      %411 = vmatprep.subr.mxu0 0.0
      %412 = vmatpush1.msra.mxu0 0.0
      %413 = vmatprep.subr.mxu0 0.0
      %414 = vmatpush1.msra.mxu0 0.0
      %415 = vmatprep.subr.mxu0 0.0
      %416 = vmatpush1.msra.mxu0 0.0
      %417 = vmatprep.subr.mxu0 0.0
      %418 = vmatpush1.msra.mxu0 0.0
      %419 = vmatprep.subr.mxu0 0.0
      %420 = vmatpush1.msra.mxu0 0.0
      %421 = vmatprep.subr.mxu0 0.0
      %422 = vmatpush1.msra.mxu0 0.0
      %423 = vmatprep.subr.mxu0 0.0
      %424 = vmatpush1.msra.mxu0 0.0
      %425 = vmatprep.subr.mxu0 0.0
      %426 = vmatpush1.msra.mxu0 0.0
      %427 = vmatprep.subr.mxu0 0.0
      %428 = vmatpush1.msra.mxu0 0.0
      %429 = vmatprep.subr.mxu0 0.0
      %430 = vmatpush1.msra.mxu0 0.0
      %431 = vmatprep.subr.mxu0 0.0
      %432 = vmatpush1.msra.mxu0 0.0
      %433 = vmatprep.subr.mxu0 0.0
      %434 = vmatpush1.msra.mxu0 0.0
      %435 = vmatprep.subr.mxu0 0.0
      %436 = vmatpush1.msra.mxu0 0.0
      %437 = vmatprep.subr.mxu0 0.0
      %438 = vmatpush1.msra.mxu0 0.0
      %439 = vmatprep.subr.mxu0 0.0
      %440 = vmatpush1.msra.mxu0 0.0
      %441 = vmatprep.subr.mxu0 0.0
      %442 = vmatpush1.msra.mxu0 0.0
      %443 = vmatprep.subr.mxu0 0.0
      %444 = vmatpush1.msra.mxu0 0.0
      %445 = vmatprep.subr.mxu0 0.0
      %446 = vmatpush1.msra.mxu0 0.0
      %447 = vmatprep.subr.mxu0 0.0
      %448 = vmatpush1.msra.mxu0 0.0
      %449 = vmatprep.subr.mxu0 0.0
      %450 = vmatpush1.msra.mxu0 0.0
      %451 = vmatprep.subr.mxu0 0.0
      %452 = vmatpush1.msra.mxu0 0.0
      %453 = vmatprep.subr.mxu0 0.0
      %454 = vmatpush1.msra.mxu0 0.0
      %455 = vmatprep.subr.mxu0 0.0
      %456 = vmatpush1.msra.mxu0 0.0
      %457 = vmatprep.mubr.f32.mxu0 0.0
      %458 = vmatmul.mubr.f32.gmra.mrb[0].mxu0 %v294
      %v459 = vpop.f32.mrb[0].mxu0
      %v460 = vadd.f32 0.0, %v459
      %v461 = vpop.f32.mrb[0].mxu0
      %462 = vmatprep.mubr.f32.mxu0 0.0
      %463 = vmatmul.mubr.f32.gmra.mrb[0].mxu0 %v297
      %v464 = vpop.f32.mrb[0].mxu0
      %v465 = vadd.f32 0.0, %v464
      %v466 = vpop.f32.mrb[0].mxu0
      %467 = vmatprep.mubr.f32.mxu0 0.0
      %468 = vmatmul.mubr.f32.gmra.mrb[0].mxu0 %v300
      %v469 = vpop.f32.mrb[0].mxu0
      %v470 = vadd.f32 0.0, %v469
      %v471 = vpop.f32.mrb[0].mxu0
      %472 = vmatprep.mubr.f32.mxu0 0.0
      %473 = vmatmul.mubr.f32.gmra.mrb[0].mxu0 %v303
      %v474 = vpop.f32.mrb[0].mxu0
      %v475 = vadd.f32 0.0, %v474
      %v476 = vpop.f32.mrb[0].mxu0
      %477 = vmatprep.mubr.f32.mxu0 0.0
      %478 = vmatmul.mubr.f32.gmra.mrb[0].mxu0 %v306
      %v479 = vpop.f32.mrb[0].mxu0
      %v480 = vadd.f32 0.0, %v479
      %v481 = vpop.f32.mrb[0].mxu0
      %482 = vmatprep.mubr.f32.mxu0 0.0
      %483 = vmatmul.mubr.f32.gmra.mrb[0].mxu0 %v309
      %v484 = vpop.f32.mrb[0].mxu0
      %v485 = vadd.f32 0.0, %v484
      %v486 = vpop.f32.mrb[0].mxu0
      %487 = vmatprep.mubr.f32.mxu0 0.0
      %488 = vmatmul.mubr.f32.gmra.mrb[0].mxu0 %v312
      %v489 = vpop.f32.mrb[0].mxu0
      %v490 = vadd.f32 0.0, %v489
      %v491 = vpop.f32.mrb[0].mxu0
      %492 = vmatprep.mubr.f32.mxu0 0.0
      %493 = vmatmul.mubr.f32.gmra.mrb[0].mxu0 %v315
      %v494 = vpop.f32.mrb[0].mxu0
      %v495 = vadd.f32 0.0, %v494
      %v496 = vpop.f32.mrb[0].mxu0
      %497 = vmatprep.mubr.f32.mxu0 0.0
      %498 = vmatmul.mubr.f32.gmra.mrb[0].mxu0 %v318
      %v499 = vpop.f32.mrb[0].mxu0
      %v500 = vadd.f32 0.0, %v499
      %v501 = vpop.f32.mrb[0].mxu0
      %502 = vmatprep.mubr.f32.mxu0 0.0
      %503 = vmatmul.mubr.f32.gmra.mrb[0].mxu0 %v321
      %v504 = vpop.f32.mrb[0].mxu0
      %v505 = vadd.f32 0.0, %v504
      %v506 = vpop.f32.mrb[0].mxu0
      %507 = vmatprep.mubr.f32.mxu0 0.0
      %508 = vmatmul.mubr.f32.gmra.mrb[0].mxu0 %v324
      %v509 = vpop.f32.mrb[0].mxu0
      %v510 = vadd.f32 0.0, %v509
      %v511 = vpop.f32.mrb[0].mxu0
      %512 = vmatprep.mubr.f32.mxu0 0.0
      %513 = vmatmul.mubr.f32.gmra.mrb[0].mxu0 %v327
      %v514 = vpop.f32.mrb[0].mxu0
      %v515 = vadd.f32 0.0, %v514
      %v516 = vpop.f32.mrb[0].mxu0
      %517 = vmatprep.mubr.f32.mxu0 0.0
      %518 = vmatmul.mubr.f32.gmra.mrb[0].mxu0 %v330
      %v519 = vpop.f32.mrb[0].mxu0
      %v520 = vadd.f32 0.0, %v519
      %v521 = vpop.f32.mrb[0].mxu0
      %522 = vmatprep.mubr.f32.mxu0 0.0
      %523 = vmatmul.mubr.f32.gmra.mrb[0].mxu0 %v333
      %v524 = vpop.f32.mrb[0].mxu0
      %v525 = vadd.f32 0.0, %v524
      %v526 = vpop.f32.mrb[0].mxu0
      %527 = vmatprep.mubr.f32.mxu0 0.0
      %528 = vmatmul.mubr.f32.gmra.mrb[0].mxu0 %v336
      %v529 = vpop.f32.mrb[0].mxu0
      %v530 = vadd.f32 0.0, %v529
      %v531 = vpop.f32.mrb[0].mxu0
      %532 = vmatprep.mubr.f32.mxu0 0.0
      %533 = vmatmul.mubr.f32.gmra.mrb[0].mxu0 %v339
      %v534 = vpop.f32.mrb[0].mxu0
      %v535 = vadd.f32 0.0, %v534
      %v536 = vpop.f32.mrb[0].mxu0
      %537 = vmatprep.mubr.f32.mxu0 0.0
      %538 = vmatmul.mubr.f32.gmra.mrb[0].mxu0 %v342
      %v539 = vpop.f32.mrb[0].mxu0
      %v540 = vadd.f32 0.0, %v539
      %v541 = vpop.f32.mrb[0].mxu0
      %542 = vmatprep.mubr.f32.mxu0 0.0
      %543 = vmatmul.mubr.f32.gmra.mrb[0].mxu0 %v345
      %v544 = vpop.f32.mrb[0].mxu0
      %v545 = vadd.f32 0.0, %v544
      %v546 = vpop.f32.mrb[0].mxu0
      %547 = vmatprep.mubr.f32.mxu0 0.0
      %548 = vmatmul.mubr.f32.gmra.mrb[0].mxu0 %v348
      %v549 = vpop.f32.mrb[0].mxu0
      %v550 = vadd.f32 0.0, %v549
      %v551 = vpop.f32.mrb[0].mxu0
      %552 = vmatprep.mubr.f32.mxu0 0.0
      %553 = vmatmul.mubr.f32.gmra.mrb[0].mxu0 %v351
      %v554 = vpop.f32.mrb[0].mxu0
      %v555 = vadd.f32 0.0, %v554
      %v556 = vpop.f32.mrb[0].mxu0
      %557 = vmatprep.mubr.f32.mxu0 0.0
      %558 = vmatmul.mubr.f32.gmra.mrb[0].mxu0 %v354
      %v559 = vpop.f32.mrb[0].mxu0
      %v560 = vadd.f32 0.0, %v559
      %v561 = vpop.f32.mrb[0].mxu0
      %562 = vmatprep.mubr.f32.mxu0 0.0
      %563 = vmatmul.mubr.f32.gmra.mrb[0].mxu0 %v357
      %v564 = vpop.f32.mrb[0].mxu0
      %v565 = vadd.f32 0.0, %v564
      %v566 = vpop.f32.mrb[0].mxu0
      %567 = vmatprep.mubr.f32.mxu0 0.0
      %568 = vmatmul.mubr.f32.gmra.mrb[0].mxu0 %v360
      %v569 = vpop.f32.mrb[0].mxu0
      %v570 = vadd.f32 0.0, %v569
      %v571 = vpop.f32.mrb[0].mxu0
      %572 = vmatprep.mubr.f32.mxu0 0.0
      %573 = vmatmul.mubr.f32.gmra.mrb[0].mxu0 %v363
      %v574 = vpop.f32.mrb[0].mxu0
      %v575 = vadd.f32 0.0, %v574
      %v576 = vpop.f32.mrb[0].mxu0
      %577 = vmatprep.mubr.f32.mxu0 0.0
      %578 = vmatmul.mubr.f32.gmra.mrb[0].mxu0 %v366
      %v579 = vpop.f32.mrb[0].mxu0
      %v580 = vadd.f32 0.0, %v579
      %v581 = vpop.f32.mrb[0].mxu0
      %582 = vmatprep.mubr.f32.mxu0 0.0
      %583 = vmatmul.mubr.f32.gmra.mrb[0].mxu0 %v369
      %v584 = vpop.f32.mrb[0].mxu0
      %v585 = vadd.f32 0.0, %v584
      %v586 = vpop.f32.mrb[0].mxu0
      %587 = vmatprep.mubr.f32.mxu0 0.0
      %588 = vmatmul.mubr.f32.gmra.mrb[0].mxu0 %v372
      %v589 = vpop.f32.mrb[0].mxu0
      %v590 = vadd.f32 0.0, %v589
      %v591 = vpop.f32.mrb[0].mxu0
      %592 = vmatprep.mubr.f32.mxu0 0.0
      %593 = vmatmul.mubr.f32.gmra.mrb[0].mxu0 %v375
      %v594 = vpop.f32.mrb[0].mxu0
      %v595 = vadd.f32 0.0, %v594
      %v596 = vpop.f32.mrb[0].mxu0
      %597 = vmatprep.mubr.f32.mxu0 0.0
      %598 = vmatmul.mubr.f32.gmra.mrb[0].mxu0 %v378
      %v599 = vpop.f32.mrb[0].mxu0
      %v600 = vadd.f32 0.0, %v599
      %v601 = vpop.f32.mrb[0].mxu0
      %602 = vmatprep.mubr.f32.mxu0 0.0
      %603 = vmatmul.mubr.f32.gmra.mrb[0].mxu0 %v381
      %v604 = vpop.f32.mrb[0].mxu0
      %v605 = vadd.f32 0.0, %v604
      %v606 = vpop.f32.mrb[0].mxu0
      %607 = vmatprep.mubr.f32.mxu0 0.0
      %608 = vmatmul.mubr.f32.gmra.mrb[0].mxu0 %v384
      %v609 = vpop.f32.mrb[0].mxu0
      %v610 = vadd.f32 0.0, %v609
      %v611 = vpop.f32.mrb[0].mxu0
      %612 = vmatprep.mubr.f32.mxu0 0.0
      %613 = vmatmul.mubr.f32.gmra.mrb[0].mxu0 %v387
      %v614 = vpop.f32.mrb[0].mxu0
      %v615 = vadd.f32 0.0, %v614
      %v616 = vpop.f32.mrb[0].mxu0
      %617 = vdwg.mxu0
      %v619 = vsel %vm292, %v225, 0
      %v622 = vsel %vm292, %v226, 0
      %v625 = vsel %vm292, %v227, 0
      %v628 = vsel %vm292, %v228, 0
      %v631 = vsel %vm292, %v229, 0
      %v634 = vsel %vm292, %v230, 0
      %v637 = vsel %vm292, %v231, 0
      %v640 = vsel %vm292, %v232, 0
      %v643 = vsel %vm292, %v233, 0
      %v646 = vsel %vm292, %v234, 0
      %v649 = vsel %vm292, %v235, 0
      %v652 = vsel %vm292, %v236, 0
      %v655 = vsel %vm292, %v237, 0
      %v658 = vsel %vm292, %v238, 0
      %v661 = vsel %vm292, %v239, 0
      %v664 = vsel %vm292, %v240, 0
      %v667 = vsel %vm292, %v241, 0
      %v670 = vsel %vm292, %v242, 0
      %v673 = vsel %vm292, %v243, 0
      %v676 = vsel %vm292, %v244, 0
      %v679 = vsel %vm292, %v245, 0
      %v682 = vsel %vm292, %v246, 0
      %v685 = vsel %vm292, %v247, 0
      %v688 = vsel %vm292, %v248, 0
      %v691 = vsel %vm292, %v249, 0
      %v694 = vsel %vm292, %v250, 0
      %v697 = vsel %vm292, %v251, 0
      %v700 = vsel %vm292, %v252, 0
      %v703 = vsel %vm292, %v253, 0
      %v706 = vsel %vm292, %v254, 0
      %v709 = vsel %vm292, %v255, 0
      %v712 = vsel %vm292, %v256, 0
      %v715 = vsel %vm389, %v257, 0
      %717 = vmatprep.subr.mxu0 0.0
      %718 = vmatpush1.msra.mxu0 %v715
      %719 = vmatprep.subr.mxu0 0.0
      %720 = vmatpush1.msra.mxu0 0.0
      %721 = vmatprep.subr.mxu0 0.0
      %722 = vmatpush1.msra.mxu0 0.0
      %723 = vmatprep.subr.mxu0 0.0
      %724 = vmatpush1.msra.mxu0 0.0
      %725 = vmatprep.subr.mxu0 0.0
      %726 = vmatpush1.msra.mxu0 0.0
      %727 = vmatprep.subr.mxu0 0.0
      %728 = vmatpush1.msra.mxu0 0.0
      %729 = vmatprep.subr.mxu0 0.0
      %730 = vmatpush1.msra.mxu0 0.0
      %731 = vmatprep.subr.mxu0 0.0
      %732 = vmatpush1.msra.mxu0 0.0
      %733 = vmatprep.subr.mxu0 0.0
      %734 = vmatpush1.msra.mxu0 0.0
      %735 = vmatprep.subr.mxu0 0.0
      %736 = vmatpush1.msra.mxu0 0.0
      %737 = vmatprep.subr.mxu0 0.0
      %738 = vmatpush1.msra.mxu0 0.0
      %739 = vmatprep.subr.mxu0 0.0
      %740 = vmatpush1.msra.mxu0 0.0
      %741 = vmatprep.subr.mxu0 0.0
      %742 = vmatpush1.msra.mxu0 0.0
      %743 = vmatprep.subr.mxu0 0.0
      %744 = vmatpush1.msra.mxu0 0.0
      %745 = vmatprep.subr.mxu0 0.0
      %746 = vmatpush1.msra.mxu0 0.0
      %747 = vmatprep.subr.mxu0 0.0
      %748 = vmatpush1.msra.mxu0 0.0
      %749 = vmatprep.subr.mxu0 0.0
      %750 = vmatpush1.msra.mxu0 0.0
      %751 = vmatprep.subr.mxu0 0.0
      %752 = vmatpush1.msra.mxu0 0.0
      %753 = vmatprep.subr.mxu0 0.0
      %754 = vmatpush1.msra.mxu0 0.0
      %755 = vmatprep.subr.mxu0 0.0
      %756 = vmatpush1.msra.mxu0 0.0
      %757 = vmatprep.subr.mxu0 0.0
      %758 = vmatpush1.msra.mxu0 0.0
      %759 = vmatprep.subr.mxu0 0.0
      %760 = vmatpush1.msra.mxu0 0.0
      %761 = vmatprep.subr.mxu0 0.0
      %762 = vmatpush1.msra.mxu0 0.0
      %763 = vmatprep.subr.mxu0 0.0
      %764 = vmatpush1.msra.mxu0 0.0
      %765 = vmatprep.subr.mxu0 0.0
      %766 = vmatpush1.msra.mxu0 0.0
      %767 = vmatprep.subr.mxu0 0.0
      %768 = vmatpush1.msra.mxu0 0.0
      %769 = vmatprep.subr.mxu0 0.0
      %770 = vmatpush1.msra.mxu0 0.0
      %771 = vmatprep.subr.mxu0 0.0
      %772 = vmatpush1.msra.mxu0 0.0
      %773 = vmatprep.subr.mxu0 0.0
      %774 = vmatpush1.msra.mxu0 0.0
      %775 = vmatprep.subr.mxu0 0.0
      %776 = vmatpush1.msra.mxu0 0.0
      %777 = vmatprep.subr.mxu0 0.0
      %778 = vmatpush1.msra.mxu0 0.0
      %779 = vmatprep.subr.mxu0 0.0
      %780 = vmatpush1.msra.mxu0 0.0
      %781 = vmatprep.mubr.f32.mxu0 0.0
      %782 = vmatmul.mubr.f32.gmra.mrb[0].mxu0 %v619
      %v783 = vpop.f32.mrb[0].mxu0
      %v784 = vadd.f32 %v460, %v783
      %v785 = vpop.f32.mrb[0].mxu0
      %786 = vmatprep.mubr.f32.mxu0 0.0
      %787 = vmatmul.mubr.f32.gmra.mrb[0].mxu0 %v622
      %v788 = vpop.f32.mrb[0].mxu0
      %v789 = vadd.f32 %v465, %v788
      %v790 = vpop.f32.mrb[0].mxu0
      %791 = vmatprep.mubr.f32.mxu0 0.0
      %792 = vmatmul.mubr.f32.gmra.mrb[0].mxu0 %v625
      %v793 = vpop.f32.mrb[0].mxu0
      %v794 = vadd.f32 %v470, %v793
      %v795 = vpop.f32.mrb[0].mxu0
      %796 = vmatprep.mubr.f32.mxu0 0.0
      %797 = vmatmul.mubr.f32.gmra.mrb[0].mxu0 %v628
      %v798 = vpop.f32.mrb[0].mxu0
      %v799 = vadd.f32 %v475, %v798
      %v800 = vpop.f32.mrb[0].mxu0
      %801 = vmatprep.mubr.f32.mxu0 0.0
      %802 = vmatmul.mubr.f32.gmra.mrb[0].mxu0 %v631
      %v803 = vpop.f32.mrb[0].mxu0
      %v804 = vadd.f32 %v480, %v803
      %v805 = vpop.f32.mrb[0].mxu0
      %806 = vmatprep.mubr.f32.mxu0 0.0
      %807 = vmatmul.mubr.f32.gmra.mrb[0].mxu0 %v634
      %v808 = vpop.f32.mrb[0].mxu0
      %v809 = vadd.f32 %v485, %v808
      %v810 = vpop.f32.mrb[0].mxu0
      %811 = vmatprep.mubr.f32.mxu0 0.0
      %812 = vmatmul.mubr.f32.gmra.mrb[0].mxu0 %v637
      %v813 = vpop.f32.mrb[0].mxu0
      %v814 = vadd.f32 %v490, %v813
      %v815 = vpop.f32.mrb[0].mxu0
      %816 = vmatprep.mubr.f32.mxu0 0.0
      %817 = vmatmul.mubr.f32.gmra.mrb[0].mxu0 %v640
      %v818 = vpop.f32.mrb[0].mxu0
      %v819 = vadd.f32 %v495, %v818
      %v820 = vpop.f32.mrb[0].mxu0
      %821 = vmatprep.mubr.f32.mxu0 0.0
      %822 = vmatmul.mubr.f32.gmra.mrb[0].mxu0 %v643
      %v823 = vpop.f32.mrb[0].mxu0
      %v824 = vadd.f32 %v500, %v823
      %v825 = vpop.f32.mrb[0].mxu0
      %826 = vmatprep.mubr.f32.mxu0 0.0
      %827 = vmatmul.mubr.f32.gmra.mrb[0].mxu0 %v646
      %v828 = vpop.f32.mrb[0].mxu0
      %v829 = vadd.f32 %v505, %v828
      %v830 = vpop.f32.mrb[0].mxu0
      %831 = vmatprep.mubr.f32.mxu0 0.0
      %832 = vmatmul.mubr.f32.gmra.mrb[0].mxu0 %v649
      %v833 = vpop.f32.mrb[0].mxu0
      %v834 = vadd.f32 %v510, %v833
      %v835 = vpop.f32.mrb[0].mxu0
      %836 = vmatprep.mubr.f32.mxu0 0.0
      %837 = vmatmul.mubr.f32.gmra.mrb[0].mxu0 %v652
      %v838 = vpop.f32.mrb[0].mxu0
      %v839 = vadd.f32 %v515, %v838
      %v840 = vpop.f32.mrb[0].mxu0
      %841 = vmatprep.mubr.f32.mxu0 0.0
      %842 = vmatmul.mubr.f32.gmra.mrb[0].mxu0 %v655
      %v843 = vpop.f32.mrb[0].mxu0
      %v844 = vadd.f32 %v520, %v843
      %v845 = vpop.f32.mrb[0].mxu0
      %846 = vmatprep.mubr.f32.mxu0 0.0
      %847 = vmatmul.mubr.f32.gmra.mrb[0].mxu0 %v658
      %v848 = vpop.f32.mrb[0].mxu0
      %v849 = vadd.f32 %v525, %v848
      %v850 = vpop.f32.mrb[0].mxu0
      %851 = vmatprep.mubr.f32.mxu0 0.0
      %852 = vmatmul.mubr.f32.gmra.mrb[0].mxu0 %v661
      %v853 = vpop.f32.mrb[0].mxu0
      %v854 = vadd.f32 %v530, %v853
      %v855 = vpop.f32.mrb[0].mxu0
      %856 = vmatprep.mubr.f32.mxu0 0.0
      %857 = vmatmul.mubr.f32.gmra.mrb[0].mxu0 %v664
      %v858 = vpop.f32.mrb[0].mxu0
      %v859 = vadd.f32 %v535, %v858
      %v860 = vpop.f32.mrb[0].mxu0
      %861 = vmatprep.mubr.f32.mxu0 0.0
      %862 = vmatmul.mubr.f32.gmra.mrb[0].mxu0 %v667
      %v863 = vpop.f32.mrb[0].mxu0
      %v864 = vadd.f32 %v540, %v863
      %v865 = vpop.f32.mrb[0].mxu0
      %866 = vmatprep.mubr.f32.mxu0 0.0
      %867 = vmatmul.mubr.f32.gmra.mrb[0].mxu0 %v670
      %v868 = vpop.f32.mrb[0].mxu0
      %v869 = vadd.f32 %v545, %v868
      %v870 = vpop.f32.mrb[0].mxu0
      %871 = vmatprep.mubr.f32.mxu0 0.0
      %872 = vmatmul.mubr.f32.gmra.mrb[0].mxu0 %v673
      %v873 = vpop.f32.mrb[0].mxu0
      %v874 = vadd.f32 %v550, %v873
      %v875 = vpop.f32.mrb[0].mxu0
      %876 = vmatprep.mubr.f32.mxu0 0.0
      %877 = vmatmul.mubr.f32.gmra.mrb[0].mxu0 %v676
      %v878 = vpop.f32.mrb[0].mxu0
      %v879 = vadd.f32 %v555, %v878
      %v880 = vpop.f32.mrb[0].mxu0
      %881 = vmatprep.mubr.f32.mxu0 0.0
      %882 = vmatmul.mubr.f32.gmra.mrb[0].mxu0 %v679
      %v883 = vpop.f32.mrb[0].mxu0
      %v884 = vadd.f32 %v560, %v883
      %v885 = vpop.f32.mrb[0].mxu0
      %886 = vmatprep.mubr.f32.mxu0 0.0
      %887 = vmatmul.mubr.f32.gmra.mrb[0].mxu0 %v682
      %v888 = vpop.f32.mrb[0].mxu0
      %v889 = vadd.f32 %v565, %v888
      %v890 = vpop.f32.mrb[0].mxu0
      %891 = vmatprep.mubr.f32.mxu0 0.0
      %892 = vmatmul.mubr.f32.gmra.mrb[0].mxu0 %v685
      %v893 = vpop.f32.mrb[0].mxu0
      %v894 = vadd.f32 %v570, %v893
      %v895 = vpop.f32.mrb[0].mxu0
      %896 = vmatprep.mubr.f32.mxu0 0.0
      %897 = vmatmul.mubr.f32.gmra.mrb[0].mxu0 %v688
      %v898 = vpop.f32.mrb[0].mxu0
      %v899 = vadd.f32 %v575, %v898
      %v900 = vpop.f32.mrb[0].mxu0
      %901 = vmatprep.mubr.f32.mxu0 0.0
      %902 = vmatmul.mubr.f32.gmra.mrb[0].mxu0 %v691
      %v903 = vpop.f32.mrb[0].mxu0
      %v904 = vadd.f32 %v580, %v903
      %v905 = vpop.f32.mrb[0].mxu0
      %906 = vmatprep.mubr.f32.mxu0 0.0
      %907 = vmatmul.mubr.f32.gmra.mrb[0].mxu0 %v694
      %v908 = vpop.f32.mrb[0].mxu0
      %v909 = vadd.f32 %v585, %v908
      %v910 = vpop.f32.mrb[0].mxu0
      %911 = vmatprep.mubr.f32.mxu0 0.0
      %912 = vmatmul.mubr.f32.gmra.mrb[0].mxu0 %v697
      %v913 = vpop.f32.mrb[0].mxu0
      %v914 = vadd.f32 %v590, %v913
      %v915 = vpop.f32.mrb[0].mxu0
      %916 = vmatprep.mubr.f32.mxu0 0.0
      %917 = vmatmul.mubr.f32.gmra.mrb[0].mxu0 %v700
      %v918 = vpop.f32.mrb[0].mxu0
      %v919 = vadd.f32 %v595, %v918
      %v920 = vpop.f32.mrb[0].mxu0
      %921 = vmatprep.mubr.f32.mxu0 0.0
      %922 = vmatmul.mubr.f32.gmra.mrb[0].mxu0 %v703
      %v923 = vpop.f32.mrb[0].mxu0
      %v924 = vadd.f32 %v600, %v923
      %v925 = vpop.f32.mrb[0].mxu0
      %926 = vmatprep.mubr.f32.mxu0 0.0
      %927 = vmatmul.mubr.f32.gmra.mrb[0].mxu0 %v706
      %v928 = vpop.f32.mrb[0].mxu0
      %v929 = vadd.f32 %v605, %v928
      %v930 = vpop.f32.mrb[0].mxu0
      %931 = vmatprep.mubr.f32.mxu0 0.0
      %932 = vmatmul.mubr.f32.gmra.mrb[0].mxu0 %v709
      %v933 = vpop.f32.mrb[0].mxu0
      %v934 = vadd.f32 %v610, %v933
      %v935 = vpop.f32.mrb[0].mxu0
      %936 = vmatprep.mubr.f32.mxu0 0.0
      %937 = vmatmul.mubr.f32.gmra.mrb[0].mxu0 %v712
      %v938 = vpop.f32.mrb[0].mxu0
      %v939 = vadd.f32 %v615, %v938
      %v940 = vpop.f32.mrb[0].mxu0
      %941 = vdwg.mxu0
      %v942 = vld [vmem:[%s219 + $0x2] sm:$0xff]
      %v943 = vld [vmem:[%s219 + $0xa] sm:$0xff]
      %v944 = vld [vmem:[%s219 + $0x1a] sm:$0xff]
      %v945 = vld [vmem:[%s219 + $0x22] sm:$0xff]
      %v946 = vld [vmem:[%s219 + $0x32] sm:$0xff]
      %v947 = vld [vmem:[%s219 + $0x3a] sm:$0xff]
      %v948 = vld [vmem:[%s219 + $0x4a] sm:$0xff]
      %v949 = vld [vmem:[%s219 + $0x52] sm:$0xff]
      %v950 = vld [vmem:[%s219 + $0x62] sm:$0xff]
      %v951 = vld [vmem:[%s219 + $0x6a] sm:$0xff]
      %v952 = vld [vmem:[%s219 + $0x7a] sm:$0xff]
      %v953 = vld [vmem:[%s219 + $0x82] sm:$0xff]
      %v954 = vld [vmem:[%s219 + $0x92] sm:$0xff]
      %v955 = vld [vmem:[%s219 + $0x9a] sm:$0xff]
      %v956 = vld [vmem:[%s219 + $0xaa] sm:$0xff]
      %v957 = vld [vmem:[%s219 + $0xb2] sm:$0xff]
      %v958 = vld [vmem:[%s219 + $0xc2] sm:$0xff]
      %v959 = vld [vmem:[%s219 + $0xca] sm:$0xff]
      %v960 = vld [vmem:[%s219 + $0xda] sm:$0xff]
      %v961 = vld [vmem:[%s219 + $0xe2] sm:$0xff]
      %v962 = vld [vmem:[%s219 + $0xf2] sm:$0xff]
      %v963 = vld [vmem:[%s219 + $0xfa] sm:$0xff]
      %v964 = vld [vmem:[%s219 + $0x10a] sm:$0xff]
      %v965 = vld [vmem:[%s219 + $0x112] sm:$0xff]
      %v966 = vld [vmem:[%s219 + $0x122] sm:$0xff]
      %v967 = vld [vmem:[%s219 + $0x12a] sm:$0xff]
      %v968 = vld [vmem:[%s219 + $0x13a] sm:$0xff]
      %v969 = vld [vmem:[%s219 + $0x142] sm:$0xff]
      %v970 = vld [vmem:[%s219 + $0x152] sm:$0xff]
      %v971 = vld [vmem:[%s219 + $0x15a] sm:$0xff]
      %v972 = vld [vmem:[%s219 + $0x16a] sm:$0xff]
      %v973 = vld [vmem:[%s219 + $0x172] sm:$0xff]
      %s974 = scalar_lea.vmem %s2, 8
      %v975 = vld [vmem:[%s974] sm:$0xf]
      %v977 = vsel %vm292, %v942, 0
      %v980 = vsel %vm292, %v943, 0
      %v983 = vsel %vm292, %v944, 0
      %v986 = vsel %vm292, %v945, 0
      %v989 = vsel %vm292, %v946, 0
      %v992 = vsel %vm292, %v947, 0
      %v995 = vsel %vm292, %v948, 0
      %v998 = vsel %vm292, %v949, 0
      %v1001 = vsel %vm292, %v950, 0
      %v1004 = vsel %vm292, %v951, 0
      %v1007 = vsel %vm292, %v952, 0
      %v1010 = vsel %vm292, %v953, 0
      %v1013 = vsel %vm292, %v954, 0
      %v1016 = vsel %vm292, %v955, 0
      %v1019 = vsel %vm292, %v956, 0
      %v1022 = vsel %vm292, %v957, 0
      %v1025 = vsel %vm292, %v958, 0
      %v1028 = vsel %vm292, %v959, 0
      %v1031 = vsel %vm292, %v960, 0
      %v1034 = vsel %vm292, %v961, 0
      %v1037 = vsel %vm292, %v962, 0
      %v1040 = vsel %vm292, %v963, 0
      %v1043 = vsel %vm292, %v964, 0
      %v1046 = vsel %vm292, %v965, 0
      %v1049 = vsel %vm292, %v966, 0
      %v1052 = vsel %vm292, %v967, 0
      %v1055 = vsel %vm292, %v968, 0
      %v1058 = vsel %vm292, %v969, 0
      %v1061 = vsel %vm292, %v970, 0
      %v1064 = vsel %vm292, %v971, 0
      %v1067 = vsel %vm292, %v972, 0
      %v1070 = vsel %vm292, %v973, 0
      %v1073 = vsel %vm389, %v975, 0
      %1075 = vmatprep.subr.mxu0 0.0
      %1076 = vmatpush1.msra.mxu0 %v1073
      %1077 = vmatprep.subr.mxu0 0.0
      %1078 = vmatpush1.msra.mxu0 0.0
      %1079 = vmatprep.subr.mxu0 0.0
      %1080 = vmatpush1.msra.mxu0 0.0
      %1081 = vmatprep.subr.mxu0 0.0
      %1082 = vmatpush1.msra.mxu0 0.0
      %1083 = vmatprep.subr.mxu0 0.0
      %1084 = vmatpush1.msra.mxu0 0.0
      %1085 = vmatprep.subr.mxu0 0.0
      %1086 = vmatpush1.msra.mxu0 0.0
      %1087 = vmatprep.subr.mxu0 0.0
      %1088 = vmatpush1.msra.mxu0 0.0
      %1089 = vmatprep.subr.mxu0 0.0
      %1090 = vmatpush1.msra.mxu0 0.0
      %1091 = vmatprep.subr.mxu0 0.0
      %1092 = vmatpush1.msra.mxu0 0.0
      %1093 = vmatprep.subr.mxu0 0.0
      %1094 = vmatpush1.msra.mxu0 0.0
      %1095 = vmatprep.subr.mxu0 0.0
      %1096 = vmatpush1.msra.mxu0 0.0
      %1097 = vmatprep.subr.mxu0 0.0
      %1098 = vmatpush1.msra.mxu0 0.0
      %1099 = vmatprep.subr.mxu0 0.0
      %1100 = vmatpush1.msra.mxu0 0.0
      %1101 = vmatprep.subr.mxu0 0.0
      %1102 = vmatpush1.msra.mxu0 0.0
      %1103 = vmatprep.subr.mxu0 0.0
      %1104 = vmatpush1.msra.mxu0 0.0
      %1105 = vmatprep.subr.mxu0 0.0
      %1106 = vmatpush1.msra.mxu0 0.0
      %1107 = vmatprep.subr.mxu0 0.0
      %1108 = vmatpush1.msra.mxu0 0.0
      %1109 = vmatprep.subr.mxu0 0.0
      %1110 = vmatpush1.msra.mxu0 0.0
      %1111 = vmatprep.subr.mxu0 0.0
      %1112 = vmatpush1.msra.mxu0 0.0
      %1113 = vmatprep.subr.mxu0 0.0
      %1114 = vmatpush1.msra.mxu0 0.0
      %1115 = vmatprep.subr.mxu0 0.0
      %1116 = vmatpush1.msra.mxu0 0.0
      %1117 = vmatprep.subr.mxu0 0.0
      %1118 = vmatpush1.msra.mxu0 0.0
      %1119 = vmatprep.subr.mxu0 0.0
      %1120 = vmatpush1.msra.mxu0 0.0
      %1121 = vmatprep.subr.mxu0 0.0
      %1122 = vmatpush1.msra.mxu0 0.0
      %1123 = vmatprep.subr.mxu0 0.0
      %1124 = vmatpush1.msra.mxu0 0.0
      %1125 = vmatprep.subr.mxu0 0.0
      %1126 = vmatpush1.msra.mxu0 0.0
      %1127 = vmatprep.subr.mxu0 0.0
      %1128 = vmatpush1.msra.mxu0 0.0
      %1129 = vmatprep.subr.mxu0 0.0
      %1130 = vmatpush1.msra.mxu0 0.0
      %1131 = vmatprep.subr.mxu0 0.0
      %1132 = vmatpush1.msra.mxu0 0.0
      %1133 = vmatprep.subr.mxu0 0.0
      %1134 = vmatpush1.msra.mxu0 0.0
      %1135 = vmatprep.subr.mxu0 0.0
      %1136 = vmatpush1.msra.mxu0 0.0
      %1137 = vmatprep.subr.mxu0 0.0
      %1138 = vmatpush1.msra.mxu0 0.0
      %1139 = vmatprep.mubr.f32.mxu0 0.0
      %1140 = vmatmul.mubr.f32.gmra.mrb[0].mxu0 %v977
      %v1141 = vpop.f32.mrb[0].mxu0
      %v1142 = vadd.f32 0.0, %v1141
      %v1143 = vpop.f32.mrb[0].mxu0
      %1144 = vmatprep.mubr.f32.mxu0 0.0
      %1145 = vmatmul.mubr.f32.gmra.mrb[0].mxu0 %v980
      %v1146 = vpop.f32.mrb[0].mxu0
      %v1147 = vadd.f32 0.0, %v1146
      %v1148 = vpop.f32.mrb[0].mxu0
      %1149 = vmatprep.mubr.f32.mxu0 0.0
      %1150 = vmatmul.mubr.f32.gmra.mrb[0].mxu0 %v983
      %v1151 = vpop.f32.mrb[0].mxu0
      %v1152 = vadd.f32 0.0, %v1151
      %v1153 = vpop.f32.mrb[0].mxu0
      %1154 = vmatprep.mubr.f32.mxu0 0.0
      %1155 = vmatmul.mubr.f32.gmra.mrb[0].mxu0 %v986
      %v1156 = vpop.f32.mrb[0].mxu0
      %v1157 = vadd.f32 0.0, %v1156
      %v1158 = vpop.f32.mrb[0].mxu0
      %1159 = vmatprep.mubr.f32.mxu0 0.0
      %1160 = vmatmul.mubr.f32.gmra.mrb[0].mxu0 %v989
      %v1161 = vpop.f32.mrb[0].mxu0
      %v1162 = vadd.f32 0.0, %v1161
      %v1163 = vpop.f32.mrb[0].mxu0
      %1164 = vmatprep.mubr.f32.mxu0 0.0
      %1165 = vmatmul.mubr.f32.gmra.mrb[0].mxu0 %v992
      %v1166 = vpop.f32.mrb[0].mxu0
      %v1167 = vadd.f32 0.0, %v1166
      %v1168 = vpop.f32.mrb[0].mxu0
      %1169 = vmatprep.mubr.f32.mxu0 0.0
      %1170 = vmatmul.mubr.f32.gmra.mrb[0].mxu0 %v995
      %v1171 = vpop.f32.mrb[0].mxu0
      %v1172 = vadd.f32 0.0, %v1171
      %v1173 = vpop.f32.mrb[0].mxu0
      %1174 = vmatprep.mubr.f32.mxu0 0.0
      %1175 = vmatmul.mubr.f32.gmra.mrb[0].mxu0 %v998
      %v1176 = vpop.f32.mrb[0].mxu0
      %v1177 = vadd.f32 0.0, %v1176
      %v1178 = vpop.f32.mrb[0].mxu0
      %1179 = vmatprep.mubr.f32.mxu0 0.0
      %1180 = vmatmul.mubr.f32.gmra.mrb[0].mxu0 %v1001
      %v1181 = vpop.f32.mrb[0].mxu0
      %v1182 = vadd.f32 0.0, %v1181
      %v1183 = vpop.f32.mrb[0].mxu0
      %1184 = vmatprep.mubr.f32.mxu0 0.0
      %1185 = vmatmul.mubr.f32.gmra.mrb[0].mxu0 %v1004
      %v1186 = vpop.f32.mrb[0].mxu0
      %v1187 = vadd.f32 0.0, %v1186
      %v1188 = vpop.f32.mrb[0].mxu0
      %1189 = vmatprep.mubr.f32.mxu0 0.0
      %1190 = vmatmul.mubr.f32.gmra.mrb[0].mxu0 %v1007
      %v1191 = vpop.f32.mrb[0].mxu0
      %v1192 = vadd.f32 0.0, %v1191
      %v1193 = vpop.f32.mrb[0].mxu0
      %1194 = vmatprep.mubr.f32.mxu0 0.0
      %1195 = vmatmul.mubr.f32.gmra.mrb[0].mxu0 %v1010
      %v1196 = vpop.f32.mrb[0].mxu0
      %v1197 = vadd.f32 0.0, %v1196
      %v1198 = vpop.f32.mrb[0].mxu0
      %1199 = vmatprep.mubr.f32.mxu0 0.0
      %1200 = vmatmul.mubr.f32.gmra.mrb[0].mxu0 %v1013
      %v1201 = vpop.f32.mrb[0].mxu0
      %v1202 = vadd.f32 0.0, %v1201
      %v1203 = vpop.f32.mrb[0].mxu0
      %1204 = vmatprep.mubr.f32.mxu0 0.0
      %1205 = vmatmul.mubr.f32.gmra.mrb[0].mxu0 %v1016
      %v1206 = vpop.f32.mrb[0].mxu0
      %v1207 = vadd.f32 0.0, %v1206
      %v1208 = vpop.f32.mrb[0].mxu0
      %1209 = vmatprep.mubr.f32.mxu0 0.0
      %1210 = vmatmul.mubr.f32.gmra.mrb[0].mxu0 %v1019
      %v1211 = vpop.f32.mrb[0].mxu0
      %v1212 = vadd.f32 0.0, %v1211
      %v1213 = vpop.f32.mrb[0].mxu0
      %1214 = vmatprep.mubr.f32.mxu0 0.0
      %1215 = vmatmul.mubr.f32.gmra.mrb[0].mxu0 %v1022
      %v1216 = vpop.f32.mrb[0].mxu0
      %v1217 = vadd.f32 0.0, %v1216
      %v1218 = vpop.f32.mrb[0].mxu0
      %1219 = vmatprep.mubr.f32.mxu0 0.0
      %1220 = vmatmul.mubr.f32.gmra.mrb[0].mxu0 %v1025
      %v1221 = vpop.f32.mrb[0].mxu0
      %v1222 = vadd.f32 0.0, %v1221
      %v1223 = vpop.f32.mrb[0].mxu0
      %1224 = vmatprep.mubr.f32.mxu0 0.0
      %1225 = vmatmul.mubr.f32.gmra.mrb[0].mxu0 %v1028
      %v1226 = vpop.f32.mrb[0].mxu0
      %v1227 = vadd.f32 0.0, %v1226
      %v1228 = vpop.f32.mrb[0].mxu0
      %1229 = vmatprep.mubr.f32.mxu0 0.0
      %1230 = vmatmul.mubr.f32.gmra.mrb[0].mxu0 %v1031
      %v1231 = vpop.f32.mrb[0].mxu0
      %v1232 = vadd.f32 0.0, %v1231
      %v1233 = vpop.f32.mrb[0].mxu0
      %1234 = vmatprep.mubr.f32.mxu0 0.0
      %1235 = vmatmul.mubr.f32.gmra.mrb[0].mxu0 %v1034
      %v1236 = vpop.f32.mrb[0].mxu0
      %v1237 = vadd.f32 0.0, %v1236
      %v1238 = vpop.f32.mrb[0].mxu0
      %1239 = vmatprep.mubr.f32.mxu0 0.0
      %1240 = vmatmul.mubr.f32.gmra.mrb[0].mxu0 %v1037
      %v1241 = vpop.f32.mrb[0].mxu0
      %v1242 = vadd.f32 0.0, %v1241
      %v1243 = vpop.f32.mrb[0].mxu0
      %1244 = vmatprep.mubr.f32.mxu0 0.0
      %1245 = vmatmul.mubr.f32.gmra.mrb[0].mxu0 %v1040
      %v1246 = vpop.f32.mrb[0].mxu0
      %v1247 = vadd.f32 0.0, %v1246
      %v1248 = vpop.f32.mrb[0].mxu0
      %1249 = vmatprep.mubr.f32.mxu0 0.0
      %1250 = vmatmul.mubr.f32.gmra.mrb[0].mxu0 %v1043
      %v1251 = vpop.f32.mrb[0].mxu0
      %v1252 = vadd.f32 0.0, %v1251
      %v1253 = vpop.f32.mrb[0].mxu0
      %1254 = vmatprep.mubr.f32.mxu0 0.0
      %1255 = vmatmul.mubr.f32.gmra.mrb[0].mxu0 %v1046
      %v1256 = vpop.f32.mrb[0].mxu0
      %v1257 = vadd.f32 0.0, %v1256
      %v1258 = vpop.f32.mrb[0].mxu0
      %1259 = vmatprep.mubr.f32.mxu0 0.0
      %1260 = vmatmul.mubr.f32.gmra.mrb[0].mxu0 %v1049
      %v1261 = vpop.f32.mrb[0].mxu0
      %v1262 = vadd.f32 0.0, %v1261
      %v1263 = vpop.f32.mrb[0].mxu0
      %1264 = vmatprep.mubr.f32.mxu0 0.0
      %1265 = vmatmul.mubr.f32.gmra.mrb[0].mxu0 %v1052
      %v1266 = vpop.f32.mrb[0].mxu0
      %v1267 = vadd.f32 0.0, %v1266
      %v1268 = vpop.f32.mrb[0].mxu0
      %1269 = vmatprep.mubr.f32.mxu0 0.0
      %1270 = vmatmul.mubr.f32.gmra.mrb[0].mxu0 %v1055
      %v1271 = vpop.f32.mrb[0].mxu0
      %v1272 = vadd.f32 0.0, %v1271
      %v1273 = vpop.f32.mrb[0].mxu0
      %1274 = vmatprep.mubr.f32.mxu0 0.0
      %1275 = vmatmul.mubr.f32.gmra.mrb[0].mxu0 %v1058
      %v1276 = vpop.f32.mrb[0].mxu0
      %v1277 = vadd.f32 0.0, %v1276
      %v1278 = vpop.f32.mrb[0].mxu0
      %1279 = vmatprep.mubr.f32.mxu0 0.0
      %1280 = vmatmul.mubr.f32.gmra.mrb[0].mxu0 %v1061
      %v1281 = vpop.f32.mrb[0].mxu0
      %v1282 = vadd.f32 0.0, %v1281
      %v1283 = vpop.f32.mrb[0].mxu0
      %1284 = vmatprep.mubr.f32.mxu0 0.0
      %1285 = vmatmul.mubr.f32.gmra.mrb[0].mxu0 %v1064
      %v1286 = vpop.f32.mrb[0].mxu0
      %v1287 = vadd.f32 0.0, %v1286
      %v1288 = vpop.f32.mrb[0].mxu0
      %1289 = vmatprep.mubr.f32.mxu0 0.0
      %1290 = vmatmul.mubr.f32.gmra.mrb[0].mxu0 %v1067
      %v1291 = vpop.f32.mrb[0].mxu0
      %v1292 = vadd.f32 0.0, %v1291
      %v1293 = vpop.f32.mrb[0].mxu0
      %1294 = vmatprep.mubr.f32.mxu0 0.0
      %1295 = vmatmul.mubr.f32.gmra.mrb[0].mxu0 %v1070
      %v1296 = vpop.f32.mrb[0].mxu0
      %v1297 = vadd.f32 0.0, %v1296
      %v1298 = vpop.f32.mrb[0].mxu0
      %1299 = vdwg.mxu0
      %v1300 = vadd.f32 %v784, %v1142
      %v1301 = vadd.f32 %v789, %v1147
      %v1302 = vadd.f32 %v794, %v1152
      %v1303 = vadd.f32 %v799, %v1157
      %v1304 = vadd.f32 %v804, %v1162
      %v1305 = vadd.f32 %v809, %v1167
      %v1306 = vadd.f32 %v814, %v1172
      %v1307 = vadd.f32 %v819, %v1177
      %v1308 = vadd.f32 %v824, %v1182
      %v1309 = vadd.f32 %v829, %v1187
      %v1310 = vadd.f32 %v834, %v1192
      %v1311 = vadd.f32 %v839, %v1197
      %v1312 = vadd.f32 %v844, %v1202
      %v1313 = vadd.f32 %v849, %v1207
      %v1314 = vadd.f32 %v854, %v1212
      %v1315 = vadd.f32 %v859, %v1217
      %v1316 = vadd.f32 %v864, %v1222
      %v1317 = vadd.f32 %v869, %v1227
      %v1318 = vadd.f32 %v874, %v1232
      %v1319 = vadd.f32 %v879, %v1237
      %v1320 = vadd.f32 %v884, %v1242
      %v1321 = vadd.f32 %v889, %v1247
      %v1322 = vadd.f32 %v894, %v1252
      %v1323 = vadd.f32 %v899, %v1257
      %v1324 = vadd.f32 %v904, %v1262
      %v1325 = vadd.f32 %v909, %v1267
      %v1326 = vadd.f32 %v914, %v1272
      %v1327 = vadd.f32 %v919, %v1277
      %v1328 = vadd.f32 %v924, %v1282
      %v1329 = vadd.f32 %v929, %v1287
      %v1330 = vadd.f32 %v934, %v1292
      %v1331 = vadd.f32 %v939, %v1297
      %s1332 = scalar_lea.vmem %s219, 24
      %v1333 = vld [vmem:[%s1332] sm:$0xff]
      %v1334 = vld [vmem:[%s1332 + $0x8] sm:$0xff]
      %v1335 = vld [vmem:[%s1332 + $0x18] sm:$0xff]
      %v1336 = vld [vmem:[%s1332 + $0x20] sm:$0xff]
      %v1337 = vld [vmem:[%s1332 + $0x30] sm:$0xff]
      %v1338 = vld [vmem:[%s1332 + $0x38] sm:$0xff]
      %v1339 = vld [vmem:[%s1332 + $0x48] sm:$0xff]
      %v1340 = vld [vmem:[%s1332 + $0x50] sm:$0xff]
      %v1341 = vld [vmem:[%s1332 + $0x60] sm:$0xff]
      %v1342 = vld [vmem:[%s1332 + $0x68] sm:$0xff]
      %v1343 = vld [vmem:[%s1332 + $0x78] sm:$0xff]
      %v1344 = vld [vmem:[%s1332 + $0x80] sm:$0xff]
      %v1345 = vld [vmem:[%s1332 + $0x90] sm:$0xff]
      %v1346 = vld [vmem:[%s1332 + $0x98] sm:$0xff]
      %v1347 = vld [vmem:[%s1332 + $0xa8] sm:$0xff]
      %v1348 = vld [vmem:[%s1332 + $0xb0] sm:$0xff]
      %v1349 = vld [vmem:[%s1332 + $0xc0] sm:$0xff]
      %v1350 = vld [vmem:[%s1332 + $0xc8] sm:$0xff]
      %v1351 = vld [vmem:[%s1332 + $0xd8] sm:$0xff]
      %v1352 = vld [vmem:[%s1332 + $0xe0] sm:$0xff]
      %v1353 = vld [vmem:[%s1332 + $0xf0] sm:$0xff]
      %v1354 = vld [vmem:[%s1332 + $0xf8] sm:$0xff]
      %v1355 = vld [vmem:[%s1332 + $0x108] sm:$0xff]
      %v1356 = vld [vmem:[%s1332 + $0x110] sm:$0xff]
      %v1357 = vld [vmem:[%s1332 + $0x120] sm:$0xff]
      %v1358 = vld [vmem:[%s1332 + $0x128] sm:$0xff]
      %v1359 = vld [vmem:[%s1332 + $0x138] sm:$0xff]
      %v1360 = vld [vmem:[%s1332 + $0x140] sm:$0xff]
      %v1361 = vld [vmem:[%s1332 + $0x150] sm:$0xff]
      %v1362 = vld [vmem:[%s1332 + $0x158] sm:$0xff]
      %v1363 = vld [vmem:[%s1332 + $0x168] sm:$0xff]
      %v1364 = vld [vmem:[%s1332 + $0x170] sm:$0xff]
      %s1365 = scalar_lea.vmem %s2, 12
      %v1366 = vld [vmem:[%s1365] sm:$0xf]
      %v1368 = vsel %vm292, %v1333, 0
      %v1371 = vsel %vm292, %v1334, 0
      %v1374 = vsel %vm292, %v1335, 0
      %v1377 = vsel %vm292, %v1336, 0
      %v1380 = vsel %vm292, %v1337, 0
      %v1383 = vsel %vm292, %v1338, 0
      %v1386 = vsel %vm292, %v1339, 0
      %v1389 = vsel %vm292, %v1340, 0
      %v1392 = vsel %vm292, %v1341, 0
      %v1395 = vsel %vm292, %v1342, 0
      %v1398 = vsel %vm292, %v1343, 0
      %v1401 = vsel %vm292, %v1344, 0
      %v1404 = vsel %vm292, %v1345, 0
      %v1407 = vsel %vm292, %v1346, 0
      %v1410 = vsel %vm292, %v1347, 0
      %v1413 = vsel %vm292, %v1348, 0
      %v1416 = vsel %vm292, %v1349, 0
      %v1419 = vsel %vm292, %v1350, 0
      %v1422 = vsel %vm292, %v1351, 0
      %v1425 = vsel %vm292, %v1352, 0
      %v1428 = vsel %vm292, %v1353, 0
      %v1431 = vsel %vm292, %v1354, 0
      %v1434 = vsel %vm292, %v1355, 0
      %v1437 = vsel %vm292, %v1356, 0
      %v1440 = vsel %vm292, %v1357, 0
      %v1443 = vsel %vm292, %v1358, 0
      %v1446 = vsel %vm292, %v1359, 0
      %v1449 = vsel %vm292, %v1360, 0
      %v1452 = vsel %vm292, %v1361, 0
      %v1455 = vsel %vm292, %v1362, 0
      %v1458 = vsel %vm292, %v1363, 0
      %v1461 = vsel %vm292, %v1364, 0
      %v1464 = vsel %vm389, %v1366, 0
      %1466 = vmatprep.subr.mxu0 0.0
      %1467 = vmatpush1.msra.mxu0 %v1464
      %1468 = vmatprep.subr.mxu0 0.0
      %1469 = vmatpush1.msra.mxu0 0.0
      %1470 = vmatprep.subr.mxu0 0.0
      %1471 = vmatpush1.msra.mxu0 0.0
      %1472 = vmatprep.subr.mxu0 0.0
      %1473 = vmatpush1.msra.mxu0 0.0
      %1474 = vmatprep.subr.mxu0 0.0
      %1475 = vmatpush1.msra.mxu0 0.0
      %1476 = vmatprep.subr.mxu0 0.0
      %1477 = vmatpush1.msra.mxu0 0.0
      %1478 = vmatprep.subr.mxu0 0.0
      %1479 = vmatpush1.msra.mxu0 0.0
      %1480 = vmatprep.subr.mxu0 0.0
      %1481 = vmatpush1.msra.mxu0 0.0
      %1482 = vmatprep.subr.mxu0 0.0
      %1483 = vmatpush1.msra.mxu0 0.0
      %1484 = vmatprep.subr.mxu0 0.0
      %1485 = vmatpush1.msra.mxu0 0.0
      %1486 = vmatprep.subr.mxu0 0.0
      %1487 = vmatpush1.msra.mxu0 0.0
      %1488 = vmatprep.subr.mxu0 0.0
      %1489 = vmatpush1.msra.mxu0 0.0
      %1490 = vmatprep.subr.mxu0 0.0
      %1491 = vmatpush1.msra.mxu0 0.0
      %1492 = vmatprep.subr.mxu0 0.0
      %1493 = vmatpush1.msra.mxu0 0.0
      %1494 = vmatprep.subr.mxu0 0.0
      %1495 = vmatpush1.msra.mxu0 0.0
      %1496 = vmatprep.subr.mxu0 0.0
      %1497 = vmatpush1.msra.mxu0 0.0
      %1498 = vmatprep.subr.mxu0 0.0
      %1499 = vmatpush1.msra.mxu0 0.0
      %1500 = vmatprep.subr.mxu0 0.0
      %1501 = vmatpush1.msra.mxu0 0.0
      %1502 = vmatprep.subr.mxu0 0.0
      %1503 = vmatpush1.msra.mxu0 0.0
      %1504 = vmatprep.subr.mxu0 0.0
      %1505 = vmatpush1.msra.mxu0 0.0
      %1506 = vmatprep.subr.mxu0 0.0
      %1507 = vmatpush1.msra.mxu0 0.0
      %1508 = vmatprep.subr.mxu0 0.0
      %1509 = vmatpush1.msra.mxu0 0.0
      %1510 = vmatprep.subr.mxu0 0.0
      %1511 = vmatpush1.msra.mxu0 0.0
      %1512 = vmatprep.subr.mxu0 0.0
      %1513 = vmatpush1.msra.mxu0 0.0
      %1514 = vmatprep.subr.mxu0 0.0
      %1515 = vmatpush1.msra.mxu0 0.0
      %1516 = vmatprep.subr.mxu0 0.0
      %1517 = vmatpush1.msra.mxu0 0.0
      %1518 = vmatprep.subr.mxu0 0.0
      %1519 = vmatpush1.msra.mxu0 0.0
      %1520 = vmatprep.subr.mxu0 0.0
      %1521 = vmatpush1.msra.mxu0 0.0
      %1522 = vmatprep.subr.mxu0 0.0
      %1523 = vmatpush1.msra.mxu0 0.0
      %1524 = vmatprep.subr.mxu0 0.0
      %1525 = vmatpush1.msra.mxu0 0.0
      %1526 = vmatprep.subr.mxu0 0.0
      %1527 = vmatpush1.msra.mxu0 0.0
      %1528 = vmatprep.subr.mxu0 0.0
      %1529 = vmatpush1.msra.mxu0 0.0
      %1530 = vmatprep.mubr.f32.mxu0 0.0
      %1531 = vmatmul.mubr.f32.gmra.mrb[0].mxu0 %v1368
      %v1532 = vpop.f32.mrb[0].mxu0
      %v1533 = vadd.f32 0.0, %v1532
      %v1534 = vpop.f32.mrb[0].mxu0
      %1535 = vmatprep.mubr.f32.mxu0 0.0
      %1536 = vmatmul.mubr.f32.gmra.mrb[0].mxu0 %v1371
      %v1537 = vpop.f32.mrb[0].mxu0
      %v1538 = vadd.f32 0.0, %v1537
      %v1539 = vpop.f32.mrb[0].mxu0
      %1540 = vmatprep.mubr.f32.mxu0 0.0
      %1541 = vmatmul.mubr.f32.gmra.mrb[0].mxu0 %v1374
      %v1542 = vpop.f32.mrb[0].mxu0
      %v1543 = vadd.f32 0.0, %v1542
      %v1544 = vpop.f32.mrb[0].mxu0
      %1545 = vmatprep.mubr.f32.mxu0 0.0
      %1546 = vmatmul.mubr.f32.gmra.mrb[0].mxu0 %v1377
      %v1547 = vpop.f32.mrb[0].mxu0
      %v1548 = vadd.f32 0.0, %v1547
      %v1549 = vpop.f32.mrb[0].mxu0
      %1550 = vmatprep.mubr.f32.mxu0 0.0
      %1551 = vmatmul.mubr.f32.gmra.mrb[0].mxu0 %v1380
      %v1552 = vpop.f32.mrb[0].mxu0
      %v1553 = vadd.f32 0.0, %v1552
      %v1554 = vpop.f32.mrb[0].mxu0
      %1555 = vmatprep.mubr.f32.mxu0 0.0
      %1556 = vmatmul.mubr.f32.gmra.mrb[0].mxu0 %v1383
      %v1557 = vpop.f32.mrb[0].mxu0
      %v1558 = vadd.f32 0.0, %v1557
      %v1559 = vpop.f32.mrb[0].mxu0
      %1560 = vmatprep.mubr.f32.mxu0 0.0
      %1561 = vmatmul.mubr.f32.gmra.mrb[0].mxu0 %v1386
      %v1562 = vpop.f32.mrb[0].mxu0
      %v1563 = vadd.f32 0.0, %v1562
      %v1564 = vpop.f32.mrb[0].mxu0
      %1565 = vmatprep.mubr.f32.mxu0 0.0
      %1566 = vmatmul.mubr.f32.gmra.mrb[0].mxu0 %v1389
      %v1567 = vpop.f32.mrb[0].mxu0
      %v1568 = vadd.f32 0.0, %v1567
      %v1569 = vpop.f32.mrb[0].mxu0
      %1570 = vmatprep.mubr.f32.mxu0 0.0
      %1571 = vmatmul.mubr.f32.gmra.mrb[0].mxu0 %v1392
      %v1572 = vpop.f32.mrb[0].mxu0
      %v1573 = vadd.f32 0.0, %v1572
      %v1574 = vpop.f32.mrb[0].mxu0
      %1575 = vmatprep.mubr.f32.mxu0 0.0
      %1576 = vmatmul.mubr.f32.gmra.mrb[0].mxu0 %v1395
      %v1577 = vpop.f32.mrb[0].mxu0
      %v1578 = vadd.f32 0.0, %v1577
      %v1579 = vpop.f32.mrb[0].mxu0
      %1580 = vmatprep.mubr.f32.mxu0 0.0
      %1581 = vmatmul.mubr.f32.gmra.mrb[0].mxu0 %v1398
      %v1582 = vpop.f32.mrb[0].mxu0
      %v1583 = vadd.f32 0.0, %v1582
      %v1584 = vpop.f32.mrb[0].mxu0
      %1585 = vmatprep.mubr.f32.mxu0 0.0
      %1586 = vmatmul.mubr.f32.gmra.mrb[0].mxu0 %v1401
      %v1587 = vpop.f32.mrb[0].mxu0
      %v1588 = vadd.f32 0.0, %v1587
      %v1589 = vpop.f32.mrb[0].mxu0
      %1590 = vmatprep.mubr.f32.mxu0 0.0
      %1591 = vmatmul.mubr.f32.gmra.mrb[0].mxu0 %v1404
      %v1592 = vpop.f32.mrb[0].mxu0
      %v1593 = vadd.f32 0.0, %v1592
      %v1594 = vpop.f32.mrb[0].mxu0
      %1595 = vmatprep.mubr.f32.mxu0 0.0
      %1596 = vmatmul.mubr.f32.gmra.mrb[0].mxu0 %v1407
      %v1597 = vpop.f32.mrb[0].mxu0
      %v1598 = vadd.f32 0.0, %v1597
      %v1599 = vpop.f32.mrb[0].mxu0
      %1600 = vmatprep.mubr.f32.mxu0 0.0
      %1601 = vmatmul.mubr.f32.gmra.mrb[0].mxu0 %v1410
      %v1602 = vpop.f32.mrb[0].mxu0
      %v1603 = vadd.f32 0.0, %v1602
      %v1604 = vpop.f32.mrb[0].mxu0
      %1605 = vmatprep.mubr.f32.mxu0 0.0
      %1606 = vmatmul.mubr.f32.gmra.mrb[0].mxu0 %v1413
      %v1607 = vpop.f32.mrb[0].mxu0
      %v1608 = vadd.f32 0.0, %v1607
      %v1609 = vpop.f32.mrb[0].mxu0
      %1610 = vmatprep.mubr.f32.mxu0 0.0
      %1611 = vmatmul.mubr.f32.gmra.mrb[0].mxu0 %v1416
      %v1612 = vpop.f32.mrb[0].mxu0
      %v1613 = vadd.f32 0.0, %v1612
      %v1614 = vpop.f32.mrb[0].mxu0
      %1615 = vmatprep.mubr.f32.mxu0 0.0
      %1616 = vmatmul.mubr.f32.gmra.mrb[0].mxu0 %v1419
      %v1617 = vpop.f32.mrb[0].mxu0
      %v1618 = vadd.f32 0.0, %v1617
      %v1619 = vpop.f32.mrb[0].mxu0
      %1620 = vmatprep.mubr.f32.mxu0 0.0
      %1621 = vmatmul.mubr.f32.gmra.mrb[0].mxu0 %v1422
      %v1622 = vpop.f32.mrb[0].mxu0
      %v1623 = vadd.f32 0.0, %v1622
      %v1624 = vpop.f32.mrb[0].mxu0
      %1625 = vmatprep.mubr.f32.mxu0 0.0
      %1626 = vmatmul.mubr.f32.gmra.mrb[0].mxu0 %v1425
      %v1627 = vpop.f32.mrb[0].mxu0
      %v1628 = vadd.f32 0.0, %v1627
      %v1629 = vpop.f32.mrb[0].mxu0
      %1630 = vmatprep.mubr.f32.mxu0 0.0
      %1631 = vmatmul.mubr.f32.gmra.mrb[0].mxu0 %v1428
      %v1632 = vpop.f32.mrb[0].mxu0
      %v1633 = vadd.f32 0.0, %v1632
      %v1634 = vpop.f32.mrb[0].mxu0
      %1635 = vmatprep.mubr.f32.mxu0 0.0
      %1636 = vmatmul.mubr.f32.gmra.mrb[0].mxu0 %v1431
      %v1637 = vpop.f32.mrb[0].mxu0
      %v1638 = vadd.f32 0.0, %v1637
      %v1639 = vpop.f32.mrb[0].mxu0
      %1640 = vmatprep.mubr.f32.mxu0 0.0
      %1641 = vmatmul.mubr.f32.gmra.mrb[0].mxu0 %v1434
      %v1642 = vpop.f32.mrb[0].mxu0
      %v1643 = vadd.f32 0.0, %v1642
      %v1644 = vpop.f32.mrb[0].mxu0
      %1645 = vmatprep.mubr.f32.mxu0 0.0
      %1646 = vmatmul.mubr.f32.gmra.mrb[0].mxu0 %v1437
      %v1647 = vpop.f32.mrb[0].mxu0
      %v1648 = vadd.f32 0.0, %v1647
      %v1649 = vpop.f32.mrb[0].mxu0
      %1650 = vmatprep.mubr.f32.mxu0 0.0
      %1651 = vmatmul.mubr.f32.gmra.mrb[0].mxu0 %v1440
      %v1652 = vpop.f32.mrb[0].mxu0
      %v1653 = vadd.f32 0.0, %v1652
      %v1654 = vpop.f32.mrb[0].mxu0
      %1655 = vmatprep.mubr.f32.mxu0 0.0
      %1656 = vmatmul.mubr.f32.gmra.mrb[0].mxu0 %v1443
      %v1657 = vpop.f32.mrb[0].mxu0
      %v1658 = vadd.f32 0.0, %v1657
      %v1659 = vpop.f32.mrb[0].mxu0
      %1660 = vmatprep.mubr.f32.mxu0 0.0
      %1661 = vmatmul.mubr.f32.gmra.mrb[0].mxu0 %v1446
      %v1662 = vpop.f32.mrb[0].mxu0
      %v1663 = vadd.f32 0.0, %v1662
      %v1664 = vpop.f32.mrb[0].mxu0
      %1665 = vmatprep.mubr.f32.mxu0 0.0
      %1666 = vmatmul.mubr.f32.gmra.mrb[0].mxu0 %v1449
      %v1667 = vpop.f32.mrb[0].mxu0
      %v1668 = vadd.f32 0.0, %v1667
      %v1669 = vpop.f32.mrb[0].mxu0
      %1670 = vmatprep.mubr.f32.mxu0 0.0
      %1671 = vmatmul.mubr.f32.gmra.mrb[0].mxu0 %v1452
      %v1672 = vpop.f32.mrb[0].mxu0
      %v1673 = vadd.f32 0.0, %v1672
      %v1674 = vpop.f32.mrb[0].mxu0
      %1675 = vmatprep.mubr.f32.mxu0 0.0
      %1676 = vmatmul.mubr.f32.gmra.mrb[0].mxu0 %v1455
      %v1677 = vpop.f32.mrb[0].mxu0
      %v1678 = vadd.f32 0.0, %v1677
      %v1679 = vpop.f32.mrb[0].mxu0
      %1680 = vmatprep.mubr.f32.mxu0 0.0
      %1681 = vmatmul.mubr.f32.gmra.mrb[0].mxu0 %v1458
      %v1682 = vpop.f32.mrb[0].mxu0
      %v1683 = vadd.f32 0.0, %v1682
      %v1684 = vpop.f32.mrb[0].mxu0
      %1685 = vmatprep.mubr.f32.mxu0 0.0
      %1686 = vmatmul.mubr.f32.gmra.mrb[0].mxu0 %v1461
      %v1687 = vpop.f32.mrb[0].mxu0
      %v1688 = vadd.f32 0.0, %v1687
      %v1689 = vpop.f32.mrb[0].mxu0
      %1690 = vdwg.mxu0
      %v1691 = vadd.f32 %v1300, %v1533
      %v1692 = vadd.f32 %v1301, %v1538
      %v1693 = vadd.f32 %v1302, %v1543
      %v1694 = vadd.f32 %v1303, %v1548
      %v1695 = vadd.f32 %v1304, %v1553
      %v1696 = vadd.f32 %v1305, %v1558
      %v1697 = vadd.f32 %v1306, %v1563
      %v1698 = vadd.f32 %v1307, %v1568
      %v1699 = vadd.f32 %v1308, %v1573
      %v1700 = vadd.f32 %v1309, %v1578
      %v1701 = vadd.f32 %v1310, %v1583
      %v1702 = vadd.f32 %v1311, %v1588
      %v1703 = vadd.f32 %v1312, %v1593
      %v1704 = vadd.f32 %v1313, %v1598
      %v1705 = vadd.f32 %v1314, %v1603
      %v1706 = vadd.f32 %v1315, %v1608
      %v1707 = vadd.f32 %v1316, %v1613
      %v1708 = vadd.f32 %v1317, %v1618
      %v1709 = vadd.f32 %v1318, %v1623
      %v1710 = vadd.f32 %v1319, %v1628
      %v1711 = vadd.f32 %v1320, %v1633
      %v1712 = vadd.f32 %v1321, %v1638
      %v1713 = vadd.f32 %v1322, %v1643
      %v1714 = vadd.f32 %v1323, %v1648
      %v1715 = vadd.f32 %v1324, %v1653
      %v1716 = vadd.f32 %v1325, %v1658
      %v1717 = vadd.f32 %v1326, %v1663
      %v1718 = vadd.f32 %v1327, %v1668
      %v1719 = vadd.f32 %v1328, %v1673
      %v1720 = vadd.f32 %v1329, %v1678
      %v1721 = vadd.f32 %v1330, %v1683
      %v1722 = vadd.f32 %v1331, %v1688
      %v1723 = vld [vmem:[%s1332 + $0x1] sm:$0xff]
      %v1724 = vld [vmem:[%s1332 + $0x9] sm:$0xff]
      %v1725 = vld [vmem:[%s1332 + $0x19] sm:$0xff]
      %v1726 = vld [vmem:[%s1332 + $0x21] sm:$0xff]
      %v1727 = vld [vmem:[%s1332 + $0x31] sm:$0xff]
      %v1728 = vld [vmem:[%s1332 + $0x39] sm:$0xff]
      %v1729 = vld [vmem:[%s1332 + $0x49] sm:$0xff]
      %v1730 = vld [vmem:[%s1332 + $0x51] sm:$0xff]
      %v1731 = vld [vmem:[%s1332 + $0x61] sm:$0xff]
      %v1732 = vld [vmem:[%s1332 + $0x69] sm:$0xff]
      %v1733 = vld [vmem:[%s1332 + $0x79] sm:$0xff]
      %v1734 = vld [vmem:[%s1332 + $0x81] sm:$0xff]
      %v1735 = vld [vmem:[%s1332 + $0x91] sm:$0xff]
      %v1736 = vld [vmem:[%s1332 + $0x99] sm:$0xff]
      %v1737 = vld [vmem:[%s1332 + $0xa9] sm:$0xff]
      %v1738 = vld [vmem:[%s1332 + $0xb1] sm:$0xff]
      %v1739 = vld [vmem:[%s1332 + $0xc1] sm:$0xff]
      %v1740 = vld [vmem:[%s1332 + $0xc9] sm:$0xff]
      %v1741 = vld [vmem:[%s1332 + $0xd9] sm:$0xff]
      %v1742 = vld [vmem:[%s1332 + $0xe1] sm:$0xff]
      %v1743 = vld [vmem:[%s1332 + $0xf1] sm:$0xff]
      %v1744 = vld [vmem:[%s1332 + $0xf9] sm:$0xff]
      %v1745 = vld [vmem:[%s1332 + $0x109] sm:$0xff]
      %v1746 = vld [vmem:[%s1332 + $0x111] sm:$0xff]
      %v1747 = vld [vmem:[%s1332 + $0x121] sm:$0xff]
      %v1748 = vld [vmem:[%s1332 + $0x129] sm:$0xff]
      %v1749 = vld [vmem:[%s1332 + $0x139] sm:$0xff]
      %v1750 = vld [vmem:[%s1332 + $0x141] sm:$0xff]
      %v1751 = vld [vmem:[%s1332 + $0x151] sm:$0xff]
      %v1752 = vld [vmem:[%s1332 + $0x159] sm:$0xff]
      %v1753 = vld [vmem:[%s1332 + $0x169] sm:$0xff]
      %v1754 = vld [vmem:[%s1332 + $0x171] sm:$0xff]
      %s1755 = scalar_lea.vmem %s2, 16
      %v1756 = vld [vmem:[%s1755] sm:$0xf]
      %v1758 = vsel %vm292, %v1723, 0
      %v1761 = vsel %vm292, %v1724, 0
      %v1764 = vsel %vm292, %v1725, 0
      %v1767 = vsel %vm292, %v1726, 0
      %v1770 = vsel %vm292, %v1727, 0
      %v1773 = vsel %vm292, %v1728, 0
      %v1776 = vsel %vm292, %v1729, 0
      %v1779 = vsel %vm292, %v1730, 0
      %v1782 = vsel %vm292, %v1731, 0
      %v1785 = vsel %vm292, %v1732, 0
      %v1788 = vsel %vm292, %v1733, 0
      %v1791 = vsel %vm292, %v1734, 0
      %v1794 = vsel %vm292, %v1735, 0
      %v1797 = vsel %vm292, %v1736, 0
      %v1800 = vsel %vm292, %v1737, 0
      %v1803 = vsel %vm292, %v1738, 0
      %v1806 = vsel %vm292, %v1739, 0
      %v1809 = vsel %vm292, %v1740, 0
      %v1812 = vsel %vm292, %v1741, 0
      %v1815 = vsel %vm292, %v1742, 0
      %v1818 = vsel %vm292, %v1743, 0
      %v1821 = vsel %vm292, %v1744, 0
      %v1824 = vsel %vm292, %v1745, 0
      %v1827 = vsel %vm292, %v1746, 0
      %v1830 = vsel %vm292, %v1747, 0
      %v1833 = vsel %vm292, %v1748, 0
      %v1836 = vsel %vm292, %v1749, 0
      %v1839 = vsel %vm292, %v1750, 0
      %v1842 = vsel %vm292, %v1751, 0
      %v1845 = vsel %vm292, %v1752, 0
      %v1848 = vsel %vm292, %v1753, 0
      %v1851 = vsel %vm292, %v1754, 0
      %v1854 = vsel %vm389, %v1756, 0
      %1856 = vmatprep.subr.mxu0 0.0
      %1857 = vmatpush1.msra.mxu0 %v1854
      %1858 = vmatprep.subr.mxu0 0.0
      %1859 = vmatpush1.msra.mxu0 0.0
      %1860 = vmatprep.subr.mxu0 0.0
      %1861 = vmatpush1.msra.mxu0 0.0
      %1862 = vmatprep.subr.mxu0 0.0
      %1863 = vmatpush1.msra.mxu0 0.0
      %1864 = vmatprep.subr.mxu0 0.0
      %1865 = vmatpush1.msra.mxu0 0.0
      %1866 = vmatprep.subr.mxu0 0.0
      %1867 = vmatpush1.msra.mxu0 0.0
      %1868 = vmatprep.subr.mxu0 0.0
      %1869 = vmatpush1.msra.mxu0 0.0
      %1870 = vmatprep.subr.mxu0 0.0
      %1871 = vmatpush1.msra.mxu0 0.0
      %1872 = vmatprep.subr.mxu0 0.0
      %1873 = vmatpush1.msra.mxu0 0.0
      %1874 = vmatprep.subr.mxu0 0.0
      %1875 = vmatpush1.msra.mxu0 0.0
      %1876 = vmatprep.subr.mxu0 0.0
      %1877 = vmatpush1.msra.mxu0 0.0
      %1878 = vmatprep.subr.mxu0 0.0
      %1879 = vmatpush1.msra.mxu0 0.0
      %1880 = vmatprep.subr.mxu0 0.0
      %1881 = vmatpush1.msra.mxu0 0.0
      %1882 = vmatprep.subr.mxu0 0.0
      %1883 = vmatpush1.msra.mxu0 0.0
      %1884 = vmatprep.subr.mxu0 0.0
      %1885 = vmatpush1.msra.mxu0 0.0
      %1886 = vmatprep.subr.mxu0 0.0
      %1887 = vmatpush1.msra.mxu0 0.0
      %1888 = vmatprep.subr.mxu0 0.0
      %1889 = vmatpush1.msra.mxu0 0.0
      %1890 = vmatprep.subr.mxu0 0.0
      %1891 = vmatpush1.msra.mxu0 0.0
      %1892 = vmatprep.subr.mxu0 0.0
      %1893 = vmatpush1.msra.mxu0 0.0
      %1894 = vmatprep.subr.mxu0 0.0
      %1895 = vmatpush1.msra.mxu0 0.0
      %1896 = vmatprep.subr.mxu0 0.0
      %1897 = vmatpush1.msra.mxu0 0.0
      %1898 = vmatprep.subr.mxu0 0.0
      %1899 = vmatpush1.msra.mxu0 0.0
      %1900 = vmatprep.subr.mxu0 0.0
      %1901 = vmatpush1.msra.mxu0 0.0
      %1902 = vmatprep.subr.mxu0 0.0
      %1903 = vmatpush1.msra.mxu0 0.0
      %1904 = vmatprep.subr.mxu0 0.0
      %1905 = vmatpush1.msra.mxu0 0.0
      %1906 = vmatprep.subr.mxu0 0.0
      %1907 = vmatpush1.msra.mxu0 0.0
      %1908 = vmatprep.subr.mxu0 0.0
      %1909 = vmatpush1.msra.mxu0 0.0
      %1910 = vmatprep.subr.mxu0 0.0
      %1911 = vmatpush1.msra.mxu0 0.0
      %1912 = vmatprep.subr.mxu0 0.0
      %1913 = vmatpush1.msra.mxu0 0.0
      %1914 = vmatprep.subr.mxu0 0.0
      %1915 = vmatpush1.msra.mxu0 0.0
      %1916 = vmatprep.subr.mxu0 0.0
      %1917 = vmatpush1.msra.mxu0 0.0
      %1918 = vmatprep.subr.mxu0 0.0
      %1919 = vmatpush1.msra.mxu0 0.0
      %1920 = vmatprep.mubr.f32.mxu0 0.0
      %1921 = vmatmul.mubr.f32.gmra.mrb[0].mxu0 %v1758
      %v1922 = vpop.f32.mrb[0].mxu0
      %v1923 = vadd.f32 0.0, %v1922
      %v1924 = vpop.f32.mrb[0].mxu0
      %1925 = vmatprep.mubr.f32.mxu0 0.0
      %1926 = vmatmul.mubr.f32.gmra.mrb[0].mxu0 %v1761
      %v1927 = vpop.f32.mrb[0].mxu0
      %v1928 = vadd.f32 0.0, %v1927
      %v1929 = vpop.f32.mrb[0].mxu0
      %1930 = vmatprep.mubr.f32.mxu0 0.0
      %1931 = vmatmul.mubr.f32.gmra.mrb[0].mxu0 %v1764
      %v1932 = vpop.f32.mrb[0].mxu0
      %v1933 = vadd.f32 0.0, %v1932
      %v1934 = vpop.f32.mrb[0].mxu0
      %1935 = vmatprep.mubr.f32.mxu0 0.0
      %1936 = vmatmul.mubr.f32.gmra.mrb[0].mxu0 %v1767
      %v1937 = vpop.f32.mrb[0].mxu0
      %v1938 = vadd.f32 0.0, %v1937
      %v1939 = vpop.f32.mrb[0].mxu0
      %1940 = vmatprep.mubr.f32.mxu0 0.0
      %1941 = vmatmul.mubr.f32.gmra.mrb[0].mxu0 %v1770
      %v1942 = vpop.f32.mrb[0].mxu0
      %v1943 = vadd.f32 0.0, %v1942
      %v1944 = vpop.f32.mrb[0].mxu0
      %1945 = vmatprep.mubr.f32.mxu0 0.0
      %1946 = vmatmul.mubr.f32.gmra.mrb[0].mxu0 %v1773
      %v1947 = vpop.f32.mrb[0].mxu0
      %v1948 = vadd.f32 0.0, %v1947
      %v1949 = vpop.f32.mrb[0].mxu0
      %1950 = vmatprep.mubr.f32.mxu0 0.0
      %1951 = vmatmul.mubr.f32.gmra.mrb[0].mxu0 %v1776
      %v1952 = vpop.f32.mrb[0].mxu0
      %v1953 = vadd.f32 0.0, %v1952
      %v1954 = vpop.f32.mrb[0].mxu0
      %1955 = vmatprep.mubr.f32.mxu0 0.0
      %1956 = vmatmul.mubr.f32.gmra.mrb[0].mxu0 %v1779
      %v1957 = vpop.f32.mrb[0].mxu0
      %v1958 = vadd.f32 0.0, %v1957
      %v1959 = vpop.f32.mrb[0].mxu0
      %1960 = vmatprep.mubr.f32.mxu0 0.0
      %1961 = vmatmul.mubr.f32.gmra.mrb[0].mxu0 %v1782
      %v1962 = vpop.f32.mrb[0].mxu0
      %v1963 = vadd.f32 0.0, %v1962
      %v1964 = vpop.f32.mrb[0].mxu0
      %1965 = vmatprep.mubr.f32.mxu0 0.0
      %1966 = vmatmul.mubr.f32.gmra.mrb[0].mxu0 %v1785
      %v1967 = vpop.f32.mrb[0].mxu0
      %v1968 = vadd.f32 0.0, %v1967
      %v1969 = vpop.f32.mrb[0].mxu0
      %1970 = vmatprep.mubr.f32.mxu0 0.0
      %1971 = vmatmul.mubr.f32.gmra.mrb[0].mxu0 %v1788
      %v1972 = vpop.f32.mrb[0].mxu0
      %v1973 = vadd.f32 0.0, %v1972
      %v1974 = vpop.f32.mrb[0].mxu0
      %1975 = vmatprep.mubr.f32.mxu0 0.0
      %1976 = vmatmul.mubr.f32.gmra.mrb[0].mxu0 %v1791
      %v1977 = vpop.f32.mrb[0].mxu0
      %v1978 = vadd.f32 0.0, %v1977
      %v1979 = vpop.f32.mrb[0].mxu0
      %1980 = vmatprep.mubr.f32.mxu0 0.0
      %1981 = vmatmul.mubr.f32.gmra.mrb[0].mxu0 %v1794
      %v1982 = vpop.f32.mrb[0].mxu0
      %v1983 = vadd.f32 0.0, %v1982
      %v1984 = vpop.f32.mrb[0].mxu0
      %1985 = vmatprep.mubr.f32.mxu0 0.0
      %1986 = vmatmul.mubr.f32.gmra.mrb[0].mxu0 %v1797
      %v1987 = vpop.f32.mrb[0].mxu0
      %v1988 = vadd.f32 0.0, %v1987
      %v1989 = vpop.f32.mrb[0].mxu0
      %1990 = vmatprep.mubr.f32.mxu0 0.0
      %1991 = vmatmul.mubr.f32.gmra.mrb[0].mxu0 %v1800
      %v1992 = vpop.f32.mrb[0].mxu0
      %v1993 = vadd.f32 0.0, %v1992
      %v1994 = vpop.f32.mrb[0].mxu0
      %1995 = vmatprep.mubr.f32.mxu0 0.0
      %1996 = vmatmul.mubr.f32.gmra.mrb[0].mxu0 %v1803
      %v1997 = vpop.f32.mrb[0].mxu0
      %v1998 = vadd.f32 0.0, %v1997
      %v1999 = vpop.f32.mrb[0].mxu0
      %2000 = vmatprep.mubr.f32.mxu0 0.0
      %2001 = vmatmul.mubr.f32.gmra.mrb[0].mxu0 %v1806
      %v2002 = vpop.f32.mrb[0].mxu0
      %v2003 = vadd.f32 0.0, %v2002
      %v2004 = vpop.f32.mrb[0].mxu0
      %2005 = vmatprep.mubr.f32.mxu0 0.0
      %2006 = vmatmul.mubr.f32.gmra.mrb[0].mxu0 %v1809
      %v2007 = vpop.f32.mrb[0].mxu0
      %v2008 = vadd.f32 0.0, %v2007
      %v2009 = vpop.f32.mrb[0].mxu0
      %2010 = vmatprep.mubr.f32.mxu0 0.0
      %2011 = vmatmul.mubr.f32.gmra.mrb[0].mxu0 %v1812
      %v2012 = vpop.f32.mrb[0].mxu0
      %v2013 = vadd.f32 0.0, %v2012
      %v2014 = vpop.f32.mrb[0].mxu0
      %2015 = vmatprep.mubr.f32.mxu0 0.0
      %2016 = vmatmul.mubr.f32.gmra.mrb[0].mxu0 %v1815
      %v2017 = vpop.f32.mrb[0].mxu0
      %v2018 = vadd.f32 0.0, %v2017
      %v2019 = vpop.f32.mrb[0].mxu0
      %2020 = vmatprep.mubr.f32.mxu0 0.0
      %2021 = vmatmul.mubr.f32.gmra.mrb[0].mxu0 %v1818
      %v2022 = vpop.f32.mrb[0].mxu0
      %v2023 = vadd.f32 0.0, %v2022
      %v2024 = vpop.f32.mrb[0].mxu0
      %2025 = vmatprep.mubr.f32.mxu0 0.0
      %2026 = vmatmul.mubr.f32.gmra.mrb[0].mxu0 %v1821
      %v2027 = vpop.f32.mrb[0].mxu0
      %v2028 = vadd.f32 0.0, %v2027
      %v2029 = vpop.f32.mrb[0].mxu0
      %2030 = vmatprep.mubr.f32.mxu0 0.0
      %2031 = vmatmul.mubr.f32.gmra.mrb[0].mxu0 %v1824
      %v2032 = vpop.f32.mrb[0].mxu0
      %v2033 = vadd.f32 0.0, %v2032
      %v2034 = vpop.f32.mrb[0].mxu0
      %2035 = vmatprep.mubr.f32.mxu0 0.0
      %2036 = vmatmul.mubr.f32.gmra.mrb[0].mxu0 %v1827
      %v2037 = vpop.f32.mrb[0].mxu0
      %v2038 = vadd.f32 0.0, %v2037
      %v2039 = vpop.f32.mrb[0].mxu0
      %2040 = vmatprep.mubr.f32.mxu0 0.0
      %2041 = vmatmul.mubr.f32.gmra.mrb[0].mxu0 %v1830
      %v2042 = vpop.f32.mrb[0].mxu0
      %v2043 = vadd.f32 0.0, %v2042
      %v2044 = vpop.f32.mrb[0].mxu0
      %2045 = vmatprep.mubr.f32.mxu0 0.0
      %2046 = vmatmul.mubr.f32.gmra.mrb[0].mxu0 %v1833
      %v2047 = vpop.f32.mrb[0].mxu0
      %v2048 = vadd.f32 0.0, %v2047
      %v2049 = vpop.f32.mrb[0].mxu0
      %2050 = vmatprep.mubr.f32.mxu0 0.0
      %2051 = vmatmul.mubr.f32.gmra.mrb[0].mxu0 %v1836
      %v2052 = vpop.f32.mrb[0].mxu0
      %v2053 = vadd.f32 0.0, %v2052
      %v2054 = vpop.f32.mrb[0].mxu0
      %2055 = vmatprep.mubr.f32.mxu0 0.0
      %2056 = vmatmul.mubr.f32.gmra.mrb[0].mxu0 %v1839
      %v2057 = vpop.f32.mrb[0].mxu0
      %v2058 = vadd.f32 0.0, %v2057
      %v2059 = vpop.f32.mrb[0].mxu0
      %2060 = vmatprep.mubr.f32.mxu0 0.0
      %2061 = vmatmul.mubr.f32.gmra.mrb[0].mxu0 %v1842
      %v2062 = vpop.f32.mrb[0].mxu0
      %v2063 = vadd.f32 0.0, %v2062
      %v2064 = vpop.f32.mrb[0].mxu0
      %2065 = vmatprep.mubr.f32.mxu0 0.0
      %2066 = vmatmul.mubr.f32.gmra.mrb[0].mxu0 %v1845
      %v2067 = vpop.f32.mrb[0].mxu0
      %v2068 = vadd.f32 0.0, %v2067
      %v2069 = vpop.f32.mrb[0].mxu0
      %2070 = vmatprep.mubr.f32.mxu0 0.0
      %2071 = vmatmul.mubr.f32.gmra.mrb[0].mxu0 %v1848
      %v2072 = vpop.f32.mrb[0].mxu0
      %v2073 = vadd.f32 0.0, %v2072
      %v2074 = vpop.f32.mrb[0].mxu0
      %2075 = vmatprep.mubr.f32.mxu0 0.0
      %2076 = vmatmul.mubr.f32.gmra.mrb[0].mxu0 %v1851
      %v2077 = vpop.f32.mrb[0].mxu0
      %v2078 = vadd.f32 0.0, %v2077
      %v2079 = vpop.f32.mrb[0].mxu0
      %2080 = vdwg.mxu0
      %v2081 = vadd.f32 %v1691, %v1923
      %v2082 = vadd.f32 %v1692, %v1928
      %v2083 = vadd.f32 %v1693, %v1933
      %v2084 = vadd.f32 %v1694, %v1938
      %v2085 = vadd.f32 %v1695, %v1943
      %v2086 = vadd.f32 %v1696, %v1948
      %v2087 = vadd.f32 %v1697, %v1953
      %v2088 = vadd.f32 %v1698, %v1958
      %v2089 = vadd.f32 %v1699, %v1963
      %v2090 = vadd.f32 %v1700, %v1968
      %v2091 = vadd.f32 %v1701, %v1973
      %v2092 = vadd.f32 %v1702, %v1978
      %v2093 = vadd.f32 %v1703, %v1983
      %v2094 = vadd.f32 %v1704, %v1988
      %v2095 = vadd.f32 %v1705, %v1993
      %v2096 = vadd.f32 %v1706, %v1998
      %v2097 = vadd.f32 %v1707, %v2003
      %v2098 = vadd.f32 %v1708, %v2008
      %v2099 = vadd.f32 %v1709, %v2013
      %v2100 = vadd.f32 %v1710, %v2018
      %v2101 = vadd.f32 %v1711, %v2023
      %v2102 = vadd.f32 %v1712, %v2028
      %v2103 = vadd.f32 %v1713, %v2033
      %v2104 = vadd.f32 %v1714, %v2038
      %v2105 = vadd.f32 %v1715, %v2043
      %v2106 = vadd.f32 %v1716, %v2048
      %v2107 = vadd.f32 %v1717, %v2053
      %v2108 = vadd.f32 %v1718, %v2058
      %v2109 = vadd.f32 %v1719, %v2063
      %v2110 = vadd.f32 %v1720, %v2068
      %v2111 = vadd.f32 %v1721, %v2073
      %v2112 = vadd.f32 %v1722, %v2078
      %v2113 = vld [vmem:[%s1332 + $0x2] sm:$0xff]
      %v2114 = vld [vmem:[%s1332 + $0xa] sm:$0xff]
      %v2115 = vld [vmem:[%s1332 + $0x1a] sm:$0xff]
      %v2116 = vld [vmem:[%s1332 + $0x22] sm:$0xff]
      %v2117 = vld [vmem:[%s1332 + $0x32] sm:$0xff]
      %v2118 = vld [vmem:[%s1332 + $0x3a] sm:$0xff]
      %v2119 = vld [vmem:[%s1332 + $0x4a] sm:$0xff]
      %v2120 = vld [vmem:[%s1332 + $0x52] sm:$0xff]
      %v2121 = vld [vmem:[%s1332 + $0x62] sm:$0xff]
      %v2122 = vld [vmem:[%s1332 + $0x6a] sm:$0xff]
      %v2123 = vld [vmem:[%s1332 + $0x7a] sm:$0xff]
      %v2124 = vld [vmem:[%s1332 + $0x82] sm:$0xff]
      %v2125 = vld [vmem:[%s1332 + $0x92] sm:$0xff]
      %v2126 = vld [vmem:[%s1332 + $0x9a] sm:$0xff]
      %v2127 = vld [vmem:[%s1332 + $0xaa] sm:$0xff]
      %v2128 = vld [vmem:[%s1332 + $0xb2] sm:$0xff]
      %v2129 = vld [vmem:[%s1332 + $0xc2] sm:$0xff]
      %v2130 = vld [vmem:[%s1332 + $0xca] sm:$0xff]
      %v2131 = vld [vmem:[%s1332 + $0xda] sm:$0xff]
      %v2132 = vld [vmem:[%s1332 + $0xe2] sm:$0xff]
      %v2133 = vld [vmem:[%s1332 + $0xf2] sm:$0xff]
      %v2134 = vld [vmem:[%s1332 + $0xfa] sm:$0xff]
      %v2135 = vld [vmem:[%s1332 + $0x10a] sm:$0xff]
      %v2136 = vld [vmem:[%s1332 + $0x112] sm:$0xff]
      %v2137 = vld [vmem:[%s1332 + $0x122] sm:$0xff]
      %v2138 = vld [vmem:[%s1332 + $0x12a] sm:$0xff]
      %v2139 = vld [vmem:[%s1332 + $0x13a] sm:$0xff]
      %v2140 = vld [vmem:[%s1332 + $0x142] sm:$0xff]
      %v2141 = vld [vmem:[%s1332 + $0x152] sm:$0xff]
      %v2142 = vld [vmem:[%s1332 + $0x15a] sm:$0xff]
      %v2143 = vld [vmem:[%s1332 + $0x16a] sm:$0xff]
      %v2144 = vld [vmem:[%s1332 + $0x172] sm:$0xff]
      %s2145 = scalar_lea.vmem %s2, 20
      %v2146 = vld [vmem:[%s2145] sm:$0xf]
      %v2148 = vsel %vm292, %v2113, 0
      %v2151 = vsel %vm292, %v2114, 0
      %v2154 = vsel %vm292, %v2115, 0
      %v2157 = vsel %vm292, %v2116, 0
      %v2160 = vsel %vm292, %v2117, 0
      %v2163 = vsel %vm292, %v2118, 0
      %v2166 = vsel %vm292, %v2119, 0
      %v2169 = vsel %vm292, %v2120, 0
      %v2172 = vsel %vm292, %v2121, 0
      %v2175 = vsel %vm292, %v2122, 0
      %v2178 = vsel %vm292, %v2123, 0
      %v2181 = vsel %vm292, %v2124, 0
      %v2184 = vsel %vm292, %v2125, 0
      %v2187 = vsel %vm292, %v2126, 0
      %v2190 = vsel %vm292, %v2127, 0
      %v2193 = vsel %vm292, %v2128, 0
      %v2196 = vsel %vm292, %v2129, 0
      %v2199 = vsel %vm292, %v2130, 0
      %v2202 = vsel %vm292, %v2131, 0
      %v2205 = vsel %vm292, %v2132, 0
      %v2208 = vsel %vm292, %v2133, 0
      %v2211 = vsel %vm292, %v2134, 0
      %v2214 = vsel %vm292, %v2135, 0
      %v2217 = vsel %vm292, %v2136, 0
      %v2220 = vsel %vm292, %v2137, 0
      %v2223 = vsel %vm292, %v2138, 0
      %v2226 = vsel %vm292, %v2139, 0
      %v2229 = vsel %vm292, %v2140, 0
      %v2232 = vsel %vm292, %v2141, 0
      %v2235 = vsel %vm292, %v2142, 0
      %v2238 = vsel %vm292, %v2143, 0
      %v2241 = vsel %vm292, %v2144, 0
      %v2244 = vsel %vm389, %v2146, 0
      %2246 = vmatprep.subr.mxu0 0.0
      %2247 = vmatpush1.msra.mxu0 %v2244
      %2248 = vmatprep.subr.mxu0 0.0
      %2249 = vmatpush1.msra.mxu0 0.0
      %2250 = vmatprep.subr.mxu0 0.0
      %2251 = vmatpush1.msra.mxu0 0.0
      %2252 = vmatprep.subr.mxu0 0.0
      %2253 = vmatpush1.msra.mxu0 0.0
      %2254 = vmatprep.subr.mxu0 0.0
      %2255 = vmatpush1.msra.mxu0 0.0
      %2256 = vmatprep.subr.mxu0 0.0
      %2257 = vmatpush1.msra.mxu0 0.0
      %2258 = vmatprep.subr.mxu0 0.0
      %2259 = vmatpush1.msra.mxu0 0.0
      %2260 = vmatprep.subr.mxu0 0.0
      %2261 = vmatpush1.msra.mxu0 0.0
      %2262 = vmatprep.subr.mxu0 0.0
      %2263 = vmatpush1.msra.mxu0 0.0
      %2264 = vmatprep.subr.mxu0 0.0
      %2265 = vmatpush1.msra.mxu0 0.0
      %2266 = vmatprep.subr.mxu0 0.0
      %2267 = vmatpush1.msra.mxu0 0.0
      %2268 = vmatprep.subr.mxu0 0.0
      %2269 = vmatpush1.msra.mxu0 0.0
      %2270 = vmatprep.subr.mxu0 0.0
      %2271 = vmatpush1.msra.mxu0 0.0
      %2272 = vmatprep.subr.mxu0 0.0
      %2273 = vmatpush1.msra.mxu0 0.0
      %2274 = vmatprep.subr.mxu0 0.0
      %2275 = vmatpush1.msra.mxu0 0.0
      %2276 = vmatprep.subr.mxu0 0.0
      %2277 = vmatpush1.msra.mxu0 0.0
      %2278 = vmatprep.subr.mxu0 0.0
      %2279 = vmatpush1.msra.mxu0 0.0
      %2280 = vmatprep.subr.mxu0 0.0
      %2281 = vmatpush1.msra.mxu0 0.0
      %2282 = vmatprep.subr.mxu0 0.0
      %2283 = vmatpush1.msra.mxu0 0.0
      %2284 = vmatprep.subr.mxu0 0.0
      %2285 = vmatpush1.msra.mxu0 0.0
      %2286 = vmatprep.subr.mxu0 0.0
      %2287 = vmatpush1.msra.mxu0 0.0
      %2288 = vmatprep.subr.mxu0 0.0
      %2289 = vmatpush1.msra.mxu0 0.0
      %2290 = vmatprep.subr.mxu0 0.0
      %2291 = vmatpush1.msra.mxu0 0.0
      %2292 = vmatprep.subr.mxu0 0.0
      %2293 = vmatpush1.msra.mxu0 0.0
      %2294 = vmatprep.subr.mxu0 0.0
      %2295 = vmatpush1.msra.mxu0 0.0
      %2296 = vmatprep.subr.mxu0 0.0
      %2297 = vmatpush1.msra.mxu0 0.0
      %2298 = vmatprep.subr.mxu0 0.0
      %2299 = vmatpush1.msra.mxu0 0.0
      %2300 = vmatprep.subr.mxu0 0.0
      %2301 = vmatpush1.msra.mxu0 0.0
      %2302 = vmatprep.subr.mxu0 0.0
      %2303 = vmatpush1.msra.mxu0 0.0
      %2304 = vmatprep.subr.mxu0 0.0
      %2305 = vmatpush1.msra.mxu0 0.0
      %2306 = vmatprep.subr.mxu0 0.0
      %2307 = vmatpush1.msra.mxu0 0.0
      %2308 = vmatprep.subr.mxu0 0.0
      %2309 = vmatpush1.msra.mxu0 0.0
      %2310 = vmatprep.mubr.f32.mxu0 0.0
      %2311 = vmatmul.mubr.f32.gmra.mrb[0].mxu0 %v2148
      %v2312 = vpop.f32.mrb[0].mxu0
      %v2313 = vadd.f32 0.0, %v2312
      %v2314 = vpop.f32.mrb[0].mxu0
      %2315 = vmatprep.mubr.f32.mxu0 0.0
      %2316 = vmatmul.mubr.f32.gmra.mrb[0].mxu0 %v2151
      %v2317 = vpop.f32.mrb[0].mxu0
      %v2318 = vadd.f32 0.0, %v2317
      %v2319 = vpop.f32.mrb[0].mxu0
      %2320 = vmatprep.mubr.f32.mxu0 0.0
      %2321 = vmatmul.mubr.f32.gmra.mrb[0].mxu0 %v2154
      %v2322 = vpop.f32.mrb[0].mxu0
      %v2323 = vadd.f32 0.0, %v2322
      %v2324 = vpop.f32.mrb[0].mxu0
      %2325 = vmatprep.mubr.f32.mxu0 0.0
      %2326 = vmatmul.mubr.f32.gmra.mrb[0].mxu0 %v2157
      %v2327 = vpop.f32.mrb[0].mxu0
      %v2328 = vadd.f32 0.0, %v2327
      %v2329 = vpop.f32.mrb[0].mxu0
      %2330 = vmatprep.mubr.f32.mxu0 0.0
      %2331 = vmatmul.mubr.f32.gmra.mrb[0].mxu0 %v2160
      %v2332 = vpop.f32.mrb[0].mxu0
      %v2333 = vadd.f32 0.0, %v2332
      %v2334 = vpop.f32.mrb[0].mxu0
      %2335 = vmatprep.mubr.f32.mxu0 0.0
      %2336 = vmatmul.mubr.f32.gmra.mrb[0].mxu0 %v2163
      %v2337 = vpop.f32.mrb[0].mxu0
      %v2338 = vadd.f32 0.0, %v2337
      %v2339 = vpop.f32.mrb[0].mxu0
      %2340 = vmatprep.mubr.f32.mxu0 0.0
      %2341 = vmatmul.mubr.f32.gmra.mrb[0].mxu0 %v2166
      %v2342 = vpop.f32.mrb[0].mxu0
      %v2343 = vadd.f32 0.0, %v2342
      %v2344 = vpop.f32.mrb[0].mxu0
      %2345 = vmatprep.mubr.f32.mxu0 0.0
      %2346 = vmatmul.mubr.f32.gmra.mrb[0].mxu0 %v2169
      %v2347 = vpop.f32.mrb[0].mxu0
      %v2348 = vadd.f32 0.0, %v2347
      %v2349 = vpop.f32.mrb[0].mxu0
      %2350 = vmatprep.mubr.f32.mxu0 0.0
      %2351 = vmatmul.mubr.f32.gmra.mrb[0].mxu0 %v2172
      %v2352 = vpop.f32.mrb[0].mxu0
      %v2353 = vadd.f32 0.0, %v2352
      %v2354 = vpop.f32.mrb[0].mxu0
      %2355 = vmatprep.mubr.f32.mxu0 0.0
      %2356 = vmatmul.mubr.f32.gmra.mrb[0].mxu0 %v2175
      %v2357 = vpop.f32.mrb[0].mxu0
      %v2358 = vadd.f32 0.0, %v2357
      %v2359 = vpop.f32.mrb[0].mxu0
      %2360 = vmatprep.mubr.f32.mxu0 0.0
      %2361 = vmatmul.mubr.f32.gmra.mrb[0].mxu0 %v2178
      %v2362 = vpop.f32.mrb[0].mxu0
      %v2363 = vadd.f32 0.0, %v2362
      %v2364 = vpop.f32.mrb[0].mxu0
      %2365 = vmatprep.mubr.f32.mxu0 0.0
      %2366 = vmatmul.mubr.f32.gmra.mrb[0].mxu0 %v2181
      %v2367 = vpop.f32.mrb[0].mxu0
      %v2368 = vadd.f32 0.0, %v2367
      %v2369 = vpop.f32.mrb[0].mxu0
      %2370 = vmatprep.mubr.f32.mxu0 0.0
      %2371 = vmatmul.mubr.f32.gmra.mrb[0].mxu0 %v2184
      %v2372 = vpop.f32.mrb[0].mxu0
      %v2373 = vadd.f32 0.0, %v2372
      %v2374 = vpop.f32.mrb[0].mxu0
      %2375 = vmatprep.mubr.f32.mxu0 0.0
      %2376 = vmatmul.mubr.f32.gmra.mrb[0].mxu0 %v2187
      %v2377 = vpop.f32.mrb[0].mxu0
      %v2378 = vadd.f32 0.0, %v2377
      %v2379 = vpop.f32.mrb[0].mxu0
      %2380 = vmatprep.mubr.f32.mxu0 0.0
      %2381 = vmatmul.mubr.f32.gmra.mrb[0].mxu0 %v2190
      %v2382 = vpop.f32.mrb[0].mxu0
      %v2383 = vadd.f32 0.0, %v2382
      %v2384 = vpop.f32.mrb[0].mxu0
      %2385 = vmatprep.mubr.f32.mxu0 0.0
      %2386 = vmatmul.mubr.f32.gmra.mrb[0].mxu0 %v2193
      %v2387 = vpop.f32.mrb[0].mxu0
      %v2388 = vadd.f32 0.0, %v2387
      %v2389 = vpop.f32.mrb[0].mxu0
      %2390 = vmatprep.mubr.f32.mxu0 0.0
      %2391 = vmatmul.mubr.f32.gmra.mrb[0].mxu0 %v2196
      %v2392 = vpop.f32.mrb[0].mxu0
      %v2393 = vadd.f32 0.0, %v2392
      %v2394 = vpop.f32.mrb[0].mxu0
      %2395 = vmatprep.mubr.f32.mxu0 0.0
      %2396 = vmatmul.mubr.f32.gmra.mrb[0].mxu0 %v2199
      %v2397 = vpop.f32.mrb[0].mxu0
      %v2398 = vadd.f32 0.0, %v2397
      %v2399 = vpop.f32.mrb[0].mxu0
      %2400 = vmatprep.mubr.f32.mxu0 0.0
      %2401 = vmatmul.mubr.f32.gmra.mrb[0].mxu0 %v2202
      %v2402 = vpop.f32.mrb[0].mxu0
      %v2403 = vadd.f32 0.0, %v2402
      %v2404 = vpop.f32.mrb[0].mxu0
      %2405 = vmatprep.mubr.f32.mxu0 0.0
      %2406 = vmatmul.mubr.f32.gmra.mrb[0].mxu0 %v2205
      %v2407 = vpop.f32.mrb[0].mxu0
      %v2408 = vadd.f32 0.0, %v2407
      %v2409 = vpop.f32.mrb[0].mxu0
      %2410 = vmatprep.mubr.f32.mxu0 0.0
      %2411 = vmatmul.mubr.f32.gmra.mrb[0].mxu0 %v2208
      %v2412 = vpop.f32.mrb[0].mxu0
      %v2413 = vadd.f32 0.0, %v2412
      %v2414 = vpop.f32.mrb[0].mxu0
      %2415 = vmatprep.mubr.f32.mxu0 0.0
      %2416 = vmatmul.mubr.f32.gmra.mrb[0].mxu0 %v2211
      %v2417 = vpop.f32.mrb[0].mxu0
      %v2418 = vadd.f32 0.0, %v2417
      %v2419 = vpop.f32.mrb[0].mxu0
      %2420 = vmatprep.mubr.f32.mxu0 0.0
      %2421 = vmatmul.mubr.f32.gmra.mrb[0].mxu0 %v2214
      %v2422 = vpop.f32.mrb[0].mxu0
      %v2423 = vadd.f32 0.0, %v2422
      %v2424 = vpop.f32.mrb[0].mxu0
      %2425 = vmatprep.mubr.f32.mxu0 0.0
      %2426 = vmatmul.mubr.f32.gmra.mrb[0].mxu0 %v2217
      %v2427 = vpop.f32.mrb[0].mxu0
      %v2428 = vadd.f32 0.0, %v2427
      %v2429 = vpop.f32.mrb[0].mxu0
      %2430 = vmatprep.mubr.f32.mxu0 0.0
      %2431 = vmatmul.mubr.f32.gmra.mrb[0].mxu0 %v2220
      %v2432 = vpop.f32.mrb[0].mxu0
      %v2433 = vadd.f32 0.0, %v2432
      %v2434 = vpop.f32.mrb[0].mxu0
      %2435 = vmatprep.mubr.f32.mxu0 0.0
      %2436 = vmatmul.mubr.f32.gmra.mrb[0].mxu0 %v2223
      %v2437 = vpop.f32.mrb[0].mxu0
      %v2438 = vadd.f32 0.0, %v2437
      %v2439 = vpop.f32.mrb[0].mxu0
      %2440 = vmatprep.mubr.f32.mxu0 0.0
      %2441 = vmatmul.mubr.f32.gmra.mrb[0].mxu0 %v2226
      %v2442 = vpop.f32.mrb[0].mxu0
      %v2443 = vadd.f32 0.0, %v2442
      %v2444 = vpop.f32.mrb[0].mxu0
      %2445 = vmatprep.mubr.f32.mxu0 0.0
      %2446 = vmatmul.mubr.f32.gmra.mrb[0].mxu0 %v2229
      %v2447 = vpop.f32.mrb[0].mxu0
      %v2448 = vadd.f32 0.0, %v2447
      %v2449 = vpop.f32.mrb[0].mxu0
      %2450 = vmatprep.mubr.f32.mxu0 0.0
      %2451 = vmatmul.mubr.f32.gmra.mrb[0].mxu0 %v2232
      %v2452 = vpop.f32.mrb[0].mxu0
      %v2453 = vadd.f32 0.0, %v2452
      %v2454 = vpop.f32.mrb[0].mxu0
      %2455 = vmatprep.mubr.f32.mxu0 0.0
      %2456 = vmatmul.mubr.f32.gmra.mrb[0].mxu0 %v2235
      %v2457 = vpop.f32.mrb[0].mxu0
      %v2458 = vadd.f32 0.0, %v2457
      %v2459 = vpop.f32.mrb[0].mxu0
      %2460 = vmatprep.mubr.f32.mxu0 0.0
      %2461 = vmatmul.mubr.f32.gmra.mrb[0].mxu0 %v2238
      %v2462 = vpop.f32.mrb[0].mxu0
      %v2463 = vadd.f32 0.0, %v2462
      %v2464 = vpop.f32.mrb[0].mxu0
      %2465 = vmatprep.mubr.f32.mxu0 0.0
      %2466 = vmatmul.mubr.f32.gmra.mrb[0].mxu0 %v2241
      %v2467 = vpop.f32.mrb[0].mxu0
      %v2468 = vadd.f32 0.0, %v2467
      %v2469 = vpop.f32.mrb[0].mxu0
      %2470 = vdwg.mxu0
      %v2471 = vadd.f32 %v2081, %v2313
      %v2472 = vadd.f32 %v2082, %v2318
      %v2473 = vadd.f32 %v2083, %v2323
      %v2474 = vadd.f32 %v2084, %v2328
      %v2475 = vadd.f32 %v2085, %v2333
      %v2476 = vadd.f32 %v2086, %v2338
      %v2477 = vadd.f32 %v2087, %v2343
      %v2478 = vadd.f32 %v2088, %v2348
      %v2479 = vadd.f32 %v2089, %v2353
      %v2480 = vadd.f32 %v2090, %v2358
      %v2481 = vadd.f32 %v2091, %v2363
      %v2482 = vadd.f32 %v2092, %v2368
      %v2483 = vadd.f32 %v2093, %v2373
      %v2484 = vadd.f32 %v2094, %v2378
      %v2485 = vadd.f32 %v2095, %v2383
      %v2486 = vadd.f32 %v2096, %v2388
      %v2487 = vadd.f32 %v2097, %v2393
      %v2488 = vadd.f32 %v2098, %v2398
      %v2489 = vadd.f32 %v2099, %v2403
      %v2490 = vadd.f32 %v2100, %v2408
      %v2491 = vadd.f32 %v2101, %v2413
      %v2492 = vadd.f32 %v2102, %v2418
      %v2493 = vadd.f32 %v2103, %v2423
      %v2494 = vadd.f32 %v2104, %v2428
      %v2495 = vadd.f32 %v2105, %v2433
      %v2496 = vadd.f32 %v2106, %v2438
      %v2497 = vadd.f32 %v2107, %v2443
      %v2498 = vadd.f32 %v2108, %v2448
      %v2499 = vadd.f32 %v2109, %v2453
      %v2500 = vadd.f32 %v2110, %v2458
      %v2501 = vadd.f32 %v2111, %v2463
      %v2502 = vadd.f32 %v2112, %v2468
      %s2503 = scalar_lea.vmem %s219, 48
      %v2504 = vld [vmem:[%s2503] sm:$0xff]
      %v2505 = vld [vmem:[%s2503 + $0x8] sm:$0xff]
      %v2506 = vld [vmem:[%s2503 + $0x18] sm:$0xff]
      %v2507 = vld [vmem:[%s2503 + $0x20] sm:$0xff]
      %v2508 = vld [vmem:[%s2503 + $0x30] sm:$0xff]
      %v2509 = vld [vmem:[%s2503 + $0x38] sm:$0xff]
      %v2510 = vld [vmem:[%s2503 + $0x48] sm:$0xff]
      %v2511 = vld [vmem:[%s2503 + $0x50] sm:$0xff]
      %v2512 = vld [vmem:[%s2503 + $0x60] sm:$0xff]
      %v2513 = vld [vmem:[%s2503 + $0x68] sm:$0xff]
      %v2514 = vld [vmem:[%s2503 + $0x78] sm:$0xff]
      %v2515 = vld [vmem:[%s2503 + $0x80] sm:$0xff]
      %v2516 = vld [vmem:[%s2503 + $0x90] sm:$0xff]
      %v2517 = vld [vmem:[%s2503 + $0x98] sm:$0xff]
      %v2518 = vld [vmem:[%s2503 + $0xa8] sm:$0xff]
      %v2519 = vld [vmem:[%s2503 + $0xb0] sm:$0xff]
      %v2520 = vld [vmem:[%s2503 + $0xc0] sm:$0xff]
      %v2521 = vld [vmem:[%s2503 + $0xc8] sm:$0xff]
      %v2522 = vld [vmem:[%s2503 + $0xd8] sm:$0xff]
      %v2523 = vld [vmem:[%s2503 + $0xe0] sm:$0xff]
      %v2524 = vld [vmem:[%s2503 + $0xf0] sm:$0xff]
      %v2525 = vld [vmem:[%s2503 + $0xf8] sm:$0xff]
      %v2526 = vld [vmem:[%s2503 + $0x108] sm:$0xff]
      %v2527 = vld [vmem:[%s2503 + $0x110] sm:$0xff]
      %v2528 = vld [vmem:[%s2503 + $0x120] sm:$0xff]
      %v2529 = vld [vmem:[%s2503 + $0x128] sm:$0xff]
      %v2530 = vld [vmem:[%s2503 + $0x138] sm:$0xff]
      %v2531 = vld [vmem:[%s2503 + $0x140] sm:$0xff]
      %v2532 = vld [vmem:[%s2503 + $0x150] sm:$0xff]
      %v2533 = vld [vmem:[%s2503 + $0x158] sm:$0xff]
      %v2534 = vld [vmem:[%s2503 + $0x168] sm:$0xff]
      %v2535 = vld [vmem:[%s2503 + $0x170] sm:$0xff]
      %s2536 = scalar_lea.vmem %s2, 24
      %v2537 = vld [vmem:[%s2536] sm:$0xf]
      %v2539 = vsel %vm292, %v2504, 0
      %v2542 = vsel %vm292, %v2505, 0
      %v2545 = vsel %vm292, %v2506, 0
      %v2548 = vsel %vm292, %v2507, 0
      %v2551 = vsel %vm292, %v2508, 0
      %v2554 = vsel %vm292, %v2509, 0
      %v2557 = vsel %vm292, %v2510, 0
      %v2560 = vsel %vm292, %v2511, 0
      %v2563 = vsel %vm292, %v2512, 0
      %v2566 = vsel %vm292, %v2513, 0
      %v2569 = vsel %vm292, %v2514, 0
      %v2572 = vsel %vm292, %v2515, 0
      %v2575 = vsel %vm292, %v2516, 0
      %v2578 = vsel %vm292, %v2517, 0
      %v2581 = vsel %vm292, %v2518, 0
      %v2584 = vsel %vm292, %v2519, 0
      %v2587 = vsel %vm292, %v2520, 0
      %v2590 = vsel %vm292, %v2521, 0
      %v2593 = vsel %vm292, %v2522, 0
      %v2596 = vsel %vm292, %v2523, 0
      %v2599 = vsel %vm292, %v2524, 0
      %v2602 = vsel %vm292, %v2525, 0
      %v2605 = vsel %vm292, %v2526, 0
      %v2608 = vsel %vm292, %v2527, 0
      %v2611 = vsel %vm292, %v2528, 0
      %v2614 = vsel %vm292, %v2529, 0
      %v2617 = vsel %vm292, %v2530, 0
      %v2620 = vsel %vm292, %v2531, 0
      %v2623 = vsel %vm292, %v2532, 0
      %v2626 = vsel %vm292, %v2533, 0
      %v2629 = vsel %vm292, %v2534, 0
      %v2632 = vsel %vm292, %v2535, 0
      %v2635 = vsel %vm389, %v2537, 0
      %2637 = vmatprep.subr.mxu0 0.0
      %2638 = vmatpush1.msra.mxu0 %v2635
      %2639 = vmatprep.subr.mxu0 0.0
      %2640 = vmatpush1.msra.mxu0 0.0
      %2641 = vmatprep.subr.mxu0 0.0
      %2642 = vmatpush1.msra.mxu0 0.0
      %2643 = vmatprep.subr.mxu0 0.0
      %2644 = vmatpush1.msra.mxu0 0.0
      %2645 = vmatprep.subr.mxu0 0.0
      %2646 = vmatpush1.msra.mxu0 0.0
      %2647 = vmatprep.subr.mxu0 0.0
      %2648 = vmatpush1.msra.mxu0 0.0
      %2649 = vmatprep.subr.mxu0 0.0
      %2650 = vmatpush1.msra.mxu0 0.0
      %2651 = vmatprep.subr.mxu0 0.0
      %2652 = vmatpush1.msra.mxu0 0.0
      %2653 = vmatprep.subr.mxu0 0.0
      %2654 = vmatpush1.msra.mxu0 0.0
      %2655 = vmatprep.subr.mxu0 0.0
      %2656 = vmatpush1.msra.mxu0 0.0
      %2657 = vmatprep.subr.mxu0 0.0
      %2658 = vmatpush1.msra.mxu0 0.0
      %2659 = vmatprep.subr.mxu0 0.0
      %2660 = vmatpush1.msra.mxu0 0.0
      %2661 = vmatprep.subr.mxu0 0.0
      %2662 = vmatpush1.msra.mxu0 0.0
      %2663 = vmatprep.subr.mxu0 0.0
      %2664 = vmatpush1.msra.mxu0 0.0
      %2665 = vmatprep.subr.mxu0 0.0
      %2666 = vmatpush1.msra.mxu0 0.0
      %2667 = vmatprep.subr.mxu0 0.0
      %2668 = vmatpush1.msra.mxu0 0.0
      %2669 = vmatprep.subr.mxu0 0.0
      %2670 = vmatpush1.msra.mxu0 0.0
      %2671 = vmatprep.subr.mxu0 0.0
      %2672 = vmatpush1.msra.mxu0 0.0
      %2673 = vmatprep.subr.mxu0 0.0
      %2674 = vmatpush1.msra.mxu0 0.0
      %2675 = vmatprep.subr.mxu0 0.0
      %2676 = vmatpush1.msra.mxu0 0.0
      %2677 = vmatprep.subr.mxu0 0.0
      %2678 = vmatpush1.msra.mxu0 0.0
      %2679 = vmatprep.subr.mxu0 0.0
      %2680 = vmatpush1.msra.mxu0 0.0
      %2681 = vmatprep.subr.mxu0 0.0
      %2682 = vmatpush1.msra.mxu0 0.0
      %2683 = vmatprep.subr.mxu0 0.0
      %2684 = vmatpush1.msra.mxu0 0.0
      %2685 = vmatprep.subr.mxu0 0.0
      %2686 = vmatpush1.msra.mxu0 0.0
      %2687 = vmatprep.subr.mxu0 0.0
      %2688 = vmatpush1.msra.mxu0 0.0
      %2689 = vmatprep.subr.mxu0 0.0
      %2690 = vmatpush1.msra.mxu0 0.0
      %2691 = vmatprep.subr.mxu0 0.0
      %2692 = vmatpush1.msra.mxu0 0.0
      %2693 = vmatprep.subr.mxu0 0.0
      %2694 = vmatpush1.msra.mxu0 0.0
      %2695 = vmatprep.subr.mxu0 0.0
      %2696 = vmatpush1.msra.mxu0 0.0
      %2697 = vmatprep.subr.mxu0 0.0
      %2698 = vmatpush1.msra.mxu0 0.0
      %2699 = vmatprep.subr.mxu0 0.0
      %2700 = vmatpush1.msra.mxu0 0.0
      %2701 = vmatprep.mubr.f32.mxu0 0.0
      %2702 = vmatmul.mubr.f32.gmra.mrb[0].mxu0 %v2539
      %v2703 = vpop.f32.mrb[0].mxu0
      %v2704 = vadd.f32 0.0, %v2703
      %v2705 = vpop.f32.mrb[0].mxu0
      %2706 = vmatprep.mubr.f32.mxu0 0.0
      %2707 = vmatmul.mubr.f32.gmra.mrb[0].mxu0 %v2542
      %v2708 = vpop.f32.mrb[0].mxu0
      %v2709 = vadd.f32 0.0, %v2708
      %v2710 = vpop.f32.mrb[0].mxu0
      %2711 = vmatprep.mubr.f32.mxu0 0.0
      %2712 = vmatmul.mubr.f32.gmra.mrb[0].mxu0 %v2545
      %v2713 = vpop.f32.mrb[0].mxu0
      %v2714 = vadd.f32 0.0, %v2713
      %v2715 = vpop.f32.mrb[0].mxu0
      %2716 = vmatprep.mubr.f32.mxu0 0.0
      %2717 = vmatmul.mubr.f32.gmra.mrb[0].mxu0 %v2548
      %v2718 = vpop.f32.mrb[0].mxu0
      %v2719 = vadd.f32 0.0, %v2718
      %v2720 = vpop.f32.mrb[0].mxu0
      %2721 = vmatprep.mubr.f32.mxu0 0.0
      %2722 = vmatmul.mubr.f32.gmra.mrb[0].mxu0 %v2551
      %v2723 = vpop.f32.mrb[0].mxu0
      %v2724 = vadd.f32 0.0, %v2723
      %v2725 = vpop.f32.mrb[0].mxu0
      %2726 = vmatprep.mubr.f32.mxu0 0.0
      %2727 = vmatmul.mubr.f32.gmra.mrb[0].mxu0 %v2554
      %v2728 = vpop.f32.mrb[0].mxu0
      %v2729 = vadd.f32 0.0, %v2728
      %v2730 = vpop.f32.mrb[0].mxu0
      %2731 = vmatprep.mubr.f32.mxu0 0.0
      %2732 = vmatmul.mubr.f32.gmra.mrb[0].mxu0 %v2557
      %v2733 = vpop.f32.mrb[0].mxu0
      %v2734 = vadd.f32 0.0, %v2733
      %v2735 = vpop.f32.mrb[0].mxu0
      %2736 = vmatprep.mubr.f32.mxu0 0.0
      %2737 = vmatmul.mubr.f32.gmra.mrb[0].mxu0 %v2560
      %v2738 = vpop.f32.mrb[0].mxu0
      %v2739 = vadd.f32 0.0, %v2738
      %v2740 = vpop.f32.mrb[0].mxu0
      %2741 = vmatprep.mubr.f32.mxu0 0.0
      %2742 = vmatmul.mubr.f32.gmra.mrb[0].mxu0 %v2563
      %v2743 = vpop.f32.mrb[0].mxu0
      %v2744 = vadd.f32 0.0, %v2743
      %v2745 = vpop.f32.mrb[0].mxu0
      %2746 = vmatprep.mubr.f32.mxu0 0.0
      %2747 = vmatmul.mubr.f32.gmra.mrb[0].mxu0 %v2566
      %v2748 = vpop.f32.mrb[0].mxu0
      %v2749 = vadd.f32 0.0, %v2748
      %v2750 = vpop.f32.mrb[0].mxu0
      %2751 = vmatprep.mubr.f32.mxu0 0.0
      %2752 = vmatmul.mubr.f32.gmra.mrb[0].mxu0 %v2569
      %v2753 = vpop.f32.mrb[0].mxu0
      %v2754 = vadd.f32 0.0, %v2753
      %v2755 = vpop.f32.mrb[0].mxu0
      %2756 = vmatprep.mubr.f32.mxu0 0.0
      %2757 = vmatmul.mubr.f32.gmra.mrb[0].mxu0 %v2572
      %v2758 = vpop.f32.mrb[0].mxu0
      %v2759 = vadd.f32 0.0, %v2758
      %v2760 = vpop.f32.mrb[0].mxu0
      %2761 = vmatprep.mubr.f32.mxu0 0.0
      %2762 = vmatmul.mubr.f32.gmra.mrb[0].mxu0 %v2575
      %v2763 = vpop.f32.mrb[0].mxu0
      %v2764 = vadd.f32 0.0, %v2763
      %v2765 = vpop.f32.mrb[0].mxu0
      %2766 = vmatprep.mubr.f32.mxu0 0.0
      %2767 = vmatmul.mubr.f32.gmra.mrb[0].mxu0 %v2578
      %v2768 = vpop.f32.mrb[0].mxu0
      %v2769 = vadd.f32 0.0, %v2768
      %v2770 = vpop.f32.mrb[0].mxu0
      %2771 = vmatprep.mubr.f32.mxu0 0.0
      %2772 = vmatmul.mubr.f32.gmra.mrb[0].mxu0 %v2581
      %v2773 = vpop.f32.mrb[0].mxu0
      %v2774 = vadd.f32 0.0, %v2773
      %v2775 = vpop.f32.mrb[0].mxu0
      %2776 = vmatprep.mubr.f32.mxu0 0.0
      %2777 = vmatmul.mubr.f32.gmra.mrb[0].mxu0 %v2584
      %v2778 = vpop.f32.mrb[0].mxu0
      %v2779 = vadd.f32 0.0, %v2778
      %v2780 = vpop.f32.mrb[0].mxu0
      %2781 = vmatprep.mubr.f32.mxu0 0.0
      %2782 = vmatmul.mubr.f32.gmra.mrb[0].mxu0 %v2587
      %v2783 = vpop.f32.mrb[0].mxu0
      %v2784 = vadd.f32 0.0, %v2783
      %v2785 = vpop.f32.mrb[0].mxu0
      %2786 = vmatprep.mubr.f32.mxu0 0.0
      %2787 = vmatmul.mubr.f32.gmra.mrb[0].mxu0 %v2590
      %v2788 = vpop.f32.mrb[0].mxu0
      %v2789 = vadd.f32 0.0, %v2788
      %v2790 = vpop.f32.mrb[0].mxu0
      %2791 = vmatprep.mubr.f32.mxu0 0.0
      %2792 = vmatmul.mubr.f32.gmra.mrb[0].mxu0 %v2593
      %v2793 = vpop.f32.mrb[0].mxu0
      %v2794 = vadd.f32 0.0, %v2793
      %v2795 = vpop.f32.mrb[0].mxu0
      %2796 = vmatprep.mubr.f32.mxu0 0.0
      %2797 = vmatmul.mubr.f32.gmra.mrb[0].mxu0 %v2596
      %v2798 = vpop.f32.mrb[0].mxu0
      %v2799 = vadd.f32 0.0, %v2798
      %v2800 = vpop.f32.mrb[0].mxu0
      %2801 = vmatprep.mubr.f32.mxu0 0.0
      %2802 = vmatmul.mubr.f32.gmra.mrb[0].mxu0 %v2599
      %v2803 = vpop.f32.mrb[0].mxu0
      %v2804 = vadd.f32 0.0, %v2803
      %v2805 = vpop.f32.mrb[0].mxu0
      %2806 = vmatprep.mubr.f32.mxu0 0.0
      %2807 = vmatmul.mubr.f32.gmra.mrb[0].mxu0 %v2602
      %v2808 = vpop.f32.mrb[0].mxu0
      %v2809 = vadd.f32 0.0, %v2808
      %v2810 = vpop.f32.mrb[0].mxu0
      %2811 = vmatprep.mubr.f32.mxu0 0.0
      %2812 = vmatmul.mubr.f32.gmra.mrb[0].mxu0 %v2605
      %v2813 = vpop.f32.mrb[0].mxu0
      %v2814 = vadd.f32 0.0, %v2813
      %v2815 = vpop.f32.mrb[0].mxu0
      %2816 = vmatprep.mubr.f32.mxu0 0.0
      %2817 = vmatmul.mubr.f32.gmra.mrb[0].mxu0 %v2608
      %v2818 = vpop.f32.mrb[0].mxu0
      %v2819 = vadd.f32 0.0, %v2818
      %v2820 = vpop.f32.mrb[0].mxu0
      %2821 = vmatprep.mubr.f32.mxu0 0.0
      %2822 = vmatmul.mubr.f32.gmra.mrb[0].mxu0 %v2611
      %v2823 = vpop.f32.mrb[0].mxu0
      %v2824 = vadd.f32 0.0, %v2823
      %v2825 = vpop.f32.mrb[0].mxu0
      %2826 = vmatprep.mubr.f32.mxu0 0.0
      %2827 = vmatmul.mubr.f32.gmra.mrb[0].mxu0 %v2614
      %v2828 = vpop.f32.mrb[0].mxu0
      %v2829 = vadd.f32 0.0, %v2828
      %v2830 = vpop.f32.mrb[0].mxu0
      %2831 = vmatprep.mubr.f32.mxu0 0.0
      %2832 = vmatmul.mubr.f32.gmra.mrb[0].mxu0 %v2617
      %v2833 = vpop.f32.mrb[0].mxu0
      %v2834 = vadd.f32 0.0, %v2833
      %v2835 = vpop.f32.mrb[0].mxu0
      %2836 = vmatprep.mubr.f32.mxu0 0.0
      %2837 = vmatmul.mubr.f32.gmra.mrb[0].mxu0 %v2620
      %v2838 = vpop.f32.mrb[0].mxu0
      %v2839 = vadd.f32 0.0, %v2838
      %v2840 = vpop.f32.mrb[0].mxu0
      %2841 = vmatprep.mubr.f32.mxu0 0.0
      %2842 = vmatmul.mubr.f32.gmra.mrb[0].mxu0 %v2623
      %v2843 = vpop.f32.mrb[0].mxu0
      %v2844 = vadd.f32 0.0, %v2843
      %v2845 = vpop.f32.mrb[0].mxu0
      %2846 = vmatprep.mubr.f32.mxu0 0.0
      %2847 = vmatmul.mubr.f32.gmra.mrb[0].mxu0 %v2626
      %v2848 = vpop.f32.mrb[0].mxu0
      %v2849 = vadd.f32 0.0, %v2848
      %v2850 = vpop.f32.mrb[0].mxu0
      %2851 = vmatprep.mubr.f32.mxu0 0.0
      %2852 = vmatmul.mubr.f32.gmra.mrb[0].mxu0 %v2629
      %v2853 = vpop.f32.mrb[0].mxu0
      %v2854 = vadd.f32 0.0, %v2853
      %v2855 = vpop.f32.mrb[0].mxu0
      %2856 = vmatprep.mubr.f32.mxu0 0.0
      %2857 = vmatmul.mubr.f32.gmra.mrb[0].mxu0 %v2632
      %v2858 = vpop.f32.mrb[0].mxu0
      %v2859 = vadd.f32 0.0, %v2858
      %v2860 = vpop.f32.mrb[0].mxu0
      %2861 = vdwg.mxu0
      %v2862 = vadd.f32 %v2471, %v2704
      %v2863 = vadd.f32 %v2472, %v2709
      %v2864 = vadd.f32 %v2473, %v2714
      %v2865 = vadd.f32 %v2474, %v2719
      %v2866 = vadd.f32 %v2475, %v2724
      %v2867 = vadd.f32 %v2476, %v2729
      %v2868 = vadd.f32 %v2477, %v2734
      %v2869 = vadd.f32 %v2478, %v2739
      %v2870 = vadd.f32 %v2479, %v2744
      %v2871 = vadd.f32 %v2480, %v2749
      %v2872 = vadd.f32 %v2481, %v2754
      %v2873 = vadd.f32 %v2482, %v2759
      %v2874 = vadd.f32 %v2483, %v2764
      %v2875 = vadd.f32 %v2484, %v2769
      %v2876 = vadd.f32 %v2485, %v2774
      %v2877 = vadd.f32 %v2486, %v2779
      %v2878 = vadd.f32 %v2487, %v2784
      %v2879 = vadd.f32 %v2488, %v2789
      %v2880 = vadd.f32 %v2489, %v2794
      %v2881 = vadd.f32 %v2490, %v2799
      %v2882 = vadd.f32 %v2491, %v2804
      %v2883 = vadd.f32 %v2492, %v2809
      %v2884 = vadd.f32 %v2493, %v2814
      %v2885 = vadd.f32 %v2494, %v2819
      %v2886 = vadd.f32 %v2495, %v2824
      %v2887 = vadd.f32 %v2496, %v2829
      %v2888 = vadd.f32 %v2497, %v2834
      %v2889 = vadd.f32 %v2498, %v2839
      %v2890 = vadd.f32 %v2499, %v2844
      %v2891 = vadd.f32 %v2500, %v2849
      %v2892 = vadd.f32 %v2501, %v2854
      %v2893 = vadd.f32 %v2502, %v2859
      %v2894 = vld [vmem:[%s2503 + $0x1] sm:$0xff]
      %v2895 = vld [vmem:[%s2503 + $0x9] sm:$0xff]
      %v2896 = vld [vmem:[%s2503 + $0x19] sm:$0xff]
      %v2897 = vld [vmem:[%s2503 + $0x21] sm:$0xff]
      %v2898 = vld [vmem:[%s2503 + $0x31] sm:$0xff]
      %v2899 = vld [vmem:[%s2503 + $0x39] sm:$0xff]
      %v2900 = vld [vmem:[%s2503 + $0x49] sm:$0xff]
      %v2901 = vld [vmem:[%s2503 + $0x51] sm:$0xff]
      %v2902 = vld [vmem:[%s2503 + $0x61] sm:$0xff]
      %v2903 = vld [vmem:[%s2503 + $0x69] sm:$0xff]
      %v2904 = vld [vmem:[%s2503 + $0x79] sm:$0xff]
      %v2905 = vld [vmem:[%s2503 + $0x81] sm:$0xff]
      %v2906 = vld [vmem:[%s2503 + $0x91] sm:$0xff]
      %v2907 = vld [vmem:[%s2503 + $0x99] sm:$0xff]
      %v2908 = vld [vmem:[%s2503 + $0xa9] sm:$0xff]
      %v2909 = vld [vmem:[%s2503 + $0xb1] sm:$0xff]
      %v2910 = vld [vmem:[%s2503 + $0xc1] sm:$0xff]
      %v2911 = vld [vmem:[%s2503 + $0xc9] sm:$0xff]
      %v2912 = vld [vmem:[%s2503 + $0xd9] sm:$0xff]
      %v2913 = vld [vmem:[%s2503 + $0xe1] sm:$0xff]
      %v2914 = vld [vmem:[%s2503 + $0xf1] sm:$0xff]
      %v2915 = vld [vmem:[%s2503 + $0xf9] sm:$0xff]
      %v2916 = vld [vmem:[%s2503 + $0x109] sm:$0xff]
      %v2917 = vld [vmem:[%s2503 + $0x111] sm:$0xff]
      %v2918 = vld [vmem:[%s2503 + $0x121] sm:$0xff]
      %v2919 = vld [vmem:[%s2503 + $0x129] sm:$0xff]
      %v2920 = vld [vmem:[%s2503 + $0x139] sm:$0xff]
      %v2921 = vld [vmem:[%s2503 + $0x141] sm:$0xff]
      %v2922 = vld [vmem:[%s2503 + $0x151] sm:$0xff]
      %v2923 = vld [vmem:[%s2503 + $0x159] sm:$0xff]
      %v2924 = vld [vmem:[%s2503 + $0x169] sm:$0xff]
      %v2925 = vld [vmem:[%s2503 + $0x171] sm:$0xff]
      %s2926 = scalar_lea.vmem %s2, 28
      %v2927 = vld [vmem:[%s2926] sm:$0xf]
      %v2929 = vsel %vm292, %v2894, 0
      %v2932 = vsel %vm292, %v2895, 0
      %v2935 = vsel %vm292, %v2896, 0
      %v2938 = vsel %vm292, %v2897, 0
      %v2941 = vsel %vm292, %v2898, 0
      %v2944 = vsel %vm292, %v2899, 0
      %v2947 = vsel %vm292, %v2900, 0
      %v2950 = vsel %vm292, %v2901, 0
      %v2953 = vsel %vm292, %v2902, 0
      %v2956 = vsel %vm292, %v2903, 0
      %v2959 = vsel %vm292, %v2904, 0
      %v2962 = vsel %vm292, %v2905, 0
      %v2965 = vsel %vm292, %v2906, 0
      %v2968 = vsel %vm292, %v2907, 0
      %v2971 = vsel %vm292, %v2908, 0
      %v2974 = vsel %vm292, %v2909, 0
      %v2977 = vsel %vm292, %v2910, 0
      %v2980 = vsel %vm292, %v2911, 0
      %v2983 = vsel %vm292, %v2912, 0
      %v2986 = vsel %vm292, %v2913, 0
      %v2989 = vsel %vm292, %v2914, 0
      %v2992 = vsel %vm292, %v2915, 0
      %v2995 = vsel %vm292, %v2916, 0
      %v2998 = vsel %vm292, %v2917, 0
      %v3001 = vsel %vm292, %v2918, 0
      %v3004 = vsel %vm292, %v2919, 0
      %v3007 = vsel %vm292, %v2920, 0
      %v3010 = vsel %vm292, %v2921, 0
      %v3013 = vsel %vm292, %v2922, 0
      %v3016 = vsel %vm292, %v2923, 0
      %v3019 = vsel %vm292, %v2924, 0
      %v3022 = vsel %vm292, %v2925, 0
      %v3025 = vsel %vm389, %v2927, 0
      %3027 = vmatprep.subr.mxu0 0.0
      %3028 = vmatpush1.msra.mxu0 %v3025
      %3029 = vmatprep.subr.mxu0 0.0
      %3030 = vmatpush1.msra.mxu0 0.0
      %3031 = vmatprep.subr.mxu0 0.0
      %3032 = vmatpush1.msra.mxu0 0.0
      %3033 = vmatprep.subr.mxu0 0.0
      %3034 = vmatpush1.msra.mxu0 0.0
      %3035 = vmatprep.subr.mxu0 0.0
      %3036 = vmatpush1.msra.mxu0 0.0
      %3037 = vmatprep.subr.mxu0 0.0
      %3038 = vmatpush1.msra.mxu0 0.0
      %3039 = vmatprep.subr.mxu0 0.0
      %3040 = vmatpush1.msra.mxu0 0.0
      %3041 = vmatprep.subr.mxu0 0.0
      %3042 = vmatpush1.msra.mxu0 0.0
      %3043 = vmatprep.subr.mxu0 0.0
      %3044 = vmatpush1.msra.mxu0 0.0
      %3045 = vmatprep.subr.mxu0 0.0
      %3046 = vmatpush1.msra.mxu0 0.0
      %3047 = vmatprep.subr.mxu0 0.0
      %3048 = vmatpush1.msra.mxu0 0.0
      %3049 = vmatprep.subr.mxu0 0.0
      %3050 = vmatpush1.msra.mxu0 0.0
      %3051 = vmatprep.subr.mxu0 0.0
      %3052 = vmatpush1.msra.mxu0 0.0
      %3053 = vmatprep.subr.mxu0 0.0
      %3054 = vmatpush1.msra.mxu0 0.0
      %3055 = vmatprep.subr.mxu0 0.0
      %3056 = vmatpush1.msra.mxu0 0.0
      %3057 = vmatprep.subr.mxu0 0.0
      %3058 = vmatpush1.msra.mxu0 0.0
      %3059 = vmatprep.subr.mxu0 0.0
      %3060 = vmatpush1.msra.mxu0 0.0
      %3061 = vmatprep.subr.mxu0 0.0
      %3062 = vmatpush1.msra.mxu0 0.0
      %3063 = vmatprep.subr.mxu0 0.0
      %3064 = vmatpush1.msra.mxu0 0.0
      %3065 = vmatprep.subr.mxu0 0.0
      %3066 = vmatpush1.msra.mxu0 0.0
      %3067 = vmatprep.subr.mxu0 0.0
      %3068 = vmatpush1.msra.mxu0 0.0
      %3069 = vmatprep.subr.mxu0 0.0
      %3070 = vmatpush1.msra.mxu0 0.0
      %3071 = vmatprep.subr.mxu0 0.0
      %3072 = vmatpush1.msra.mxu0 0.0
      %3073 = vmatprep.subr.mxu0 0.0
      %3074 = vmatpush1.msra.mxu0 0.0
      %3075 = vmatprep.subr.mxu0 0.0
      %3076 = vmatpush1.msra.mxu0 0.0
      %3077 = vmatprep.subr.mxu0 0.0
      %3078 = vmatpush1.msra.mxu0 0.0
      %3079 = vmatprep.subr.mxu0 0.0
      %3080 = vmatpush1.msra.mxu0 0.0
      %3081 = vmatprep.subr.mxu0 0.0
      %3082 = vmatpush1.msra.mxu0 0.0
      %3083 = vmatprep.subr.mxu0 0.0
      %3084 = vmatpush1.msra.mxu0 0.0
      %3085 = vmatprep.subr.mxu0 0.0
      %3086 = vmatpush1.msra.mxu0 0.0
      %3087 = vmatprep.subr.mxu0 0.0
      %3088 = vmatpush1.msra.mxu0 0.0
      %3089 = vmatprep.subr.mxu0 0.0
      %3090 = vmatpush1.msra.mxu0 0.0
      %3091 = vmatprep.mubr.f32.mxu0 0.0
      %3092 = vmatmul.mubr.f32.gmra.mrb[0].mxu0 %v2929
      %v3093 = vpop.f32.mrb[0].mxu0
      %v3094 = vadd.f32 0.0, %v3093
      %v3095 = vpop.f32.mrb[0].mxu0
      %3096 = vmatprep.mubr.f32.mxu0 0.0
      %3097 = vmatmul.mubr.f32.gmra.mrb[0].mxu0 %v2932
      %v3098 = vpop.f32.mrb[0].mxu0
      %v3099 = vadd.f32 0.0, %v3098
      %v3100 = vpop.f32.mrb[0].mxu0
      %3101 = vmatprep.mubr.f32.mxu0 0.0
      %3102 = vmatmul.mubr.f32.gmra.mrb[0].mxu0 %v2935
      %v3103 = vpop.f32.mrb[0].mxu0
      %v3104 = vadd.f32 0.0, %v3103
      %v3105 = vpop.f32.mrb[0].mxu0
      %3106 = vmatprep.mubr.f32.mxu0 0.0
      %3107 = vmatmul.mubr.f32.gmra.mrb[0].mxu0 %v2938
      %v3108 = vpop.f32.mrb[0].mxu0
      %v3109 = vadd.f32 0.0, %v3108
      %v3110 = vpop.f32.mrb[0].mxu0
      %3111 = vmatprep.mubr.f32.mxu0 0.0
      %3112 = vmatmul.mubr.f32.gmra.mrb[0].mxu0 %v2941
      %v3113 = vpop.f32.mrb[0].mxu0
      %v3114 = vadd.f32 0.0, %v3113
      %v3115 = vpop.f32.mrb[0].mxu0
      %3116 = vmatprep.mubr.f32.mxu0 0.0
      %3117 = vmatmul.mubr.f32.gmra.mrb[0].mxu0 %v2944
      %v3118 = vpop.f32.mrb[0].mxu0
      %v3119 = vadd.f32 0.0, %v3118
      %v3120 = vpop.f32.mrb[0].mxu0
      %3121 = vmatprep.mubr.f32.mxu0 0.0
      %3122 = vmatmul.mubr.f32.gmra.mrb[0].mxu0 %v2947
      %v3123 = vpop.f32.mrb[0].mxu0
      %v3124 = vadd.f32 0.0, %v3123
      %v3125 = vpop.f32.mrb[0].mxu0
      %3126 = vmatprep.mubr.f32.mxu0 0.0
      %3127 = vmatmul.mubr.f32.gmra.mrb[0].mxu0 %v2950
      %v3128 = vpop.f32.mrb[0].mxu0
      %v3129 = vadd.f32 0.0, %v3128
      %v3130 = vpop.f32.mrb[0].mxu0
      %3131 = vmatprep.mubr.f32.mxu0 0.0
      %3132 = vmatmul.mubr.f32.gmra.mrb[0].mxu0 %v2953
      %v3133 = vpop.f32.mrb[0].mxu0
      %v3134 = vadd.f32 0.0, %v3133
      %v3135 = vpop.f32.mrb[0].mxu0
      %3136 = vmatprep.mubr.f32.mxu0 0.0
      %3137 = vmatmul.mubr.f32.gmra.mrb[0].mxu0 %v2956
      %v3138 = vpop.f32.mrb[0].mxu0
      %v3139 = vadd.f32 0.0, %v3138
      %v3140 = vpop.f32.mrb[0].mxu0
      %3141 = vmatprep.mubr.f32.mxu0 0.0
      %3142 = vmatmul.mubr.f32.gmra.mrb[0].mxu0 %v2959
      %v3143 = vpop.f32.mrb[0].mxu0
      %v3144 = vadd.f32 0.0, %v3143
      %v3145 = vpop.f32.mrb[0].mxu0
      %3146 = vmatprep.mubr.f32.mxu0 0.0
      %3147 = vmatmul.mubr.f32.gmra.mrb[0].mxu0 %v2962
      %v3148 = vpop.f32.mrb[0].mxu0
      %v3149 = vadd.f32 0.0, %v3148
      %v3150 = vpop.f32.mrb[0].mxu0
      %3151 = vmatprep.mubr.f32.mxu0 0.0
      %3152 = vmatmul.mubr.f32.gmra.mrb[0].mxu0 %v2965
      %v3153 = vpop.f32.mrb[0].mxu0
      %v3154 = vadd.f32 0.0, %v3153
      %v3155 = vpop.f32.mrb[0].mxu0
      %3156 = vmatprep.mubr.f32.mxu0 0.0
      %3157 = vmatmul.mubr.f32.gmra.mrb[0].mxu0 %v2968
      %v3158 = vpop.f32.mrb[0].mxu0
      %v3159 = vadd.f32 0.0, %v3158
      %v3160 = vpop.f32.mrb[0].mxu0
      %3161 = vmatprep.mubr.f32.mxu0 0.0
      %3162 = vmatmul.mubr.f32.gmra.mrb[0].mxu0 %v2971
      %v3163 = vpop.f32.mrb[0].mxu0
      %v3164 = vadd.f32 0.0, %v3163
      %v3165 = vpop.f32.mrb[0].mxu0
      %3166 = vmatprep.mubr.f32.mxu0 0.0
      %3167 = vmatmul.mubr.f32.gmra.mrb[0].mxu0 %v2974
      %v3168 = vpop.f32.mrb[0].mxu0
      %v3169 = vadd.f32 0.0, %v3168
      %v3170 = vpop.f32.mrb[0].mxu0
      %3171 = vmatprep.mubr.f32.mxu0 0.0
      %3172 = vmatmul.mubr.f32.gmra.mrb[0].mxu0 %v2977
      %v3173 = vpop.f32.mrb[0].mxu0
      %v3174 = vadd.f32 0.0, %v3173
      %v3175 = vpop.f32.mrb[0].mxu0
      %3176 = vmatprep.mubr.f32.mxu0 0.0
      %3177 = vmatmul.mubr.f32.gmra.mrb[0].mxu0 %v2980
      %v3178 = vpop.f32.mrb[0].mxu0
      %v3179 = vadd.f32 0.0, %v3178
      %v3180 = vpop.f32.mrb[0].mxu0
      %3181 = vmatprep.mubr.f32.mxu0 0.0
      %3182 = vmatmul.mubr.f32.gmra.mrb[0].mxu0 %v2983
      %v3183 = vpop.f32.mrb[0].mxu0
      %v3184 = vadd.f32 0.0, %v3183
      %v3185 = vpop.f32.mrb[0].mxu0
      %3186 = vmatprep.mubr.f32.mxu0 0.0
      %3187 = vmatmul.mubr.f32.gmra.mrb[0].mxu0 %v2986
      %v3188 = vpop.f32.mrb[0].mxu0
      %v3189 = vadd.f32 0.0, %v3188
      %v3190 = vpop.f32.mrb[0].mxu0
      %3191 = vmatprep.mubr.f32.mxu0 0.0
      %3192 = vmatmul.mubr.f32.gmra.mrb[0].mxu0 %v2989
      %v3193 = vpop.f32.mrb[0].mxu0
      %v3194 = vadd.f32 0.0, %v3193
      %v3195 = vpop.f32.mrb[0].mxu0
      %3196 = vmatprep.mubr.f32.mxu0 0.0
      %3197 = vmatmul.mubr.f32.gmra.mrb[0].mxu0 %v2992
      %v3198 = vpop.f32.mrb[0].mxu0
      %v3199 = vadd.f32 0.0, %v3198
      %v3200 = vpop.f32.mrb[0].mxu0
      %3201 = vmatprep.mubr.f32.mxu0 0.0
      %3202 = vmatmul.mubr.f32.gmra.mrb[0].mxu0 %v2995
      %v3203 = vpop.f32.mrb[0].mxu0
      %v3204 = vadd.f32 0.0, %v3203
      %v3205 = vpop.f32.mrb[0].mxu0
      %3206 = vmatprep.mubr.f32.mxu0 0.0
      %3207 = vmatmul.mubr.f32.gmra.mrb[0].mxu0 %v2998
      %v3208 = vpop.f32.mrb[0].mxu0
      %v3209 = vadd.f32 0.0, %v3208
      %v3210 = vpop.f32.mrb[0].mxu0
      %3211 = vmatprep.mubr.f32.mxu0 0.0
      %3212 = vmatmul.mubr.f32.gmra.mrb[0].mxu0 %v3001
      %v3213 = vpop.f32.mrb[0].mxu0
      %v3214 = vadd.f32 0.0, %v3213
      %v3215 = vpop.f32.mrb[0].mxu0
      %3216 = vmatprep.mubr.f32.mxu0 0.0
      %3217 = vmatmul.mubr.f32.gmra.mrb[0].mxu0 %v3004
      %v3218 = vpop.f32.mrb[0].mxu0
      %v3219 = vadd.f32 0.0, %v3218
      %v3220 = vpop.f32.mrb[0].mxu0
      %3221 = vmatprep.mubr.f32.mxu0 0.0
      %3222 = vmatmul.mubr.f32.gmra.mrb[0].mxu0 %v3007
      %v3223 = vpop.f32.mrb[0].mxu0
      %v3224 = vadd.f32 0.0, %v3223
      %v3225 = vpop.f32.mrb[0].mxu0
      %3226 = vmatprep.mubr.f32.mxu0 0.0
      %3227 = vmatmul.mubr.f32.gmra.mrb[0].mxu0 %v3010
      %v3228 = vpop.f32.mrb[0].mxu0
      %v3229 = vadd.f32 0.0, %v3228
      %v3230 = vpop.f32.mrb[0].mxu0
      %3231 = vmatprep.mubr.f32.mxu0 0.0
      %3232 = vmatmul.mubr.f32.gmra.mrb[0].mxu0 %v3013
      %v3233 = vpop.f32.mrb[0].mxu0
      %v3234 = vadd.f32 0.0, %v3233
      %v3235 = vpop.f32.mrb[0].mxu0
      %3236 = vmatprep.mubr.f32.mxu0 0.0
      %3237 = vmatmul.mubr.f32.gmra.mrb[0].mxu0 %v3016
      %v3238 = vpop.f32.mrb[0].mxu0
      %v3239 = vadd.f32 0.0, %v3238
      %v3240 = vpop.f32.mrb[0].mxu0
      %3241 = vmatprep.mubr.f32.mxu0 0.0
      %3242 = vmatmul.mubr.f32.gmra.mrb[0].mxu0 %v3019
      %v3243 = vpop.f32.mrb[0].mxu0
      %v3244 = vadd.f32 0.0, %v3243
      %v3245 = vpop.f32.mrb[0].mxu0
      %3246 = vmatprep.mubr.f32.mxu0 0.0
      %3247 = vmatmul.mubr.f32.gmra.mrb[0].mxu0 %v3022
      %v3248 = vpop.f32.mrb[0].mxu0
      %v3249 = vadd.f32 0.0, %v3248
      %v3250 = vpop.f32.mrb[0].mxu0
      %3251 = vdwg.mxu0
      %v3252 = vadd.f32 %v2862, %v3094
      %v3253 = vadd.f32 %v2863, %v3099
      %v3254 = vadd.f32 %v2864, %v3104
      %v3255 = vadd.f32 %v2865, %v3109
      %v3256 = vadd.f32 %v2866, %v3114
      %v3257 = vadd.f32 %v2867, %v3119
      %v3258 = vadd.f32 %v2868, %v3124
      %v3259 = vadd.f32 %v2869, %v3129
      %v3260 = vadd.f32 %v2870, %v3134
      %v3261 = vadd.f32 %v2871, %v3139
      %v3262 = vadd.f32 %v2872, %v3144
      %v3263 = vadd.f32 %v2873, %v3149
      %v3264 = vadd.f32 %v2874, %v3154
      %v3265 = vadd.f32 %v2875, %v3159
      %v3266 = vadd.f32 %v2876, %v3164
      %v3267 = vadd.f32 %v2877, %v3169
      %v3268 = vadd.f32 %v2878, %v3174
      %v3269 = vadd.f32 %v2879, %v3179
      %v3270 = vadd.f32 %v2880, %v3184
      %v3271 = vadd.f32 %v2881, %v3189
      %v3272 = vadd.f32 %v2882, %v3194
      %v3273 = vadd.f32 %v2883, %v3199
      %v3274 = vadd.f32 %v2884, %v3204
      %v3275 = vadd.f32 %v2885, %v3209
      %v3276 = vadd.f32 %v2886, %v3214
      %v3277 = vadd.f32 %v2887, %v3219
      %v3278 = vadd.f32 %v2888, %v3224
      %v3279 = vadd.f32 %v2889, %v3229
      %v3280 = vadd.f32 %v2890, %v3234
      %v3281 = vadd.f32 %v2891, %v3239
      %v3282 = vadd.f32 %v2892, %v3244
      %v3283 = vadd.f32 %v2893, %v3249
      %v3284 = vld [vmem:[%s2503 + $0x2] sm:$0xff]
      %v3285 = vld [vmem:[%s2503 + $0xa] sm:$0xff]
      %v3286 = vld [vmem:[%s2503 + $0x1a] sm:$0xff]
      %v3287 = vld [vmem:[%s2503 + $0x22] sm:$0xff]
      %v3288 = vld [vmem:[%s2503 + $0x32] sm:$0xff]
      %v3289 = vld [vmem:[%s2503 + $0x3a] sm:$0xff]
      %v3290 = vld [vmem:[%s2503 + $0x4a] sm:$0xff]
      %v3291 = vld [vmem:[%s2503 + $0x52] sm:$0xff]
      %v3292 = vld [vmem:[%s2503 + $0x62] sm:$0xff]
      %v3293 = vld [vmem:[%s2503 + $0x6a] sm:$0xff]
      %v3294 = vld [vmem:[%s2503 + $0x7a] sm:$0xff]
      %v3295 = vld [vmem:[%s2503 + $0x82] sm:$0xff]
      %v3296 = vld [vmem:[%s2503 + $0x92] sm:$0xff]
      %v3297 = vld [vmem:[%s2503 + $0x9a] sm:$0xff]
      %v3298 = vld [vmem:[%s2503 + $0xaa] sm:$0xff]
      %v3299 = vld [vmem:[%s2503 + $0xb2] sm:$0xff]
      %v3300 = vld [vmem:[%s2503 + $0xc2] sm:$0xff]
      %v3301 = vld [vmem:[%s2503 + $0xca] sm:$0xff]
      %v3302 = vld [vmem:[%s2503 + $0xda] sm:$0xff]
      %v3303 = vld [vmem:[%s2503 + $0xe2] sm:$0xff]
      %v3304 = vld [vmem:[%s2503 + $0xf2] sm:$0xff]
      %v3305 = vld [vmem:[%s2503 + $0xfa] sm:$0xff]
      %v3306 = vld [vmem:[%s2503 + $0x10a] sm:$0xff]
      %v3307 = vld [vmem:[%s2503 + $0x112] sm:$0xff]
      %v3308 = vld [vmem:[%s2503 + $0x122] sm:$0xff]
      %v3309 = vld [vmem:[%s2503 + $0x12a] sm:$0xff]
      %v3310 = vld [vmem:[%s2503 + $0x13a] sm:$0xff]
      %v3311 = vld [vmem:[%s2503 + $0x142] sm:$0xff]
      %v3312 = vld [vmem:[%s2503 + $0x152] sm:$0xff]
      %v3313 = vld [vmem:[%s2503 + $0x15a] sm:$0xff]
      %v3314 = vld [vmem:[%s2503 + $0x16a] sm:$0xff]
      %v3315 = vld [vmem:[%s2503 + $0x172] sm:$0xff]
      %s3316 = scalar_lea.vmem %s2, 32
      %v3317 = vld [vmem:[%s3316] sm:$0xf]
      %v3319 = vsel %vm292, %v3284, 0
      %v3322 = vsel %vm292, %v3285, 0
      %v3325 = vsel %vm292, %v3286, 0
      %v3328 = vsel %vm292, %v3287, 0
      %v3331 = vsel %vm292, %v3288, 0
      %v3334 = vsel %vm292, %v3289, 0
      %v3337 = vsel %vm292, %v3290, 0
      %v3340 = vsel %vm292, %v3291, 0
      %v3343 = vsel %vm292, %v3292, 0
      %v3346 = vsel %vm292, %v3293, 0
      %v3349 = vsel %vm292, %v3294, 0
      %v3352 = vsel %vm292, %v3295, 0
      %v3355 = vsel %vm292, %v3296, 0
      %v3358 = vsel %vm292, %v3297, 0
      %v3361 = vsel %vm292, %v3298, 0
      %v3364 = vsel %vm292, %v3299, 0
      %v3367 = vsel %vm292, %v3300, 0
      %v3370 = vsel %vm292, %v3301, 0
      %v3373 = vsel %vm292, %v3302, 0
      %v3376 = vsel %vm292, %v3303, 0
      %v3379 = vsel %vm292, %v3304, 0
      %v3382 = vsel %vm292, %v3305, 0
      %v3385 = vsel %vm292, %v3306, 0
      %v3388 = vsel %vm292, %v3307, 0
      %v3391 = vsel %vm292, %v3308, 0
      %v3394 = vsel %vm292, %v3309, 0
      %v3397 = vsel %vm292, %v3310, 0
      %v3400 = vsel %vm292, %v3311, 0
      %v3403 = vsel %vm292, %v3312, 0
      %v3406 = vsel %vm292, %v3313, 0
      %v3409 = vsel %vm292, %v3314, 0
      %v3412 = vsel %vm292, %v3315, 0
      %v3415 = vsel %vm389, %v3317, 0
      %3417 = vmatprep.subr.mxu0 0.0
      %3418 = vmatpush1.msra.mxu0 %v3415
      %3419 = vmatprep.subr.mxu0 0.0
      %3420 = vmatpush1.msra.mxu0 0.0
      %3421 = vmatprep.subr.mxu0 0.0
      %3422 = vmatpush1.msra.mxu0 0.0
      %3423 = vmatprep.subr.mxu0 0.0
      %3424 = vmatpush1.msra.mxu0 0.0
      %3425 = vmatprep.subr.mxu0 0.0
      %3426 = vmatpush1.msra.mxu0 0.0
      %3427 = vmatprep.subr.mxu0 0.0
      %3428 = vmatpush1.msra.mxu0 0.0
      %3429 = vmatprep.subr.mxu0 0.0
      %3430 = vmatpush1.msra.mxu0 0.0
      %3431 = vmatprep.subr.mxu0 0.0
      %3432 = vmatpush1.msra.mxu0 0.0
      %3433 = vmatprep.subr.mxu0 0.0
      %3434 = vmatpush1.msra.mxu0 0.0
      %3435 = vmatprep.subr.mxu0 0.0
      %3436 = vmatpush1.msra.mxu0 0.0
      %3437 = vmatprep.subr.mxu0 0.0
      %3438 = vmatpush1.msra.mxu0 0.0
      %3439 = vmatprep.subr.mxu0 0.0
      %3440 = vmatpush1.msra.mxu0 0.0
      %3441 = vmatprep.subr.mxu0 0.0
      %3442 = vmatpush1.msra.mxu0 0.0
      %3443 = vmatprep.subr.mxu0 0.0
      %3444 = vmatpush1.msra.mxu0 0.0
      %3445 = vmatprep.subr.mxu0 0.0
      %3446 = vmatpush1.msra.mxu0 0.0
      %3447 = vmatprep.subr.mxu0 0.0
      %3448 = vmatpush1.msra.mxu0 0.0
      %3449 = vmatprep.subr.mxu0 0.0
      %3450 = vmatpush1.msra.mxu0 0.0
      %3451 = vmatprep.subr.mxu0 0.0
      %3452 = vmatpush1.msra.mxu0 0.0
      %3453 = vmatprep.subr.mxu0 0.0
      %3454 = vmatpush1.msra.mxu0 0.0
      %3455 = vmatprep.subr.mxu0 0.0
      %3456 = vmatpush1.msra.mxu0 0.0
      %3457 = vmatprep.subr.mxu0 0.0
      %3458 = vmatpush1.msra.mxu0 0.0
      %3459 = vmatprep.subr.mxu0 0.0
      %3460 = vmatpush1.msra.mxu0 0.0
      %3461 = vmatprep.subr.mxu0 0.0
      %3462 = vmatpush1.msra.mxu0 0.0
      %3463 = vmatprep.subr.mxu0 0.0
      %3464 = vmatpush1.msra.mxu0 0.0
      %3465 = vmatprep.subr.mxu0 0.0
      %3466 = vmatpush1.msra.mxu0 0.0
      %3467 = vmatprep.subr.mxu0 0.0
      %3468 = vmatpush1.msra.mxu0 0.0
      %3469 = vmatprep.subr.mxu0 0.0
      %3470 = vmatpush1.msra.mxu0 0.0
      %3471 = vmatprep.subr.mxu0 0.0
      %3472 = vmatpush1.msra.mxu0 0.0
      %3473 = vmatprep.subr.mxu0 0.0
      %3474 = vmatpush1.msra.mxu0 0.0
      %3475 = vmatprep.subr.mxu0 0.0
      %3476 = vmatpush1.msra.mxu0 0.0
      %3477 = vmatprep.subr.mxu0 0.0
      %3478 = vmatpush1.msra.mxu0 0.0
      %3479 = vmatprep.subr.mxu0 0.0
      %3480 = vmatpush1.msra.mxu0 0.0
      %3481 = vmatprep.mubr.f32.mxu0 0.0
      %3482 = vmatmul.mubr.f32.gmra.mrb[0].mxu0 %v3319
      %v3483 = vpop.f32.mrb[0].mxu0
      %v3484 = vadd.f32 0.0, %v3483
      %v3485 = vpop.f32.mrb[0].mxu0
      %3486 = vmatprep.mubr.f32.mxu0 0.0
      %3487 = vmatmul.mubr.f32.gmra.mrb[0].mxu0 %v3322
      %v3488 = vpop.f32.mrb[0].mxu0
      %v3489 = vadd.f32 0.0, %v3488
      %v3490 = vpop.f32.mrb[0].mxu0
      %3491 = vmatprep.mubr.f32.mxu0 0.0
      %3492 = vmatmul.mubr.f32.gmra.mrb[0].mxu0 %v3325
      %v3493 = vpop.f32.mrb[0].mxu0
      %v3494 = vadd.f32 0.0, %v3493
      %v3495 = vpop.f32.mrb[0].mxu0
      %3496 = vmatprep.mubr.f32.mxu0 0.0
      %3497 = vmatmul.mubr.f32.gmra.mrb[0].mxu0 %v3328
      %v3498 = vpop.f32.mrb[0].mxu0
      %v3499 = vadd.f32 0.0, %v3498
      %v3500 = vpop.f32.mrb[0].mxu0
      %3501 = vmatprep.mubr.f32.mxu0 0.0
      %3502 = vmatmul.mubr.f32.gmra.mrb[0].mxu0 %v3331
      %v3503 = vpop.f32.mrb[0].mxu0
      %v3504 = vadd.f32 0.0, %v3503
      %v3505 = vpop.f32.mrb[0].mxu0
      %3506 = vmatprep.mubr.f32.mxu0 0.0
      %3507 = vmatmul.mubr.f32.gmra.mrb[0].mxu0 %v3334
      %v3508 = vpop.f32.mrb[0].mxu0
      %v3509 = vadd.f32 0.0, %v3508
      %v3510 = vpop.f32.mrb[0].mxu0
      %3511 = vmatprep.mubr.f32.mxu0 0.0
      %3512 = vmatmul.mubr.f32.gmra.mrb[0].mxu0 %v3337
      %v3513 = vpop.f32.mrb[0].mxu0
      %v3514 = vadd.f32 0.0, %v3513
      %v3515 = vpop.f32.mrb[0].mxu0
      %3516 = vmatprep.mubr.f32.mxu0 0.0
      %3517 = vmatmul.mubr.f32.gmra.mrb[0].mxu0 %v3340
      %v3518 = vpop.f32.mrb[0].mxu0
      %v3519 = vadd.f32 0.0, %v3518
      %v3520 = vpop.f32.mrb[0].mxu0
      %3521 = vmatprep.mubr.f32.mxu0 0.0
      %3522 = vmatmul.mubr.f32.gmra.mrb[0].mxu0 %v3343
      %v3523 = vpop.f32.mrb[0].mxu0
      %v3524 = vadd.f32 0.0, %v3523
      %v3525 = vpop.f32.mrb[0].mxu0
      %3526 = vmatprep.mubr.f32.mxu0 0.0
      %3527 = vmatmul.mubr.f32.gmra.mrb[0].mxu0 %v3346
      %v3528 = vpop.f32.mrb[0].mxu0
      %v3529 = vadd.f32 0.0, %v3528
      %v3530 = vpop.f32.mrb[0].mxu0
      %3531 = vmatprep.mubr.f32.mxu0 0.0
      %3532 = vmatmul.mubr.f32.gmra.mrb[0].mxu0 %v3349
      %v3533 = vpop.f32.mrb[0].mxu0
      %v3534 = vadd.f32 0.0, %v3533
      %v3535 = vpop.f32.mrb[0].mxu0
      %3536 = vmatprep.mubr.f32.mxu0 0.0
      %3537 = vmatmul.mubr.f32.gmra.mrb[0].mxu0 %v3352
      %v3538 = vpop.f32.mrb[0].mxu0
      %v3539 = vadd.f32 0.0, %v3538
      %v3540 = vpop.f32.mrb[0].mxu0
      %3541 = vmatprep.mubr.f32.mxu0 0.0
      %3542 = vmatmul.mubr.f32.gmra.mrb[0].mxu0 %v3355
      %v3543 = vpop.f32.mrb[0].mxu0
      %v3544 = vadd.f32 0.0, %v3543
      %v3545 = vpop.f32.mrb[0].mxu0
      %3546 = vmatprep.mubr.f32.mxu0 0.0
      %3547 = vmatmul.mubr.f32.gmra.mrb[0].mxu0 %v3358
      %v3548 = vpop.f32.mrb[0].mxu0
      %v3549 = vadd.f32 0.0, %v3548
      %v3550 = vpop.f32.mrb[0].mxu0
      %3551 = vmatprep.mubr.f32.mxu0 0.0
      %3552 = vmatmul.mubr.f32.gmra.mrb[0].mxu0 %v3361
      %v3553 = vpop.f32.mrb[0].mxu0
      %v3554 = vadd.f32 0.0, %v3553
      %v3555 = vpop.f32.mrb[0].mxu0
      %3556 = vmatprep.mubr.f32.mxu0 0.0
      %3557 = vmatmul.mubr.f32.gmra.mrb[0].mxu0 %v3364
      %v3558 = vpop.f32.mrb[0].mxu0
      %v3559 = vadd.f32 0.0, %v3558
      %v3560 = vpop.f32.mrb[0].mxu0
      %3561 = vmatprep.mubr.f32.mxu0 0.0
      %3562 = vmatmul.mubr.f32.gmra.mrb[0].mxu0 %v3367
      %v3563 = vpop.f32.mrb[0].mxu0
      %v3564 = vadd.f32 0.0, %v3563
      %v3565 = vpop.f32.mrb[0].mxu0
      %3566 = vmatprep.mubr.f32.mxu0 0.0
      %3567 = vmatmul.mubr.f32.gmra.mrb[0].mxu0 %v3370
      %v3568 = vpop.f32.mrb[0].mxu0
      %v3569 = vadd.f32 0.0, %v3568
      %v3570 = vpop.f32.mrb[0].mxu0
      %3571 = vmatprep.mubr.f32.mxu0 0.0
      %3572 = vmatmul.mubr.f32.gmra.mrb[0].mxu0 %v3373
      %v3573 = vpop.f32.mrb[0].mxu0
      %v3574 = vadd.f32 0.0, %v3573
      %v3575 = vpop.f32.mrb[0].mxu0
      %3576 = vmatprep.mubr.f32.mxu0 0.0
      %3577 = vmatmul.mubr.f32.gmra.mrb[0].mxu0 %v3376
      %v3578 = vpop.f32.mrb[0].mxu0
      %v3579 = vadd.f32 0.0, %v3578
      %v3580 = vpop.f32.mrb[0].mxu0
      %3581 = vmatprep.mubr.f32.mxu0 0.0
      %3582 = vmatmul.mubr.f32.gmra.mrb[0].mxu0 %v3379
      %v3583 = vpop.f32.mrb[0].mxu0
      %v3584 = vadd.f32 0.0, %v3583
      %v3585 = vpop.f32.mrb[0].mxu0
      %3586 = vmatprep.mubr.f32.mxu0 0.0
      %3587 = vmatmul.mubr.f32.gmra.mrb[0].mxu0 %v3382
      %v3588 = vpop.f32.mrb[0].mxu0
      %v3589 = vadd.f32 0.0, %v3588
      %v3590 = vpop.f32.mrb[0].mxu0
      %3591 = vmatprep.mubr.f32.mxu0 0.0
      %3592 = vmatmul.mubr.f32.gmra.mrb[0].mxu0 %v3385
      %v3593 = vpop.f32.mrb[0].mxu0
      %v3594 = vadd.f32 0.0, %v3593
      %v3595 = vpop.f32.mrb[0].mxu0
      %3596 = vmatprep.mubr.f32.mxu0 0.0
      %3597 = vmatmul.mubr.f32.gmra.mrb[0].mxu0 %v3388
      %v3598 = vpop.f32.mrb[0].mxu0
      %v3599 = vadd.f32 0.0, %v3598
      %v3600 = vpop.f32.mrb[0].mxu0
      %3601 = vmatprep.mubr.f32.mxu0 0.0
      %3602 = vmatmul.mubr.f32.gmra.mrb[0].mxu0 %v3391
      %v3603 = vpop.f32.mrb[0].mxu0
      %v3604 = vadd.f32 0.0, %v3603
      %v3605 = vpop.f32.mrb[0].mxu0
      %3606 = vmatprep.mubr.f32.mxu0 0.0
      %3607 = vmatmul.mubr.f32.gmra.mrb[0].mxu0 %v3394
      %v3608 = vpop.f32.mrb[0].mxu0
      %v3609 = vadd.f32 0.0, %v3608
      %v3610 = vpop.f32.mrb[0].mxu0
      %3611 = vmatprep.mubr.f32.mxu0 0.0
      %3612 = vmatmul.mubr.f32.gmra.mrb[0].mxu0 %v3397
      %v3613 = vpop.f32.mrb[0].mxu0
      %v3614 = vadd.f32 0.0, %v3613
      %v3615 = vpop.f32.mrb[0].mxu0
      %3616 = vmatprep.mubr.f32.mxu0 0.0
      %3617 = vmatmul.mubr.f32.gmra.mrb[0].mxu0 %v3400
      %v3618 = vpop.f32.mrb[0].mxu0
      %v3619 = vadd.f32 0.0, %v3618
      %v3620 = vpop.f32.mrb[0].mxu0
      %3621 = vmatprep.mubr.f32.mxu0 0.0
      %3622 = vmatmul.mubr.f32.gmra.mrb[0].mxu0 %v3403
      %v3623 = vpop.f32.mrb[0].mxu0
      %v3624 = vadd.f32 0.0, %v3623
      %v3625 = vpop.f32.mrb[0].mxu0
      %3626 = vmatprep.mubr.f32.mxu0 0.0
      %3627 = vmatmul.mubr.f32.gmra.mrb[0].mxu0 %v3406
      %v3628 = vpop.f32.mrb[0].mxu0
      %v3629 = vadd.f32 0.0, %v3628
      %v3630 = vpop.f32.mrb[0].mxu0
      %3631 = vmatprep.mubr.f32.mxu0 0.0
      %3632 = vmatmul.mubr.f32.gmra.mrb[0].mxu0 %v3409
      %v3633 = vpop.f32.mrb[0].mxu0
      %v3634 = vadd.f32 0.0, %v3633
      %v3635 = vpop.f32.mrb[0].mxu0
      %3636 = vmatprep.mubr.f32.mxu0 0.0
      %3637 = vmatmul.mubr.f32.gmra.mrb[0].mxu0 %v3412
      %v3638 = vpop.f32.mrb[0].mxu0
      %v3639 = vadd.f32 0.0, %v3638
      %v3640 = vpop.f32.mrb[0].mxu0
      %3641 = vdwg.mxu0
      %v3642 = vadd.f32 %v3252, %v3484
      %v3643 = vadd.f32 %v3253, %v3489
      %v3644 = vadd.f32 %v3254, %v3494
      %v3645 = vadd.f32 %v3255, %v3499
      %v3646 = vadd.f32 %v3256, %v3504
      %v3647 = vadd.f32 %v3257, %v3509
      %v3648 = vadd.f32 %v3258, %v3514
      %v3649 = vadd.f32 %v3259, %v3519
      %v3650 = vadd.f32 %v3260, %v3524
      %v3651 = vadd.f32 %v3261, %v3529
      %v3652 = vadd.f32 %v3262, %v3534
      %v3653 = vadd.f32 %v3263, %v3539
      %v3654 = vadd.f32 %v3264, %v3544
      %v3655 = vadd.f32 %v3265, %v3549
      %v3656 = vadd.f32 %v3266, %v3554
      %v3657 = vadd.f32 %v3267, %v3559
      %v3658 = vadd.f32 %v3268, %v3564
      %v3659 = vadd.f32 %v3269, %v3569
      %v3660 = vadd.f32 %v3270, %v3574
      %v3661 = vadd.f32 %v3271, %v3579
      %v3662 = vadd.f32 %v3272, %v3584
      %v3663 = vadd.f32 %v3273, %v3589
      %v3664 = vadd.f32 %v3274, %v3594
      %v3665 = vadd.f32 %v3275, %v3599
      %v3666 = vadd.f32 %v3276, %v3604
      %v3667 = vadd.f32 %v3277, %v3609
      %v3668 = vadd.f32 %v3278, %v3614
      %v3669 = vadd.f32 %v3279, %v3619
      %v3670 = vadd.f32 %v3280, %v3624
      %v3671 = vadd.f32 %v3281, %v3629
      %v3672 = vadd.f32 %v3282, %v3634
      %v3673 = vadd.f32 %v3283, %v3639
      %v3674 = vld [vmem:[%s0] sm:$0x1]
      %v3675 = vld [vmem:[%s1] sm:$0x1]
      %v3677 = vlaneseq
      %v3678 = vshrl.u32 %v3677, 7
      %v3679 = vsub.s32 0, %v3678
      %v3680 = vrot.slane %v3675, %v3679
      %v3682 = vadd.f32 %v3642, %v3680
      %v3683 = vadd.f32 %v3643, %v3680
      %v3684 = vadd.f32 %v3644, %v3680
      %v3685 = vadd.f32 %v3645, %v3680
      %v3686 = vadd.f32 %v3646, %v3680
      %v3687 = vadd.f32 %v3647, %v3680
      %v3688 = vadd.f32 %v3648, %v3680
      %v3689 = vadd.f32 %v3649, %v3680
      %v3690 = vadd.f32 %v3650, %v3680
      %v3691 = vadd.f32 %v3651, %v3680
      %v3692 = vadd.f32 %v3652, %v3680
      %v3693 = vadd.f32 %v3653, %v3680
      %v3694 = vadd.f32 %v3654, %v3680
      %v3695 = vadd.f32 %v3655, %v3680
      %v3696 = vadd.f32 %v3656, %v3680
      %v3697 = vadd.f32 %v3657, %v3680
      %v3698 = vadd.f32 %v3658, %v3680
      %v3699 = vadd.f32 %v3659, %v3680
      %v3700 = vadd.f32 %v3660, %v3680
      %v3701 = vadd.f32 %v3661, %v3680
      %v3702 = vadd.f32 %v3662, %v3680
      %v3703 = vadd.f32 %v3663, %v3680
      %v3704 = vadd.f32 %v3664, %v3680
      %v3705 = vadd.f32 %v3665, %v3680
      %v3706 = vadd.f32 %v3666, %v3680
      %v3707 = vadd.f32 %v3667, %v3680
      %v3708 = vadd.f32 %v3668, %v3680
      %v3709 = vadd.f32 %v3669, %v3680
      %v3710 = vadd.f32 %v3670, %v3680
      %v3711 = vadd.f32 %v3671, %v3680
      %v3712 = vadd.f32 %v3672, %v3680
      %v3713 = vadd.f32 %v3673, %v3680
      %v3714 = vmax.f32 %v3682, 0.0
      %v3715 = vmax.f32 %v3683, 0.0
      %v3716 = vmax.f32 %v3684, 0.0
      %v3717 = vmax.f32 %v3685, 0.0
      %v3718 = vmax.f32 %v3686, 0.0
      %v3719 = vmax.f32 %v3687, 0.0
      %v3720 = vmax.f32 %v3688, 0.0
      %v3721 = vmax.f32 %v3689, 0.0
      %v3722 = vmax.f32 %v3690, 0.0
      %v3723 = vmax.f32 %v3691, 0.0
      %v3724 = vmax.f32 %v3692, 0.0
      %v3725 = vmax.f32 %v3693, 0.0
      %v3726 = vmax.f32 %v3694, 0.0
      %v3727 = vmax.f32 %v3695, 0.0
      %v3728 = vmax.f32 %v3696, 0.0
      %v3729 = vmax.f32 %v3697, 0.0
      %v3730 = vmax.f32 %v3698, 0.0
      %v3731 = vmax.f32 %v3699, 0.0
      %v3732 = vmax.f32 %v3700, 0.0
      %v3733 = vmax.f32 %v3701, 0.0
      %v3734 = vmax.f32 %v3702, 0.0
      %v3735 = vmax.f32 %v3703, 0.0
      %v3736 = vmax.f32 %v3704, 0.0
      %v3737 = vmax.f32 %v3705, 0.0
      %v3738 = vmax.f32 %v3706, 0.0
      %v3739 = vmax.f32 %v3707, 0.0
      %v3740 = vmax.f32 %v3708, 0.0
      %v3741 = vmax.f32 %v3709, 0.0
      %v3742 = vmax.f32 %v3710, 0.0
      %v3743 = vmax.f32 %v3711, 0.0
      %v3744 = vmax.f32 %v3712, 0.0
      %v3745 = vmax.f32 %v3713, 0.0
      %v3747 = vlaneseq
      %v3748 = vshrl.u32 %v3747, 7
      %v3749 = vsub.s32 0, %v3748
      %v3750 = vrot.slane %v3674, %v3749
      %v3752 = vmul.f32 %v3750, %v3714
      %v3753 = vmul.f32 %v3750, %v3715
      %v3754 = vmul.f32 %v3750, %v3716
      %v3755 = vmul.f32 %v3750, %v3717
      %v3756 = vmul.f32 %v3750, %v3718
      %v3757 = vmul.f32 %v3750, %v3719
      %v3758 = vmul.f32 %v3750, %v3720
      %v3759 = vmul.f32 %v3750, %v3721
      %v3760 = vmul.f32 %v3750, %v3722
      %v3761 = vmul.f32 %v3750, %v3723
      %v3762 = vmul.f32 %v3750, %v3724
      %v3763 = vmul.f32 %v3750, %v3725
      %v3764 = vmul.f32 %v3750, %v3726
      %v3765 = vmul.f32 %v3750, %v3727
      %v3766 = vmul.f32 %v3750, %v3728
      %v3767 = vmul.f32 %v3750, %v3729
      %v3768 = vmul.f32 %v3750, %v3730
      %v3769 = vmul.f32 %v3750, %v3731
      %v3770 = vmul.f32 %v3750, %v3732
      %v3771 = vmul.f32 %v3750, %v3733
      %v3772 = vmul.f32 %v3750, %v3734
      %v3773 = vmul.f32 %v3750, %v3735
      %v3774 = vmul.f32 %v3750, %v3736
      %v3775 = vmul.f32 %v3750, %v3737
      %v3776 = vmul.f32 %v3750, %v3738
      %v3777 = vmul.f32 %v3750, %v3739
      %v3778 = vmul.f32 %v3750, %v3740
      %v3779 = vmul.f32 %v3750, %v3741
      %v3780 = vmul.f32 %v3750, %v3742
      %v3781 = vmul.f32 %v3750, %v3743
      %v3782 = vmul.f32 %v3750, %v3744
      %v3783 = vmul.f32 %v3750, %v3745
      %3784 = vst.msk [vmem:[%s224] sm:$0xff] %vm292, %v1723
      %3785 = vst.msk [vmem:[%s224 + $0x8] sm:$0xff] %vm292, %v1724
      %3786 = vst.msk [vmem:[%s224 + $0x10] sm:$0xff] %vm292, %v1725
      %3787 = vst.msk [vmem:[%s224 + $0x18] sm:$0xff] %vm292, %v1726
      %3788 = vst.msk [vmem:[%s224 + $0x20] sm:$0xff] %vm292, %v1727
      %3789 = vst.msk [vmem:[%s224 + $0x28] sm:$0xff] %vm292, %v1728
      %3790 = vst.msk [vmem:[%s224 + $0x30] sm:$0xff] %vm292, %v1729
      %3791 = vst.msk [vmem:[%s224 + $0x38] sm:$0xff] %vm292, %v1730
      %3792 = vst.msk [vmem:[%s224 + $0x40] sm:$0xff] %vm292, %v1731
      %3793 = vst.msk [vmem:[%s224 + $0x48] sm:$0xff] %vm292, %v1732
      %3794 = vst.msk [vmem:[%s224 + $0x50] sm:$0xff] %vm292, %v1733
      %3795 = vst.msk [vmem:[%s224 + $0x58] sm:$0xff] %vm292, %v1734
      %3796 = vst.msk [vmem:[%s224 + $0x60] sm:$0xff] %vm292, %v1735
      %3797 = vst.msk [vmem:[%s224 + $0x68] sm:$0xff] %vm292, %v1736
      %3798 = vst.msk [vmem:[%s224 + $0x70] sm:$0xff] %vm292, %v1737
      %3799 = vst.msk [vmem:[%s224 + $0x78] sm:$0xff] %vm292, %v1738
      %3800 = vst.msk [vmem:[%s224 + $0x80] sm:$0xff] %vm292, %v1739
      %3801 = vst.msk [vmem:[%s224 + $0x88] sm:$0xff] %vm292, %v1740
      %3802 = vst.msk [vmem:[%s224 + $0x90] sm:$0xff] %vm292, %v1741
      %3803 = vst.msk [vmem:[%s224 + $0x98] sm:$0xff] %vm292, %v1742
      %3804 = vst.msk [vmem:[%s224 + $0xa0] sm:$0xff] %vm292, %v1743
      %3805 = vst.msk [vmem:[%s224 + $0xa8] sm:$0xff] %vm292, %v1744
      %3806 = vst.msk [vmem:[%s224 + $0xb0] sm:$0xff] %vm292, %v1745
      %3807 = vst.msk [vmem:[%s224 + $0xb8] sm:$0xff] %vm292, %v1746
      %3808 = vst.msk [vmem:[%s224 + $0xc0] sm:$0xff] %vm292, %v1747
      %3809 = vst.msk [vmem:[%s224 + $0xc8] sm:$0xff] %vm292, %v1748
      %3810 = vst.msk [vmem:[%s224 + $0xd0] sm:$0xff] %vm292, %v1749
      %3811 = vst.msk [vmem:[%s224 + $0xd8] sm:$0xff] %vm292, %v1750
      %3812 = vst.msk [vmem:[%s224 + $0xe0] sm:$0xff] %vm292, %v1751
      %3813 = vst.msk [vmem:[%s224 + $0xe8] sm:$0xff] %vm292, %v1752
      %3814 = vst.msk [vmem:[%s224 + $0xf0] sm:$0xff] %vm292, %v1753
      %3815 = vst.msk [vmem:[%s224 + $0xf8] sm:$0xff] %vm292, %v1754
      %v3816 = vld [vmem:[%s3] sm:$0xff]
      %vm3817 = vcmask 64512
      %v3819 = vsel %vm3817, %v3752, 0
      %v3822 = vsel %vm3817, %v3753, 0
      %v3825 = vsel %vm3817, %v3754, 0
      %v3828 = vsel %vm3817, %v3755, 0
      %v3831 = vsel %vm3817, %v3756, 0
      %v3834 = vsel %vm3817, %v3757, 0
      %v3837 = vsel %vm3817, %v3758, 0
      %v3840 = vsel %vm3817, %v3759, 0
      %v3843 = vsel %vm3817, %v3760, 0
      %v3846 = vsel %vm3817, %v3761, 0
      %v3849 = vsel %vm3817, %v3762, 0
      %v3852 = vsel %vm3817, %v3763, 0
      %v3855 = vsel %vm3817, %v3764, 0
      %v3858 = vsel %vm3817, %v3765, 0
      %v3861 = vsel %vm3817, %v3766, 0
      %v3864 = vsel %vm3817, %v3767, 0
      %v3867 = vsel %vm3817, %v3768, 0
      %v3870 = vsel %vm3817, %v3769, 0
      %v3873 = vsel %vm3817, %v3770, 0
      %v3876 = vsel %vm3817, %v3771, 0
      %v3879 = vsel %vm3817, %v3772, 0
      %v3882 = vsel %vm3817, %v3773, 0
      %v3885 = vsel %vm3817, %v3774, 0
      %v3888 = vsel %vm3817, %v3775, 0
      %v3891 = vsel %vm3817, %v3776, 0
      %v3894 = vsel %vm3817, %v3777, 0
      %v3897 = vsel %vm3817, %v3778, 0
      %v3900 = vsel %vm3817, %v3779, 0
      %v3903 = vsel %vm3817, %v3780, 0
      %v3906 = vsel %vm3817, %v3781, 0
      %v3909 = vsel %vm3817, %v3782, 0
      %v3912 = vsel %vm3817, %v3783, 0
      %3914 = vmatprep.subr.mxu0 0.0
      %3915 = vmatpush1.msra.mxu0 %v3816
      %3916 = vmatprep.subr.mxu0 0.0
      %3917 = vmatpush1.msra.mxu0 0.0
      %3918 = vmatprep.subr.mxu0 0.0
      %3919 = vmatpush1.msra.mxu0 0.0
      %3920 = vmatprep.subr.mxu0 0.0
      %3921 = vmatpush1.msra.mxu0 0.0
      %3922 = vmatprep.subr.mxu0 0.0
      %3923 = vmatpush1.msra.mxu0 0.0
      %3924 = vmatprep.subr.mxu0 0.0
      %3925 = vmatpush1.msra.mxu0 0.0
      %3926 = vmatprep.subr.mxu0 0.0
      %3927 = vmatpush1.msra.mxu0 0.0
      %3928 = vmatprep.subr.mxu0 0.0
      %3929 = vmatpush1.msra.mxu0 0.0
      %3930 = vmatprep.subr.mxu0 0.0
      %3931 = vmatpush1.msra.mxu0 0.0
      %3932 = vmatprep.subr.mxu0 0.0
      %3933 = vmatpush1.msra.mxu0 0.0
      %3934 = vmatprep.subr.mxu0 0.0
      %3935 = vmatpush1.msra.mxu0 0.0
      %3936 = vmatprep.subr.mxu0 0.0
      %3937 = vmatpush1.msra.mxu0 0.0
      %3938 = vmatprep.subr.mxu0 0.0
      %3939 = vmatpush1.msra.mxu0 0.0
      %3940 = vmatprep.subr.mxu0 0.0
      %3941 = vmatpush1.msra.mxu0 0.0
      %3942 = vmatprep.subr.mxu0 0.0
      %3943 = vmatpush1.msra.mxu0 0.0
      %3944 = vmatprep.subr.mxu0 0.0
      %3945 = vmatpush1.msra.mxu0 0.0
      %3946 = vmatprep.subr.mxu0 0.0
      %3947 = vmatpush1.msra.mxu0 0.0
      %3948 = vmatprep.subr.mxu0 0.0
      %3949 = vmatpush1.msra.mxu0 0.0
      %3950 = vmatprep.subr.mxu0 0.0
      %3951 = vmatpush1.msra.mxu0 0.0
      %3952 = vmatprep.subr.mxu0 0.0
      %3953 = vmatpush1.msra.mxu0 0.0
      %3954 = vmatprep.subr.mxu0 0.0
      %3955 = vmatpush1.msra.mxu0 0.0
      %3956 = vmatprep.subr.mxu0 0.0
      %3957 = vmatpush1.msra.mxu0 0.0
      %3958 = vmatprep.subr.mxu0 0.0
      %3959 = vmatpush1.msra.mxu0 0.0
      %3960 = vmatprep.subr.mxu0 0.0
      %3961 = vmatpush1.msra.mxu0 0.0
      %3962 = vmatprep.subr.mxu0 0.0
      %3963 = vmatpush1.msra.mxu0 0.0
      %3964 = vmatprep.subr.mxu0 0.0
      %3965 = vmatpush1.msra.mxu0 0.0
      %3966 = vmatprep.subr.mxu0 0.0
      %3967 = vmatpush1.msra.mxu0 0.0
      %3968 = vmatprep.subr.mxu0 0.0
      %3969 = vmatpush1.msra.mxu0 0.0
      %3970 = vmatprep.subr.mxu0 0.0
      %3971 = vmatpush1.msra.mxu0 0.0
      %3972 = vmatprep.subr.mxu0 0.0
      %3973 = vmatpush1.msra.mxu0 0.0
      %3974 = vmatprep.subr.mxu0 0.0
      %3975 = vmatpush1.msra.mxu0 0.0
      %3976 = vmatprep.subr.mxu0 0.0
      %3977 = vmatpush1.msra.mxu0 0.0
      %3978 = vmatprep.mubr.f32.mxu0 0.0
      %3979 = vmatmul.mubr.f32.gmra.mrb[0].mxu0 %v3819
      %v3980 = vpop.f32.mrb[0].mxu0
      %v3981 = vpop.f32.mrb[0].mxu0
      %3982 = vmatprep.mubr.f32.mxu0 0.0
      %3983 = vmatmul.mubr.f32.gmra.mrb[0].mxu0 %v3822
      %v3984 = vpop.f32.mrb[0].mxu0
      %v3985 = vpop.f32.mrb[0].mxu0
      %3986 = vmatprep.mubr.f32.mxu0 0.0
      %3987 = vmatmul.mubr.f32.gmra.mrb[0].mxu0 %v3825
      %v3988 = vpop.f32.mrb[0].mxu0
      %v3989 = vadd.f32 0.0, %v3988
      %v3990 = vpop.f32.mrb[0].mxu0
      %3991 = vmatprep.mubr.f32.mxu0 0.0
      %3992 = vmatmul.mubr.f32.gmra.mrb[0].mxu0 %v3828
      %v3993 = vpop.f32.mrb[0].mxu0
      %v3994 = vadd.f32 0.0, %v3993
      %v3995 = vpop.f32.mrb[0].mxu0
      %3996 = vmatprep.mubr.f32.mxu0 0.0
      %3997 = vmatmul.mubr.f32.gmra.mrb[0].mxu0 %v3831
      %v3998 = vpop.f32.mrb[0].mxu0
      %v3999 = vadd.f32 0.0, %v3998
      %v4000 = vpop.f32.mrb[0].mxu0
      %4001 = vmatprep.mubr.f32.mxu0 0.0
      %4002 = vmatmul.mubr.f32.gmra.mrb[0].mxu0 %v3834
      %v4003 = vpop.f32.mrb[0].mxu0
      %v4004 = vadd.f32 0.0, %v4003
      %v4005 = vpop.f32.mrb[0].mxu0
      %4006 = vmatprep.mubr.f32.mxu0 0.0
      %4007 = vmatmul.mubr.f32.gmra.mrb[0].mxu0 %v3837
      %v4008 = vpop.f32.mrb[0].mxu0
      %v4009 = vadd.f32 0.0, %v4008
      %v4010 = vpop.f32.mrb[0].mxu0
      %4011 = vmatprep.mubr.f32.mxu0 0.0
      %4012 = vmatmul.mubr.f32.gmra.mrb[0].mxu0 %v3840
      %v4013 = vpop.f32.mrb[0].mxu0
      %v4014 = vadd.f32 0.0, %v4013
      %v4015 = vpop.f32.mrb[0].mxu0
      %4016 = vmatprep.mubr.f32.mxu0 0.0
      %4017 = vmatmul.mubr.f32.gmra.mrb[0].mxu0 %v3843
      %v4018 = vpop.f32.mrb[0].mxu0
      %v4019 = vadd.f32 0.0, %v4018
      %v4020 = vpop.f32.mrb[0].mxu0
      %4021 = vmatprep.mubr.f32.mxu0 0.0
      %4022 = vmatmul.mubr.f32.gmra.mrb[0].mxu0 %v3846
      %v4023 = vpop.f32.mrb[0].mxu0
      %v4024 = vadd.f32 0.0, %v4023
      %v4025 = vpop.f32.mrb[0].mxu0
      %4026 = vmatprep.mubr.f32.mxu0 0.0
      %4027 = vmatmul.mubr.f32.gmra.mrb[0].mxu0 %v3849
      %v4028 = vpop.f32.mrb[0].mxu0
      %v4029 = vadd.f32 0.0, %v4028
      %v4030 = vpop.f32.mrb[0].mxu0
      %4031 = vmatprep.mubr.f32.mxu0 0.0
      %4032 = vmatmul.mubr.f32.gmra.mrb[0].mxu0 %v3852
      %v4033 = vpop.f32.mrb[0].mxu0
      %v4034 = vadd.f32 0.0, %v4033
      %v4035 = vpop.f32.mrb[0].mxu0
      %4036 = vmatprep.mubr.f32.mxu0 0.0
      %4037 = vmatmul.mubr.f32.gmra.mrb[0].mxu0 %v3855
      %v4038 = vpop.f32.mrb[0].mxu0
      %v4039 = vadd.f32 0.0, %v4038
      %v4040 = vpop.f32.mrb[0].mxu0
      %4041 = vmatprep.mubr.f32.mxu0 0.0
      %4042 = vmatmul.mubr.f32.gmra.mrb[0].mxu0 %v3858
      %v4043 = vpop.f32.mrb[0].mxu0
      %v4044 = vadd.f32 0.0, %v4043
      %v4045 = vpop.f32.mrb[0].mxu0
      %4046 = vmatprep.mubr.f32.mxu0 0.0
      %4047 = vmatmul.mubr.f32.gmra.mrb[0].mxu0 %v3861
      %v4048 = vpop.f32.mrb[0].mxu0
      %v4049 = vadd.f32 0.0, %v4048
      %v4050 = vpop.f32.mrb[0].mxu0
      %4051 = vmatprep.mubr.f32.mxu0 0.0
      %4052 = vmatmul.mubr.f32.gmra.mrb[0].mxu0 %v3864
      %v4053 = vpop.f32.mrb[0].mxu0
      %v4054 = vadd.f32 0.0, %v4053
      %v4055 = vpop.f32.mrb[0].mxu0
      %4056 = vmatprep.mubr.f32.mxu0 0.0
      %4057 = vmatmul.mubr.f32.gmra.mrb[0].mxu0 %v3867
      %v4058 = vpop.f32.mrb[0].mxu0
      %v4059 = vadd.f32 0.0, %v4058
      %v4060 = vpop.f32.mrb[0].mxu0
      %4061 = vmatprep.mubr.f32.mxu0 0.0
      %4062 = vmatmul.mubr.f32.gmra.mrb[0].mxu0 %v3870
      %v4063 = vpop.f32.mrb[0].mxu0
      %v4064 = vadd.f32 0.0, %v4063
      %v4065 = vpop.f32.mrb[0].mxu0
      %4066 = vmatprep.mubr.f32.mxu0 0.0
      %4067 = vmatmul.mubr.f32.gmra.mrb[0].mxu0 %v3873
      %v4068 = vpop.f32.mrb[0].mxu0
      %v4069 = vadd.f32 0.0, %v4068
      %v4070 = vpop.f32.mrb[0].mxu0
      %4071 = vmatprep.mubr.f32.mxu0 0.0
      %4072 = vmatmul.mubr.f32.gmra.mrb[0].mxu0 %v3876
      %v4073 = vpop.f32.mrb[0].mxu0
      %v4074 = vadd.f32 0.0, %v4073
      %v4075 = vpop.f32.mrb[0].mxu0
      %4076 = vmatprep.mubr.f32.mxu0 0.0
      %4077 = vmatmul.mubr.f32.gmra.mrb[0].mxu0 %v3879
      %v4078 = vpop.f32.mrb[0].mxu0
      %v4079 = vadd.f32 0.0, %v4078
      %v4080 = vpop.f32.mrb[0].mxu0
      %4081 = vmatprep.mubr.f32.mxu0 0.0
      %4082 = vmatmul.mubr.f32.gmra.mrb[0].mxu0 %v3882
      %v4083 = vpop.f32.mrb[0].mxu0
      %v4084 = vadd.f32 0.0, %v4083
      %v4085 = vpop.f32.mrb[0].mxu0
      %4086 = vmatprep.mubr.f32.mxu0 0.0
      %4087 = vmatmul.mubr.f32.gmra.mrb[0].mxu0 %v3885
      %v4088 = vpop.f32.mrb[0].mxu0
      %v4089 = vadd.f32 0.0, %v4088
      %v4090 = vpop.f32.mrb[0].mxu0
      %4091 = vmatprep.mubr.f32.mxu0 0.0
      %4092 = vmatmul.mubr.f32.gmra.mrb[0].mxu0 %v3888
      %v4093 = vpop.f32.mrb[0].mxu0
      %v4094 = vadd.f32 0.0, %v4093
      %v4095 = vpop.f32.mrb[0].mxu0
      %4096 = vmatprep.mubr.f32.mxu0 0.0
      %4097 = vmatmul.mubr.f32.gmra.mrb[0].mxu0 %v3891
      %v4098 = vpop.f32.mrb[0].mxu0
      %v4099 = vadd.f32 0.0, %v4098
      %v4100 = vpop.f32.mrb[0].mxu0
      %4101 = vmatprep.mubr.f32.mxu0 0.0
      %4102 = vmatmul.mubr.f32.gmra.mrb[0].mxu0 %v3894
      %v4103 = vpop.f32.mrb[0].mxu0
      %v4104 = vadd.f32 0.0, %v4103
      %v4105 = vpop.f32.mrb[0].mxu0
      %4106 = vmatprep.mubr.f32.mxu0 0.0
      %4107 = vmatmul.mubr.f32.gmra.mrb[0].mxu0 %v3897
      %v4108 = vpop.f32.mrb[0].mxu0
      %v4109 = vadd.f32 0.0, %v4108
      %v4110 = vpop.f32.mrb[0].mxu0
      %4111 = vmatprep.mubr.f32.mxu0 0.0
      %4112 = vmatmul.mubr.f32.gmra.mrb[0].mxu0 %v3900
      %v4113 = vpop.f32.mrb[0].mxu0
      %v4114 = vadd.f32 0.0, %v4113
      %v4115 = vpop.f32.mrb[0].mxu0
      %4116 = vmatprep.mubr.f32.mxu0 0.0
      %4117 = vmatmul.mubr.f32.gmra.mrb[0].mxu0 %v3903
      %v4118 = vpop.f32.mrb[0].mxu0
      %v4119 = vadd.f32 0.0, %v4118
      %v4120 = vpop.f32.mrb[0].mxu0
      %4121 = vmatprep.mubr.f32.mxu0 0.0
      %4122 = vmatmul.mubr.f32.gmra.mrb[0].mxu0 %v3906
      %v4123 = vpop.f32.mrb[0].mxu0
      %v4124 = vadd.f32 0.0, %v4123
      %v4125 = vpop.f32.mrb[0].mxu0
      %4126 = vmatprep.mubr.f32.mxu0 0.0
      %4127 = vmatmul.mubr.f32.gmra.mrb[0].mxu0 %v3909
      %v4128 = vpop.f32.mrb[0].mxu0
      %v4129 = vadd.f32 0.0, %v4128
      %v4130 = vpop.f32.mrb[0].mxu0
      %4131 = vmatprep.mubr.f32.mxu0 0.0
      %4132 = vmatmul.mubr.f32.gmra.mrb[0].mxu0 %v3912
      %v4133 = vpop.f32.mrb[0].mxu0
      %v4134 = vadd.f32 0.0, %v4133
      %v4135 = vpop.f32.mrb[0].mxu0
      %4136 = vdwg.mxu0
      %v4137 = vld [vmem:[%s224] sm:$0xff]
      %v4138 = vld [vmem:[%s224 + $0x8] sm:$0x7f]
      %v4139 = vld [vmem:[%s224 + $0x10] sm:$0xff]
      %v4140 = vld [vmem:[%s224 + $0x18] sm:$0x7f]
      %v4141 = vld [vmem:[%s224 + $0x20] sm:$0xff]
      %v4142 = vld [vmem:[%s224 + $0x28] sm:$0x7f]
      %v4143 = vld [vmem:[%s224 + $0x30] sm:$0xff]
      %v4144 = vld [vmem:[%s224 + $0x38] sm:$0x7f]
      %v4145 = vld [vmem:[%s224 + $0x40] sm:$0xff]
      %v4146 = vld [vmem:[%s224 + $0x48] sm:$0x7f]
      %v4147 = vld [vmem:[%s224 + $0x50] sm:$0xff]
      %v4148 = vld [vmem:[%s224 + $0x58] sm:$0x7f]
      %v4149 = vld [vmem:[%s224 + $0x60] sm:$0xff]
      %v4150 = vld [vmem:[%s224 + $0x68] sm:$0x7f]
      %v4151 = vld [vmem:[%s224 + $0x70] sm:$0xff]
      %v4152 = vld [vmem:[%s224 + $0x78] sm:$0x7f]
      %v4153 = vld [vmem:[%s224 + $0x80] sm:$0xff]
      %v4154 = vld [vmem:[%s224 + $0x88] sm:$0x7f]
      %v4155 = vld [vmem:[%s224 + $0x90] sm:$0xff]
      %v4156 = vld [vmem:[%s224 + $0x98] sm:$0x7f]
      %v4157 = vld [vmem:[%s224 + $0xa0] sm:$0xff]
      %v4158 = vld [vmem:[%s224 + $0xa8] sm:$0x7f]
      %v4159 = vld [vmem:[%s224 + $0xb0] sm:$0xff]
      %v4160 = vld [vmem:[%s224 + $0xb8] sm:$0x7f]
      %v4161 = vld [vmem:[%s224 + $0xc0] sm:$0xff]
      %v4162 = vld [vmem:[%s224 + $0xc8] sm:$0x7f]
      %v4163 = vld [vmem:[%s224 + $0xd0] sm:$0xff]
      %v4164 = vld [vmem:[%s224 + $0xd8] sm:$0x7f]
      %v4165 = vld [vmem:[%s224 + $0xe0] sm:$0xff]
      %v4166 = vld [vmem:[%s224 + $0xe8] sm:$0x7f]
      %vm4197 = vcmask 1046528
      %v4198 = vrot.slane %v3989, 1
      %v4199 = vrot.slane %v3994, 1
      %v4200 = vsel %vm4197, %v4198, %v4199
      %v4201 = vrot.slane %v3999, 1
      %v4202 = vrot.slane %v4004, 1
      %v4203 = vsel %vm4197, %v4201, %v4202
      %v4204 = vrot.slane %v4009, 1
      %v4205 = vrot.slane %v4014, 1
      %v4206 = vsel %vm4197, %v4204, %v4205
      %v4207 = vrot.slane %v4019, 1
      %v4208 = vrot.slane %v4024, 1
      %v4209 = vsel %vm4197, %v4207, %v4208
      %v4210 = vrot.slane %v4029, 1
      %v4211 = vrot.slane %v4034, 1
      %v4212 = vsel %vm4197, %v4210, %v4211
      %v4213 = vrot.slane %v4039, 1
      %v4214 = vrot.slane %v4044, 1
      %v4215 = vsel %vm4197, %v4213, %v4214
      %v4216 = vrot.slane %v4049, 1
      %v4217 = vrot.slane %v4054, 1
      %v4218 = vsel %vm4197, %v4216, %v4217
      %v4219 = vrot.slane %v4059, 1
      %v4220 = vrot.slane %v4064, 1
      %v4221 = vsel %vm4197, %v4219, %v4220
      %v4222 = vrot.slane %v4069, 1
      %v4223 = vrot.slane %v4074, 1
      %v4224 = vsel %vm4197, %v4222, %v4223
      %v4225 = vrot.slane %v4079, 1
      %v4226 = vrot.slane %v4084, 1
      %v4227 = vsel %vm4197, %v4225, %v4226
      %v4228 = vrot.slane %v4089, 1
      %v4229 = vrot.slane %v4094, 1
      %v4230 = vsel %vm4197, %v4228, %v4229
      %v4231 = vrot.slane %v4099, 1
      %v4232 = vrot.slane %v4104, 1
      %v4233 = vsel %vm4197, %v4231, %v4232
      %v4234 = vrot.slane %v4109, 1
      %v4235 = vrot.slane %v4114, 1
      %v4236 = vsel %vm4197, %v4234, %v4235
      %v4237 = vrot.slane %v4119, 1
      %v4238 = vrot.slane %v4124, 1
      %v4239 = vsel %vm4197, %v4237, %v4238
      %v4240 = vrot.slane %v4129, 1
      %v4241 = vrot.slane %v4134, 1
      %v4242 = vsel %vm4197, %v4240, %v4241
      %v4273 = vsub.f32 %v4137, %v4200
      %v4274 = vsub.f32 %v4138, %v4199
      %v4275 = vsub.f32 %v4139, %v4203
      %v4276 = vsub.f32 %v4140, %v4202
      %v4277 = vsub.f32 %v4141, %v4206
      %v4278 = vsub.f32 %v4142, %v4205
      %v4279 = vsub.f32 %v4143, %v4209
      %v4280 = vsub.f32 %v4144, %v4208
      %v4281 = vsub.f32 %v4145, %v4212
      %v4282 = vsub.f32 %v4146, %v4211
      %v4283 = vsub.f32 %v4147, %v4215
      %v4284 = vsub.f32 %v4148, %v4214
      %v4285 = vsub.f32 %v4149, %v4218
      %v4286 = vsub.f32 %v4150, %v4217
      %v4287 = vsub.f32 %v4151, %v4221
      %v4288 = vsub.f32 %v4152, %v4220
      %v4289 = vsub.f32 %v4153, %v4224
      %v4290 = vsub.f32 %v4154, %v4223
      %v4291 = vsub.f32 %v4155, %v4227
      %v4292 = vsub.f32 %v4156, %v4226
      %v4293 = vsub.f32 %v4157, %v4230
      %v4294 = vsub.f32 %v4158, %v4229
      %v4295 = vsub.f32 %v4159, %v4233
      %v4296 = vsub.f32 %v4160, %v4232
      %v4297 = vsub.f32 %v4161, %v4236
      %v4298 = vsub.f32 %v4162, %v4235
      %v4299 = vsub.f32 %v4163, %v4239
      %v4300 = vsub.f32 %v4164, %v4238
      %v4301 = vsub.f32 %v4165, %v4242
      %v4302 = vsub.f32 %v4166, %v4241
      %4303 = vst.msk [vmem:[%s224] sm:$0xff] %vm292, %v4273
      %vm4304 = vcmask 30720
      %4305 = vst.msk [vmem:[%s224 + $0x8] sm:$0x7f] %vm4304, %v4274
      %4306 = vst.msk [vmem:[%s224 + $0x10] sm:$0xff] %vm292, %v4275
      %4307 = vst.msk [vmem:[%s224 + $0x18] sm:$0x7f] %vm4304, %v4276
      %4308 = vst.msk [vmem:[%s224 + $0x20] sm:$0xff] %vm292, %v4277
      %4309 = vst.msk [vmem:[%s224 + $0x28] sm:$0x7f] %vm4304, %v4278
      %4310 = vst.msk [vmem:[%s224 + $0x30] sm:$0xff] %vm292, %v4279
      %4311 = vst.msk [vmem:[%s224 + $0x38] sm:$0x7f] %vm4304, %v4280
      %4312 = vst.msk [vmem:[%s224 + $0x40] sm:$0xff] %vm292, %v4281
      %4313 = vst.msk [vmem:[%s224 + $0x48] sm:$0x7f] %vm4304, %v4282
      %4314 = vst.msk [vmem:[%s224 + $0x50] sm:$0xff] %vm292, %v4283
      %4315 = vst.msk [vmem:[%s224 + $0x58] sm:$0x7f] %vm4304, %v4284
      %4316 = vst.msk [vmem:[%s224 + $0x60] sm:$0xff] %vm292, %v4285
      %4317 = vst.msk [vmem:[%s224 + $0x68] sm:$0x7f] %vm4304, %v4286
      %4318 = vst.msk [vmem:[%s224 + $0x70] sm:$0xff] %vm292, %v4287
      %4319 = vst.msk [vmem:[%s224 + $0x78] sm:$0x7f] %vm4304, %v4288
      %4320 = vst.msk [vmem:[%s224 + $0x80] sm:$0xff] %vm292, %v4289
      %4321 = vst.msk [vmem:[%s224 + $0x88] sm:$0x7f] %vm4304, %v4290
      %4322 = vst.msk [vmem:[%s224 + $0x90] sm:$0xff] %vm292, %v4291
      %4323 = vst.msk [vmem:[%s224 + $0x98] sm:$0x7f] %vm4304, %v4292
      %4324 = vst.msk [vmem:[%s224 + $0xa0] sm:$0xff] %vm292, %v4293
      %4325 = vst.msk [vmem:[%s224 + $0xa8] sm:$0x7f] %vm4304, %v4294
      %4326 = vst.msk [vmem:[%s224 + $0xb0] sm:$0xff] %vm292, %v4295
      %4327 = vst.msk [vmem:[%s224 + $0xb8] sm:$0x7f] %vm4304, %v4296
      %4328 = vst.msk [vmem:[%s224 + $0xc0] sm:$0xff] %vm292, %v4297
      %4329 = vst.msk [vmem:[%s224 + $0xc8] sm:$0x7f] %vm4304, %v4298
      %4330 = vst.msk [vmem:[%s224 + $0xd0] sm:$0xff] %vm292, %v4299
      %4331 = vst.msk [vmem:[%s224 + $0xd8] sm:$0x7f] %vm4304, %v4300
      %4332 = vst.msk [vmem:[%s224 + $0xe0] sm:$0xff] %vm292, %v4301
      %4333 = vst.msk [vmem:[%s224 + $0xe8] sm:$0x7f] %vm4304, %v4302
      %s4334 = scalar_lea.vmem %s3, 8
      %v4335 = vld [vmem:[%s4334] sm:$0xff]
      %4336 = vmatprep.subr.mxu0 0.0
      %4337 = vmatpush1.msra.mxu0 %v4335
      %4338 = vmatprep.subr.mxu0 0.0
      %4339 = vmatpush1.msra.mxu0 0.0
      %4340 = vmatprep.subr.mxu0 0.0
      %4341 = vmatpush1.msra.mxu0 0.0
      %4342 = vmatprep.subr.mxu0 0.0
      %4343 = vmatpush1.msra.mxu0 0.0
      %4344 = vmatprep.subr.mxu0 0.0
      %4345 = vmatpush1.msra.mxu0 0.0
      %4346 = vmatprep.subr.mxu0 0.0
      %4347 = vmatpush1.msra.mxu0 0.0
      %4348 = vmatprep.subr.mxu0 0.0
      %4349 = vmatpush1.msra.mxu0 0.0
      %4350 = vmatprep.subr.mxu0 0.0
      %4351 = vmatpush1.msra.mxu0 0.0
      %4352 = vmatprep.subr.mxu0 0.0
      %4353 = vmatpush1.msra.mxu0 0.0
      %4354 = vmatprep.subr.mxu0 0.0
      %4355 = vmatpush1.msra.mxu0 0.0
      %4356 = vmatprep.subr.mxu0 0.0
      %4357 = vmatpush1.msra.mxu0 0.0
      %4358 = vmatprep.subr.mxu0 0.0
      %4359 = vmatpush1.msra.mxu0 0.0
      %4360 = vmatprep.subr.mxu0 0.0
      %4361 = vmatpush1.msra.mxu0 0.0
      %4362 = vmatprep.subr.mxu0 0.0
      %4363 = vmatpush1.msra.mxu0 0.0
      %4364 = vmatprep.subr.mxu0 0.0
      %4365 = vmatpush1.msra.mxu0 0.0
      %4366 = vmatprep.subr.mxu0 0.0
      %4367 = vmatpush1.msra.mxu0 0.0
      %4368 = vmatprep.subr.mxu0 0.0
      %4369 = vmatpush1.msra.mxu0 0.0
      %4370 = vmatprep.subr.mxu0 0.0
      %4371 = vmatpush1.msra.mxu0 0.0
      %4372 = vmatprep.subr.mxu0 0.0
      %4373 = vmatpush1.msra.mxu0 0.0
      %4374 = vmatprep.subr.mxu0 0.0
      %4375 = vmatpush1.msra.mxu0 0.0
      %4376 = vmatprep.subr.mxu0 0.0
      %4377 = vmatpush1.msra.mxu0 0.0
      %4378 = vmatprep.subr.mxu0 0.0
      %4379 = vmatpush1.msra.mxu0 0.0
      %4380 = vmatprep.subr.mxu0 0.0
      %4381 = vmatpush1.msra.mxu0 0.0
      %4382 = vmatprep.subr.mxu0 0.0
      %4383 = vmatpush1.msra.mxu0 0.0
      %4384 = vmatprep.subr.mxu0 0.0
      %4385 = vmatpush1.msra.mxu0 0.0
      %4386 = vmatprep.subr.mxu0 0.0
      %4387 = vmatpush1.msra.mxu0 0.0
      %4388 = vmatprep.subr.mxu0 0.0
      %4389 = vmatpush1.msra.mxu0 0.0
      %4390 = vmatprep.subr.mxu0 0.0
      %4391 = vmatpush1.msra.mxu0 0.0
      %4392 = vmatprep.subr.mxu0 0.0
      %4393 = vmatpush1.msra.mxu0 0.0
      %4394 = vmatprep.subr.mxu0 0.0
      %4395 = vmatpush1.msra.mxu0 0.0
      %4396 = vmatprep.subr.mxu0 0.0
      %4397 = vmatpush1.msra.mxu0 0.0
      %4398 = vmatprep.subr.mxu0 0.0
      %4399 = vmatpush1.msra.mxu0 0.0
      %4400 = vmatprep.mubr.f32.mxu0 0.0
      %4401 = vmatmul.mubr.f32.gmra.mrb[0].mxu0 %v3819
      %v4402 = vpop.f32.mrb[0].mxu0
      %v4403 = vpop.f32.mrb[0].mxu0
      %4404 = vmatprep.mubr.f32.mxu0 0.0
      %4405 = vmatmul.mubr.f32.gmra.mrb[0].mxu0 %v3822
      %v4406 = vpop.f32.mrb[0].mxu0
      %v4407 = vpop.f32.mrb[0].mxu0
      %4408 = vmatprep.mubr.f32.mxu0 0.0
      %4409 = vmatmul.mubr.f32.gmra.mrb[0].mxu0 %v3825
      %v4410 = vpop.f32.mrb[0].mxu0
      %v4411 = vadd.f32 0.0, %v4410
      %v4412 = vpop.f32.mrb[0].mxu0
      %4413 = vmatprep.mubr.f32.mxu0 0.0
      %4414 = vmatmul.mubr.f32.gmra.mrb[0].mxu0 %v3828
      %v4415 = vpop.f32.mrb[0].mxu0
      %v4416 = vadd.f32 0.0, %v4415
      %v4417 = vpop.f32.mrb[0].mxu0
      %4418 = vmatprep.mubr.f32.mxu0 0.0
      %4419 = vmatmul.mubr.f32.gmra.mrb[0].mxu0 %v3831
      %v4420 = vpop.f32.mrb[0].mxu0
      %v4421 = vadd.f32 0.0, %v4420
      %v4422 = vpop.f32.mrb[0].mxu0
      %4423 = vmatprep.mubr.f32.mxu0 0.0
      %4424 = vmatmul.mubr.f32.gmra.mrb[0].mxu0 %v3834
      %v4425 = vpop.f32.mrb[0].mxu0
      %v4426 = vadd.f32 0.0, %v4425
      %v4427 = vpop.f32.mrb[0].mxu0
      %4428 = vmatprep.mubr.f32.mxu0 0.0
      %4429 = vmatmul.mubr.f32.gmra.mrb[0].mxu0 %v3837
      %v4430 = vpop.f32.mrb[0].mxu0
      %v4431 = vadd.f32 0.0, %v4430
      %v4432 = vpop.f32.mrb[0].mxu0
      %4433 = vmatprep.mubr.f32.mxu0 0.0
      %4434 = vmatmul.mubr.f32.gmra.mrb[0].mxu0 %v3840
      %v4435 = vpop.f32.mrb[0].mxu0
      %v4436 = vadd.f32 0.0, %v4435
      %v4437 = vpop.f32.mrb[0].mxu0
      %4438 = vmatprep.mubr.f32.mxu0 0.0
      %4439 = vmatmul.mubr.f32.gmra.mrb[0].mxu0 %v3843
      %v4440 = vpop.f32.mrb[0].mxu0
      %v4441 = vadd.f32 0.0, %v4440
      %v4442 = vpop.f32.mrb[0].mxu0
      %4443 = vmatprep.mubr.f32.mxu0 0.0
      %4444 = vmatmul.mubr.f32.gmra.mrb[0].mxu0 %v3846
      %v4445 = vpop.f32.mrb[0].mxu0
      %v4446 = vadd.f32 0.0, %v4445
      %v4447 = vpop.f32.mrb[0].mxu0
      %4448 = vmatprep.mubr.f32.mxu0 0.0
      %4449 = vmatmul.mubr.f32.gmra.mrb[0].mxu0 %v3849
      %v4450 = vpop.f32.mrb[0].mxu0
      %v4451 = vadd.f32 0.0, %v4450
      %v4452 = vpop.f32.mrb[0].mxu0
      %4453 = vmatprep.mubr.f32.mxu0 0.0
      %4454 = vmatmul.mubr.f32.gmra.mrb[0].mxu0 %v3852
      %v4455 = vpop.f32.mrb[0].mxu0
      %v4456 = vadd.f32 0.0, %v4455
      %v4457 = vpop.f32.mrb[0].mxu0
      %4458 = vmatprep.mubr.f32.mxu0 0.0
      %4459 = vmatmul.mubr.f32.gmra.mrb[0].mxu0 %v3855
      %v4460 = vpop.f32.mrb[0].mxu0
      %v4461 = vadd.f32 0.0, %v4460
      %v4462 = vpop.f32.mrb[0].mxu0
      %4463 = vmatprep.mubr.f32.mxu0 0.0
      %4464 = vmatmul.mubr.f32.gmra.mrb[0].mxu0 %v3858
      %v4465 = vpop.f32.mrb[0].mxu0
      %v4466 = vadd.f32 0.0, %v4465
      %v4467 = vpop.f32.mrb[0].mxu0
      %4468 = vmatprep.mubr.f32.mxu0 0.0
      %4469 = vmatmul.mubr.f32.gmra.mrb[0].mxu0 %v3861
      %v4470 = vpop.f32.mrb[0].mxu0
      %v4471 = vadd.f32 0.0, %v4470
      %v4472 = vpop.f32.mrb[0].mxu0
      %4473 = vmatprep.mubr.f32.mxu0 0.0
      %4474 = vmatmul.mubr.f32.gmra.mrb[0].mxu0 %v3864
      %v4475 = vpop.f32.mrb[0].mxu0
      %v4476 = vadd.f32 0.0, %v4475
      %v4477 = vpop.f32.mrb[0].mxu0
      %4478 = vmatprep.mubr.f32.mxu0 0.0
      %4479 = vmatmul.mubr.f32.gmra.mrb[0].mxu0 %v3867
      %v4480 = vpop.f32.mrb[0].mxu0
      %v4481 = vadd.f32 0.0, %v4480
      %v4482 = vpop.f32.mrb[0].mxu0
      %4483 = vmatprep.mubr.f32.mxu0 0.0
      %4484 = vmatmul.mubr.f32.gmra.mrb[0].mxu0 %v3870
      %v4485 = vpop.f32.mrb[0].mxu0
      %v4486 = vadd.f32 0.0, %v4485
      %v4487 = vpop.f32.mrb[0].mxu0
      %4488 = vmatprep.mubr.f32.mxu0 0.0
      %4489 = vmatmul.mubr.f32.gmra.mrb[0].mxu0 %v3873
      %v4490 = vpop.f32.mrb[0].mxu0
      %v4491 = vadd.f32 0.0, %v4490
      %v4492 = vpop.f32.mrb[0].mxu0
      %4493 = vmatprep.mubr.f32.mxu0 0.0
      %4494 = vmatmul.mubr.f32.gmra.mrb[0].mxu0 %v3876
      %v4495 = vpop.f32.mrb[0].mxu0
      %v4496 = vadd.f32 0.0, %v4495
      %v4497 = vpop.f32.mrb[0].mxu0
      %4498 = vmatprep.mubr.f32.mxu0 0.0
      %4499 = vmatmul.mubr.f32.gmra.mrb[0].mxu0 %v3879
      %v4500 = vpop.f32.mrb[0].mxu0
      %v4501 = vadd.f32 0.0, %v4500
      %v4502 = vpop.f32.mrb[0].mxu0
      %4503 = vmatprep.mubr.f32.mxu0 0.0
      %4504 = vmatmul.mubr.f32.gmra.mrb[0].mxu0 %v3882
      %v4505 = vpop.f32.mrb[0].mxu0
      %v4506 = vadd.f32 0.0, %v4505
      %v4507 = vpop.f32.mrb[0].mxu0
      %4508 = vmatprep.mubr.f32.mxu0 0.0
      %4509 = vmatmul.mubr.f32.gmra.mrb[0].mxu0 %v3885
      %v4510 = vpop.f32.mrb[0].mxu0
      %v4511 = vadd.f32 0.0, %v4510
      %v4512 = vpop.f32.mrb[0].mxu0
      %4513 = vmatprep.mubr.f32.mxu0 0.0
      %4514 = vmatmul.mubr.f32.gmra.mrb[0].mxu0 %v3888
      %v4515 = vpop.f32.mrb[0].mxu0
      %v4516 = vadd.f32 0.0, %v4515
      %v4517 = vpop.f32.mrb[0].mxu0
      %4518 = vmatprep.mubr.f32.mxu0 0.0
      %4519 = vmatmul.mubr.f32.gmra.mrb[0].mxu0 %v3891
      %v4520 = vpop.f32.mrb[0].mxu0
      %v4521 = vadd.f32 0.0, %v4520
      %v4522 = vpop.f32.mrb[0].mxu0
      %4523 = vmatprep.mubr.f32.mxu0 0.0
      %4524 = vmatmul.mubr.f32.gmra.mrb[0].mxu0 %v3894
      %v4525 = vpop.f32.mrb[0].mxu0
      %v4526 = vadd.f32 0.0, %v4525
      %v4527 = vpop.f32.mrb[0].mxu0
      %4528 = vmatprep.mubr.f32.mxu0 0.0
      %4529 = vmatmul.mubr.f32.gmra.mrb[0].mxu0 %v3897
      %v4530 = vpop.f32.mrb[0].mxu0
      %v4531 = vadd.f32 0.0, %v4530
      %v4532 = vpop.f32.mrb[0].mxu0
      %4533 = vmatprep.mubr.f32.mxu0 0.0
      %4534 = vmatmul.mubr.f32.gmra.mrb[0].mxu0 %v3900
      %v4535 = vpop.f32.mrb[0].mxu0
      %v4536 = vadd.f32 0.0, %v4535
      %v4537 = vpop.f32.mrb[0].mxu0
      %4538 = vmatprep.mubr.f32.mxu0 0.0
      %4539 = vmatmul.mubr.f32.gmra.mrb[0].mxu0 %v3903
      %v4540 = vpop.f32.mrb[0].mxu0
      %v4541 = vadd.f32 0.0, %v4540
      %v4542 = vpop.f32.mrb[0].mxu0
      %4543 = vmatprep.mubr.f32.mxu0 0.0
      %4544 = vmatmul.mubr.f32.gmra.mrb[0].mxu0 %v3906
      %v4545 = vpop.f32.mrb[0].mxu0
      %v4546 = vadd.f32 0.0, %v4545
      %v4547 = vpop.f32.mrb[0].mxu0
      %4548 = vmatprep.mubr.f32.mxu0 0.0
      %4549 = vmatmul.mubr.f32.gmra.mrb[0].mxu0 %v3909
      %v4550 = vpop.f32.mrb[0].mxu0
      %v4551 = vadd.f32 0.0, %v4550
      %v4552 = vpop.f32.mrb[0].mxu0
      %4553 = vmatprep.mubr.f32.mxu0 0.0
      %4554 = vmatmul.mubr.f32.gmra.mrb[0].mxu0 %v3912
      %v4555 = vpop.f32.mrb[0].mxu0
      %v4556 = vadd.f32 0.0, %v4555
      %v4557 = vpop.f32.mrb[0].mxu0
      %4558 = vdwg.mxu0
      %v4559 = vld [vmem:[%s224] sm:$0xff]
      %v4560 = vld [vmem:[%s224 + $0x8] sm:$0xff]
      %v4561 = vld [vmem:[%s224 + $0x10] sm:$0xff]
      %v4562 = vld [vmem:[%s224 + $0x18] sm:$0xff]
      %v4563 = vld [vmem:[%s224 + $0x20] sm:$0xff]
      %v4564 = vld [vmem:[%s224 + $0x28] sm:$0xff]
      %v4565 = vld [vmem:[%s224 + $0x30] sm:$0xff]
      %v4566 = vld [vmem:[%s224 + $0x38] sm:$0xff]
      %v4567 = vld [vmem:[%s224 + $0x40] sm:$0xff]
      %v4568 = vld [vmem:[%s224 + $0x48] sm:$0xff]
      %v4569 = vld [vmem:[%s224 + $0x50] sm:$0xff]
      %v4570 = vld [vmem:[%s224 + $0x58] sm:$0xff]
      %v4571 = vld [vmem:[%s224 + $0x60] sm:$0xff]
      %v4572 = vld [vmem:[%s224 + $0x68] sm:$0xff]
      %v4573 = vld [vmem:[%s224 + $0x70] sm:$0xff]
      %v4574 = vld [vmem:[%s224 + $0x78] sm:$0xff]
      %v4575 = vld [vmem:[%s224 + $0x80] sm:$0xff]
      %v4576 = vld [vmem:[%s224 + $0x88] sm:$0xff]
      %v4577 = vld [vmem:[%s224 + $0x90] sm:$0xff]
      %v4578 = vld [vmem:[%s224 + $0x98] sm:$0xff]
      %v4579 = vld [vmem:[%s224 + $0xa0] sm:$0xff]
      %v4580 = vld [vmem:[%s224 + $0xa8] sm:$0xff]
      %v4581 = vld [vmem:[%s224 + $0xb0] sm:$0xff]
      %v4582 = vld [vmem:[%s224 + $0xb8] sm:$0xff]
      %v4583 = vld [vmem:[%s224 + $0xc0] sm:$0xff]
      %v4584 = vld [vmem:[%s224 + $0xc8] sm:$0xff]
      %v4585 = vld [vmem:[%s224 + $0xd0] sm:$0xff]
      %v4586 = vld [vmem:[%s224 + $0xd8] sm:$0xff]
      %v4587 = vld [vmem:[%s224 + $0xe0] sm:$0xff]
      %v4588 = vld [vmem:[%s224 + $0xe8] sm:$0xff]
      %v4589 = vsub.f32 %v4559, %v4411
      %v4590 = vsub.f32 %v4560, %v4416
      %v4591 = vsub.f32 %v4561, %v4421
      %v4592 = vsub.f32 %v4562, %v4426
      %v4593 = vsub.f32 %v4563, %v4431
      %v4594 = vsub.f32 %v4564, %v4436
      %v4595 = vsub.f32 %v4565, %v4441
      %v4596 = vsub.f32 %v4566, %v4446
      %v4597 = vsub.f32 %v4567, %v4451
      %v4598 = vsub.f32 %v4568, %v4456
      %v4599 = vsub.f32 %v4569, %v4461
      %v4600 = vsub.f32 %v4570, %v4466
      %v4601 = vsub.f32 %v4571, %v4471
      %v4602 = vsub.f32 %v4572, %v4476
      %v4603 = vsub.f32 %v4573, %v4481
      %v4604 = vsub.f32 %v4574, %v4486
      %v4605 = vsub.f32 %v4575, %v4491
      %v4606 = vsub.f32 %v4576, %v4496
      %v4607 = vsub.f32 %v4577, %v4501
      %v4608 = vsub.f32 %v4578, %v4506
      %v4609 = vsub.f32 %v4579, %v4511
      %v4610 = vsub.f32 %v4580, %v4516
      %v4611 = vsub.f32 %v4581, %v4521
      %v4612 = vsub.f32 %v4582, %v4526
      %v4613 = vsub.f32 %v4583, %v4531
      %v4614 = vsub.f32 %v4584, %v4536
      %v4615 = vsub.f32 %v4585, %v4541
      %v4616 = vsub.f32 %v4586, %v4546
      %v4617 = vsub.f32 %v4587, %v4551
      %v4618 = vsub.f32 %v4588, %v4556
      %4619 = vst.msk [vmem:[%s224] sm:$0xff] %vm292, %v4589
      %4620 = vst.msk [vmem:[%s224 + $0x8] sm:$0xff] %vm292, %v4590
      %4621 = vst.msk [vmem:[%s224 + $0x10] sm:$0xff] %vm292, %v4591
      %4622 = vst.msk [vmem:[%s224 + $0x18] sm:$0xff] %vm292, %v4592
      %4623 = vst.msk [vmem:[%s224 + $0x20] sm:$0xff] %vm292, %v4593
      %4624 = vst.msk [vmem:[%s224 + $0x28] sm:$0xff] %vm292, %v4594
      %4625 = vst.msk [vmem:[%s224 + $0x30] sm:$0xff] %vm292, %v4595
      %4626 = vst.msk [vmem:[%s224 + $0x38] sm:$0xff] %vm292, %v4596
      %4627 = vst.msk [vmem:[%s224 + $0x40] sm:$0xff] %vm292, %v4597
      %4628 = vst.msk [vmem:[%s224 + $0x48] sm:$0xff] %vm292, %v4598
      %4629 = vst.msk [vmem:[%s224 + $0x50] sm:$0xff] %vm292, %v4599
      %4630 = vst.msk [vmem:[%s224 + $0x58] sm:$0xff] %vm292, %v4600
      %4631 = vst.msk [vmem:[%s224 + $0x60] sm:$0xff] %vm292, %v4601
      %4632 = vst.msk [vmem:[%s224 + $0x68] sm:$0xff] %vm292, %v4602
      %4633 = vst.msk [vmem:[%s224 + $0x70] sm:$0xff] %vm292, %v4603
      %4634 = vst.msk [vmem:[%s224 + $0x78] sm:$0xff] %vm292, %v4604
      %4635 = vst.msk [vmem:[%s224 + $0x80] sm:$0xff] %vm292, %v4605
      %4636 = vst.msk [vmem:[%s224 + $0x88] sm:$0xff] %vm292, %v4606
      %4637 = vst.msk [vmem:[%s224 + $0x90] sm:$0xff] %vm292, %v4607
      %4638 = vst.msk [vmem:[%s224 + $0x98] sm:$0xff] %vm292, %v4608
      %4639 = vst.msk [vmem:[%s224 + $0xa0] sm:$0xff] %vm292, %v4609
      %4640 = vst.msk [vmem:[%s224 + $0xa8] sm:$0xff] %vm292, %v4610
      %4641 = vst.msk [vmem:[%s224 + $0xb0] sm:$0xff] %vm292, %v4611
      %4642 = vst.msk [vmem:[%s224 + $0xb8] sm:$0xff] %vm292, %v4612
      %4643 = vst.msk [vmem:[%s224 + $0xc0] sm:$0xff] %vm292, %v4613
      %4644 = vst.msk [vmem:[%s224 + $0xc8] sm:$0xff] %vm292, %v4614
      %4645 = vst.msk [vmem:[%s224 + $0xd0] sm:$0xff] %vm292, %v4615
      %4646 = vst.msk [vmem:[%s224 + $0xd8] sm:$0xff] %vm292, %v4616
      %4647 = vst.msk [vmem:[%s224 + $0xe0] sm:$0xff] %vm292, %v4617
      %4648 = vst.msk [vmem:[%s224 + $0xe8] sm:$0xff] %vm292, %v4618
      %s4649 = scalar_lea.vmem %s3, 16
      %v4650 = vld [vmem:[%s4649] sm:$0xff]
      %4651 = vmatprep.subr.mxu0 0.0
      %4652 = vmatpush1.msra.mxu0 %v4650
      %4653 = vmatprep.subr.mxu0 0.0
      %4654 = vmatpush1.msra.mxu0 0.0
      %4655 = vmatprep.subr.mxu0 0.0
      %4656 = vmatpush1.msra.mxu0 0.0
      %4657 = vmatprep.subr.mxu0 0.0
      %4658 = vmatpush1.msra.mxu0 0.0
      %4659 = vmatprep.subr.mxu0 0.0
      %4660 = vmatpush1.msra.mxu0 0.0
      %4661 = vmatprep.subr.mxu0 0.0
      %4662 = vmatpush1.msra.mxu0 0.0
      %4663 = vmatprep.subr.mxu0 0.0
      %4664 = vmatpush1.msra.mxu0 0.0
      %4665 = vmatprep.subr.mxu0 0.0
      %4666 = vmatpush1.msra.mxu0 0.0
      %4667 = vmatprep.subr.mxu0 0.0
      %4668 = vmatpush1.msra.mxu0 0.0
      %4669 = vmatprep.subr.mxu0 0.0
      %4670 = vmatpush1.msra.mxu0 0.0
      %4671 = vmatprep.subr.mxu0 0.0
      %4672 = vmatpush1.msra.mxu0 0.0
      %4673 = vmatprep.subr.mxu0 0.0
      %4674 = vmatpush1.msra.mxu0 0.0
      %4675 = vmatprep.subr.mxu0 0.0
      %4676 = vmatpush1.msra.mxu0 0.0
      %4677 = vmatprep.subr.mxu0 0.0
      %4678 = vmatpush1.msra.mxu0 0.0
      %4679 = vmatprep.subr.mxu0 0.0
      %4680 = vmatpush1.msra.mxu0 0.0
      %4681 = vmatprep.subr.mxu0 0.0
      %4682 = vmatpush1.msra.mxu0 0.0
      %4683 = vmatprep.subr.mxu0 0.0
      %4684 = vmatpush1.msra.mxu0 0.0
      %4685 = vmatprep.subr.mxu0 0.0
      %4686 = vmatpush1.msra.mxu0 0.0
      %4687 = vmatprep.subr.mxu0 0.0
      %4688 = vmatpush1.msra.mxu0 0.0
      %4689 = vmatprep.subr.mxu0 0.0
      %4690 = vmatpush1.msra.mxu0 0.0
      %4691 = vmatprep.subr.mxu0 0.0
      %4692 = vmatpush1.msra.mxu0 0.0
      %4693 = vmatprep.subr.mxu0 0.0
      %4694 = vmatpush1.msra.mxu0 0.0
      %4695 = vmatprep.subr.mxu0 0.0
      %4696 = vmatpush1.msra.mxu0 0.0
      %4697 = vmatprep.subr.mxu0 0.0
      %4698 = vmatpush1.msra.mxu0 0.0
      %4699 = vmatprep.subr.mxu0 0.0
      %4700 = vmatpush1.msra.mxu0 0.0
      %4701 = vmatprep.subr.mxu0 0.0
      %4702 = vmatpush1.msra.mxu0 0.0
      %4703 = vmatprep.subr.mxu0 0.0
      %4704 = vmatpush1.msra.mxu0 0.0
      %4705 = vmatprep.subr.mxu0 0.0
      %4706 = vmatpush1.msra.mxu0 0.0
      %4707 = vmatprep.subr.mxu0 0.0
      %4708 = vmatpush1.msra.mxu0 0.0
      %4709 = vmatprep.subr.mxu0 0.0
      %4710 = vmatpush1.msra.mxu0 0.0
      %4711 = vmatprep.subr.mxu0 0.0
      %4712 = vmatpush1.msra.mxu0 0.0
      %4713 = vmatprep.subr.mxu0 0.0
      %4714 = vmatpush1.msra.mxu0 0.0
      %4715 = vmatprep.mubr.f32.mxu0 0.0
      %4716 = vmatmul.mubr.f32.gmra.mrb[0].mxu0 %v3819
      %v4717 = vpop.f32.mrb[0].mxu0
      %v4718 = vpop.f32.mrb[0].mxu0
      %4719 = vmatprep.mubr.f32.mxu0 0.0
      %4720 = vmatmul.mubr.f32.gmra.mrb[0].mxu0 %v3822
      %v4721 = vpop.f32.mrb[0].mxu0
      %v4722 = vpop.f32.mrb[0].mxu0
      %4723 = vmatprep.mubr.f32.mxu0 0.0
      %4724 = vmatmul.mubr.f32.gmra.mrb[0].mxu0 %v3825
      %v4725 = vpop.f32.mrb[0].mxu0
      %v4726 = vadd.f32 0.0, %v4725
      %v4727 = vpop.f32.mrb[0].mxu0
      %4728 = vmatprep.mubr.f32.mxu0 0.0
      %4729 = vmatmul.mubr.f32.gmra.mrb[0].mxu0 %v3828
      %v4730 = vpop.f32.mrb[0].mxu0
      %v4731 = vadd.f32 0.0, %v4730
      %v4732 = vpop.f32.mrb[0].mxu0
      %4733 = vmatprep.mubr.f32.mxu0 0.0
      %4734 = vmatmul.mubr.f32.gmra.mrb[0].mxu0 %v3831
      %v4735 = vpop.f32.mrb[0].mxu0
      %v4736 = vadd.f32 0.0, %v4735
      %v4737 = vpop.f32.mrb[0].mxu0
      %4738 = vmatprep.mubr.f32.mxu0 0.0
      %4739 = vmatmul.mubr.f32.gmra.mrb[0].mxu0 %v3834
      %v4740 = vpop.f32.mrb[0].mxu0
      %v4741 = vadd.f32 0.0, %v4740
      %v4742 = vpop.f32.mrb[0].mxu0
      %4743 = vmatprep.mubr.f32.mxu0 0.0
      %4744 = vmatmul.mubr.f32.gmra.mrb[0].mxu0 %v3837
      %v4745 = vpop.f32.mrb[0].mxu0
      %v4746 = vadd.f32 0.0, %v4745
      %v4747 = vpop.f32.mrb[0].mxu0
      %4748 = vmatprep.mubr.f32.mxu0 0.0
      %4749 = vmatmul.mubr.f32.gmra.mrb[0].mxu0 %v3840
      %v4750 = vpop.f32.mrb[0].mxu0
      %v4751 = vadd.f32 0.0, %v4750
      %v4752 = vpop.f32.mrb[0].mxu0
      %4753 = vmatprep.mubr.f32.mxu0 0.0
      %4754 = vmatmul.mubr.f32.gmra.mrb[0].mxu0 %v3843
      %v4755 = vpop.f32.mrb[0].mxu0
      %v4756 = vadd.f32 0.0, %v4755
      %v4757 = vpop.f32.mrb[0].mxu0
      %4758 = vmatprep.mubr.f32.mxu0 0.0
      %4759 = vmatmul.mubr.f32.gmra.mrb[0].mxu0 %v3846
      %v4760 = vpop.f32.mrb[0].mxu0
      %v4761 = vadd.f32 0.0, %v4760
      %v4762 = vpop.f32.mrb[0].mxu0
      %4763 = vmatprep.mubr.f32.mxu0 0.0
      %4764 = vmatmul.mubr.f32.gmra.mrb[0].mxu0 %v3849
      %v4765 = vpop.f32.mrb[0].mxu0
      %v4766 = vadd.f32 0.0, %v4765
      %v4767 = vpop.f32.mrb[0].mxu0
      %4768 = vmatprep.mubr.f32.mxu0 0.0
      %4769 = vmatmul.mubr.f32.gmra.mrb[0].mxu0 %v3852
      %v4770 = vpop.f32.mrb[0].mxu0
      %v4771 = vadd.f32 0.0, %v4770
      %v4772 = vpop.f32.mrb[0].mxu0
      %4773 = vmatprep.mubr.f32.mxu0 0.0
      %4774 = vmatmul.mubr.f32.gmra.mrb[0].mxu0 %v3855
      %v4775 = vpop.f32.mrb[0].mxu0
      %v4776 = vadd.f32 0.0, %v4775
      %v4777 = vpop.f32.mrb[0].mxu0
      %4778 = vmatprep.mubr.f32.mxu0 0.0
      %4779 = vmatmul.mubr.f32.gmra.mrb[0].mxu0 %v3858
      %v4780 = vpop.f32.mrb[0].mxu0
      %v4781 = vadd.f32 0.0, %v4780
      %v4782 = vpop.f32.mrb[0].mxu0
      %4783 = vmatprep.mubr.f32.mxu0 0.0
      %4784 = vmatmul.mubr.f32.gmra.mrb[0].mxu0 %v3861
      %v4785 = vpop.f32.mrb[0].mxu0
      %v4786 = vadd.f32 0.0, %v4785
      %v4787 = vpop.f32.mrb[0].mxu0
      %4788 = vmatprep.mubr.f32.mxu0 0.0
      %4789 = vmatmul.mubr.f32.gmra.mrb[0].mxu0 %v3864
      %v4790 = vpop.f32.mrb[0].mxu0
      %v4791 = vadd.f32 0.0, %v4790
      %v4792 = vpop.f32.mrb[0].mxu0
      %4793 = vmatprep.mubr.f32.mxu0 0.0
      %4794 = vmatmul.mubr.f32.gmra.mrb[0].mxu0 %v3867
      %v4795 = vpop.f32.mrb[0].mxu0
      %v4796 = vadd.f32 0.0, %v4795
      %v4797 = vpop.f32.mrb[0].mxu0
      %4798 = vmatprep.mubr.f32.mxu0 0.0
      %4799 = vmatmul.mubr.f32.gmra.mrb[0].mxu0 %v3870
      %v4800 = vpop.f32.mrb[0].mxu0
      %v4801 = vadd.f32 0.0, %v4800
      %v4802 = vpop.f32.mrb[0].mxu0
      %4803 = vmatprep.mubr.f32.mxu0 0.0
      %4804 = vmatmul.mubr.f32.gmra.mrb[0].mxu0 %v3873
      %v4805 = vpop.f32.mrb[0].mxu0
      %v4806 = vadd.f32 0.0, %v4805
      %v4807 = vpop.f32.mrb[0].mxu0
      %4808 = vmatprep.mubr.f32.mxu0 0.0
      %4809 = vmatmul.mubr.f32.gmra.mrb[0].mxu0 %v3876
      %v4810 = vpop.f32.mrb[0].mxu0
      %v4811 = vadd.f32 0.0, %v4810
      %v4812 = vpop.f32.mrb[0].mxu0
      %4813 = vmatprep.mubr.f32.mxu0 0.0
      %4814 = vmatmul.mubr.f32.gmra.mrb[0].mxu0 %v3879
      %v4815 = vpop.f32.mrb[0].mxu0
      %v4816 = vadd.f32 0.0, %v4815
      %v4817 = vpop.f32.mrb[0].mxu0
      %4818 = vmatprep.mubr.f32.mxu0 0.0
      %4819 = vmatmul.mubr.f32.gmra.mrb[0].mxu0 %v3882
      %v4820 = vpop.f32.mrb[0].mxu0
      %v4821 = vadd.f32 0.0, %v4820
      %v4822 = vpop.f32.mrb[0].mxu0
      %4823 = vmatprep.mubr.f32.mxu0 0.0
      %4824 = vmatmul.mubr.f32.gmra.mrb[0].mxu0 %v3885
      %v4825 = vpop.f32.mrb[0].mxu0
      %v4826 = vadd.f32 0.0, %v4825
      %v4827 = vpop.f32.mrb[0].mxu0
      %4828 = vmatprep.mubr.f32.mxu0 0.0
      %4829 = vmatmul.mubr.f32.gmra.mrb[0].mxu0 %v3888
      %v4830 = vpop.f32.mrb[0].mxu0
      %v4831 = vadd.f32 0.0, %v4830
      %v4832 = vpop.f32.mrb[0].mxu0
      %4833 = vmatprep.mubr.f32.mxu0 0.0
      %4834 = vmatmul.mubr.f32.gmra.mrb[0].mxu0 %v3891
      %v4835 = vpop.f32.mrb[0].mxu0
      %v4836 = vadd.f32 0.0, %v4835
      %v4837 = vpop.f32.mrb[0].mxu0
      %4838 = vmatprep.mubr.f32.mxu0 0.0
      %4839 = vmatmul.mubr.f32.gmra.mrb[0].mxu0 %v3894
      %v4840 = vpop.f32.mrb[0].mxu0
      %v4841 = vadd.f32 0.0, %v4840
      %v4842 = vpop.f32.mrb[0].mxu0
      %4843 = vmatprep.mubr.f32.mxu0 0.0
      %4844 = vmatmul.mubr.f32.gmra.mrb[0].mxu0 %v3897
      %v4845 = vpop.f32.mrb[0].mxu0
      %v4846 = vadd.f32 0.0, %v4845
      %v4847 = vpop.f32.mrb[0].mxu0
      %4848 = vmatprep.mubr.f32.mxu0 0.0
      %4849 = vmatmul.mubr.f32.gmra.mrb[0].mxu0 %v3900
      %v4850 = vpop.f32.mrb[0].mxu0
      %v4851 = vadd.f32 0.0, %v4850
      %v4852 = vpop.f32.mrb[0].mxu0
      %4853 = vmatprep.mubr.f32.mxu0 0.0
      %4854 = vmatmul.mubr.f32.gmra.mrb[0].mxu0 %v3903
      %v4855 = vpop.f32.mrb[0].mxu0
      %v4856 = vadd.f32 0.0, %v4855
      %v4857 = vpop.f32.mrb[0].mxu0
      %4858 = vmatprep.mubr.f32.mxu0 0.0
      %4859 = vmatmul.mubr.f32.gmra.mrb[0].mxu0 %v3906
      %v4860 = vpop.f32.mrb[0].mxu0
      %v4861 = vadd.f32 0.0, %v4860
      %v4862 = vpop.f32.mrb[0].mxu0
      %4863 = vmatprep.mubr.f32.mxu0 0.0
      %4864 = vmatmul.mubr.f32.gmra.mrb[0].mxu0 %v3909
      %v4865 = vpop.f32.mrb[0].mxu0
      %v4866 = vadd.f32 0.0, %v4865
      %v4867 = vpop.f32.mrb[0].mxu0
      %4868 = vmatprep.mubr.f32.mxu0 0.0
      %4869 = vmatmul.mubr.f32.gmra.mrb[0].mxu0 %v3912
      %v4870 = vpop.f32.mrb[0].mxu0
      %v4871 = vadd.f32 0.0, %v4870
      %v4872 = vpop.f32.mrb[0].mxu0
      %4873 = vdwg.mxu0
      %v4874 = vld [vmem:[%s224 + $0x1] sm:$0xff]
      %v4875 = vld [vmem:[%s224 + $0x9] sm:$0x7f]
      %v4876 = vld [vmem:[%s224 + $0x11] sm:$0xff]
      %v4877 = vld [vmem:[%s224 + $0x19] sm:$0x7f]
      %v4878 = vld [vmem:[%s224 + $0x21] sm:$0xff]
      %v4879 = vld [vmem:[%s224 + $0x29] sm:$0x7f]
      %v4880 = vld [vmem:[%s224 + $0x31] sm:$0xff]
      %v4881 = vld [vmem:[%s224 + $0x39] sm:$0x7f]
      %v4882 = vld [vmem:[%s224 + $0x41] sm:$0xff]
      %v4883 = vld [vmem:[%s224 + $0x49] sm:$0x7f]
      %v4884 = vld [vmem:[%s224 + $0x51] sm:$0xff]
      %v4885 = vld [vmem:[%s224 + $0x59] sm:$0x7f]
      %v4886 = vld [vmem:[%s224 + $0x61] sm:$0xff]
      %v4887 = vld [vmem:[%s224 + $0x69] sm:$0x7f]
      %v4888 = vld [vmem:[%s224 + $0x71] sm:$0xff]
      %v4889 = vld [vmem:[%s224 + $0x79] sm:$0x7f]
      %v4890 = vld [vmem:[%s224 + $0x81] sm:$0xff]
      %v4891 = vld [vmem:[%s224 + $0x89] sm:$0x7f]
      %v4892 = vld [vmem:[%s224 + $0x91] sm:$0xff]
      %v4893 = vld [vmem:[%s224 + $0x99] sm:$0x7f]
      %v4894 = vld [vmem:[%s224 + $0xa1] sm:$0xff]
      %v4895 = vld [vmem:[%s224 + $0xa9] sm:$0x7f]
      %v4896 = vld [vmem:[%s224 + $0xb1] sm:$0xff]
      %v4897 = vld [vmem:[%s224 + $0xb9] sm:$0x7f]
      %v4898 = vld [vmem:[%s224 + $0xc1] sm:$0xff]
      %v4899 = vld [vmem:[%s224 + $0xc9] sm:$0x7f]
      %v4900 = vld [vmem:[%s224 + $0xd1] sm:$0xff]
      %v4901 = vld [vmem:[%s224 + $0xd9] sm:$0x7f]
      %v4902 = vld [vmem:[%s224 + $0xe1] sm:$0xff]
      %v4903 = vld [vmem:[%s224 + $0xe9] sm:$0x7f]
      %v4904 = vsub.f32 %v4874, %v4726
      %v4905 = vsub.f32 %v4875, %v4731
      %v4906 = vsub.f32 %v4876, %v4736
      %v4907 = vsub.f32 %v4877, %v4741
      %v4908 = vsub.f32 %v4878, %v4746
      %v4909 = vsub.f32 %v4879, %v4751
      %v4910 = vsub.f32 %v4880, %v4756
      %v4911 = vsub.f32 %v4881, %v4761
      %v4912 = vsub.f32 %v4882, %v4766
      %v4913 = vsub.f32 %v4883, %v4771
      %v4914 = vsub.f32 %v4884, %v4776
      %v4915 = vsub.f32 %v4885, %v4781
      %v4916 = vsub.f32 %v4886, %v4786
      %v4917 = vsub.f32 %v4887, %v4791
      %v4918 = vsub.f32 %v4888, %v4796
      %v4919 = vsub.f32 %v4889, %v4801
      %v4920 = vsub.f32 %v4890, %v4806
      %v4921 = vsub.f32 %v4891, %v4811
      %v4922 = vsub.f32 %v4892, %v4816
      %v4923 = vsub.f32 %v4893, %v4821
      %v4924 = vsub.f32 %v4894, %v4826
      %v4925 = vsub.f32 %v4895, %v4831
      %v4926 = vsub.f32 %v4896, %v4836
      %v4927 = vsub.f32 %v4897, %v4841
      %v4928 = vsub.f32 %v4898, %v4846
      %v4929 = vsub.f32 %v4899, %v4851
      %v4930 = vsub.f32 %v4900, %v4856
      %v4931 = vsub.f32 %v4901, %v4861
      %v4932 = vsub.f32 %v4902, %v4866
      %v4933 = vsub.f32 %v4903, %v4871
      %4934 = vst.msk [vmem:[%s224 + $0x1] sm:$0xff] %vm292, %v4904
      %4935 = vst.msk [vmem:[%s224 + $0x9] sm:$0x7f] %vm4304, %v4905
      %4936 = vst.msk [vmem:[%s224 + $0x11] sm:$0xff] %vm292, %v4906
      %4937 = vst.msk [vmem:[%s224 + $0x19] sm:$0x7f] %vm4304, %v4907
      %4938 = vst.msk [vmem:[%s224 + $0x21] sm:$0xff] %vm292, %v4908
      %4939 = vst.msk [vmem:[%s224 + $0x29] sm:$0x7f] %vm4304, %v4909
      %4940 = vst.msk [vmem:[%s224 + $0x31] sm:$0xff] %vm292, %v4910
      %4941 = vst.msk [vmem:[%s224 + $0x39] sm:$0x7f] %vm4304, %v4911
      %4942 = vst.msk [vmem:[%s224 + $0x41] sm:$0xff] %vm292, %v4912
      %4943 = vst.msk [vmem:[%s224 + $0x49] sm:$0x7f] %vm4304, %v4913
      %4944 = vst.msk [vmem:[%s224 + $0x51] sm:$0xff] %vm292, %v4914
      %4945 = vst.msk [vmem:[%s224 + $0x59] sm:$0x7f] %vm4304, %v4915
      %4946 = vst.msk [vmem:[%s224 + $0x61] sm:$0xff] %vm292, %v4916
      %4947 = vst.msk [vmem:[%s224 + $0x69] sm:$0x7f] %vm4304, %v4917
      %4948 = vst.msk [vmem:[%s224 + $0x71] sm:$0xff] %vm292, %v4918
      %4949 = vst.msk [vmem:[%s224 + $0x79] sm:$0x7f] %vm4304, %v4919
      %4950 = vst.msk [vmem:[%s224 + $0x81] sm:$0xff] %vm292, %v4920
      %4951 = vst.msk [vmem:[%s224 + $0x89] sm:$0x7f] %vm4304, %v4921
      %4952 = vst.msk [vmem:[%s224 + $0x91] sm:$0xff] %vm292, %v4922
      %4953 = vst.msk [vmem:[%s224 + $0x99] sm:$0x7f] %vm4304, %v4923
      %4954 = vst.msk [vmem:[%s224 + $0xa1] sm:$0xff] %vm292, %v4924
      %4955 = vst.msk [vmem:[%s224 + $0xa9] sm:$0x7f] %vm4304, %v4925
      %4956 = vst.msk [vmem:[%s224 + $0xb1] sm:$0xff] %vm292, %v4926
      %4957 = vst.msk [vmem:[%s224 + $0xb9] sm:$0x7f] %vm4304, %v4927
      %4958 = vst.msk [vmem:[%s224 + $0xc1] sm:$0xff] %vm292, %v4928
      %4959 = vst.msk [vmem:[%s224 + $0xc9] sm:$0x7f] %vm4304, %v4929
      %4960 = vst.msk [vmem:[%s224 + $0xd1] sm:$0xff] %vm292, %v4930
      %4961 = vst.msk [vmem:[%s224 + $0xd9] sm:$0x7f] %vm4304, %v4931
      %4962 = vst.msk [vmem:[%s224 + $0xe1] sm:$0xff] %vm292, %v4932
      %4963 = vst.msk [vmem:[%s224 + $0xe9] sm:$0x7f] %vm4304, %v4933
      %s4964 = scalar_lea.vmem %s3, 24
      %v4965 = vld [vmem:[%s4964] sm:$0xff]
      %4966 = vmatprep.subr.mxu0 0.0
      %4967 = vmatpush1.msra.mxu0 %v4965
      %4968 = vmatprep.subr.mxu0 0.0
      %4969 = vmatpush1.msra.mxu0 0.0
      %4970 = vmatprep.subr.mxu0 0.0
      %4971 = vmatpush1.msra.mxu0 0.0
      %4972 = vmatprep.subr.mxu0 0.0
      %4973 = vmatpush1.msra.mxu0 0.0
      %4974 = vmatprep.subr.mxu0 0.0
      %4975 = vmatpush1.msra.mxu0 0.0
      %4976 = vmatprep.subr.mxu0 0.0
      %4977 = vmatpush1.msra.mxu0 0.0
      %4978 = vmatprep.subr.mxu0 0.0
      %4979 = vmatpush1.msra.mxu0 0.0
      %4980 = vmatprep.subr.mxu0 0.0
      %4981 = vmatpush1.msra.mxu0 0.0
      %4982 = vmatprep.subr.mxu0 0.0
      %4983 = vmatpush1.msra.mxu0 0.0
      %4984 = vmatprep.subr.mxu0 0.0
      %4985 = vmatpush1.msra.mxu0 0.0
      %4986 = vmatprep.subr.mxu0 0.0
      %4987 = vmatpush1.msra.mxu0 0.0
      %4988 = vmatprep.subr.mxu0 0.0
      %4989 = vmatpush1.msra.mxu0 0.0
      %4990 = vmatprep.subr.mxu0 0.0
      %4991 = vmatpush1.msra.mxu0 0.0
      %4992 = vmatprep.subr.mxu0 0.0
      %4993 = vmatpush1.msra.mxu0 0.0
      %4994 = vmatprep.subr.mxu0 0.0
      %4995 = vmatpush1.msra.mxu0 0.0
      %4996 = vmatprep.subr.mxu0 0.0
      %4997 = vmatpush1.msra.mxu0 0.0
      %4998 = vmatprep.subr.mxu0 0.0
      %4999 = vmatpush1.msra.mxu0 0.0
      %5000 = vmatprep.subr.mxu0 0.0
      %5001 = vmatpush1.msra.mxu0 0.0
      %5002 = vmatprep.subr.mxu0 0.0
      %5003 = vmatpush1.msra.mxu0 0.0
      %5004 = vmatprep.subr.mxu0 0.0
      %5005 = vmatpush1.msra.mxu0 0.0
      %5006 = vmatprep.subr.mxu0 0.0
      %5007 = vmatpush1.msra.mxu0 0.0
      %5008 = vmatprep.subr.mxu0 0.0
      %5009 = vmatpush1.msra.mxu0 0.0
      %5010 = vmatprep.subr.mxu0 0.0
      %5011 = vmatpush1.msra.mxu0 0.0
      %5012 = vmatprep.subr.mxu0 0.0
      %5013 = vmatpush1.msra.mxu0 0.0
      %5014 = vmatprep.subr.mxu0 0.0
      %5015 = vmatpush1.msra.mxu0 0.0
      %5016 = vmatprep.subr.mxu0 0.0
      %5017 = vmatpush1.msra.mxu0 0.0
      %5018 = vmatprep.subr.mxu0 0.0
      %5019 = vmatpush1.msra.mxu0 0.0
      %5020 = vmatprep.subr.mxu0 0.0
      %5021 = vmatpush1.msra.mxu0 0.0
      %5022 = vmatprep.subr.mxu0 0.0
      %5023 = vmatpush1.msra.mxu0 0.0
      %5024 = vmatprep.subr.mxu0 0.0
      %5025 = vmatpush1.msra.mxu0 0.0
      %5026 = vmatprep.subr.mxu0 0.0
      %5027 = vmatpush1.msra.mxu0 0.0
      %5028 = vmatprep.subr.mxu0 0.0
      %5029 = vmatpush1.msra.mxu0 0.0
      %5030 = vmatprep.mubr.f32.mxu0 0.0
      %5031 = vmatmul.mubr.f32.gmra.mrb[0].mxu0 %v3819
      %v5032 = vpop.f32.mrb[0].mxu0
      %v5033 = vadd.f32 0.0, %v5032
      %v5034 = vpop.f32.mrb[0].mxu0
      %5035 = vmatprep.mubr.f32.mxu0 0.0
      %5036 = vmatmul.mubr.f32.gmra.mrb[0].mxu0 %v3822
      %v5037 = vpop.f32.mrb[0].mxu0
      %v5038 = vadd.f32 0.0, %v5037
      %v5039 = vpop.f32.mrb[0].mxu0
      %5040 = vmatprep.mubr.f32.mxu0 0.0
      %5041 = vmatmul.mubr.f32.gmra.mrb[0].mxu0 %v3825
      %v5042 = vpop.f32.mrb[0].mxu0
      %v5043 = vadd.f32 0.0, %v5042
      %v5044 = vpop.f32.mrb[0].mxu0
      %5045 = vmatprep.mubr.f32.mxu0 0.0
      %5046 = vmatmul.mubr.f32.gmra.mrb[0].mxu0 %v3828
      %v5047 = vpop.f32.mrb[0].mxu0
      %v5048 = vadd.f32 0.0, %v5047
      %v5049 = vpop.f32.mrb[0].mxu0
      %5050 = vmatprep.mubr.f32.mxu0 0.0
      %5051 = vmatmul.mubr.f32.gmra.mrb[0].mxu0 %v3831
      %v5052 = vpop.f32.mrb[0].mxu0
      %v5053 = vadd.f32 0.0, %v5052
      %v5054 = vpop.f32.mrb[0].mxu0
      %5055 = vmatprep.mubr.f32.mxu0 0.0
      %5056 = vmatmul.mubr.f32.gmra.mrb[0].mxu0 %v3834
      %v5057 = vpop.f32.mrb[0].mxu0
      %v5058 = vadd.f32 0.0, %v5057
      %v5059 = vpop.f32.mrb[0].mxu0
      %5060 = vmatprep.mubr.f32.mxu0 0.0
      %5061 = vmatmul.mubr.f32.gmra.mrb[0].mxu0 %v3837
      %v5062 = vpop.f32.mrb[0].mxu0
      %v5063 = vadd.f32 0.0, %v5062
      %v5064 = vpop.f32.mrb[0].mxu0
      %5065 = vmatprep.mubr.f32.mxu0 0.0
      %5066 = vmatmul.mubr.f32.gmra.mrb[0].mxu0 %v3840
      %v5067 = vpop.f32.mrb[0].mxu0
      %v5068 = vadd.f32 0.0, %v5067
      %v5069 = vpop.f32.mrb[0].mxu0
      %5070 = vmatprep.mubr.f32.mxu0 0.0
      %5071 = vmatmul.mubr.f32.gmra.mrb[0].mxu0 %v3843
      %v5072 = vpop.f32.mrb[0].mxu0
      %v5073 = vadd.f32 0.0, %v5072
      %v5074 = vpop.f32.mrb[0].mxu0
      %5075 = vmatprep.mubr.f32.mxu0 0.0
      %5076 = vmatmul.mubr.f32.gmra.mrb[0].mxu0 %v3846
      %v5077 = vpop.f32.mrb[0].mxu0
      %v5078 = vadd.f32 0.0, %v5077
      %v5079 = vpop.f32.mrb[0].mxu0
      %5080 = vmatprep.mubr.f32.mxu0 0.0
      %5081 = vmatmul.mubr.f32.gmra.mrb[0].mxu0 %v3849
      %v5082 = vpop.f32.mrb[0].mxu0
      %v5083 = vadd.f32 0.0, %v5082
      %v5084 = vpop.f32.mrb[0].mxu0
      %5085 = vmatprep.mubr.f32.mxu0 0.0
      %5086 = vmatmul.mubr.f32.gmra.mrb[0].mxu0 %v3852
      %v5087 = vpop.f32.mrb[0].mxu0
      %v5088 = vadd.f32 0.0, %v5087
      %v5089 = vpop.f32.mrb[0].mxu0
      %5090 = vmatprep.mubr.f32.mxu0 0.0
      %5091 = vmatmul.mubr.f32.gmra.mrb[0].mxu0 %v3855
      %v5092 = vpop.f32.mrb[0].mxu0
      %v5093 = vadd.f32 0.0, %v5092
      %v5094 = vpop.f32.mrb[0].mxu0
      %5095 = vmatprep.mubr.f32.mxu0 0.0
      %5096 = vmatmul.mubr.f32.gmra.mrb[0].mxu0 %v3858
      %v5097 = vpop.f32.mrb[0].mxu0
      %v5098 = vadd.f32 0.0, %v5097
      %v5099 = vpop.f32.mrb[0].mxu0
      %5100 = vmatprep.mubr.f32.mxu0 0.0
      %5101 = vmatmul.mubr.f32.gmra.mrb[0].mxu0 %v3861
      %v5102 = vpop.f32.mrb[0].mxu0
      %v5103 = vadd.f32 0.0, %v5102
      %v5104 = vpop.f32.mrb[0].mxu0
      %5105 = vmatprep.mubr.f32.mxu0 0.0
      %5106 = vmatmul.mubr.f32.gmra.mrb[0].mxu0 %v3864
      %v5107 = vpop.f32.mrb[0].mxu0
      %v5108 = vadd.f32 0.0, %v5107
      %v5109 = vpop.f32.mrb[0].mxu0
      %5110 = vmatprep.mubr.f32.mxu0 0.0
      %5111 = vmatmul.mubr.f32.gmra.mrb[0].mxu0 %v3867
      %v5112 = vpop.f32.mrb[0].mxu0
      %v5113 = vadd.f32 0.0, %v5112
      %v5114 = vpop.f32.mrb[0].mxu0
      %5115 = vmatprep.mubr.f32.mxu0 0.0
      %5116 = vmatmul.mubr.f32.gmra.mrb[0].mxu0 %v3870
      %v5117 = vpop.f32.mrb[0].mxu0
      %v5118 = vadd.f32 0.0, %v5117
      %v5119 = vpop.f32.mrb[0].mxu0
      %5120 = vmatprep.mubr.f32.mxu0 0.0
      %5121 = vmatmul.mubr.f32.gmra.mrb[0].mxu0 %v3873
      %v5122 = vpop.f32.mrb[0].mxu0
      %v5123 = vadd.f32 0.0, %v5122
      %v5124 = vpop.f32.mrb[0].mxu0
      %5125 = vmatprep.mubr.f32.mxu0 0.0
      %5126 = vmatmul.mubr.f32.gmra.mrb[0].mxu0 %v3876
      %v5127 = vpop.f32.mrb[0].mxu0
      %v5128 = vadd.f32 0.0, %v5127
      %v5129 = vpop.f32.mrb[0].mxu0
      %5130 = vmatprep.mubr.f32.mxu0 0.0
      %5131 = vmatmul.mubr.f32.gmra.mrb[0].mxu0 %v3879
      %v5132 = vpop.f32.mrb[0].mxu0
      %v5133 = vadd.f32 0.0, %v5132
      %v5134 = vpop.f32.mrb[0].mxu0
      %5135 = vmatprep.mubr.f32.mxu0 0.0
      %5136 = vmatmul.mubr.f32.gmra.mrb[0].mxu0 %v3882
      %v5137 = vpop.f32.mrb[0].mxu0
      %v5138 = vadd.f32 0.0, %v5137
      %v5139 = vpop.f32.mrb[0].mxu0
      %5140 = vmatprep.mubr.f32.mxu0 0.0
      %5141 = vmatmul.mubr.f32.gmra.mrb[0].mxu0 %v3885
      %v5142 = vpop.f32.mrb[0].mxu0
      %v5143 = vadd.f32 0.0, %v5142
      %v5144 = vpop.f32.mrb[0].mxu0
      %5145 = vmatprep.mubr.f32.mxu0 0.0
      %5146 = vmatmul.mubr.f32.gmra.mrb[0].mxu0 %v3888
      %v5147 = vpop.f32.mrb[0].mxu0
      %v5148 = vadd.f32 0.0, %v5147
      %v5149 = vpop.f32.mrb[0].mxu0
      %5150 = vmatprep.mubr.f32.mxu0 0.0
      %5151 = vmatmul.mubr.f32.gmra.mrb[0].mxu0 %v3891
      %v5152 = vpop.f32.mrb[0].mxu0
      %v5153 = vadd.f32 0.0, %v5152
      %v5154 = vpop.f32.mrb[0].mxu0
      %5155 = vmatprep.mubr.f32.mxu0 0.0
      %5156 = vmatmul.mubr.f32.gmra.mrb[0].mxu0 %v3894
      %v5157 = vpop.f32.mrb[0].mxu0
      %v5158 = vadd.f32 0.0, %v5157
      %v5159 = vpop.f32.mrb[0].mxu0
      %5160 = vmatprep.mubr.f32.mxu0 0.0
      %5161 = vmatmul.mubr.f32.gmra.mrb[0].mxu0 %v3897
      %v5162 = vpop.f32.mrb[0].mxu0
      %v5163 = vadd.f32 0.0, %v5162
      %v5164 = vpop.f32.mrb[0].mxu0
      %5165 = vmatprep.mubr.f32.mxu0 0.0
      %5166 = vmatmul.mubr.f32.gmra.mrb[0].mxu0 %v3900
      %v5167 = vpop.f32.mrb[0].mxu0
      %v5168 = vadd.f32 0.0, %v5167
      %v5169 = vpop.f32.mrb[0].mxu0
      %5170 = vmatprep.mubr.f32.mxu0 0.0
      %5171 = vmatmul.mubr.f32.gmra.mrb[0].mxu0 %v3903
      %v5172 = vpop.f32.mrb[0].mxu0
      %v5173 = vadd.f32 0.0, %v5172
      %v5174 = vpop.f32.mrb[0].mxu0
      %5175 = vmatprep.mubr.f32.mxu0 0.0
      %5176 = vmatmul.mubr.f32.gmra.mrb[0].mxu0 %v3906
      %v5177 = vpop.f32.mrb[0].mxu0
      %v5178 = vadd.f32 0.0, %v5177
      %v5179 = vpop.f32.mrb[0].mxu0
      %5180 = vmatprep.mubr.f32.mxu0 0.0
      %5181 = vmatmul.mubr.f32.gmra.mrb[0].mxu0 %v3909
      %v5182 = vpop.f32.mrb[0].mxu0
      %v5183 = vadd.f32 0.0, %v5182
      %v5184 = vpop.f32.mrb[0].mxu0
      %5185 = vmatprep.mubr.f32.mxu0 0.0
      %5186 = vmatmul.mubr.f32.gmra.mrb[0].mxu0 %v3912
      %v5187 = vpop.f32.mrb[0].mxu0
      %v5188 = vadd.f32 0.0, %v5187
      %v5189 = vpop.f32.mrb[0].mxu0
      %5190 = vdwg.mxu0
      %v5191 = vld [vmem:[%s224] sm:$0xff]
      %v5192 = vld [vmem:[%s224 + $0x8] sm:$0x7f]
      %v5193 = vld [vmem:[%s224 + $0x10] sm:$0xff]
      %v5194 = vld [vmem:[%s224 + $0x18] sm:$0x7f]
      %v5195 = vld [vmem:[%s224 + $0x20] sm:$0xff]
      %v5196 = vld [vmem:[%s224 + $0x28] sm:$0x7f]
      %v5197 = vld [vmem:[%s224 + $0x30] sm:$0xff]
      %v5198 = vld [vmem:[%s224 + $0x38] sm:$0x7f]
      %v5199 = vld [vmem:[%s224 + $0x40] sm:$0xff]
      %v5200 = vld [vmem:[%s224 + $0x48] sm:$0x7f]
      %v5201 = vld [vmem:[%s224 + $0x50] sm:$0xff]
      %v5202 = vld [vmem:[%s224 + $0x58] sm:$0x7f]
      %v5203 = vld [vmem:[%s224 + $0x60] sm:$0xff]
      %v5204 = vld [vmem:[%s224 + $0x68] sm:$0x7f]
      %v5205 = vld [vmem:[%s224 + $0x70] sm:$0xff]
      %v5206 = vld [vmem:[%s224 + $0x78] sm:$0x7f]
      %v5207 = vld [vmem:[%s224 + $0x80] sm:$0xff]
      %v5208 = vld [vmem:[%s224 + $0x88] sm:$0x7f]
      %v5209 = vld [vmem:[%s224 + $0x90] sm:$0xff]
      %v5210 = vld [vmem:[%s224 + $0x98] sm:$0x7f]
      %v5211 = vld [vmem:[%s224 + $0xa0] sm:$0xff]
      %v5212 = vld [vmem:[%s224 + $0xa8] sm:$0x7f]
      %v5213 = vld [vmem:[%s224 + $0xb0] sm:$0xff]
      %v5214 = vld [vmem:[%s224 + $0xb8] sm:$0x7f]
      %v5215 = vld [vmem:[%s224 + $0xc0] sm:$0xff]
      %v5216 = vld [vmem:[%s224 + $0xc8] sm:$0x7f]
      %v5217 = vld [vmem:[%s224 + $0xd0] sm:$0xff]
      %v5218 = vld [vmem:[%s224 + $0xd8] sm:$0x7f]
      %v5219 = vld [vmem:[%s224 + $0xe0] sm:$0xff]
      %v5220 = vld [vmem:[%s224 + $0xe8] sm:$0x7f]
      %v5221 = vld [vmem:[%s224 + $0xf0] sm:$0xff]
      %v5222 = vld [vmem:[%s224 + $0xf8] sm:$0x7f]
      %v5255 = vrot.slane %v5033, 1
      %v5256 = vrot.slane %v5038, 1
      %v5257 = vsel %vm4197, %v5255, %v5256
      %v5258 = vrot.slane %v5043, 1
      %v5259 = vrot.slane %v5048, 1
      %v5260 = vsel %vm4197, %v5258, %v5259
      %v5261 = vrot.slane %v5053, 1
      %v5262 = vrot.slane %v5058, 1
      %v5263 = vsel %vm4197, %v5261, %v5262
      %v5264 = vrot.slane %v5063, 1
      %v5265 = vrot.slane %v5068, 1
      %v5266 = vsel %vm4197, %v5264, %v5265
      %v5267 = vrot.slane %v5073, 1
      %v5268 = vrot.slane %v5078, 1
      %v5269 = vsel %vm4197, %v5267, %v5268
      %v5270 = vrot.slane %v5083, 1
      %v5271 = vrot.slane %v5088, 1
      %v5272 = vsel %vm4197, %v5270, %v5271
      %v5273 = vrot.slane %v5093, 1
      %v5274 = vrot.slane %v5098, 1
      %v5275 = vsel %vm4197, %v5273, %v5274
      %v5276 = vrot.slane %v5103, 1
      %v5277 = vrot.slane %v5108, 1
      %v5278 = vsel %vm4197, %v5276, %v5277
      %v5279 = vrot.slane %v5113, 1
      %v5280 = vrot.slane %v5118, 1
      %v5281 = vsel %vm4197, %v5279, %v5280
      %v5282 = vrot.slane %v5123, 1
      %v5283 = vrot.slane %v5128, 1
      %v5284 = vsel %vm4197, %v5282, %v5283
      %v5285 = vrot.slane %v5133, 1
      %v5286 = vrot.slane %v5138, 1
      %v5287 = vsel %vm4197, %v5285, %v5286
      %v5288 = vrot.slane %v5143, 1
      %v5289 = vrot.slane %v5148, 1
      %v5290 = vsel %vm4197, %v5288, %v5289
      %v5291 = vrot.slane %v5153, 1
      %v5292 = vrot.slane %v5158, 1
      %v5293 = vsel %vm4197, %v5291, %v5292
      %v5294 = vrot.slane %v5163, 1
      %v5295 = vrot.slane %v5168, 1
      %v5296 = vsel %vm4197, %v5294, %v5295
      %v5297 = vrot.slane %v5173, 1
      %v5298 = vrot.slane %v5178, 1
      %v5299 = vsel %vm4197, %v5297, %v5298
      %v5300 = vrot.slane %v5183, 1
      %v5301 = vrot.slane %v5188, 1
      %v5302 = vsel %vm4197, %v5300, %v5301
      %v5335 = vsub.f32 %v5191, %v5257
      %v5336 = vsub.f32 %v5192, %v5256
      %v5337 = vsub.f32 %v5193, %v5260
      %v5338 = vsub.f32 %v5194, %v5259
      %v5339 = vsub.f32 %v5195, %v5263
      %v5340 = vsub.f32 %v5196, %v5262
      %v5341 = vsub.f32 %v5197, %v5266
      %v5342 = vsub.f32 %v5198, %v5265
      %v5343 = vsub.f32 %v5199, %v5269
      %v5344 = vsub.f32 %v5200, %v5268
      %v5345 = vsub.f32 %v5201, %v5272
      %v5346 = vsub.f32 %v5202, %v5271
      %v5347 = vsub.f32 %v5203, %v5275
      %v5348 = vsub.f32 %v5204, %v5274
      %v5349 = vsub.f32 %v5205, %v5278
      %v5350 = vsub.f32 %v5206, %v5277
      %v5351 = vsub.f32 %v5207, %v5281
      %v5352 = vsub.f32 %v5208, %v5280
      %v5353 = vsub.f32 %v5209, %v5284
      %v5354 = vsub.f32 %v5210, %v5283
      %v5355 = vsub.f32 %v5211, %v5287
      %v5356 = vsub.f32 %v5212, %v5286
      %v5357 = vsub.f32 %v5213, %v5290
      %v5358 = vsub.f32 %v5214, %v5289
      %v5359 = vsub.f32 %v5215, %v5293
      %v5360 = vsub.f32 %v5216, %v5292
      %v5361 = vsub.f32 %v5217, %v5296
      %v5362 = vsub.f32 %v5218, %v5295
      %v5363 = vsub.f32 %v5219, %v5299
      %v5364 = vsub.f32 %v5220, %v5298
      %v5365 = vsub.f32 %v5221, %v5302
      %v5366 = vsub.f32 %v5222, %v5301
      %5367 = vst.msk [vmem:[%s224] sm:$0xff] %vm292, %v5335
      %5368 = vst.msk [vmem:[%s224 + $0x8] sm:$0x7f] %vm4304, %v5336
      %5369 = vst.msk [vmem:[%s224 + $0x10] sm:$0xff] %vm292, %v5337
      %5370 = vst.msk [vmem:[%s224 + $0x18] sm:$0x7f] %vm4304, %v5338
      %5371 = vst.msk [vmem:[%s224 + $0x20] sm:$0xff] %vm292, %v5339
      %5372 = vst.msk [vmem:[%s224 + $0x28] sm:$0x7f] %vm4304, %v5340
      %5373 = vst.msk [vmem:[%s224 + $0x30] sm:$0xff] %vm292, %v5341
      %5374 = vst.msk [vmem:[%s224 + $0x38] sm:$0x7f] %vm4304, %v5342
      %5375 = vst.msk [vmem:[%s224 + $0x40] sm:$0xff] %vm292, %v5343
      %5376 = vst.msk [vmem:[%s224 + $0x48] sm:$0x7f] %vm4304, %v5344
      %5377 = vst.msk [vmem:[%s224 + $0x50] sm:$0xff] %vm292, %v5345
      %5378 = vst.msk [vmem:[%s224 + $0x58] sm:$0x7f] %vm4304, %v5346
      %5379 = vst.msk [vmem:[%s224 + $0x60] sm:$0xff] %vm292, %v5347
      %5380 = vst.msk [vmem:[%s224 + $0x68] sm:$0x7f] %vm4304, %v5348
      %5381 = vst.msk [vmem:[%s224 + $0x70] sm:$0xff] %vm292, %v5349
      %5382 = vst.msk [vmem:[%s224 + $0x78] sm:$0x7f] %vm4304, %v5350
      %5383 = vst.msk [vmem:[%s224 + $0x80] sm:$0xff] %vm292, %v5351
      %5384 = vst.msk [vmem:[%s224 + $0x88] sm:$0x7f] %vm4304, %v5352
      %5385 = vst.msk [vmem:[%s224 + $0x90] sm:$0xff] %vm292, %v5353
      %5386 = vst.msk [vmem:[%s224 + $0x98] sm:$0x7f] %vm4304, %v5354
      %5387 = vst.msk [vmem:[%s224 + $0xa0] sm:$0xff] %vm292, %v5355
      %5388 = vst.msk [vmem:[%s224 + $0xa8] sm:$0x7f] %vm4304, %v5356
      %5389 = vst.msk [vmem:[%s224 + $0xb0] sm:$0xff] %vm292, %v5357
      %5390 = vst.msk [vmem:[%s224 + $0xb8] sm:$0x7f] %vm4304, %v5358
      %5391 = vst.msk [vmem:[%s224 + $0xc0] sm:$0xff] %vm292, %v5359
      %5392 = vst.msk [vmem:[%s224 + $0xc8] sm:$0x7f] %vm4304, %v5360
      %5393 = vst.msk [vmem:[%s224 + $0xd0] sm:$0xff] %vm292, %v5361
      %5394 = vst.msk [vmem:[%s224 + $0xd8] sm:$0x7f] %vm4304, %v5362
      %5395 = vst.msk [vmem:[%s224 + $0xe0] sm:$0xff] %vm292, %v5363
      %5396 = vst.msk [vmem:[%s224 + $0xe8] sm:$0x7f] %vm4304, %v5364
      %5397 = vst.msk [vmem:[%s224 + $0xf0] sm:$0xff] %vm292, %v5365
      %5398 = vst.msk [vmem:[%s224 + $0xf8] sm:$0x7f] %vm4304, %v5366
      %s5399 = scalar_lea.vmem %s3, 32
      %v5400 = vld [vmem:[%s5399] sm:$0xff]
      %5401 = vmatprep.subr.mxu0 0.0
      %5402 = vmatpush1.msra.mxu0 %v5400
      %5403 = vmatprep.subr.mxu0 0.0
      %5404 = vmatpush1.msra.mxu0 0.0
      %5405 = vmatprep.subr.mxu0 0.0
      %5406 = vmatpush1.msra.mxu0 0.0
      %5407 = vmatprep.subr.mxu0 0.0
      %5408 = vmatpush1.msra.mxu0 0.0
      %5409 = vmatprep.subr.mxu0 0.0
      %5410 = vmatpush1.msra.mxu0 0.0
      %5411 = vmatprep.subr.mxu0 0.0
      %5412 = vmatpush1.msra.mxu0 0.0
      %5413 = vmatprep.subr.mxu0 0.0
      %5414 = vmatpush1.msra.mxu0 0.0
      %5415 = vmatprep.subr.mxu0 0.0
      %5416 = vmatpush1.msra.mxu0 0.0
      %5417 = vmatprep.subr.mxu0 0.0
      %5418 = vmatpush1.msra.mxu0 0.0
      %5419 = vmatprep.subr.mxu0 0.0
      %5420 = vmatpush1.msra.mxu0 0.0
      %5421 = vmatprep.subr.mxu0 0.0
      %5422 = vmatpush1.msra.mxu0 0.0
      %5423 = vmatprep.subr.mxu0 0.0
      %5424 = vmatpush1.msra.mxu0 0.0
      %5425 = vmatprep.subr.mxu0 0.0
      %5426 = vmatpush1.msra.mxu0 0.0
      %5427 = vmatprep.subr.mxu0 0.0
      %5428 = vmatpush1.msra.mxu0 0.0
      %5429 = vmatprep.subr.mxu0 0.0
      %5430 = vmatpush1.msra.mxu0 0.0
      %5431 = vmatprep.subr.mxu0 0.0
      %5432 = vmatpush1.msra.mxu0 0.0
      %5433 = vmatprep.subr.mxu0 0.0
      %5434 = vmatpush1.msra.mxu0 0.0
      %5435 = vmatprep.subr.mxu0 0.0
      %5436 = vmatpush1.msra.mxu0 0.0
      %5437 = vmatprep.subr.mxu0 0.0
      %5438 = vmatpush1.msra.mxu0 0.0
      %5439 = vmatprep.subr.mxu0 0.0
      %5440 = vmatpush1.msra.mxu0 0.0
      %5441 = vmatprep.subr.mxu0 0.0
      %5442 = vmatpush1.msra.mxu0 0.0
      %5443 = vmatprep.subr.mxu0 0.0
      %5444 = vmatpush1.msra.mxu0 0.0
      %5445 = vmatprep.subr.mxu0 0.0
      %5446 = vmatpush1.msra.mxu0 0.0
      %5447 = vmatprep.subr.mxu0 0.0
      %5448 = vmatpush1.msra.mxu0 0.0
      %5449 = vmatprep.subr.mxu0 0.0
      %5450 = vmatpush1.msra.mxu0 0.0
      %5451 = vmatprep.subr.mxu0 0.0
      %5452 = vmatpush1.msra.mxu0 0.0
      %5453 = vmatprep.subr.mxu0 0.0
      %5454 = vmatpush1.msra.mxu0 0.0
      %5455 = vmatprep.subr.mxu0 0.0
      %5456 = vmatpush1.msra.mxu0 0.0
      %5457 = vmatprep.subr.mxu0 0.0
      %5458 = vmatpush1.msra.mxu0 0.0
      %5459 = vmatprep.subr.mxu0 0.0
      %5460 = vmatpush1.msra.mxu0 0.0
      %5461 = vmatprep.subr.mxu0 0.0
      %5462 = vmatpush1.msra.mxu0 0.0
      %5463 = vmatprep.subr.mxu0 0.0
      %5464 = vmatpush1.msra.mxu0 0.0
      %5465 = vmatprep.mubr.f32.mxu0 0.0
      %5466 = vmatmul.mubr.f32.gmra.mrb[0].mxu0 %v3819
      %v5467 = vpop.f32.mrb[0].mxu0
      %v5468 = vadd.f32 0.0, %v5467
      %v5469 = vpop.f32.mrb[0].mxu0
      %5470 = vmatprep.mubr.f32.mxu0 0.0
      %5471 = vmatmul.mubr.f32.gmra.mrb[0].mxu0 %v3822
      %v5472 = vpop.f32.mrb[0].mxu0
      %v5473 = vadd.f32 0.0, %v5472
      %v5474 = vpop.f32.mrb[0].mxu0
      %5475 = vmatprep.mubr.f32.mxu0 0.0
      %5476 = vmatmul.mubr.f32.gmra.mrb[0].mxu0 %v3825
      %v5477 = vpop.f32.mrb[0].mxu0
      %v5478 = vadd.f32 0.0, %v5477
      %v5479 = vpop.f32.mrb[0].mxu0
      %5480 = vmatprep.mubr.f32.mxu0 0.0
      %5481 = vmatmul.mubr.f32.gmra.mrb[0].mxu0 %v3828
      %v5482 = vpop.f32.mrb[0].mxu0
      %v5483 = vadd.f32 0.0, %v5482
      %v5484 = vpop.f32.mrb[0].mxu0
      %5485 = vmatprep.mubr.f32.mxu0 0.0
      %5486 = vmatmul.mubr.f32.gmra.mrb[0].mxu0 %v3831
      %v5487 = vpop.f32.mrb[0].mxu0
      %v5488 = vadd.f32 0.0, %v5487
      %v5489 = vpop.f32.mrb[0].mxu0
      %5490 = vmatprep.mubr.f32.mxu0 0.0
      %5491 = vmatmul.mubr.f32.gmra.mrb[0].mxu0 %v3834
      %v5492 = vpop.f32.mrb[0].mxu0
      %v5493 = vadd.f32 0.0, %v5492
      %v5494 = vpop.f32.mrb[0].mxu0
      %5495 = vmatprep.mubr.f32.mxu0 0.0
      %5496 = vmatmul.mubr.f32.gmra.mrb[0].mxu0 %v3837
      %v5497 = vpop.f32.mrb[0].mxu0
      %v5498 = vadd.f32 0.0, %v5497
      %v5499 = vpop.f32.mrb[0].mxu0
      %5500 = vmatprep.mubr.f32.mxu0 0.0
      %5501 = vmatmul.mubr.f32.gmra.mrb[0].mxu0 %v3840
      %v5502 = vpop.f32.mrb[0].mxu0
      %v5503 = vadd.f32 0.0, %v5502
      %v5504 = vpop.f32.mrb[0].mxu0
      %5505 = vmatprep.mubr.f32.mxu0 0.0
      %5506 = vmatmul.mubr.f32.gmra.mrb[0].mxu0 %v3843
      %v5507 = vpop.f32.mrb[0].mxu0
      %v5508 = vadd.f32 0.0, %v5507
      %v5509 = vpop.f32.mrb[0].mxu0
      %5510 = vmatprep.mubr.f32.mxu0 0.0
      %5511 = vmatmul.mubr.f32.gmra.mrb[0].mxu0 %v3846
      %v5512 = vpop.f32.mrb[0].mxu0
      %v5513 = vadd.f32 0.0, %v5512
      %v5514 = vpop.f32.mrb[0].mxu0
      %5515 = vmatprep.mubr.f32.mxu0 0.0
      %5516 = vmatmul.mubr.f32.gmra.mrb[0].mxu0 %v3849
      %v5517 = vpop.f32.mrb[0].mxu0
      %v5518 = vadd.f32 0.0, %v5517
      %v5519 = vpop.f32.mrb[0].mxu0
      %5520 = vmatprep.mubr.f32.mxu0 0.0
      %5521 = vmatmul.mubr.f32.gmra.mrb[0].mxu0 %v3852
      %v5522 = vpop.f32.mrb[0].mxu0
      %v5523 = vadd.f32 0.0, %v5522
      %v5524 = vpop.f32.mrb[0].mxu0
      %5525 = vmatprep.mubr.f32.mxu0 0.0
      %5526 = vmatmul.mubr.f32.gmra.mrb[0].mxu0 %v3855
      %v5527 = vpop.f32.mrb[0].mxu0
      %v5528 = vadd.f32 0.0, %v5527
      %v5529 = vpop.f32.mrb[0].mxu0
      %5530 = vmatprep.mubr.f32.mxu0 0.0
      %5531 = vmatmul.mubr.f32.gmra.mrb[0].mxu0 %v3858
      %v5532 = vpop.f32.mrb[0].mxu0
      %v5533 = vadd.f32 0.0, %v5532
      %v5534 = vpop.f32.mrb[0].mxu0
      %5535 = vmatprep.mubr.f32.mxu0 0.0
      %5536 = vmatmul.mubr.f32.gmra.mrb[0].mxu0 %v3861
      %v5537 = vpop.f32.mrb[0].mxu0
      %v5538 = vadd.f32 0.0, %v5537
      %v5539 = vpop.f32.mrb[0].mxu0
      %5540 = vmatprep.mubr.f32.mxu0 0.0
      %5541 = vmatmul.mubr.f32.gmra.mrb[0].mxu0 %v3864
      %v5542 = vpop.f32.mrb[0].mxu0
      %v5543 = vadd.f32 0.0, %v5542
      %v5544 = vpop.f32.mrb[0].mxu0
      %5545 = vmatprep.mubr.f32.mxu0 0.0
      %5546 = vmatmul.mubr.f32.gmra.mrb[0].mxu0 %v3867
      %v5547 = vpop.f32.mrb[0].mxu0
      %v5548 = vadd.f32 0.0, %v5547
      %v5549 = vpop.f32.mrb[0].mxu0
      %5550 = vmatprep.mubr.f32.mxu0 0.0
      %5551 = vmatmul.mubr.f32.gmra.mrb[0].mxu0 %v3870
      %v5552 = vpop.f32.mrb[0].mxu0
      %v5553 = vadd.f32 0.0, %v5552
      %v5554 = vpop.f32.mrb[0].mxu0
      %5555 = vmatprep.mubr.f32.mxu0 0.0
      %5556 = vmatmul.mubr.f32.gmra.mrb[0].mxu0 %v3873
      %v5557 = vpop.f32.mrb[0].mxu0
      %v5558 = vadd.f32 0.0, %v5557
      %v5559 = vpop.f32.mrb[0].mxu0
      %5560 = vmatprep.mubr.f32.mxu0 0.0
      %5561 = vmatmul.mubr.f32.gmra.mrb[0].mxu0 %v3876
      %v5562 = vpop.f32.mrb[0].mxu0
      %v5563 = vadd.f32 0.0, %v5562
      %v5564 = vpop.f32.mrb[0].mxu0
      %5565 = vmatprep.mubr.f32.mxu0 0.0
      %5566 = vmatmul.mubr.f32.gmra.mrb[0].mxu0 %v3879
      %v5567 = vpop.f32.mrb[0].mxu0
      %v5568 = vadd.f32 0.0, %v5567
      %v5569 = vpop.f32.mrb[0].mxu0
      %5570 = vmatprep.mubr.f32.mxu0 0.0
      %5571 = vmatmul.mubr.f32.gmra.mrb[0].mxu0 %v3882
      %v5572 = vpop.f32.mrb[0].mxu0
      %v5573 = vadd.f32 0.0, %v5572
      %v5574 = vpop.f32.mrb[0].mxu0
      %5575 = vmatprep.mubr.f32.mxu0 0.0
      %5576 = vmatmul.mubr.f32.gmra.mrb[0].mxu0 %v3885
      %v5577 = vpop.f32.mrb[0].mxu0
      %v5578 = vadd.f32 0.0, %v5577
      %v5579 = vpop.f32.mrb[0].mxu0
      %5580 = vmatprep.mubr.f32.mxu0 0.0
      %5581 = vmatmul.mubr.f32.gmra.mrb[0].mxu0 %v3888
      %v5582 = vpop.f32.mrb[0].mxu0
      %v5583 = vadd.f32 0.0, %v5582
      %v5584 = vpop.f32.mrb[0].mxu0
      %5585 = vmatprep.mubr.f32.mxu0 0.0
      %5586 = vmatmul.mubr.f32.gmra.mrb[0].mxu0 %v3891
      %v5587 = vpop.f32.mrb[0].mxu0
      %v5588 = vadd.f32 0.0, %v5587
      %v5589 = vpop.f32.mrb[0].mxu0
      %5590 = vmatprep.mubr.f32.mxu0 0.0
      %5591 = vmatmul.mubr.f32.gmra.mrb[0].mxu0 %v3894
      %v5592 = vpop.f32.mrb[0].mxu0
      %v5593 = vadd.f32 0.0, %v5592
      %v5594 = vpop.f32.mrb[0].mxu0
      %5595 = vmatprep.mubr.f32.mxu0 0.0
      %5596 = vmatmul.mubr.f32.gmra.mrb[0].mxu0 %v3897
      %v5597 = vpop.f32.mrb[0].mxu0
      %v5598 = vadd.f32 0.0, %v5597
      %v5599 = vpop.f32.mrb[0].mxu0
      %5600 = vmatprep.mubr.f32.mxu0 0.0
      %5601 = vmatmul.mubr.f32.gmra.mrb[0].mxu0 %v3900
      %v5602 = vpop.f32.mrb[0].mxu0
      %v5603 = vadd.f32 0.0, %v5602
      %v5604 = vpop.f32.mrb[0].mxu0
      %5605 = vmatprep.mubr.f32.mxu0 0.0
      %5606 = vmatmul.mubr.f32.gmra.mrb[0].mxu0 %v3903
      %v5607 = vpop.f32.mrb[0].mxu0
      %v5608 = vadd.f32 0.0, %v5607
      %v5609 = vpop.f32.mrb[0].mxu0
      %5610 = vmatprep.mubr.f32.mxu0 0.0
      %5611 = vmatmul.mubr.f32.gmra.mrb[0].mxu0 %v3906
      %v5612 = vpop.f32.mrb[0].mxu0
      %v5613 = vadd.f32 0.0, %v5612
      %v5614 = vpop.f32.mrb[0].mxu0
      %5615 = vmatprep.mubr.f32.mxu0 0.0
      %5616 = vmatmul.mubr.f32.gmra.mrb[0].mxu0 %v3909
      %v5617 = vpop.f32.mrb[0].mxu0
      %v5618 = vadd.f32 0.0, %v5617
      %v5619 = vpop.f32.mrb[0].mxu0
      %5620 = vmatprep.mubr.f32.mxu0 0.0
      %5621 = vmatmul.mubr.f32.gmra.mrb[0].mxu0 %v3912
      %v5622 = vpop.f32.mrb[0].mxu0
      %v5623 = vadd.f32 0.0, %v5622
      %v5624 = vpop.f32.mrb[0].mxu0
      %5625 = vdwg.mxu0
      %v5626 = vld [vmem:[%s224] sm:$0xff]
      %v5627 = vld [vmem:[%s224 + $0x8] sm:$0xff]
      %v5628 = vld [vmem:[%s224 + $0x10] sm:$0xff]
      %v5629 = vld [vmem:[%s224 + $0x18] sm:$0xff]
      %v5630 = vld [vmem:[%s224 + $0x20] sm:$0xff]
      %v5631 = vld [vmem:[%s224 + $0x28] sm:$0xff]
      %v5632 = vld [vmem:[%s224 + $0x30] sm:$0xff]
      %v5633 = vld [vmem:[%s224 + $0x38] sm:$0xff]
      %v5634 = vld [vmem:[%s224 + $0x40] sm:$0xff]
      %v5635 = vld [vmem:[%s224 + $0x48] sm:$0xff]
      %v5636 = vld [vmem:[%s224 + $0x50] sm:$0xff]
      %v5637 = vld [vmem:[%s224 + $0x58] sm:$0xff]
      %v5638 = vld [vmem:[%s224 + $0x60] sm:$0xff]
      %v5639 = vld [vmem:[%s224 + $0x68] sm:$0xff]
      %v5640 = vld [vmem:[%s224 + $0x70] sm:$0xff]
      %v5641 = vld [vmem:[%s224 + $0x78] sm:$0xff]
      %v5642 = vld [vmem:[%s224 + $0x80] sm:$0xff]
      %v5643 = vld [vmem:[%s224 + $0x88] sm:$0xff]
      %v5644 = vld [vmem:[%s224 + $0x90] sm:$0xff]
      %v5645 = vld [vmem:[%s224 + $0x98] sm:$0xff]
      %v5646 = vld [vmem:[%s224 + $0xa0] sm:$0xff]
      %v5647 = vld [vmem:[%s224 + $0xa8] sm:$0xff]
      %v5648 = vld [vmem:[%s224 + $0xb0] sm:$0xff]
      %v5649 = vld [vmem:[%s224 + $0xb8] sm:$0xff]
      %v5650 = vld [vmem:[%s224 + $0xc0] sm:$0xff]
      %v5651 = vld [vmem:[%s224 + $0xc8] sm:$0xff]
      %v5652 = vld [vmem:[%s224 + $0xd0] sm:$0xff]
      %v5653 = vld [vmem:[%s224 + $0xd8] sm:$0xff]
      %v5654 = vld [vmem:[%s224 + $0xe0] sm:$0xff]
      %v5655 = vld [vmem:[%s224 + $0xe8] sm:$0xff]
      %v5656 = vld [vmem:[%s224 + $0xf0] sm:$0xff]
      %v5657 = vld [vmem:[%s224 + $0xf8] sm:$0xff]
      %v5658 = vsub.f32 %v5626, %v5468
      %v5659 = vsub.f32 %v5627, %v5473
      %v5660 = vsub.f32 %v5628, %v5478
      %v5661 = vsub.f32 %v5629, %v5483
      %v5662 = vsub.f32 %v5630, %v5488
      %v5663 = vsub.f32 %v5631, %v5493
      %v5664 = vsub.f32 %v5632, %v5498
      %v5665 = vsub.f32 %v5633, %v5503
      %v5666 = vsub.f32 %v5634, %v5508
      %v5667 = vsub.f32 %v5635, %v5513
      %v5668 = vsub.f32 %v5636, %v5518
      %v5669 = vsub.f32 %v5637, %v5523
      %v5670 = vsub.f32 %v5638, %v5528
      %v5671 = vsub.f32 %v5639, %v5533
      %v5672 = vsub.f32 %v5640, %v5538
      %v5673 = vsub.f32 %v5641, %v5543
      %v5674 = vsub.f32 %v5642, %v5548
      %v5675 = vsub.f32 %v5643, %v5553
      %v5676 = vsub.f32 %v5644, %v5558
      %v5677 = vsub.f32 %v5645, %v5563
      %v5678 = vsub.f32 %v5646, %v5568
      %v5679 = vsub.f32 %v5647, %v5573
      %v5680 = vsub.f32 %v5648, %v5578
      %v5681 = vsub.f32 %v5649, %v5583
      %v5682 = vsub.f32 %v5650, %v5588
      %v5683 = vsub.f32 %v5651, %v5593
      %v5684 = vsub.f32 %v5652, %v5598
      %v5685 = vsub.f32 %v5653, %v5603
      %v5686 = vsub.f32 %v5654, %v5608
      %v5687 = vsub.f32 %v5655, %v5613
      %v5688 = vsub.f32 %v5656, %v5618
      %v5689 = vsub.f32 %v5657, %v5623
      %5690 = vst.msk [vmem:[%s224] sm:$0xff] %vm292, %v5658
      %5691 = vst.msk [vmem:[%s224 + $0x8] sm:$0xff] %vm292, %v5659
      %5692 = vst.msk [vmem:[%s224 + $0x10] sm:$0xff] %vm292, %v5660
      %5693 = vst.msk [vmem:[%s224 + $0x18] sm:$0xff] %vm292, %v5661
      %5694 = vst.msk [vmem:[%s224 + $0x20] sm:$0xff] %vm292, %v5662
      %5695 = vst.msk [vmem:[%s224 + $0x28] sm:$0xff] %vm292, %v5663
      %5696 = vst.msk [vmem:[%s224 + $0x30] sm:$0xff] %vm292, %v5664
      %5697 = vst.msk [vmem:[%s224 + $0x38] sm:$0xff] %vm292, %v5665
      %5698 = vst.msk [vmem:[%s224 + $0x40] sm:$0xff] %vm292, %v5666
      %5699 = vst.msk [vmem:[%s224 + $0x48] sm:$0xff] %vm292, %v5667
      %5700 = vst.msk [vmem:[%s224 + $0x50] sm:$0xff] %vm292, %v5668
      %5701 = vst.msk [vmem:[%s224 + $0x58] sm:$0xff] %vm292, %v5669
      %5702 = vst.msk [vmem:[%s224 + $0x60] sm:$0xff] %vm292, %v5670
      %5703 = vst.msk [vmem:[%s224 + $0x68] sm:$0xff] %vm292, %v5671
      %5704 = vst.msk [vmem:[%s224 + $0x70] sm:$0xff] %vm292, %v5672
      %5705 = vst.msk [vmem:[%s224 + $0x78] sm:$0xff] %vm292, %v5673
      %5706 = vst.msk [vmem:[%s224 + $0x80] sm:$0xff] %vm292, %v5674
      %5707 = vst.msk [vmem:[%s224 + $0x88] sm:$0xff] %vm292, %v5675
      %5708 = vst.msk [vmem:[%s224 + $0x90] sm:$0xff] %vm292, %v5676
      %5709 = vst.msk [vmem:[%s224 + $0x98] sm:$0xff] %vm292, %v5677
      %5710 = vst.msk [vmem:[%s224 + $0xa0] sm:$0xff] %vm292, %v5678
      %5711 = vst.msk [vmem:[%s224 + $0xa8] sm:$0xff] %vm292, %v5679
      %5712 = vst.msk [vmem:[%s224 + $0xb0] sm:$0xff] %vm292, %v5680
      %5713 = vst.msk [vmem:[%s224 + $0xb8] sm:$0xff] %vm292, %v5681
      %5714 = vst.msk [vmem:[%s224 + $0xc0] sm:$0xff] %vm292, %v5682
      %5715 = vst.msk [vmem:[%s224 + $0xc8] sm:$0xff] %vm292, %v5683
      %5716 = vst.msk [vmem:[%s224 + $0xd0] sm:$0xff] %vm292, %v5684
      %5717 = vst.msk [vmem:[%s224 + $0xd8] sm:$0xff] %vm292, %v5685
      %5718 = vst.msk [vmem:[%s224 + $0xe0] sm:$0xff] %vm292, %v5686
      %5719 = vst.msk [vmem:[%s224 + $0xe8] sm:$0xff] %vm292, %v5687
      %5720 = vst.msk [vmem:[%s224 + $0xf0] sm:$0xff] %vm292, %v5688
      %5721 = vst.msk [vmem:[%s224 + $0xf8] sm:$0xff] %vm292, %v5689
      %s5722 = scalar_lea.vmem %s3, 40
      %v5723 = vld [vmem:[%s5722] sm:$0xff]
      %5724 = vmatprep.subr.mxu0 0.0
      %5725 = vmatpush1.msra.mxu0 %v5723
      %5726 = vmatprep.subr.mxu0 0.0
      %5727 = vmatpush1.msra.mxu0 0.0
      %5728 = vmatprep.subr.mxu0 0.0
      %5729 = vmatpush1.msra.mxu0 0.0
      %5730 = vmatprep.subr.mxu0 0.0
      %5731 = vmatpush1.msra.mxu0 0.0
      %5732 = vmatprep.subr.mxu0 0.0
      %5733 = vmatpush1.msra.mxu0 0.0
      %5734 = vmatprep.subr.mxu0 0.0
      %5735 = vmatpush1.msra.mxu0 0.0
      %5736 = vmatprep.subr.mxu0 0.0
      %5737 = vmatpush1.msra.mxu0 0.0
      %5738 = vmatprep.subr.mxu0 0.0
      %5739 = vmatpush1.msra.mxu0 0.0
      %5740 = vmatprep.subr.mxu0 0.0
      %5741 = vmatpush1.msra.mxu0 0.0
      %5742 = vmatprep.subr.mxu0 0.0
      %5743 = vmatpush1.msra.mxu0 0.0
      %5744 = vmatprep.subr.mxu0 0.0
      %5745 = vmatpush1.msra.mxu0 0.0
      %5746 = vmatprep.subr.mxu0 0.0
      %5747 = vmatpush1.msra.mxu0 0.0
      %5748 = vmatprep.subr.mxu0 0.0
      %5749 = vmatpush1.msra.mxu0 0.0
      %5750 = vmatprep.subr.mxu0 0.0
      %5751 = vmatpush1.msra.mxu0 0.0
      %5752 = vmatprep.subr.mxu0 0.0
      %5753 = vmatpush1.msra.mxu0 0.0
      %5754 = vmatprep.subr.mxu0 0.0
      %5755 = vmatpush1.msra.mxu0 0.0
      %5756 = vmatprep.subr.mxu0 0.0
      %5757 = vmatpush1.msra.mxu0 0.0
      %5758 = vmatprep.subr.mxu0 0.0
      %5759 = vmatpush1.msra.mxu0 0.0
      %5760 = vmatprep.subr.mxu0 0.0
      %5761 = vmatpush1.msra.mxu0 0.0
      %5762 = vmatprep.subr.mxu0 0.0
      %5763 = vmatpush1.msra.mxu0 0.0
      %5764 = vmatprep.subr.mxu0 0.0
      %5765 = vmatpush1.msra.mxu0 0.0
      %5766 = vmatprep.subr.mxu0 0.0
      %5767 = vmatpush1.msra.mxu0 0.0
      %5768 = vmatprep.subr.mxu0 0.0
      %5769 = vmatpush1.msra.mxu0 0.0
      %5770 = vmatprep.subr.mxu0 0.0
      %5771 = vmatpush1.msra.mxu0 0.0
      %5772 = vmatprep.subr.mxu0 0.0
      %5773 = vmatpush1.msra.mxu0 0.0
      %5774 = vmatprep.subr.mxu0 0.0
      %5775 = vmatpush1.msra.mxu0 0.0
      %5776 = vmatprep.subr.mxu0 0.0
      %5777 = vmatpush1.msra.mxu0 0.0
      %5778 = vmatprep.subr.mxu0 0.0
      %5779 = vmatpush1.msra.mxu0 0.0
      %5780 = vmatprep.subr.mxu0 0.0
      %5781 = vmatpush1.msra.mxu0 0.0
      %5782 = vmatprep.subr.mxu0 0.0
      %5783 = vmatpush1.msra.mxu0 0.0
      %5784 = vmatprep.subr.mxu0 0.0
      %5785 = vmatpush1.msra.mxu0 0.0
      %5786 = vmatprep.subr.mxu0 0.0
      %5787 = vmatpush1.msra.mxu0 0.0
      %5788 = vmatprep.mubr.f32.mxu0 0.0
      %5789 = vmatmul.mubr.f32.gmra.mrb[0].mxu0 %v3819
      %v5790 = vpop.f32.mrb[0].mxu0
      %v5791 = vadd.f32 0.0, %v5790
      %v5792 = vpop.f32.mrb[0].mxu0
      %5793 = vmatprep.mubr.f32.mxu0 0.0
      %5794 = vmatmul.mubr.f32.gmra.mrb[0].mxu0 %v3822
      %v5795 = vpop.f32.mrb[0].mxu0
      %v5796 = vadd.f32 0.0, %v5795
      %v5797 = vpop.f32.mrb[0].mxu0
      %5798 = vmatprep.mubr.f32.mxu0 0.0
      %5799 = vmatmul.mubr.f32.gmra.mrb[0].mxu0 %v3825
      %v5800 = vpop.f32.mrb[0].mxu0
      %v5801 = vadd.f32 0.0, %v5800
      %v5802 = vpop.f32.mrb[0].mxu0
      %5803 = vmatprep.mubr.f32.mxu0 0.0
      %5804 = vmatmul.mubr.f32.gmra.mrb[0].mxu0 %v3828
      %v5805 = vpop.f32.mrb[0].mxu0
      %v5806 = vadd.f32 0.0, %v5805
      %v5807 = vpop.f32.mrb[0].mxu0
      %5808 = vmatprep.mubr.f32.mxu0 0.0
      %5809 = vmatmul.mubr.f32.gmra.mrb[0].mxu0 %v3831
      %v5810 = vpop.f32.mrb[0].mxu0
      %v5811 = vadd.f32 0.0, %v5810
      %v5812 = vpop.f32.mrb[0].mxu0
      %5813 = vmatprep.mubr.f32.mxu0 0.0
      %5814 = vmatmul.mubr.f32.gmra.mrb[0].mxu0 %v3834
      %v5815 = vpop.f32.mrb[0].mxu0
      %v5816 = vadd.f32 0.0, %v5815
      %v5817 = vpop.f32.mrb[0].mxu0
      %5818 = vmatprep.mubr.f32.mxu0 0.0
      %5819 = vmatmul.mubr.f32.gmra.mrb[0].mxu0 %v3837
      %v5820 = vpop.f32.mrb[0].mxu0
      %v5821 = vadd.f32 0.0, %v5820
      %v5822 = vpop.f32.mrb[0].mxu0
      %5823 = vmatprep.mubr.f32.mxu0 0.0
      %5824 = vmatmul.mubr.f32.gmra.mrb[0].mxu0 %v3840
      %v5825 = vpop.f32.mrb[0].mxu0
      %v5826 = vadd.f32 0.0, %v5825
      %v5827 = vpop.f32.mrb[0].mxu0
      %5828 = vmatprep.mubr.f32.mxu0 0.0
      %5829 = vmatmul.mubr.f32.gmra.mrb[0].mxu0 %v3843
      %v5830 = vpop.f32.mrb[0].mxu0
      %v5831 = vadd.f32 0.0, %v5830
      %v5832 = vpop.f32.mrb[0].mxu0
      %5833 = vmatprep.mubr.f32.mxu0 0.0
      %5834 = vmatmul.mubr.f32.gmra.mrb[0].mxu0 %v3846
      %v5835 = vpop.f32.mrb[0].mxu0
      %v5836 = vadd.f32 0.0, %v5835
      %v5837 = vpop.f32.mrb[0].mxu0
      %5838 = vmatprep.mubr.f32.mxu0 0.0
      %5839 = vmatmul.mubr.f32.gmra.mrb[0].mxu0 %v3849
      %v5840 = vpop.f32.mrb[0].mxu0
      %v5841 = vadd.f32 0.0, %v5840
      %v5842 = vpop.f32.mrb[0].mxu0
      %5843 = vmatprep.mubr.f32.mxu0 0.0
      %5844 = vmatmul.mubr.f32.gmra.mrb[0].mxu0 %v3852
      %v5845 = vpop.f32.mrb[0].mxu0
      %v5846 = vadd.f32 0.0, %v5845
      %v5847 = vpop.f32.mrb[0].mxu0
      %5848 = vmatprep.mubr.f32.mxu0 0.0
      %5849 = vmatmul.mubr.f32.gmra.mrb[0].mxu0 %v3855
      %v5850 = vpop.f32.mrb[0].mxu0
      %v5851 = vadd.f32 0.0, %v5850
      %v5852 = vpop.f32.mrb[0].mxu0
      %5853 = vmatprep.mubr.f32.mxu0 0.0
      %5854 = vmatmul.mubr.f32.gmra.mrb[0].mxu0 %v3858
      %v5855 = vpop.f32.mrb[0].mxu0
      %v5856 = vadd.f32 0.0, %v5855
      %v5857 = vpop.f32.mrb[0].mxu0
      %5858 = vmatprep.mubr.f32.mxu0 0.0
      %5859 = vmatmul.mubr.f32.gmra.mrb[0].mxu0 %v3861
      %v5860 = vpop.f32.mrb[0].mxu0
      %v5861 = vadd.f32 0.0, %v5860
      %v5862 = vpop.f32.mrb[0].mxu0
      %5863 = vmatprep.mubr.f32.mxu0 0.0
      %5864 = vmatmul.mubr.f32.gmra.mrb[0].mxu0 %v3864
      %v5865 = vpop.f32.mrb[0].mxu0
      %v5866 = vadd.f32 0.0, %v5865
      %v5867 = vpop.f32.mrb[0].mxu0
      %5868 = vmatprep.mubr.f32.mxu0 0.0
      %5869 = vmatmul.mubr.f32.gmra.mrb[0].mxu0 %v3867
      %v5870 = vpop.f32.mrb[0].mxu0
      %v5871 = vadd.f32 0.0, %v5870
      %v5872 = vpop.f32.mrb[0].mxu0
      %5873 = vmatprep.mubr.f32.mxu0 0.0
      %5874 = vmatmul.mubr.f32.gmra.mrb[0].mxu0 %v3870
      %v5875 = vpop.f32.mrb[0].mxu0
      %v5876 = vadd.f32 0.0, %v5875
      %v5877 = vpop.f32.mrb[0].mxu0
      %5878 = vmatprep.mubr.f32.mxu0 0.0
      %5879 = vmatmul.mubr.f32.gmra.mrb[0].mxu0 %v3873
      %v5880 = vpop.f32.mrb[0].mxu0
      %v5881 = vadd.f32 0.0, %v5880
      %v5882 = vpop.f32.mrb[0].mxu0
      %5883 = vmatprep.mubr.f32.mxu0 0.0
      %5884 = vmatmul.mubr.f32.gmra.mrb[0].mxu0 %v3876
      %v5885 = vpop.f32.mrb[0].mxu0
      %v5886 = vadd.f32 0.0, %v5885
      %v5887 = vpop.f32.mrb[0].mxu0
      %5888 = vmatprep.mubr.f32.mxu0 0.0
      %5889 = vmatmul.mubr.f32.gmra.mrb[0].mxu0 %v3879
      %v5890 = vpop.f32.mrb[0].mxu0
      %v5891 = vadd.f32 0.0, %v5890
      %v5892 = vpop.f32.mrb[0].mxu0
      %5893 = vmatprep.mubr.f32.mxu0 0.0
      %5894 = vmatmul.mubr.f32.gmra.mrb[0].mxu0 %v3882
      %v5895 = vpop.f32.mrb[0].mxu0
      %v5896 = vadd.f32 0.0, %v5895
      %v5897 = vpop.f32.mrb[0].mxu0
      %5898 = vmatprep.mubr.f32.mxu0 0.0
      %5899 = vmatmul.mubr.f32.gmra.mrb[0].mxu0 %v3885
      %v5900 = vpop.f32.mrb[0].mxu0
      %v5901 = vadd.f32 0.0, %v5900
      %v5902 = vpop.f32.mrb[0].mxu0
      %5903 = vmatprep.mubr.f32.mxu0 0.0
      %5904 = vmatmul.mubr.f32.gmra.mrb[0].mxu0 %v3888
      %v5905 = vpop.f32.mrb[0].mxu0
      %v5906 = vadd.f32 0.0, %v5905
      %v5907 = vpop.f32.mrb[0].mxu0
      %5908 = vmatprep.mubr.f32.mxu0 0.0
      %5909 = vmatmul.mubr.f32.gmra.mrb[0].mxu0 %v3891
      %v5910 = vpop.f32.mrb[0].mxu0
      %v5911 = vadd.f32 0.0, %v5910
      %v5912 = vpop.f32.mrb[0].mxu0
      %5913 = vmatprep.mubr.f32.mxu0 0.0
      %5914 = vmatmul.mubr.f32.gmra.mrb[0].mxu0 %v3894
      %v5915 = vpop.f32.mrb[0].mxu0
      %v5916 = vadd.f32 0.0, %v5915
      %v5917 = vpop.f32.mrb[0].mxu0
      %5918 = vmatprep.mubr.f32.mxu0 0.0
      %5919 = vmatmul.mubr.f32.gmra.mrb[0].mxu0 %v3897
      %v5920 = vpop.f32.mrb[0].mxu0
      %v5921 = vadd.f32 0.0, %v5920
      %v5922 = vpop.f32.mrb[0].mxu0
      %5923 = vmatprep.mubr.f32.mxu0 0.0
      %5924 = vmatmul.mubr.f32.gmra.mrb[0].mxu0 %v3900
      %v5925 = vpop.f32.mrb[0].mxu0
      %v5926 = vadd.f32 0.0, %v5925
      %v5927 = vpop.f32.mrb[0].mxu0
      %5928 = vmatprep.mubr.f32.mxu0 0.0
      %5929 = vmatmul.mubr.f32.gmra.mrb[0].mxu0 %v3903
      %v5930 = vpop.f32.mrb[0].mxu0
      %v5931 = vadd.f32 0.0, %v5930
      %v5932 = vpop.f32.mrb[0].mxu0
      %5933 = vmatprep.mubr.f32.mxu0 0.0
      %5934 = vmatmul.mubr.f32.gmra.mrb[0].mxu0 %v3906
      %v5935 = vpop.f32.mrb[0].mxu0
      %v5936 = vadd.f32 0.0, %v5935
      %v5937 = vpop.f32.mrb[0].mxu0
      %5938 = vmatprep.mubr.f32.mxu0 0.0
      %5939 = vmatmul.mubr.f32.gmra.mrb[0].mxu0 %v3909
      %v5940 = vpop.f32.mrb[0].mxu0
      %v5941 = vadd.f32 0.0, %v5940
      %v5942 = vpop.f32.mrb[0].mxu0
      %5943 = vmatprep.mubr.f32.mxu0 0.0
      %5944 = vmatmul.mubr.f32.gmra.mrb[0].mxu0 %v3912
      %v5945 = vpop.f32.mrb[0].mxu0
      %v5946 = vadd.f32 0.0, %v5945
      %v5947 = vpop.f32.mrb[0].mxu0
      %5948 = vdwg.mxu0
      %v5949 = vld [vmem:[%s224 + $0x1] sm:$0xff]
      %v5950 = vld [vmem:[%s224 + $0x9] sm:$0x7f]
      %v5951 = vld [vmem:[%s224 + $0x11] sm:$0xff]
      %v5952 = vld [vmem:[%s224 + $0x19] sm:$0x7f]
      %v5953 = vld [vmem:[%s224 + $0x21] sm:$0xff]
      %v5954 = vld [vmem:[%s224 + $0x29] sm:$0x7f]
      %v5955 = vld [vmem:[%s224 + $0x31] sm:$0xff]
      %v5956 = vld [vmem:[%s224 + $0x39] sm:$0x7f]
      %v5957 = vld [vmem:[%s224 + $0x41] sm:$0xff]
      %v5958 = vld [vmem:[%s224 + $0x49] sm:$0x7f]
      %v5959 = vld [vmem:[%s224 + $0x51] sm:$0xff]
      %v5960 = vld [vmem:[%s224 + $0x59] sm:$0x7f]
      %v5961 = vld [vmem:[%s224 + $0x61] sm:$0xff]
      %v5962 = vld [vmem:[%s224 + $0x69] sm:$0x7f]
      %v5963 = vld [vmem:[%s224 + $0x71] sm:$0xff]
      %v5964 = vld [vmem:[%s224 + $0x79] sm:$0x7f]
      %v5965 = vld [vmem:[%s224 + $0x81] sm:$0xff]
      %v5966 = vld [vmem:[%s224 + $0x89] sm:$0x7f]
      %v5967 = vld [vmem:[%s224 + $0x91] sm:$0xff]
      %v5968 = vld [vmem:[%s224 + $0x99] sm:$0x7f]
      %v5969 = vld [vmem:[%s224 + $0xa1] sm:$0xff]
      %v5970 = vld [vmem:[%s224 + $0xa9] sm:$0x7f]
      %v5971 = vld [vmem:[%s224 + $0xb1] sm:$0xff]
      %v5972 = vld [vmem:[%s224 + $0xb9] sm:$0x7f]
      %v5973 = vld [vmem:[%s224 + $0xc1] sm:$0xff]
      %v5974 = vld [vmem:[%s224 + $0xc9] sm:$0x7f]
      %v5975 = vld [vmem:[%s224 + $0xd1] sm:$0xff]
      %v5976 = vld [vmem:[%s224 + $0xd9] sm:$0x7f]
      %v5977 = vld [vmem:[%s224 + $0xe1] sm:$0xff]
      %v5978 = vld [vmem:[%s224 + $0xe9] sm:$0x7f]
      %v5979 = vld [vmem:[%s224 + $0xf1] sm:$0xff]
      %v5980 = vld [vmem:[%s224 + $0xf9] sm:$0x7f]
      %v5981 = vsub.f32 %v5949, %v5791
      %v5982 = vsub.f32 %v5950, %v5796
      %v5983 = vsub.f32 %v5951, %v5801
      %v5984 = vsub.f32 %v5952, %v5806
      %v5985 = vsub.f32 %v5953, %v5811
      %v5986 = vsub.f32 %v5954, %v5816
      %v5987 = vsub.f32 %v5955, %v5821
      %v5988 = vsub.f32 %v5956, %v5826
      %v5989 = vsub.f32 %v5957, %v5831
      %v5990 = vsub.f32 %v5958, %v5836
      %v5991 = vsub.f32 %v5959, %v5841
      %v5992 = vsub.f32 %v5960, %v5846
      %v5993 = vsub.f32 %v5961, %v5851
      %v5994 = vsub.f32 %v5962, %v5856
      %v5995 = vsub.f32 %v5963, %v5861
      %v5996 = vsub.f32 %v5964, %v5866
      %v5997 = vsub.f32 %v5965, %v5871
      %v5998 = vsub.f32 %v5966, %v5876
      %v5999 = vsub.f32 %v5967, %v5881
      %v6000 = vsub.f32 %v5968, %v5886
      %v6001 = vsub.f32 %v5969, %v5891
      %v6002 = vsub.f32 %v5970, %v5896
      %v6003 = vsub.f32 %v5971, %v5901
      %v6004 = vsub.f32 %v5972, %v5906
      %v6005 = vsub.f32 %v5973, %v5911
      %v6006 = vsub.f32 %v5974, %v5916
      %v6007 = vsub.f32 %v5975, %v5921
      %v6008 = vsub.f32 %v5976, %v5926
      %v6009 = vsub.f32 %v5977, %v5931
      %v6010 = vsub.f32 %v5978, %v5936
      %v6011 = vsub.f32 %v5979, %v5941
      %v6012 = vsub.f32 %v5980, %v5946
      %6013 = vst.msk [vmem:[%s224 + $0x1] sm:$0xff] %vm292, %v5981
      %6014 = vst.msk [vmem:[%s224 + $0x9] sm:$0x7f] %vm4304, %v5982
      %6015 = vst.msk [vmem:[%s224 + $0x11] sm:$0xff] %vm292, %v5983
      %6016 = vst.msk [vmem:[%s224 + $0x19] sm:$0x7f] %vm4304, %v5984
      %6017 = vst.msk [vmem:[%s224 + $0x21] sm:$0xff] %vm292, %v5985
      %6018 = vst.msk [vmem:[%s224 + $0x29] sm:$0x7f] %vm4304, %v5986
      %6019 = vst.msk [vmem:[%s224 + $0x31] sm:$0xff] %vm292, %v5987
      %6020 = vst.msk [vmem:[%s224 + $0x39] sm:$0x7f] %vm4304, %v5988
      %6021 = vst.msk [vmem:[%s224 + $0x41] sm:$0xff] %vm292, %v5989
      %6022 = vst.msk [vmem:[%s224 + $0x49] sm:$0x7f] %vm4304, %v5990
      %6023 = vst.msk [vmem:[%s224 + $0x51] sm:$0xff] %vm292, %v5991
      %6024 = vst.msk [vmem:[%s224 + $0x59] sm:$0x7f] %vm4304, %v5992
      %6025 = vst.msk [vmem:[%s224 + $0x61] sm:$0xff] %vm292, %v5993
      %6026 = vst.msk [vmem:[%s224 + $0x69] sm:$0x7f] %vm4304, %v5994
      %6027 = vst.msk [vmem:[%s224 + $0x71] sm:$0xff] %vm292, %v5995
      %6028 = vst.msk [vmem:[%s224 + $0x79] sm:$0x7f] %vm4304, %v5996
      %6029 = vst.msk [vmem:[%s224 + $0x81] sm:$0xff] %vm292, %v5997
      %6030 = vst.msk [vmem:[%s224 + $0x89] sm:$0x7f] %vm4304, %v5998
      %6031 = vst.msk [vmem:[%s224 + $0x91] sm:$0xff] %vm292, %v5999
      %6032 = vst.msk [vmem:[%s224 + $0x99] sm:$0x7f] %vm4304, %v6000
      %6033 = vst.msk [vmem:[%s224 + $0xa1] sm:$0xff] %vm292, %v6001
      %6034 = vst.msk [vmem:[%s224 + $0xa9] sm:$0x7f] %vm4304, %v6002
      %6035 = vst.msk [vmem:[%s224 + $0xb1] sm:$0xff] %vm292, %v6003
      %6036 = vst.msk [vmem:[%s224 + $0xb9] sm:$0x7f] %vm4304, %v6004
      %6037 = vst.msk [vmem:[%s224 + $0xc1] sm:$0xff] %vm292, %v6005
      %6038 = vst.msk [vmem:[%s224 + $0xc9] sm:$0x7f] %vm4304, %v6006
      %6039 = vst.msk [vmem:[%s224 + $0xd1] sm:$0xff] %vm292, %v6007
      %6040 = vst.msk [vmem:[%s224 + $0xd9] sm:$0x7f] %vm4304, %v6008
      %6041 = vst.msk [vmem:[%s224 + $0xe1] sm:$0xff] %vm292, %v6009
      %6042 = vst.msk [vmem:[%s224 + $0xe9] sm:$0x7f] %vm4304, %v6010
      %6043 = vst.msk [vmem:[%s224 + $0xf1] sm:$0xff] %vm292, %v6011
      %6044 = vst.msk [vmem:[%s224 + $0xf9] sm:$0x7f] %vm4304, %v6012
      %s6045 = scalar_lea.vmem %s3, 48
      %v6046 = vld [vmem:[%s6045] sm:$0xff]
      %6047 = vmatprep.subr.mxu0 0.0
      %6048 = vmatpush1.msra.mxu0 %v6046
      %6049 = vmatprep.subr.mxu0 0.0
      %6050 = vmatpush1.msra.mxu0 0.0
      %6051 = vmatprep.subr.mxu0 0.0
      %6052 = vmatpush1.msra.mxu0 0.0
      %6053 = vmatprep.subr.mxu0 0.0
      %6054 = vmatpush1.msra.mxu0 0.0
      %6055 = vmatprep.subr.mxu0 0.0
      %6056 = vmatpush1.msra.mxu0 0.0
      %6057 = vmatprep.subr.mxu0 0.0
      %6058 = vmatpush1.msra.mxu0 0.0
      %6059 = vmatprep.subr.mxu0 0.0
      %6060 = vmatpush1.msra.mxu0 0.0
      %6061 = vmatprep.subr.mxu0 0.0
      %6062 = vmatpush1.msra.mxu0 0.0
      %6063 = vmatprep.subr.mxu0 0.0
      %6064 = vmatpush1.msra.mxu0 0.0
      %6065 = vmatprep.subr.mxu0 0.0
      %6066 = vmatpush1.msra.mxu0 0.0
      %6067 = vmatprep.subr.mxu0 0.0
      %6068 = vmatpush1.msra.mxu0 0.0
      %6069 = vmatprep.subr.mxu0 0.0
      %6070 = vmatpush1.msra.mxu0 0.0
      %6071 = vmatprep.subr.mxu0 0.0
      %6072 = vmatpush1.msra.mxu0 0.0
      %6073 = vmatprep.subr.mxu0 0.0
      %6074 = vmatpush1.msra.mxu0 0.0
      %6075 = vmatprep.subr.mxu0 0.0
      %6076 = vmatpush1.msra.mxu0 0.0
      %6077 = vmatprep.subr.mxu0 0.0
      %6078 = vmatpush1.msra.mxu0 0.0
      %6079 = vmatprep.subr.mxu0 0.0
      %6080 = vmatpush1.msra.mxu0 0.0
      %6081 = vmatprep.subr.mxu0 0.0
      %6082 = vmatpush1.msra.mxu0 0.0
      %6083 = vmatprep.subr.mxu0 0.0
      %6084 = vmatpush1.msra.mxu0 0.0
      %6085 = vmatprep.subr.mxu0 0.0
      %6086 = vmatpush1.msra.mxu0 0.0
      %6087 = vmatprep.subr.mxu0 0.0
      %6088 = vmatpush1.msra.mxu0 0.0
      %6089 = vmatprep.subr.mxu0 0.0
      %6090 = vmatpush1.msra.mxu0 0.0
      %6091 = vmatprep.subr.mxu0 0.0
      %6092 = vmatpush1.msra.mxu0 0.0
      %6093 = vmatprep.subr.mxu0 0.0
      %6094 = vmatpush1.msra.mxu0 0.0
      %6095 = vmatprep.subr.mxu0 0.0
      %6096 = vmatpush1.msra.mxu0 0.0
      %6097 = vmatprep.subr.mxu0 0.0
      %6098 = vmatpush1.msra.mxu0 0.0
      %6099 = vmatprep.subr.mxu0 0.0
      %6100 = vmatpush1.msra.mxu0 0.0
      %6101 = vmatprep.subr.mxu0 0.0
      %6102 = vmatpush1.msra.mxu0 0.0
      %6103 = vmatprep.subr.mxu0 0.0
      %6104 = vmatpush1.msra.mxu0 0.0
      %6105 = vmatprep.subr.mxu0 0.0
      %6106 = vmatpush1.msra.mxu0 0.0
      %6107 = vmatprep.subr.mxu0 0.0
      %6108 = vmatpush1.msra.mxu0 0.0
      %6109 = vmatprep.subr.mxu0 0.0
      %6110 = vmatpush1.msra.mxu0 0.0
      %6111 = vmatprep.mubr.f32.mxu0 0.0
      %6112 = vmatmul.mubr.f32.gmra.mrb[0].mxu0 %v3819
      %v6113 = vpop.f32.mrb[0].mxu0
      %v6114 = vadd.f32 0.0, %v6113
      %v6115 = vpop.f32.mrb[0].mxu0
      %6116 = vmatprep.mubr.f32.mxu0 0.0
      %6117 = vmatmul.mubr.f32.gmra.mrb[0].mxu0 %v3822
      %v6118 = vpop.f32.mrb[0].mxu0
      %v6119 = vadd.f32 0.0, %v6118
      %v6120 = vpop.f32.mrb[0].mxu0
      %6121 = vmatprep.mubr.f32.mxu0 0.0
      %6122 = vmatmul.mubr.f32.gmra.mrb[0].mxu0 %v3825
      %v6123 = vpop.f32.mrb[0].mxu0
      %v6124 = vadd.f32 0.0, %v6123
      %v6125 = vpop.f32.mrb[0].mxu0
      %6126 = vmatprep.mubr.f32.mxu0 0.0
      %6127 = vmatmul.mubr.f32.gmra.mrb[0].mxu0 %v3828
      %v6128 = vpop.f32.mrb[0].mxu0
      %v6129 = vadd.f32 0.0, %v6128
      %v6130 = vpop.f32.mrb[0].mxu0
      %6131 = vmatprep.mubr.f32.mxu0 0.0
      %6132 = vmatmul.mubr.f32.gmra.mrb[0].mxu0 %v3831
      %v6133 = vpop.f32.mrb[0].mxu0
      %v6134 = vadd.f32 0.0, %v6133
      %v6135 = vpop.f32.mrb[0].mxu0
      %6136 = vmatprep.mubr.f32.mxu0 0.0
      %6137 = vmatmul.mubr.f32.gmra.mrb[0].mxu0 %v3834
      %v6138 = vpop.f32.mrb[0].mxu0
      %v6139 = vadd.f32 0.0, %v6138
      %v6140 = vpop.f32.mrb[0].mxu0
      %6141 = vmatprep.mubr.f32.mxu0 0.0
      %6142 = vmatmul.mubr.f32.gmra.mrb[0].mxu0 %v3837
      %v6143 = vpop.f32.mrb[0].mxu0
      %v6144 = vadd.f32 0.0, %v6143
      %v6145 = vpop.f32.mrb[0].mxu0
      %6146 = vmatprep.mubr.f32.mxu0 0.0
      %6147 = vmatmul.mubr.f32.gmra.mrb[0].mxu0 %v3840
      %v6148 = vpop.f32.mrb[0].mxu0
      %v6149 = vadd.f32 0.0, %v6148
      %v6150 = vpop.f32.mrb[0].mxu0
      %6151 = vmatprep.mubr.f32.mxu0 0.0
      %6152 = vmatmul.mubr.f32.gmra.mrb[0].mxu0 %v3843
      %v6153 = vpop.f32.mrb[0].mxu0
      %v6154 = vadd.f32 0.0, %v6153
      %v6155 = vpop.f32.mrb[0].mxu0
      %6156 = vmatprep.mubr.f32.mxu0 0.0
      %6157 = vmatmul.mubr.f32.gmra.mrb[0].mxu0 %v3846
      %v6158 = vpop.f32.mrb[0].mxu0
      %v6159 = vadd.f32 0.0, %v6158
      %v6160 = vpop.f32.mrb[0].mxu0
      %6161 = vmatprep.mubr.f32.mxu0 0.0
      %6162 = vmatmul.mubr.f32.gmra.mrb[0].mxu0 %v3849
      %v6163 = vpop.f32.mrb[0].mxu0
      %v6164 = vadd.f32 0.0, %v6163
      %v6165 = vpop.f32.mrb[0].mxu0
      %6166 = vmatprep.mubr.f32.mxu0 0.0
      %6167 = vmatmul.mubr.f32.gmra.mrb[0].mxu0 %v3852
      %v6168 = vpop.f32.mrb[0].mxu0
      %v6169 = vadd.f32 0.0, %v6168
      %v6170 = vpop.f32.mrb[0].mxu0
      %6171 = vmatprep.mubr.f32.mxu0 0.0
      %6172 = vmatmul.mubr.f32.gmra.mrb[0].mxu0 %v3855
      %v6173 = vpop.f32.mrb[0].mxu0
      %v6174 = vadd.f32 0.0, %v6173
      %v6175 = vpop.f32.mrb[0].mxu0
      %6176 = vmatprep.mubr.f32.mxu0 0.0
      %6177 = vmatmul.mubr.f32.gmra.mrb[0].mxu0 %v3858
      %v6178 = vpop.f32.mrb[0].mxu0
      %v6179 = vadd.f32 0.0, %v6178
      %v6180 = vpop.f32.mrb[0].mxu0
      %6181 = vmatprep.mubr.f32.mxu0 0.0
      %6182 = vmatmul.mubr.f32.gmra.mrb[0].mxu0 %v3861
      %v6183 = vpop.f32.mrb[0].mxu0
      %v6184 = vadd.f32 0.0, %v6183
      %v6185 = vpop.f32.mrb[0].mxu0
      %6186 = vmatprep.mubr.f32.mxu0 0.0
      %6187 = vmatmul.mubr.f32.gmra.mrb[0].mxu0 %v3864
      %v6188 = vpop.f32.mrb[0].mxu0
      %v6189 = vadd.f32 0.0, %v6188
      %v6190 = vpop.f32.mrb[0].mxu0
      %6191 = vmatprep.mubr.f32.mxu0 0.0
      %6192 = vmatmul.mubr.f32.gmra.mrb[0].mxu0 %v3867
      %v6193 = vpop.f32.mrb[0].mxu0
      %v6194 = vadd.f32 0.0, %v6193
      %v6195 = vpop.f32.mrb[0].mxu0
      %6196 = vmatprep.mubr.f32.mxu0 0.0
      %6197 = vmatmul.mubr.f32.gmra.mrb[0].mxu0 %v3870
      %v6198 = vpop.f32.mrb[0].mxu0
      %v6199 = vadd.f32 0.0, %v6198
      %v6200 = vpop.f32.mrb[0].mxu0
      %6201 = vmatprep.mubr.f32.mxu0 0.0
      %6202 = vmatmul.mubr.f32.gmra.mrb[0].mxu0 %v3873
      %v6203 = vpop.f32.mrb[0].mxu0
      %v6204 = vadd.f32 0.0, %v6203
      %v6205 = vpop.f32.mrb[0].mxu0
      %6206 = vmatprep.mubr.f32.mxu0 0.0
      %6207 = vmatmul.mubr.f32.gmra.mrb[0].mxu0 %v3876
      %v6208 = vpop.f32.mrb[0].mxu0
      %v6209 = vadd.f32 0.0, %v6208
      %v6210 = vpop.f32.mrb[0].mxu0
      %6211 = vmatprep.mubr.f32.mxu0 0.0
      %6212 = vmatmul.mubr.f32.gmra.mrb[0].mxu0 %v3879
      %v6213 = vpop.f32.mrb[0].mxu0
      %v6214 = vadd.f32 0.0, %v6213
      %v6215 = vpop.f32.mrb[0].mxu0
      %6216 = vmatprep.mubr.f32.mxu0 0.0
      %6217 = vmatmul.mubr.f32.gmra.mrb[0].mxu0 %v3882
      %v6218 = vpop.f32.mrb[0].mxu0
      %v6219 = vadd.f32 0.0, %v6218
      %v6220 = vpop.f32.mrb[0].mxu0
      %6221 = vmatprep.mubr.f32.mxu0 0.0
      %6222 = vmatmul.mubr.f32.gmra.mrb[0].mxu0 %v3885
      %v6223 = vpop.f32.mrb[0].mxu0
      %v6224 = vadd.f32 0.0, %v6223
      %v6225 = vpop.f32.mrb[0].mxu0
      %6226 = vmatprep.mubr.f32.mxu0 0.0
      %6227 = vmatmul.mubr.f32.gmra.mrb[0].mxu0 %v3888
      %v6228 = vpop.f32.mrb[0].mxu0
      %v6229 = vadd.f32 0.0, %v6228
      %v6230 = vpop.f32.mrb[0].mxu0
      %6231 = vmatprep.mubr.f32.mxu0 0.0
      %6232 = vmatmul.mubr.f32.gmra.mrb[0].mxu0 %v3891
      %v6233 = vpop.f32.mrb[0].mxu0
      %v6234 = vadd.f32 0.0, %v6233
      %v6235 = vpop.f32.mrb[0].mxu0
      %6236 = vmatprep.mubr.f32.mxu0 0.0
      %6237 = vmatmul.mubr.f32.gmra.mrb[0].mxu0 %v3894
      %v6238 = vpop.f32.mrb[0].mxu0
      %v6239 = vadd.f32 0.0, %v6238
      %v6240 = vpop.f32.mrb[0].mxu0
      %6241 = vmatprep.mubr.f32.mxu0 0.0
      %6242 = vmatmul.mubr.f32.gmra.mrb[0].mxu0 %v3897
      %v6243 = vpop.f32.mrb[0].mxu0
      %v6244 = vadd.f32 0.0, %v6243
      %v6245 = vpop.f32.mrb[0].mxu0
      %6246 = vmatprep.mubr.f32.mxu0 0.0
      %6247 = vmatmul.mubr.f32.gmra.mrb[0].mxu0 %v3900
      %v6248 = vpop.f32.mrb[0].mxu0
      %v6249 = vadd.f32 0.0, %v6248
      %v6250 = vpop.f32.mrb[0].mxu0
      %6251 = vmatprep.mubr.f32.mxu0 0.0
      %6252 = vmatmul.mubr.f32.gmra.mrb[0].mxu0 %v3903
      %v6253 = vpop.f32.mrb[0].mxu0
      %v6254 = vadd.f32 0.0, %v6253
      %v6255 = vpop.f32.mrb[0].mxu0
      %6256 = vmatprep.mubr.f32.mxu0 0.0
      %6257 = vmatmul.mubr.f32.gmra.mrb[0].mxu0 %v3906
      %v6258 = vpop.f32.mrb[0].mxu0
      %v6259 = vadd.f32 0.0, %v6258
      %v6260 = vpop.f32.mrb[0].mxu0
      %6261 = vmatprep.mubr.f32.mxu0 0.0
      %6262 = vmatmul.mubr.f32.gmra.mrb[0].mxu0 %v3909
      %v6263 = vpop.f32.mrb[0].mxu0
      %v6264 = vpop.f32.mrb[0].mxu0
      %6265 = vmatprep.mubr.f32.mxu0 0.0
      %6266 = vmatmul.mubr.f32.gmra.mrb[0].mxu0 %v3912
      %v6267 = vpop.f32.mrb[0].mxu0
      %v6268 = vpop.f32.mrb[0].mxu0
      %6269 = vdwg.mxu0
      %s6270 = scalar_lea.vmem %s224, 16
      %v6271 = vld [vmem:[%s6270] sm:$0xff]
      %v6272 = vld [vmem:[%s6270 + $0x8] sm:$0x7f]
      %v6273 = vld [vmem:[%s6270 + $0x10] sm:$0xff]
      %v6274 = vld [vmem:[%s6270 + $0x18] sm:$0x7f]
      %v6275 = vld [vmem:[%s6270 + $0x20] sm:$0xff]
      %v6276 = vld [vmem:[%s6270 + $0x28] sm:$0x7f]
      %v6277 = vld [vmem:[%s6270 + $0x30] sm:$0xff]
      %v6278 = vld [vmem:[%s6270 + $0x38] sm:$0x7f]
      %v6279 = vld [vmem:[%s6270 + $0x40] sm:$0xff]
      %v6280 = vld [vmem:[%s6270 + $0x48] sm:$0x7f]
      %v6281 = vld [vmem:[%s6270 + $0x50] sm:$0xff]
      %v6282 = vld [vmem:[%s6270 + $0x58] sm:$0x7f]
      %v6283 = vld [vmem:[%s6270 + $0x60] sm:$0xff]
      %v6284 = vld [vmem:[%s6270 + $0x68] sm:$0x7f]
      %v6285 = vld [vmem:[%s6270 + $0x70] sm:$0xff]
      %v6286 = vld [vmem:[%s6270 + $0x78] sm:$0x7f]
      %v6287 = vld [vmem:[%s6270 + $0x80] sm:$0xff]
      %v6288 = vld [vmem:[%s6270 + $0x88] sm:$0x7f]
      %v6289 = vld [vmem:[%s6270 + $0x90] sm:$0xff]
      %v6290 = vld [vmem:[%s6270 + $0x98] sm:$0x7f]
      %v6291 = vld [vmem:[%s6270 + $0xa0] sm:$0xff]
      %v6292 = vld [vmem:[%s6270 + $0xa8] sm:$0x7f]
      %v6293 = vld [vmem:[%s6270 + $0xb0] sm:$0xff]
      %v6294 = vld [vmem:[%s6270 + $0xb8] sm:$0x7f]
      %v6295 = vld [vmem:[%s6270 + $0xc0] sm:$0xff]
      %v6296 = vld [vmem:[%s6270 + $0xc8] sm:$0x7f]
      %v6297 = vld [vmem:[%s6270 + $0xd0] sm:$0xff]
      %v6298 = vld [vmem:[%s6270 + $0xd8] sm:$0x7f]
      %v6299 = vld [vmem:[%s6270 + $0xe0] sm:$0xff]
      %v6300 = vld [vmem:[%s6270 + $0xe8] sm:$0x7f]
      %v6331 = vrot.slane %v6114, 1
      %v6332 = vrot.slane %v6119, 1
      %v6333 = vsel %vm4197, %v6331, %v6332
      %v6334 = vrot.slane %v6124, 1
      %v6335 = vrot.slane %v6129, 1
      %v6336 = vsel %vm4197, %v6334, %v6335
      %v6337 = vrot.slane %v6134, 1
      %v6338 = vrot.slane %v6139, 1
      %v6339 = vsel %vm4197, %v6337, %v6338
      %v6340 = vrot.slane %v6144, 1
      %v6341 = vrot.slane %v6149, 1
      %v6342 = vsel %vm4197, %v6340, %v6341
      %v6343 = vrot.slane %v6154, 1
      %v6344 = vrot.slane %v6159, 1
      %v6345 = vsel %vm4197, %v6343, %v6344
      %v6346 = vrot.slane %v6164, 1
      %v6347 = vrot.slane %v6169, 1
      %v6348 = vsel %vm4197, %v6346, %v6347
      %v6349 = vrot.slane %v6174, 1
      %v6350 = vrot.slane %v6179, 1
      %v6351 = vsel %vm4197, %v6349, %v6350
      %v6352 = vrot.slane %v6184, 1
      %v6353 = vrot.slane %v6189, 1
      %v6354 = vsel %vm4197, %v6352, %v6353
      %v6355 = vrot.slane %v6194, 1
      %v6356 = vrot.slane %v6199, 1
      %v6357 = vsel %vm4197, %v6355, %v6356
      %v6358 = vrot.slane %v6204, 1
      %v6359 = vrot.slane %v6209, 1
      %v6360 = vsel %vm4197, %v6358, %v6359
      %v6361 = vrot.slane %v6214, 1
      %v6362 = vrot.slane %v6219, 1
      %v6363 = vsel %vm4197, %v6361, %v6362
      %v6364 = vrot.slane %v6224, 1
      %v6365 = vrot.slane %v6229, 1
      %v6366 = vsel %vm4197, %v6364, %v6365
      %v6367 = vrot.slane %v6234, 1
      %v6368 = vrot.slane %v6239, 1
      %v6369 = vsel %vm4197, %v6367, %v6368
      %v6370 = vrot.slane %v6244, 1
      %v6371 = vrot.slane %v6249, 1
      %v6372 = vsel %vm4197, %v6370, %v6371
      %v6373 = vrot.slane %v6254, 1
      %v6374 = vrot.slane %v6259, 1
      %v6375 = vsel %vm4197, %v6373, %v6374
      %v6406 = vsub.f32 %v6271, %v6333
      %v6407 = vsub.f32 %v6272, %v6332
      %v6408 = vsub.f32 %v6273, %v6336
      %v6409 = vsub.f32 %v6274, %v6335
      %v6410 = vsub.f32 %v6275, %v6339
      %v6411 = vsub.f32 %v6276, %v6338
      %v6412 = vsub.f32 %v6277, %v6342
      %v6413 = vsub.f32 %v6278, %v6341
      %v6414 = vsub.f32 %v6279, %v6345
      %v6415 = vsub.f32 %v6280, %v6344
      %v6416 = vsub.f32 %v6281, %v6348
      %v6417 = vsub.f32 %v6282, %v6347
      %v6418 = vsub.f32 %v6283, %v6351
      %v6419 = vsub.f32 %v6284, %v6350
      %v6420 = vsub.f32 %v6285, %v6354
      %v6421 = vsub.f32 %v6286, %v6353
      %v6422 = vsub.f32 %v6287, %v6357
      %v6423 = vsub.f32 %v6288, %v6356
      %v6424 = vsub.f32 %v6289, %v6360
      %v6425 = vsub.f32 %v6290, %v6359
      %v6426 = vsub.f32 %v6291, %v6363
      %v6427 = vsub.f32 %v6292, %v6362
      %v6428 = vsub.f32 %v6293, %v6366
      %v6429 = vsub.f32 %v6294, %v6365
      %v6430 = vsub.f32 %v6295, %v6369
      %v6431 = vsub.f32 %v6296, %v6368
      %v6432 = vsub.f32 %v6297, %v6372
      %v6433 = vsub.f32 %v6298, %v6371
      %v6434 = vsub.f32 %v6299, %v6375
      %v6435 = vsub.f32 %v6300, %v6374
      %6436 = vst.msk [vmem:[%s6270] sm:$0xff] %vm292, %v6406
      %6437 = vst.msk [vmem:[%s6270 + $0x8] sm:$0x7f] %vm4304, %v6407
      %6438 = vst.msk [vmem:[%s6270 + $0x10] sm:$0xff] %vm292, %v6408
      %6439 = vst.msk [vmem:[%s6270 + $0x18] sm:$0x7f] %vm4304, %v6409
      %6440 = vst.msk [vmem:[%s6270 + $0x20] sm:$0xff] %vm292, %v6410
      %6441 = vst.msk [vmem:[%s6270 + $0x28] sm:$0x7f] %vm4304, %v6411
      %6442 = vst.msk [vmem:[%s6270 + $0x30] sm:$0xff] %vm292, %v6412
      %6443 = vst.msk [vmem:[%s6270 + $0x38] sm:$0x7f] %vm4304, %v6413
      %6444 = vst.msk [vmem:[%s6270 + $0x40] sm:$0xff] %vm292, %v6414
      %6445 = vst.msk [vmem:[%s6270 + $0x48] sm:$0x7f] %vm4304, %v6415
      %6446 = vst.msk [vmem:[%s6270 + $0x50] sm:$0xff] %vm292, %v6416
      %6447 = vst.msk [vmem:[%s6270 + $0x58] sm:$0x7f] %vm4304, %v6417
      %6448 = vst.msk [vmem:[%s6270 + $0x60] sm:$0xff] %vm292, %v6418
      %6449 = vst.msk [vmem:[%s6270 + $0x68] sm:$0x7f] %vm4304, %v6419
      %6450 = vst.msk [vmem:[%s6270 + $0x70] sm:$0xff] %vm292, %v6420
      %6451 = vst.msk [vmem:[%s6270 + $0x78] sm:$0x7f] %vm4304, %v6421
      %6452 = vst.msk [vmem:[%s6270 + $0x80] sm:$0xff] %vm292, %v6422
      %6453 = vst.msk [vmem:[%s6270 + $0x88] sm:$0x7f] %vm4304, %v6423
      %6454 = vst.msk [vmem:[%s6270 + $0x90] sm:$0xff] %vm292, %v6424
      %6455 = vst.msk [vmem:[%s6270 + $0x98] sm:$0x7f] %vm4304, %v6425
      %6456 = vst.msk [vmem:[%s6270 + $0xa0] sm:$0xff] %vm292, %v6426
      %6457 = vst.msk [vmem:[%s6270 + $0xa8] sm:$0x7f] %vm4304, %v6427
      %6458 = vst.msk [vmem:[%s6270 + $0xb0] sm:$0xff] %vm292, %v6428
      %6459 = vst.msk [vmem:[%s6270 + $0xb8] sm:$0x7f] %vm4304, %v6429
      %6460 = vst.msk [vmem:[%s6270 + $0xc0] sm:$0xff] %vm292, %v6430
      %6461 = vst.msk [vmem:[%s6270 + $0xc8] sm:$0x7f] %vm4304, %v6431
      %6462 = vst.msk [vmem:[%s6270 + $0xd0] sm:$0xff] %vm292, %v6432
      %6463 = vst.msk [vmem:[%s6270 + $0xd8] sm:$0x7f] %vm4304, %v6433
      %6464 = vst.msk [vmem:[%s6270 + $0xe0] sm:$0xff] %vm292, %v6434
      %6465 = vst.msk [vmem:[%s6270 + $0xe8] sm:$0x7f] %vm4304, %v6435
      %s6466 = scalar_lea.vmem %s3, 56
      %v6467 = vld [vmem:[%s6466] sm:$0xff]
      %6468 = vmatprep.subr.mxu0 0.0
      %6469 = vmatpush1.msra.mxu0 %v6467
      %6470 = vmatprep.subr.mxu0 0.0
      %6471 = vmatpush1.msra.mxu0 0.0
      %6472 = vmatprep.subr.mxu0 0.0
      %6473 = vmatpush1.msra.mxu0 0.0
      %6474 = vmatprep.subr.mxu0 0.0
      %6475 = vmatpush1.msra.mxu0 0.0
      %6476 = vmatprep.subr.mxu0 0.0
      %6477 = vmatpush1.msra.mxu0 0.0
      %6478 = vmatprep.subr.mxu0 0.0
      %6479 = vmatpush1.msra.mxu0 0.0
      %6480 = vmatprep.subr.mxu0 0.0
      %6481 = vmatpush1.msra.mxu0 0.0
      %6482 = vmatprep.subr.mxu0 0.0
      %6483 = vmatpush1.msra.mxu0 0.0
      %6484 = vmatprep.subr.mxu0 0.0
      %6485 = vmatpush1.msra.mxu0 0.0
      %6486 = vmatprep.subr.mxu0 0.0
      %6487 = vmatpush1.msra.mxu0 0.0
      %6488 = vmatprep.subr.mxu0 0.0
      %6489 = vmatpush1.msra.mxu0 0.0
      %6490 = vmatprep.subr.mxu0 0.0
      %6491 = vmatpush1.msra.mxu0 0.0
      %6492 = vmatprep.subr.mxu0 0.0
      %6493 = vmatpush1.msra.mxu0 0.0
      %6494 = vmatprep.subr.mxu0 0.0
      %6495 = vmatpush1.msra.mxu0 0.0
      %6496 = vmatprep.subr.mxu0 0.0
      %6497 = vmatpush1.msra.mxu0 0.0
      %6498 = vmatprep.subr.mxu0 0.0
      %6499 = vmatpush1.msra.mxu0 0.0
      %6500 = vmatprep.subr.mxu0 0.0
      %6501 = vmatpush1.msra.mxu0 0.0
      %6502 = vmatprep.subr.mxu0 0.0
      %6503 = vmatpush1.msra.mxu0 0.0
      %6504 = vmatprep.subr.mxu0 0.0
      %6505 = vmatpush1.msra.mxu0 0.0
      %6506 = vmatprep.subr.mxu0 0.0
      %6507 = vmatpush1.msra.mxu0 0.0
      %6508 = vmatprep.subr.mxu0 0.0
      %6509 = vmatpush1.msra.mxu0 0.0
      %6510 = vmatprep.subr.mxu0 0.0
      %6511 = vmatpush1.msra.mxu0 0.0
      %6512 = vmatprep.subr.mxu0 0.0
      %6513 = vmatpush1.msra.mxu0 0.0
      %6514 = vmatprep.subr.mxu0 0.0
      %6515 = vmatpush1.msra.mxu0 0.0
      %6516 = vmatprep.subr.mxu0 0.0
      %6517 = vmatpush1.msra.mxu0 0.0
      %6518 = vmatprep.subr.mxu0 0.0
      %6519 = vmatpush1.msra.mxu0 0.0
      %6520 = vmatprep.subr.mxu0 0.0
      %6521 = vmatpush1.msra.mxu0 0.0
      %6522 = vmatprep.subr.mxu0 0.0
      %6523 = vmatpush1.msra.mxu0 0.0
      %6524 = vmatprep.subr.mxu0 0.0
      %6525 = vmatpush1.msra.mxu0 0.0
      %6526 = vmatprep.subr.mxu0 0.0
      %6527 = vmatpush1.msra.mxu0 0.0
      %6528 = vmatprep.subr.mxu0 0.0
      %6529 = vmatpush1.msra.mxu0 0.0
      %6530 = vmatprep.subr.mxu0 0.0
      %6531 = vmatpush1.msra.mxu0 0.0
      %6532 = vmatprep.mubr.f32.mxu0 0.0
      %6533 = vmatmul.mubr.f32.gmra.mrb[0].mxu0 %v3819
      %v6534 = vpop.f32.mrb[0].mxu0
      %v6535 = vadd.f32 0.0, %v6534
      %v6536 = vpop.f32.mrb[0].mxu0
      %6537 = vmatprep.mubr.f32.mxu0 0.0
      %6538 = vmatmul.mubr.f32.gmra.mrb[0].mxu0 %v3822
      %v6539 = vpop.f32.mrb[0].mxu0
      %v6540 = vadd.f32 0.0, %v6539
      %v6541 = vpop.f32.mrb[0].mxu0
      %6542 = vmatprep.mubr.f32.mxu0 0.0
      %6543 = vmatmul.mubr.f32.gmra.mrb[0].mxu0 %v3825
      %v6544 = vpop.f32.mrb[0].mxu0
      %v6545 = vadd.f32 0.0, %v6544
      %v6546 = vpop.f32.mrb[0].mxu0
      %6547 = vmatprep.mubr.f32.mxu0 0.0
      %6548 = vmatmul.mubr.f32.gmra.mrb[0].mxu0 %v3828
      %v6549 = vpop.f32.mrb[0].mxu0
      %v6550 = vadd.f32 0.0, %v6549
      %v6551 = vpop.f32.mrb[0].mxu0
      %6552 = vmatprep.mubr.f32.mxu0 0.0
      %6553 = vmatmul.mubr.f32.gmra.mrb[0].mxu0 %v3831
      %v6554 = vpop.f32.mrb[0].mxu0
      %v6555 = vadd.f32 0.0, %v6554
      %v6556 = vpop.f32.mrb[0].mxu0
      %6557 = vmatprep.mubr.f32.mxu0 0.0
      %6558 = vmatmul.mubr.f32.gmra.mrb[0].mxu0 %v3834
      %v6559 = vpop.f32.mrb[0].mxu0
      %v6560 = vadd.f32 0.0, %v6559
      %v6561 = vpop.f32.mrb[0].mxu0
      %6562 = vmatprep.mubr.f32.mxu0 0.0
      %6563 = vmatmul.mubr.f32.gmra.mrb[0].mxu0 %v3837
      %v6564 = vpop.f32.mrb[0].mxu0
      %v6565 = vadd.f32 0.0, %v6564
      %v6566 = vpop.f32.mrb[0].mxu0
      %6567 = vmatprep.mubr.f32.mxu0 0.0
      %6568 = vmatmul.mubr.f32.gmra.mrb[0].mxu0 %v3840
      %v6569 = vpop.f32.mrb[0].mxu0
      %v6570 = vadd.f32 0.0, %v6569
      %v6571 = vpop.f32.mrb[0].mxu0
      %6572 = vmatprep.mubr.f32.mxu0 0.0
      %6573 = vmatmul.mubr.f32.gmra.mrb[0].mxu0 %v3843
      %v6574 = vpop.f32.mrb[0].mxu0
      %v6575 = vadd.f32 0.0, %v6574
      %v6576 = vpop.f32.mrb[0].mxu0
      %6577 = vmatprep.mubr.f32.mxu0 0.0
      %6578 = vmatmul.mubr.f32.gmra.mrb[0].mxu0 %v3846
      %v6579 = vpop.f32.mrb[0].mxu0
      %v6580 = vadd.f32 0.0, %v6579
      %v6581 = vpop.f32.mrb[0].mxu0
      %6582 = vmatprep.mubr.f32.mxu0 0.0
      %6583 = vmatmul.mubr.f32.gmra.mrb[0].mxu0 %v3849
      %v6584 = vpop.f32.mrb[0].mxu0
      %v6585 = vadd.f32 0.0, %v6584
      %v6586 = vpop.f32.mrb[0].mxu0
      %6587 = vmatprep.mubr.f32.mxu0 0.0
      %6588 = vmatmul.mubr.f32.gmra.mrb[0].mxu0 %v3852
      %v6589 = vpop.f32.mrb[0].mxu0
      %v6590 = vadd.f32 0.0, %v6589
      %v6591 = vpop.f32.mrb[0].mxu0
      %6592 = vmatprep.mubr.f32.mxu0 0.0
      %6593 = vmatmul.mubr.f32.gmra.mrb[0].mxu0 %v3855
      %v6594 = vpop.f32.mrb[0].mxu0
      %v6595 = vadd.f32 0.0, %v6594
      %v6596 = vpop.f32.mrb[0].mxu0
      %6597 = vmatprep.mubr.f32.mxu0 0.0
      %6598 = vmatmul.mubr.f32.gmra.mrb[0].mxu0 %v3858
      %v6599 = vpop.f32.mrb[0].mxu0
      %v6600 = vadd.f32 0.0, %v6599
      %v6601 = vpop.f32.mrb[0].mxu0
      %6602 = vmatprep.mubr.f32.mxu0 0.0
      %6603 = vmatmul.mubr.f32.gmra.mrb[0].mxu0 %v3861
      %v6604 = vpop.f32.mrb[0].mxu0
      %v6605 = vadd.f32 0.0, %v6604
      %v6606 = vpop.f32.mrb[0].mxu0
      %6607 = vmatprep.mubr.f32.mxu0 0.0
      %6608 = vmatmul.mubr.f32.gmra.mrb[0].mxu0 %v3864
      %v6609 = vpop.f32.mrb[0].mxu0
      %v6610 = vadd.f32 0.0, %v6609
      %v6611 = vpop.f32.mrb[0].mxu0
      %6612 = vmatprep.mubr.f32.mxu0 0.0
      %6613 = vmatmul.mubr.f32.gmra.mrb[0].mxu0 %v3867
      %v6614 = vpop.f32.mrb[0].mxu0
      %v6615 = vadd.f32 0.0, %v6614
      %v6616 = vpop.f32.mrb[0].mxu0
      %6617 = vmatprep.mubr.f32.mxu0 0.0
      %6618 = vmatmul.mubr.f32.gmra.mrb[0].mxu0 %v3870
      %v6619 = vpop.f32.mrb[0].mxu0
      %v6620 = vadd.f32 0.0, %v6619
      %v6621 = vpop.f32.mrb[0].mxu0
      %6622 = vmatprep.mubr.f32.mxu0 0.0
      %6623 = vmatmul.mubr.f32.gmra.mrb[0].mxu0 %v3873
      %v6624 = vpop.f32.mrb[0].mxu0
      %v6625 = vadd.f32 0.0, %v6624
      %v6626 = vpop.f32.mrb[0].mxu0
      %6627 = vmatprep.mubr.f32.mxu0 0.0
      %6628 = vmatmul.mubr.f32.gmra.mrb[0].mxu0 %v3876
      %v6629 = vpop.f32.mrb[0].mxu0
      %v6630 = vadd.f32 0.0, %v6629
      %v6631 = vpop.f32.mrb[0].mxu0
      %6632 = vmatprep.mubr.f32.mxu0 0.0
      %6633 = vmatmul.mubr.f32.gmra.mrb[0].mxu0 %v3879
      %v6634 = vpop.f32.mrb[0].mxu0
      %v6635 = vadd.f32 0.0, %v6634
      %v6636 = vpop.f32.mrb[0].mxu0
      %6637 = vmatprep.mubr.f32.mxu0 0.0
      %6638 = vmatmul.mubr.f32.gmra.mrb[0].mxu0 %v3882
      %v6639 = vpop.f32.mrb[0].mxu0
      %v6640 = vadd.f32 0.0, %v6639
      %v6641 = vpop.f32.mrb[0].mxu0
      %6642 = vmatprep.mubr.f32.mxu0 0.0
      %6643 = vmatmul.mubr.f32.gmra.mrb[0].mxu0 %v3885
      %v6644 = vpop.f32.mrb[0].mxu0
      %v6645 = vadd.f32 0.0, %v6644
      %v6646 = vpop.f32.mrb[0].mxu0
      %6647 = vmatprep.mubr.f32.mxu0 0.0
      %6648 = vmatmul.mubr.f32.gmra.mrb[0].mxu0 %v3888
      %v6649 = vpop.f32.mrb[0].mxu0
      %v6650 = vadd.f32 0.0, %v6649
      %v6651 = vpop.f32.mrb[0].mxu0
      %6652 = vmatprep.mubr.f32.mxu0 0.0
      %6653 = vmatmul.mubr.f32.gmra.mrb[0].mxu0 %v3891
      %v6654 = vpop.f32.mrb[0].mxu0
      %v6655 = vadd.f32 0.0, %v6654
      %v6656 = vpop.f32.mrb[0].mxu0
      %6657 = vmatprep.mubr.f32.mxu0 0.0
      %6658 = vmatmul.mubr.f32.gmra.mrb[0].mxu0 %v3894
      %v6659 = vpop.f32.mrb[0].mxu0
      %v6660 = vadd.f32 0.0, %v6659
      %v6661 = vpop.f32.mrb[0].mxu0
      %6662 = vmatprep.mubr.f32.mxu0 0.0
      %6663 = vmatmul.mubr.f32.gmra.mrb[0].mxu0 %v3897
      %v6664 = vpop.f32.mrb[0].mxu0
      %v6665 = vadd.f32 0.0, %v6664
      %v6666 = vpop.f32.mrb[0].mxu0
      %6667 = vmatprep.mubr.f32.mxu0 0.0
      %6668 = vmatmul.mubr.f32.gmra.mrb[0].mxu0 %v3900
      %v6669 = vpop.f32.mrb[0].mxu0
      %v6670 = vadd.f32 0.0, %v6669
      %v6671 = vpop.f32.mrb[0].mxu0
      %6672 = vmatprep.mubr.f32.mxu0 0.0
      %6673 = vmatmul.mubr.f32.gmra.mrb[0].mxu0 %v3903
      %v6674 = vpop.f32.mrb[0].mxu0
      %v6675 = vadd.f32 0.0, %v6674
      %v6676 = vpop.f32.mrb[0].mxu0
      %6677 = vmatprep.mubr.f32.mxu0 0.0
      %6678 = vmatmul.mubr.f32.gmra.mrb[0].mxu0 %v3906
      %v6679 = vpop.f32.mrb[0].mxu0
      %v6680 = vadd.f32 0.0, %v6679
      %v6681 = vpop.f32.mrb[0].mxu0
      %6682 = vmatprep.mubr.f32.mxu0 0.0
      %6683 = vmatmul.mubr.f32.gmra.mrb[0].mxu0 %v3909
      %v6684 = vpop.f32.mrb[0].mxu0
      %v6685 = vpop.f32.mrb[0].mxu0
      %6686 = vmatprep.mubr.f32.mxu0 0.0
      %6687 = vmatmul.mubr.f32.gmra.mrb[0].mxu0 %v3912
      %v6688 = vpop.f32.mrb[0].mxu0
      %v6689 = vpop.f32.mrb[0].mxu0
      %6690 = vdwg.mxu0
      %v6691 = vld [vmem:[%s6270] sm:$0xff]
      %v6692 = vld [vmem:[%s6270 + $0x8] sm:$0xff]
      %v6693 = vld [vmem:[%s6270 + $0x10] sm:$0xff]
      %v6694 = vld [vmem:[%s6270 + $0x18] sm:$0xff]
      %v6695 = vld [vmem:[%s6270 + $0x20] sm:$0xff]
      %v6696 = vld [vmem:[%s6270 + $0x28] sm:$0xff]
      %v6697 = vld [vmem:[%s6270 + $0x30] sm:$0xff]
      %v6698 = vld [vmem:[%s6270 + $0x38] sm:$0xff]
      %v6699 = vld [vmem:[%s6270 + $0x40] sm:$0xff]
      %v6700 = vld [vmem:[%s6270 + $0x48] sm:$0xff]
      %v6701 = vld [vmem:[%s6270 + $0x50] sm:$0xff]
      %v6702 = vld [vmem:[%s6270 + $0x58] sm:$0xff]
      %v6703 = vld [vmem:[%s6270 + $0x60] sm:$0xff]
      %v6704 = vld [vmem:[%s6270 + $0x68] sm:$0xff]
      %v6705 = vld [vmem:[%s6270 + $0x70] sm:$0xff]
      %v6706 = vld [vmem:[%s6270 + $0x78] sm:$0xff]
      %v6707 = vld [vmem:[%s6270 + $0x80] sm:$0xff]
      %v6708 = vld [vmem:[%s6270 + $0x88] sm:$0xff]
      %v6709 = vld [vmem:[%s6270 + $0x90] sm:$0xff]
      %v6710 = vld [vmem:[%s6270 + $0x98] sm:$0xff]
      %v6711 = vld [vmem:[%s6270 + $0xa0] sm:$0xff]
      %v6712 = vld [vmem:[%s6270 + $0xa8] sm:$0xff]
      %v6713 = vld [vmem:[%s6270 + $0xb0] sm:$0xff]
      %v6714 = vld [vmem:[%s6270 + $0xb8] sm:$0xff]
      %v6715 = vld [vmem:[%s6270 + $0xc0] sm:$0xff]
      %v6716 = vld [vmem:[%s6270 + $0xc8] sm:$0xff]
      %v6717 = vld [vmem:[%s6270 + $0xd0] sm:$0xff]
      %v6718 = vld [vmem:[%s6270 + $0xd8] sm:$0xff]
      %v6719 = vld [vmem:[%s6270 + $0xe0] sm:$0xff]
      %v6720 = vld [vmem:[%s6270 + $0xe8] sm:$0xff]
      %v6721 = vsub.f32 %v6691, %v6535
      %v6722 = vsub.f32 %v6692, %v6540
      %v6723 = vsub.f32 %v6693, %v6545
      %v6724 = vsub.f32 %v6694, %v6550
      %v6725 = vsub.f32 %v6695, %v6555
      %v6726 = vsub.f32 %v6696, %v6560
      %v6727 = vsub.f32 %v6697, %v6565
      %v6728 = vsub.f32 %v6698, %v6570
      %v6729 = vsub.f32 %v6699, %v6575
      %v6730 = vsub.f32 %v6700, %v6580
      %v6731 = vsub.f32 %v6701, %v6585
      %v6732 = vsub.f32 %v6702, %v6590
      %v6733 = vsub.f32 %v6703, %v6595
      %v6734 = vsub.f32 %v6704, %v6600
      %v6735 = vsub.f32 %v6705, %v6605
      %v6736 = vsub.f32 %v6706, %v6610
      %v6737 = vsub.f32 %v6707, %v6615
      %v6738 = vsub.f32 %v6708, %v6620
      %v6739 = vsub.f32 %v6709, %v6625
      %v6740 = vsub.f32 %v6710, %v6630
      %v6741 = vsub.f32 %v6711, %v6635
      %v6742 = vsub.f32 %v6712, %v6640
      %v6743 = vsub.f32 %v6713, %v6645
      %v6744 = vsub.f32 %v6714, %v6650
      %v6745 = vsub.f32 %v6715, %v6655
      %v6746 = vsub.f32 %v6716, %v6660
      %v6747 = vsub.f32 %v6717, %v6665
      %v6748 = vsub.f32 %v6718, %v6670
      %v6749 = vsub.f32 %v6719, %v6675
      %v6750 = vsub.f32 %v6720, %v6680
      %6751 = vst.msk [vmem:[%s6270] sm:$0xff] %vm292, %v6721
      %6752 = vst.msk [vmem:[%s6270 + $0x8] sm:$0xff] %vm292, %v6722
      %6753 = vst.msk [vmem:[%s6270 + $0x10] sm:$0xff] %vm292, %v6723
      %6754 = vst.msk [vmem:[%s6270 + $0x18] sm:$0xff] %vm292, %v6724
      %6755 = vst.msk [vmem:[%s6270 + $0x20] sm:$0xff] %vm292, %v6725
      %6756 = vst.msk [vmem:[%s6270 + $0x28] sm:$0xff] %vm292, %v6726
      %6757 = vst.msk [vmem:[%s6270 + $0x30] sm:$0xff] %vm292, %v6727
      %6758 = vst.msk [vmem:[%s6270 + $0x38] sm:$0xff] %vm292, %v6728
      %6759 = vst.msk [vmem:[%s6270 + $0x40] sm:$0xff] %vm292, %v6729
      %6760 = vst.msk [vmem:[%s6270 + $0x48] sm:$0xff] %vm292, %v6730
      %6761 = vst.msk [vmem:[%s6270 + $0x50] sm:$0xff] %vm292, %v6731
      %6762 = vst.msk [vmem:[%s6270 + $0x58] sm:$0xff] %vm292, %v6732
      %6763 = vst.msk [vmem:[%s6270 + $0x60] sm:$0xff] %vm292, %v6733
      %6764 = vst.msk [vmem:[%s6270 + $0x68] sm:$0xff] %vm292, %v6734
      %6765 = vst.msk [vmem:[%s6270 + $0x70] sm:$0xff] %vm292, %v6735
      %6766 = vst.msk [vmem:[%s6270 + $0x78] sm:$0xff] %vm292, %v6736
      %6767 = vst.msk [vmem:[%s6270 + $0x80] sm:$0xff] %vm292, %v6737
      %6768 = vst.msk [vmem:[%s6270 + $0x88] sm:$0xff] %vm292, %v6738
      %6769 = vst.msk [vmem:[%s6270 + $0x90] sm:$0xff] %vm292, %v6739
      %6770 = vst.msk [vmem:[%s6270 + $0x98] sm:$0xff] %vm292, %v6740
      %6771 = vst.msk [vmem:[%s6270 + $0xa0] sm:$0xff] %vm292, %v6741
      %6772 = vst.msk [vmem:[%s6270 + $0xa8] sm:$0xff] %vm292, %v6742
      %6773 = vst.msk [vmem:[%s6270 + $0xb0] sm:$0xff] %vm292, %v6743
      %6774 = vst.msk [vmem:[%s6270 + $0xb8] sm:$0xff] %vm292, %v6744
      %6775 = vst.msk [vmem:[%s6270 + $0xc0] sm:$0xff] %vm292, %v6745
      %6776 = vst.msk [vmem:[%s6270 + $0xc8] sm:$0xff] %vm292, %v6746
      %6777 = vst.msk [vmem:[%s6270 + $0xd0] sm:$0xff] %vm292, %v6747
      %6778 = vst.msk [vmem:[%s6270 + $0xd8] sm:$0xff] %vm292, %v6748
      %6779 = vst.msk [vmem:[%s6270 + $0xe0] sm:$0xff] %vm292, %v6749
      %6780 = vst.msk [vmem:[%s6270 + $0xe8] sm:$0xff] %vm292, %v6750
      %s6781 = scalar_lea.vmem %s3, 64
      %v6782 = vld [vmem:[%s6781] sm:$0xff]
      %6783 = vmatprep.subr.mxu0 0.0
      %6784 = vmatpush1.msra.mxu0 %v6782
      %6785 = vmatprep.subr.mxu0 0.0
      %6786 = vmatpush1.msra.mxu0 0.0
      %6787 = vmatprep.subr.mxu0 0.0
      %6788 = vmatpush1.msra.mxu0 0.0
      %6789 = vmatprep.subr.mxu0 0.0
      %6790 = vmatpush1.msra.mxu0 0.0
      %6791 = vmatprep.subr.mxu0 0.0
      %6792 = vmatpush1.msra.mxu0 0.0
      %6793 = vmatprep.subr.mxu0 0.0
      %6794 = vmatpush1.msra.mxu0 0.0
      %6795 = vmatprep.subr.mxu0 0.0
      %6796 = vmatpush1.msra.mxu0 0.0
      %6797 = vmatprep.subr.mxu0 0.0
      %6798 = vmatpush1.msra.mxu0 0.0
      %6799 = vmatprep.subr.mxu0 0.0
      %6800 = vmatpush1.msra.mxu0 0.0
      %6801 = vmatprep.subr.mxu0 0.0
      %6802 = vmatpush1.msra.mxu0 0.0
      %6803 = vmatprep.subr.mxu0 0.0
      %6804 = vmatpush1.msra.mxu0 0.0
      %6805 = vmatprep.subr.mxu0 0.0
      %6806 = vmatpush1.msra.mxu0 0.0
      %6807 = vmatprep.subr.mxu0 0.0
      %6808 = vmatpush1.msra.mxu0 0.0
      %6809 = vmatprep.subr.mxu0 0.0
      %6810 = vmatpush1.msra.mxu0 0.0
      %6811 = vmatprep.subr.mxu0 0.0
      %6812 = vmatpush1.msra.mxu0 0.0
      %6813 = vmatprep.subr.mxu0 0.0
      %6814 = vmatpush1.msra.mxu0 0.0
      %6815 = vmatprep.subr.mxu0 0.0
      %6816 = vmatpush1.msra.mxu0 0.0
      %6817 = vmatprep.subr.mxu0 0.0
      %6818 = vmatpush1.msra.mxu0 0.0
      %6819 = vmatprep.subr.mxu0 0.0
      %6820 = vmatpush1.msra.mxu0 0.0
      %6821 = vmatprep.subr.mxu0 0.0
      %6822 = vmatpush1.msra.mxu0 0.0
      %6823 = vmatprep.subr.mxu0 0.0
      %6824 = vmatpush1.msra.mxu0 0.0
      %6825 = vmatprep.subr.mxu0 0.0
      %6826 = vmatpush1.msra.mxu0 0.0
      %6827 = vmatprep.subr.mxu0 0.0
      %6828 = vmatpush1.msra.mxu0 0.0
      %6829 = vmatprep.subr.mxu0 0.0
      %6830 = vmatpush1.msra.mxu0 0.0
      %6831 = vmatprep.subr.mxu0 0.0
      %6832 = vmatpush1.msra.mxu0 0.0
      %6833 = vmatprep.subr.mxu0 0.0
      %6834 = vmatpush1.msra.mxu0 0.0
      %6835 = vmatprep.subr.mxu0 0.0
      %6836 = vmatpush1.msra.mxu0 0.0
      %6837 = vmatprep.subr.mxu0 0.0
      %6838 = vmatpush1.msra.mxu0 0.0
      %6839 = vmatprep.subr.mxu0 0.0
      %6840 = vmatpush1.msra.mxu0 0.0
      %6841 = vmatprep.subr.mxu0 0.0
      %6842 = vmatpush1.msra.mxu0 0.0
      %6843 = vmatprep.subr.mxu0 0.0
      %6844 = vmatpush1.msra.mxu0 0.0
      %6845 = vmatprep.subr.mxu0 0.0
      %6846 = vmatpush1.msra.mxu0 0.0
      %6847 = vmatprep.mubr.f32.mxu0 0.0
      %6848 = vmatmul.mubr.f32.gmra.mrb[0].mxu0 %v3819
      %v6849 = vpop.f32.mrb[0].mxu0
      %v6850 = vadd.f32 0.0, %v6849
      %v6851 = vpop.f32.mrb[0].mxu0
      %6852 = vmatprep.mubr.f32.mxu0 0.0
      %6853 = vmatmul.mubr.f32.gmra.mrb[0].mxu0 %v3822
      %v6854 = vpop.f32.mrb[0].mxu0
      %v6855 = vadd.f32 0.0, %v6854
      %v6856 = vpop.f32.mrb[0].mxu0
      %6857 = vmatprep.mubr.f32.mxu0 0.0
      %6858 = vmatmul.mubr.f32.gmra.mrb[0].mxu0 %v3825
      %v6859 = vpop.f32.mrb[0].mxu0
      %v6860 = vadd.f32 0.0, %v6859
      %v6861 = vpop.f32.mrb[0].mxu0
      %6862 = vmatprep.mubr.f32.mxu0 0.0
      %6863 = vmatmul.mubr.f32.gmra.mrb[0].mxu0 %v3828
      %v6864 = vpop.f32.mrb[0].mxu0
      %v6865 = vadd.f32 0.0, %v6864
      %v6866 = vpop.f32.mrb[0].mxu0
      %6867 = vmatprep.mubr.f32.mxu0 0.0
      %6868 = vmatmul.mubr.f32.gmra.mrb[0].mxu0 %v3831
      %v6869 = vpop.f32.mrb[0].mxu0
      %v6870 = vadd.f32 0.0, %v6869
      %v6871 = vpop.f32.mrb[0].mxu0
      %6872 = vmatprep.mubr.f32.mxu0 0.0
      %6873 = vmatmul.mubr.f32.gmra.mrb[0].mxu0 %v3834
      %v6874 = vpop.f32.mrb[0].mxu0
      %v6875 = vadd.f32 0.0, %v6874
      %v6876 = vpop.f32.mrb[0].mxu0
      %6877 = vmatprep.mubr.f32.mxu0 0.0
      %6878 = vmatmul.mubr.f32.gmra.mrb[0].mxu0 %v3837
      %v6879 = vpop.f32.mrb[0].mxu0
      %v6880 = vadd.f32 0.0, %v6879
      %v6881 = vpop.f32.mrb[0].mxu0
      %6882 = vmatprep.mubr.f32.mxu0 0.0
      %6883 = vmatmul.mubr.f32.gmra.mrb[0].mxu0 %v3840
      %v6884 = vpop.f32.mrb[0].mxu0
      %v6885 = vadd.f32 0.0, %v6884
      %v6886 = vpop.f32.mrb[0].mxu0
      %6887 = vmatprep.mubr.f32.mxu0 0.0
      %6888 = vmatmul.mubr.f32.gmra.mrb[0].mxu0 %v3843
      %v6889 = vpop.f32.mrb[0].mxu0
      %v6890 = vadd.f32 0.0, %v6889
      %v6891 = vpop.f32.mrb[0].mxu0
      %6892 = vmatprep.mubr.f32.mxu0 0.0
      %6893 = vmatmul.mubr.f32.gmra.mrb[0].mxu0 %v3846
      %v6894 = vpop.f32.mrb[0].mxu0
      %v6895 = vadd.f32 0.0, %v6894
      %v6896 = vpop.f32.mrb[0].mxu0
      %6897 = vmatprep.mubr.f32.mxu0 0.0
      %6898 = vmatmul.mubr.f32.gmra.mrb[0].mxu0 %v3849
      %v6899 = vpop.f32.mrb[0].mxu0
      %v6900 = vadd.f32 0.0, %v6899
      %v6901 = vpop.f32.mrb[0].mxu0
      %6902 = vmatprep.mubr.f32.mxu0 0.0
      %6903 = vmatmul.mubr.f32.gmra.mrb[0].mxu0 %v3852
      %v6904 = vpop.f32.mrb[0].mxu0
      %v6905 = vadd.f32 0.0, %v6904
      %v6906 = vpop.f32.mrb[0].mxu0
      %6907 = vmatprep.mubr.f32.mxu0 0.0
      %6908 = vmatmul.mubr.f32.gmra.mrb[0].mxu0 %v3855
      %v6909 = vpop.f32.mrb[0].mxu0
      %v6910 = vadd.f32 0.0, %v6909
      %v6911 = vpop.f32.mrb[0].mxu0
      %6912 = vmatprep.mubr.f32.mxu0 0.0
      %6913 = vmatmul.mubr.f32.gmra.mrb[0].mxu0 %v3858
      %v6914 = vpop.f32.mrb[0].mxu0
      %v6915 = vadd.f32 0.0, %v6914
      %v6916 = vpop.f32.mrb[0].mxu0
      %6917 = vmatprep.mubr.f32.mxu0 0.0
      %6918 = vmatmul.mubr.f32.gmra.mrb[0].mxu0 %v3861
      %v6919 = vpop.f32.mrb[0].mxu0
      %v6920 = vadd.f32 0.0, %v6919
      %v6921 = vpop.f32.mrb[0].mxu0
      %6922 = vmatprep.mubr.f32.mxu0 0.0
      %6923 = vmatmul.mubr.f32.gmra.mrb[0].mxu0 %v3864
      %v6924 = vpop.f32.mrb[0].mxu0
      %v6925 = vadd.f32 0.0, %v6924
      %v6926 = vpop.f32.mrb[0].mxu0
      %6927 = vmatprep.mubr.f32.mxu0 0.0
      %6928 = vmatmul.mubr.f32.gmra.mrb[0].mxu0 %v3867
      %v6929 = vpop.f32.mrb[0].mxu0
      %v6930 = vadd.f32 0.0, %v6929
      %v6931 = vpop.f32.mrb[0].mxu0
      %6932 = vmatprep.mubr.f32.mxu0 0.0
      %6933 = vmatmul.mubr.f32.gmra.mrb[0].mxu0 %v3870
      %v6934 = vpop.f32.mrb[0].mxu0
      %v6935 = vadd.f32 0.0, %v6934
      %v6936 = vpop.f32.mrb[0].mxu0
      %6937 = vmatprep.mubr.f32.mxu0 0.0
      %6938 = vmatmul.mubr.f32.gmra.mrb[0].mxu0 %v3873
      %v6939 = vpop.f32.mrb[0].mxu0
      %v6940 = vadd.f32 0.0, %v6939
      %v6941 = vpop.f32.mrb[0].mxu0
      %6942 = vmatprep.mubr.f32.mxu0 0.0
      %6943 = vmatmul.mubr.f32.gmra.mrb[0].mxu0 %v3876
      %v6944 = vpop.f32.mrb[0].mxu0
      %v6945 = vadd.f32 0.0, %v6944
      %v6946 = vpop.f32.mrb[0].mxu0
      %6947 = vmatprep.mubr.f32.mxu0 0.0
      %6948 = vmatmul.mubr.f32.gmra.mrb[0].mxu0 %v3879
      %v6949 = vpop.f32.mrb[0].mxu0
      %v6950 = vadd.f32 0.0, %v6949
      %v6951 = vpop.f32.mrb[0].mxu0
      %6952 = vmatprep.mubr.f32.mxu0 0.0
      %6953 = vmatmul.mubr.f32.gmra.mrb[0].mxu0 %v3882
      %v6954 = vpop.f32.mrb[0].mxu0
      %v6955 = vadd.f32 0.0, %v6954
      %v6956 = vpop.f32.mrb[0].mxu0
      %6957 = vmatprep.mubr.f32.mxu0 0.0
      %6958 = vmatmul.mubr.f32.gmra.mrb[0].mxu0 %v3885
      %v6959 = vpop.f32.mrb[0].mxu0
      %v6960 = vadd.f32 0.0, %v6959
      %v6961 = vpop.f32.mrb[0].mxu0
      %6962 = vmatprep.mubr.f32.mxu0 0.0
      %6963 = vmatmul.mubr.f32.gmra.mrb[0].mxu0 %v3888
      %v6964 = vpop.f32.mrb[0].mxu0
      %v6965 = vadd.f32 0.0, %v6964
      %v6966 = vpop.f32.mrb[0].mxu0
      %6967 = vmatprep.mubr.f32.mxu0 0.0
      %6968 = vmatmul.mubr.f32.gmra.mrb[0].mxu0 %v3891
      %v6969 = vpop.f32.mrb[0].mxu0
      %v6970 = vadd.f32 0.0, %v6969
      %v6971 = vpop.f32.mrb[0].mxu0
      %6972 = vmatprep.mubr.f32.mxu0 0.0
      %6973 = vmatmul.mubr.f32.gmra.mrb[0].mxu0 %v3894
      %v6974 = vpop.f32.mrb[0].mxu0
      %v6975 = vadd.f32 0.0, %v6974
      %v6976 = vpop.f32.mrb[0].mxu0
      %6977 = vmatprep.mubr.f32.mxu0 0.0
      %6978 = vmatmul.mubr.f32.gmra.mrb[0].mxu0 %v3897
      %v6979 = vpop.f32.mrb[0].mxu0
      %v6980 = vadd.f32 0.0, %v6979
      %v6981 = vpop.f32.mrb[0].mxu0
      %6982 = vmatprep.mubr.f32.mxu0 0.0
      %6983 = vmatmul.mubr.f32.gmra.mrb[0].mxu0 %v3900
      %v6984 = vpop.f32.mrb[0].mxu0
      %v6985 = vadd.f32 0.0, %v6984
      %v6986 = vpop.f32.mrb[0].mxu0
      %6987 = vmatprep.mubr.f32.mxu0 0.0
      %6988 = vmatmul.mubr.f32.gmra.mrb[0].mxu0 %v3903
      %v6989 = vpop.f32.mrb[0].mxu0
      %v6990 = vadd.f32 0.0, %v6989
      %v6991 = vpop.f32.mrb[0].mxu0
      %6992 = vmatprep.mubr.f32.mxu0 0.0
      %6993 = vmatmul.mubr.f32.gmra.mrb[0].mxu0 %v3906
      %v6994 = vpop.f32.mrb[0].mxu0
      %v6995 = vadd.f32 0.0, %v6994
      %v6996 = vpop.f32.mrb[0].mxu0
      %6997 = vmatprep.mubr.f32.mxu0 0.0
      %6998 = vmatmul.mubr.f32.gmra.mrb[0].mxu0 %v3909
      %v6999 = vpop.f32.mrb[0].mxu0
      %v7000 = vpop.f32.mrb[0].mxu0
      %7001 = vmatprep.mubr.f32.mxu0 0.0
      %7002 = vmatmul.mubr.f32.gmra.mrb[0].mxu0 %v3912
      %v7003 = vpop.f32.mrb[0].mxu0
      %v7004 = vpop.f32.mrb[0].mxu0
      %7005 = vdwg.mxu0
      %v7006 = vld [vmem:[%s6270 + $0x1] sm:$0xff]
      %v7007 = vld [vmem:[%s6270 + $0x9] sm:$0x7f]
      %v7008 = vld [vmem:[%s6270 + $0x11] sm:$0xff]
      %v7009 = vld [vmem:[%s6270 + $0x19] sm:$0x7f]
      %v7010 = vld [vmem:[%s6270 + $0x21] sm:$0xff]
      %v7011 = vld [vmem:[%s6270 + $0x29] sm:$0x7f]
      %v7012 = vld [vmem:[%s6270 + $0x31] sm:$0xff]
      %v7013 = vld [vmem:[%s6270 + $0x39] sm:$0x7f]
      %v7014 = vld [vmem:[%s6270 + $0x41] sm:$0xff]
      %v7015 = vld [vmem:[%s6270 + $0x49] sm:$0x7f]
      %v7016 = vld [vmem:[%s6270 + $0x51] sm:$0xff]
      %v7017 = vld [vmem:[%s6270 + $0x59] sm:$0x7f]
      %v7018 = vld [vmem:[%s6270 + $0x61] sm:$0xff]
      %v7019 = vld [vmem:[%s6270 + $0x69] sm:$0x7f]
      %v7020 = vld [vmem:[%s6270 + $0x71] sm:$0xff]
      %v7021 = vld [vmem:[%s6270 + $0x79] sm:$0x7f]
      %v7022 = vld [vmem:[%s6270 + $0x81] sm:$0xff]
      %v7023 = vld [vmem:[%s6270 + $0x89] sm:$0x7f]
      %v7024 = vld [vmem:[%s6270 + $0x91] sm:$0xff]
      %v7025 = vld [vmem:[%s6270 + $0x99] sm:$0x7f]
      %v7026 = vld [vmem:[%s6270 + $0xa1] sm:$0xff]
      %v7027 = vld [vmem:[%s6270 + $0xa9] sm:$0x7f]
      %v7028 = vld [vmem:[%s6270 + $0xb1] sm:$0xff]
      %v7029 = vld [vmem:[%s6270 + $0xb9] sm:$0x7f]
      %v7030 = vld [vmem:[%s6270 + $0xc1] sm:$0xff]
      %v7031 = vld [vmem:[%s6270 + $0xc9] sm:$0x7f]
      %v7032 = vld [vmem:[%s6270 + $0xd1] sm:$0xff]
      %v7033 = vld [vmem:[%s6270 + $0xd9] sm:$0x7f]
      %v7034 = vld [vmem:[%s6270 + $0xe1] sm:$0xff]
      %v7035 = vld [vmem:[%s6270 + $0xe9] sm:$0x7f]
      %v7036 = vsub.f32 %v7006, %v6850
      %v7037 = vsub.f32 %v7007, %v6855
      %v7038 = vsub.f32 %v7008, %v6860
      %v7039 = vsub.f32 %v7009, %v6865
      %v7040 = vsub.f32 %v7010, %v6870
      %v7041 = vsub.f32 %v7011, %v6875
      %v7042 = vsub.f32 %v7012, %v6880
      %v7043 = vsub.f32 %v7013, %v6885
      %v7044 = vsub.f32 %v7014, %v6890
      %v7045 = vsub.f32 %v7015, %v6895
      %v7046 = vsub.f32 %v7016, %v6900
      %v7047 = vsub.f32 %v7017, %v6905
      %v7048 = vsub.f32 %v7018, %v6910
      %v7049 = vsub.f32 %v7019, %v6915
      %v7050 = vsub.f32 %v7020, %v6920
      %v7051 = vsub.f32 %v7021, %v6925
      %v7052 = vsub.f32 %v7022, %v6930
      %v7053 = vsub.f32 %v7023, %v6935
      %v7054 = vsub.f32 %v7024, %v6940
      %v7055 = vsub.f32 %v7025, %v6945
      %v7056 = vsub.f32 %v7026, %v6950
      %v7057 = vsub.f32 %v7027, %v6955
      %v7058 = vsub.f32 %v7028, %v6960
      %v7059 = vsub.f32 %v7029, %v6965
      %v7060 = vsub.f32 %v7030, %v6970
      %v7061 = vsub.f32 %v7031, %v6975
      %v7062 = vsub.f32 %v7032, %v6980
      %v7063 = vsub.f32 %v7033, %v6985
      %v7064 = vsub.f32 %v7034, %v6990
      %v7065 = vsub.f32 %v7035, %v6995
      %7066 = vst.msk [vmem:[%s6270 + $0x1] sm:$0xff] %vm292, %v7036
      %7067 = vst.msk [vmem:[%s6270 + $0x9] sm:$0x7f] %vm4304, %v7037
      %7068 = vst.msk [vmem:[%s6270 + $0x11] sm:$0xff] %vm292, %v7038
      %7069 = vst.msk [vmem:[%s6270 + $0x19] sm:$0x7f] %vm4304, %v7039
      %7070 = vst.msk [vmem:[%s6270 + $0x21] sm:$0xff] %vm292, %v7040
      %7071 = vst.msk [vmem:[%s6270 + $0x29] sm:$0x7f] %vm4304, %v7041
      %7072 = vst.msk [vmem:[%s6270 + $0x31] sm:$0xff] %vm292, %v7042
      %7073 = vst.msk [vmem:[%s6270 + $0x39] sm:$0x7f] %vm4304, %v7043
      %7074 = vst.msk [vmem:[%s6270 + $0x41] sm:$0xff] %vm292, %v7044
      %7075 = vst.msk [vmem:[%s6270 + $0x49] sm:$0x7f] %vm4304, %v7045
      %7076 = vst.msk [vmem:[%s6270 + $0x51] sm:$0xff] %vm292, %v7046
      %7077 = vst.msk [vmem:[%s6270 + $0x59] sm:$0x7f] %vm4304, %v7047
      %7078 = vst.msk [vmem:[%s6270 + $0x61] sm:$0xff] %vm292, %v7048
      %7079 = vst.msk [vmem:[%s6270 + $0x69] sm:$0x7f] %vm4304, %v7049
      %7080 = vst.msk [vmem:[%s6270 + $0x71] sm:$0xff] %vm292, %v7050
      %7081 = vst.msk [vmem:[%s6270 + $0x79] sm:$0x7f] %vm4304, %v7051
      %7082 = vst.msk [vmem:[%s6270 + $0x81] sm:$0xff] %vm292, %v7052
      %7083 = vst.msk [vmem:[%s6270 + $0x89] sm:$0x7f] %vm4304, %v7053
      %7084 = vst.msk [vmem:[%s6270 + $0x91] sm:$0xff] %vm292, %v7054
      %7085 = vst.msk [vmem:[%s6270 + $0x99] sm:$0x7f] %vm4304, %v7055
      %7086 = vst.msk [vmem:[%s6270 + $0xa1] sm:$0xff] %vm292, %v7056
      %7087 = vst.msk [vmem:[%s6270 + $0xa9] sm:$0x7f] %vm4304, %v7057
      %7088 = vst.msk [vmem:[%s6270 + $0xb1] sm:$0xff] %vm292, %v7058
      %7089 = vst.msk [vmem:[%s6270 + $0xb9] sm:$0x7f] %vm4304, %v7059
      %7090 = vst.msk [vmem:[%s6270 + $0xc1] sm:$0xff] %vm292, %v7060
      %7091 = vst.msk [vmem:[%s6270 + $0xc9] sm:$0x7f] %vm4304, %v7061
      %7092 = vst.msk [vmem:[%s6270 + $0xd1] sm:$0xff] %vm292, %v7062
      %7093 = vst.msk [vmem:[%s6270 + $0xd9] sm:$0x7f] %vm4304, %v7063
      %7094 = vst.msk [vmem:[%s6270 + $0xe1] sm:$0xff] %vm292, %v7064
      %7095 = vst.msk [vmem:[%s6270 + $0xe9] sm:$0x7f] %vm4304, %v7065
      %p7096 = scmp.lt.s32.totalorder %s16, 1
      %s7097 = scalar_select %p7096, %s16, 1
      %s7098 = smul.addr %s7097, 32
      %s7099 = smul.addr %s7098, 8
      %s7100 = scalar_lea.vmem %s5, %s7099
      // Predicated region
      $region41: #{sdp_lipschitz_conv_forward.1} parent=39 // pred_check
        %p7101 = pneg %p144
      $region42: #{sdp_lipschitz_conv_forward.1} parent=39 // pred_check_branch
        %7103 = sbr.rel (%p7101) target = $region44
      $region43: #{sdp_lipschitz_conv_forward.1} parent=39 // pred_region
        _
      $region44: #{sdp_lipschitz_conv_forward.1} parent=39 // pred_fallthru
        _
    $region40: #{sdp_lipschitz_conv_forward.1} parent=5 // pred_fallthru
      _
    %p7104 = scmp.le.s32.totalorder 2, %s11
    // Predicated region
    $region45: #{sdp_lipschitz_conv_forward.1} parent=5 // pred_check
      %p7105 = pneg %p7104
    $region46: #{sdp_lipschitz_conv_forward.1} parent=5 // pred_check_branch
      %7107 = sbr.rel (%p7105) target = $region48
    $region47: #{sdp_lipschitz_conv_forward.1} parent=5 // pred_region
      %s7108 = ssub.s32 %s11, 2
      // Predicated region
      $region49: #{sdp_lipschitz_conv_forward.1} parent=47 // pred_check
        %p7109 = pneg %p150
      $region50: #{sdp_lipschitz_conv_forward.1} parent=47 // pred_check_branch
        %7111 = sbr.rel (%p7109) target = $region52
      $region51: #{sdp_lipschitz_conv_forward.1} parent=47 // pred_region
        %p7112 = scmp.lt.s32.totalorder %s17, 1
        %s7113 = scalar_select %p7112, %s17, 1
        %s7114 = smul.addr %s7113, 32
        %s7115 = smul.addr %s7114, 8
        %s7116 = scalar_lea.vmem %s5, %s7115
      $region52: #{sdp_lipschitz_conv_forward.1} parent=47 // pred_fallthru
        _
    $region48: #{sdp_lipschitz_conv_forward.1} parent=5 // pred_fallthru
      _
  $region6: #{sdp_lipschitz_conv_forward.1} parent=0 // loop_footer
    %s15 = sadd.s32 1, %s11
  $region7: #{sdp_lipschitz_conv_forward.1} parent=0 // loop_footer_branch
    %10 = sbr.rel target = $region3
  $region8: #{sdp_lipschitz_conv_forward.1} parent=0 // loop_exit
    _

</llo_original>
